<compile_context>
chip_gen: v7x
topology: tpu7x:2x2x1
jax: 0.10.0
libtpu: 0.0.40
codegen_flags: <defaults>
</compile_context>

<pallas_src>
import jax
import jax.numpy as jnp
from jax.experimental import pallas as pl
from jax.experimental.pallas import tpu as pltpu

C = 16  # "c" from the PyTorch module


def _round_up(x, m):
    return (x + m - 1) // m * m


# ----------------------------------------------------------------------------
# Pallas kernel 1: fused matmul + bias + PReLU, tiled over the M (rows) axis.
#   lhs (bf16): (TM, K)    rhs (bf16): (K, Cout)   [resident across M tiles]
#   bias/alpha (f32): (1, Cout)                    out (f32): (TM, Cout)
# Identity activation == alpha of 1.0 (PReLU reduces to identity).
# ----------------------------------------------------------------------------
def _matmul_bias_prelu_kernel(lhs_ref, rhs_ref, bias_ref, alpha_ref, o_ref):
    acc = jnp.dot(lhs_ref[...], rhs_ref[...], preferred_element_type=jnp.float32)
    acc = acc + bias_ref[...]                       # (1, Cout) broadcast
    alpha = alpha_ref[...]                          # (1, Cout) broadcast
    o_ref[...] = jnp.where(acc >= 0.0, acc, alpha * acc)


def matmul_bias_prelu(lhs, rhs, bias, alpha, tm_max=512):
    M, K = lhs.shape
    _, N = rhs.shape
    # M tile: multiple of 16 (bf16 sublane packing), capped at tm_max rows so
    # double-buffered lhs/out tiles stay small in VMEM on all chips.
    TM = min(tm_max, _round_up(M, 16))
    Mp = _round_up(M, TM)
    if Mp != M:
        lhs = jnp.pad(lhs, ((0, Mp - M), (0, 0)))
    # bf16 MXU inputs (native MXU dtype on v5e/v6e/v7x), f32 accum + epilogue.
    lhs = lhs.astype(jnp.bfloat16)
    rhs = rhs.astype(jnp.bfloat16)
    bias = bias.astype(jnp.float32)
    alpha = alpha.astype(jnp.float32)
    out = pl.pallas_call(
        _matmul_bias_prelu_kernel,
        out_shape=jax.ShapeDtypeStruct((Mp, N), jnp.float32),
        grid=(Mp // TM,),
        in_specs=[
            pl.BlockSpec((TM, K), lambda i: (i, 0)),   # streamed over M
            pl.BlockSpec((K, N), lambda i: (0, 0)),    # weights resident
            pl.BlockSpec((1, N), lambda i: (0, 0)),    # bias resident
            pl.BlockSpec((1, N), lambda i: (0, 0)),    # alpha resident
        ],
        out_specs=pl.BlockSpec((TM, N), lambda i: (i, 0)),
        compiler_params=pltpu.CompilerParams(
            dimension_semantics=("parallel",),         # megacore sharding
        ),
    )(lhs, rhs, bias, alpha)
    return out[:M] if Mp != M else out


# ----------------------------------------------------------------------------
# Pallas kernel 2: conv2 (matmul+bias) + squeeze-excite + residual + PReLU,
# one batch sample per grid step.
#   lhs2 (bf16): (1, HW, 9*C)   w2 (bf16): (9*C, C)   b2 (f32): (1, C)
#   y    (f32) : (1, HW, C)     fc1: (C,16)  fc2: (16,C)  a1: (1,16)  a2: (1,C)
# ----------------------------------------------------------------------------
def _conv2_se_kernel(lhs_ref, y_ref, w2_ref, b2_ref, fc1_ref, fc2_ref,
                     a1_ref, a2_ref, o_ref):
    # conv2 as matmul + bias (no activation)
    x2 = jnp.dot(lhs_ref[0], w2_ref[...],
                 preferred_element_type=jnp.float32)            # (HW, C)
    x2 = x2 + b2_ref[...]                                       # (1, C) bcast
    # squeeze-excite: spatial mean -> fc1 -> PReLU(1) -> fc2 -> sigmoid
    m = jnp.mean(x2, axis=0, keepdims=True)                     # (1, C)
    h = jnp.dot(m, fc1_ref[...], preferred_element_type=jnp.float32)   # (1,16)
    a1 = a1_ref[...]
    h = jnp.where(h >= 0.0, h, a1 * h)                          # PReLU(1)
    s = jnp.dot(h, fc2_ref[...], preferred_element_type=jnp.float32)   # (1, C)
    s = jax.nn.sigmoid(s)
    # channel scale + residual + per-channel PReLU
    out = x2 * s + y_ref[0]                                     # (HW, C)
    a2 = a2_ref[...]                                            # (1, C)
    o_ref[0] = jnp.where(out >= 0.0, out, a2 * out)


def conv2_se_residual(lhs2, y, w2, b2, fc1, fc2, a_fc, a2):
    N, HW, K = lhs2.shape
    Cc = w2.shape[-1]
    lhs2 = lhs2.astype(jnp.bfloat16)
    w2 = w2.astype(jnp.bfloat16)
    return pl.pallas_call(
        _conv2_se_kernel,
        out_shape=jax.ShapeDtypeStruct((N, HW, Cc), jnp.float32),
        grid=(N,),
        in_specs=[
            pl.BlockSpec((1, HW, K), lambda n: (n, 0, 0)),   # im2col of conv1 out
            pl.BlockSpec((1, HW, Cc), lambda n: (n, 0, 0)),  # residual (conv0 out)
            pl.BlockSpec((K, Cc), lambda n: (0, 0)),         # conv2 weights resident
            pl.BlockSpec((1, Cc), lambda n: (0, 0)),
            pl.BlockSpec((Cc, 16), lambda n: (0, 0)),
            pl.BlockSpec((16, Cc), lambda n: (0, 0)),
            pl.BlockSpec((1, 16), lambda n: (0, 0)),
            pl.BlockSpec((1, Cc), lambda n: (0, 0)),
        ],
        out_specs=pl.BlockSpec((1, HW, Cc), lambda n: (n, 0, 0)),
        compiler_params=pltpu.CompilerParams(
            dimension_semantics=("parallel",)),
    )(lhs2, y.astype(jnp.float32), w2, b2.astype(jnp.float32),
      fc1.astype(jnp.float32), fc2.astype(jnp.float32),
      a_fc.astype(jnp.float32), a2.astype(jnp.float32))


# ----------------------------------------------------------------------------
# Conv3x3 (pad=1) im2col (JAX glue) feeding the fused Pallas matmul kernels.
# Column order is (dy, dx, cin), matching w.reshape(9*Cin, Cout) for HWIO.
# ----------------------------------------------------------------------------
# TODO(synk): move the 9-tap im2col gather into the kernel (halo-tile DMA with
# shifted in-VMEM reads) to avoid the 9x HBM expansion of the activation.
def im2col(x, stride):
    N, H, W, Cin = x.shape
    Ho = (H + 2 - 3) // stride + 1
    Wo = (W + 2 - 3) // stride + 1
    xp = jnp.pad(x, ((0, 0), (1, 1), (1, 1), (0, 0)))
    cols = []
    for dy in range(3):
        for dx in range(3):
            cols.append(
                xp[:, dy:dy + (Ho - 1) * stride + 1:stride,
                      dx:dx + (Wo - 1) * stride + 1:stride, :]
            )
    lhs = jnp.concatenate(cols, axis=-1).reshape(N * Ho * Wo, 9 * Cin)
    return lhs, (Ho, Wo)


# ----------------------------------------------------------------------------
# ResBlock (stride 2): conv0 | conv1 fused into one lane-dense matmul
# (shared stride-2 im2col lhs), then the fused conv2/SE/residual kernel.
# ----------------------------------------------------------------------------
def res_block(x, p):
    N, H, W, Cin = x.shape
    Cout = p["w1"].shape[-1]

    # --- fused conv0 (no bias / no act) + conv1 (bias + PReLU) ---
    lhs, (Ho, Wo) = im2col(x, stride=2)                       # (M, 9*Cin)
    w01 = jnp.concatenate(
        [p["w0"].reshape(9 * Cin, Cout), p["w1"].reshape(9 * Cin, Cout)],
        axis=-1)                                              # (9*Cin, 2*Cout)
    b01 = jnp.concatenate(
        [jnp.zeros((Cout,), jnp.float32), p["b1"]]).reshape(1, 2 * Cout)
    a01 = jnp.concatenate(
        [jnp.ones((Cout,), jnp.float32), p["a1"]]).reshape(1, 2 * Cout)
    yh = matmul_bias_prelu(lhs, w01, b01, a01)                # (M, 2*Cout)
    y = yh[:, :Cout].reshape(N, Ho * Wo, Cout)                # conv0 branch
    h = yh[:, Cout:].reshape(N, Ho, Wo, Cout)                 # conv1 branch

    # --- fused conv2 + bias + squeeze-excite + residual + PReLU ---
    lhs2, _ = im2col(h, stride=1)                             # (M, 9*Cout)
    lhs2 = lhs2.reshape(N, Ho * Wo, 9 * Cout)
    out = conv2_se_residual(lhs2, y,
                            p["w2"].reshape(9 * Cout, Cout),
                            p["b2"].reshape(1, Cout),
                            p["fc1"], p["fc2"], p["a_fc"],
                            p["a2"].reshape(1, Cout))
    return out.reshape(N, Ho, Wo, Cout)


# ----------------------------------------------------------------------------
# warp (grid_sample bilinear, padding_mode='border', align_corners=True)
# and bilinear 0.5x flow downsample -- plain JAX glue.
# ----------------------------------------------------------------------------
def warp_nhwc(x, flow):
    # TODO(synk): the data-dependent bilinear gather of grid_sample stays in
    # plain JAX; it has no clean BlockSpec-expressible Pallas equivalent here.
    N, H, W, Cc = x.shape
    fx = flow[..., 0]
    fy = flow[..., 1]
    px = jnp.arange(W, dtype=jnp.float32)[None, None, :] + fx
    py = jnp.arange(H, dtype=jnp.float32)[None, :, None] + fy
    px = jnp.clip(px, 0.0, W - 1.0)
    py = jnp.clip(py, 0.0, H - 1.0)
    x0 = jnp.floor(px)
    y0 = jnp.floor(py)
    wx1 = (px - x0)[..., None]
    wy1 = (py - y0)[..., None]
    wx0 = 1.0 - wx1
    wy0 = 1.0 - wy1
    x0i = x0.astype(jnp.int32)
    y0i = y0.astype(jnp.int32)
    x1i = jnp.minimum(x0i + 1, W - 1)
    y1i = jnp.minimum(y0i + 1, H - 1)
    flat = x.reshape(N, H * W, Cc)

    def gather(yi, xi):
        idx = (yi * W + xi).reshape(N, H * W)
        g = jax.vmap(lambda ff, ii: ff[ii])(flat, idx)
        return g.reshape(N, H, W, Cc)

    g00 = gather(y0i, x0i)
    g01 = gather(y0i, x1i)
    g10 = gather(y1i, x0i)
    g11 = gather(y1i, x1i)
    return wy0 * (wx0 * g00 + wx1 * g01) + wy1 * (wx0 * g10 + wx1 * g11)


def downsample_flow(flow):
    # F.interpolate(scale_factor=0.5, bilinear, align_corners=False) == 2x2 avg
    N, H, W, Cc = flow.shape
    f = flow.reshape(N, H // 2, 2, W // 2, 2, Cc).mean(axis=(2, 4))
    return f * 0.5


# ----------------------------------------------------------------------------
# ContextNet forward (inputs/outputs in PyTorch NCHW convention)
# ----------------------------------------------------------------------------
def context_net(params, x_nchw, flow_nchw):
    x = jnp.transpose(x_nchw, (0, 2, 3, 1)).astype(jnp.float32)
    flow = jnp.transpose(flow_nchw, (0, 2, 3, 1)).astype(jnp.float32)
    feats = []
    for i in range(4):
        x = res_block(x, params[f"conv{i + 1}"])
        if i > 0:
            flow = downsample_flow(flow)
        feats.append(warp_nhwc(x, flow))
    return [jnp.transpose(f, (0, 3, 1, 2)) for f in feats]


# ----------------------------------------------------------------------------
# Deterministic parameter init (shapes from the PyTorch __init__)
# ----------------------------------------------------------------------------
def init_params(key):
    dims = [(3, C), (C, 2 * C), (2 * C, 4 * C), (4 * C, 8 * C)]
    params = {}
    for i, (cin, cout) in enumerate(dims):
        key, k0, k1, k2, k3, k4, k5, k6 = jax.random.split(key, 8)
        params[f"conv{i + 1}"] = dict(
            w0=0.1 * jax.random.normal(k0, (3, 3, cin, cout), jnp.float32),
            w1=0.1 * jax.random.normal(k1, (3, 3, cin, cout), jnp.float32),
            b1=0.01 * jax.random.normal(k2, (cout,), jnp.float32),
            a1=jnp.full((cout,), 0.25, jnp.float32),          # PReLU(out) in conv1
            w2=0.1 * jax.random.normal(k3, (3, 3, cout, cout), jnp.float32),
            b2=0.01 * jax.random.normal(k4, (cout,), jnp.float32),
            fc1=0.1 * jax.random.normal(k5, (cout, 16), jnp.float32),
            fc2=0.1 * jax.random.normal(k6, (16, cout), jnp.float32),
            a_fc=jnp.full((1, 16), 0.25, jnp.float32),        # PReLU(1) shared alpha
            a2=jnp.full((cout,), 0.25, jnp.float32),          # final PReLU(out)
        )
    return params


if __name__ == "__main__":
    key = jax.random.PRNGKey(0)
    kp, kx, kf = jax.random.split(key, 3)
    params = init_params(kp)
    # x at full resolution, flow at half resolution (warp spatial dims must
    # match the feature map after the first stride-2 ResBlock).
    x = jax.random.normal(kx, (2, 3, 32, 32), jnp.float32)
    flow = 2.0 * jax.random.normal(kf, (2, 2, 16, 16), jnp.float32)

    fwd = jax.jit(context_net)
    feats = fwd(params, x, flow)
    feats = jax.block_until_ready(feats)

    expected = [(2, 16, 16, 16), (2, 32, 8, 8), (2, 64, 4, 4), (2, 128, 2, 2)]
    for f, s in zip(feats, expected):
        assert f.shape == s, (f.shape, s)
        assert bool(jnp.all(jnp.isfinite(f)))
    print("KERNEL_OK")
</pallas_src>

<mosaic_0001>
module attributes {stable_mosaic.version = 11 : i64} {
  func.func @_matmul_bias_prelu_kernel(%arg0: i32, %arg1: memref<512x27xbf16, #tpu.memory_space<vmem>>, %arg2: memref<27x32xbf16, #tpu.memory_space<vmem>>, %arg3: memref<1x32xf32, #tpu.memory_space<vmem>>, %arg4: memref<1x32xf32, #tpu.memory_space<vmem>>, %arg5: memref<512x32xf32, #tpu.memory_space<vmem>>) attributes {dimension_semantics = [#tpu.dimension_semantics<parallel>], iteration_bounds = array<i64: 1>, scalar_prefetch = 0 : i64, scratch_operands = 0 : i64, tpu.core_type = #tpu.core_type<tc>, window_params = [{transform_indices = @transform_0, window_bounds = array<i64: 512, 27>}, {pipeline_mode = #tpu.pipeline_mode<synchronous>, transform_indices = @transform_1, window_bounds = array<i64: 27, 32>}, {pipeline_mode = #tpu.pipeline_mode<synchronous>, transform_indices = @transform_2, window_bounds = array<i64: 1, 32>}, {pipeline_mode = #tpu.pipeline_mode<synchronous>, transform_indices = @transform_3, window_bounds = array<i64: 1, 32>}, {transform_indices = @transform_4, window_bounds = array<i64: 512, 32>}]} {
    %c0 = arith.constant 0 : index
    %c0_0 = arith.constant 0 : index
    %0 = vector.load %arg1[%c0, %c0_0] : memref<512x27xbf16, #tpu.memory_space<vmem>>, vector<512x27xbf16>
    %c0_1 = arith.constant 0 : index
    %c0_2 = arith.constant 0 : index
    %1 = vector.load %arg2[%c0_1, %c0_2] : memref<27x32xbf16, #tpu.memory_space<vmem>>, vector<27x32xbf16>
    %cst = arith.constant dense<0.000000e+00> : vector<512x32xf32>
    %2 = tpu.matmul %0, %1, %cst {dimension_numbers = #tpu.dot_dimension_numbers<[1], [0], [0], [1], [0, 0, 1, 1], [], []>} : vector<512x27xbf16>, vector<27x32xbf16>, vector<512x32xf32> -> vector<512x32xf32>
    %c0_3 = arith.constant 0 : index
    %c0_4 = arith.constant 0 : index
    %3 = vector.load %arg3[%c0_3, %c0_4] : memref<1x32xf32, #tpu.memory_space<vmem>>, vector<1x32xf32>
    %4 = vector.broadcast %3 : vector<1x32xf32> to vector<512x32xf32>
    %5 = arith.addf %2, %4 : vector<512x32xf32>
    %c0_5 = arith.constant 0 : index
    %c0_6 = arith.constant 0 : index
    %6 = vector.load %arg4[%c0_5, %c0_6] : memref<1x32xf32, #tpu.memory_space<vmem>>, vector<1x32xf32>
    %cst_7 = arith.constant 0.000000e+00 : f32
    %7 = vector.broadcast %cst_7 : f32 to vector<512x32xf32>
    %8 = arith.cmpf oge, %5, %7 : vector<512x32xf32>
    %9 = vector.broadcast %6 : vector<1x32xf32> to vector<512x32xf32>
    %10 = arith.mulf %9, %5 : vector<512x32xf32>
    %11 = arith.select %8, %5, %10 : vector<512x32xi1>, vector<512x32xf32>
    %c0_8 = arith.constant 0 : index
    %c0_9 = arith.constant 0 : index
    %12 = vector.load %arg5[%c0_8, %c0_9] : memref<512x32xf32, #tpu.memory_space<vmem>>, vector<512x32xf32>
    tpu.vector_store %arg5[%c0_8, %c0_9], %11 {strides = array<i32>} : memref<512x32xf32, #tpu.memory_space<vmem>>, vector<512x32xf32>,
    return
  }
  func.func @transform_0(%arg0: i32) -> (i32, i32) {
    %c0_i32 = arith.constant 0 : i32
    %c0_i32_0 = arith.constant 0 : i32
    return %arg0, %c0_i32 : i32, i32
  }
  func.func @transform_1(%arg0: i32) -> (i32, i32) {
    %c0_i32 = arith.constant 0 : i32
    %c0_i32_0 = arith.constant 0 : i32
    %c0_i32_1 = arith.constant 0 : i32
    return %c0_i32, %c0_i32_0 : i32, i32
  }
  func.func @transform_2(%arg0: i32) -> (i32, i32) {
    %c0_i32 = arith.constant 0 : i32
    %c0_i32_0 = arith.constant 0 : i32
    %c0_i32_1 = arith.constant 0 : i32
    return %c0_i32, %c0_i32_0 : i32, i32
  }
  func.func @transform_3(%arg0: i32) -> (i32, i32) {
    %c0_i32 = arith.constant 0 : i32
    %c0_i32_0 = arith.constant 0 : i32
    %c0_i32_1 = arith.constant 0 : i32
    return %c0_i32, %c0_i32_0 : i32, i32
  }
  func.func @transform_4(%arg0: i32) -> (i32, i32) {
    %c0_i32 = arith.constant 0 : i32
    %c0_i32_0 = arith.constant 0 : i32
    return %arg0, %c0_i32 : i32, i32
  }
}

module attributes {stable_mosaic.version = 11 : i64} {
  func.func @_conv2_se_kernel(%arg0: i32, %arg1: memref<1x256x144xbf16, #tpu.memory_space<vmem>>, %arg2: memref<1x256x16xf32, #tpu.memory_space<vmem>>, %arg3: memref<144x16xbf16, #tpu.memory_space<vmem>>, %arg4: memref<1x16xf32, #tpu.memory_space<vmem>>, %arg5: memref<16x16xf32, #tpu.memory_space<vmem>>, %arg6: memref<16x16xf32, #tpu.memory_space<vmem>>, %arg7: memref<1x16xf32, #tpu.memory_space<vmem>>, %arg8: memref<1x16xf32, #tpu.memory_space<vmem>>, %arg9: memref<1x256x16xf32, #tpu.memory_space<vmem>>) attributes {dimension_semantics = [#tpu.dimension_semantics<parallel>], iteration_bounds = array<i64: 2>, scalar_prefetch = 0 : i64, scratch_operands = 0 : i64, tpu.core_type = #tpu.core_type<tc>, window_params = [{transform_indices = @transform_0, window_bounds = array<i64: 1, 256, 144>}, {transform_indices = @transform_1, window_bounds = array<i64: 1, 256, 16>}, {pipeline_mode = #tpu.pipeline_mode<synchronous>, transform_indices = @transform_2, window_bounds = array<i64: 144, 16>}, {pipeline_mode = #tpu.pipeline_mode<synchronous>, transform_indices = @transform_3, window_bounds = array<i64: 1, 16>}, {pipeline_mode = #tpu.pipeline_mode<synchronous>, transform_indices = @transform_4, window_bounds = array<i64: 16, 16>}, {pipeline_mode = #tpu.pipeline_mode<synchronous>, transform_indices = @transform_5, window_bounds = array<i64: 16, 16>}, {pipeline_mode = #tpu.pipeline_mode<synchronous>, transform_indices = @transform_6, window_bounds = array<i64: 1, 16>}, {pipeline_mode = #tpu.pipeline_mode<synchronous>, transform_indices = @transform_7, window_bounds = array<i64: 1, 16>}, {transform_indices = @transform_8, window_bounds = array<i64: 1, 256, 16>}]} {
    %c0 = arith.constant 0 : index
    %c0_0 = arith.constant 0 : index
    %c0_1 = arith.constant 0 : index
    %0 = vector.load %arg1[%c0, %c0_0, %c0_1] : memref<1x256x144xbf16, #tpu.memory_space<vmem>>, vector<1x256x144xbf16>
    %1 = vector.shape_cast %0 : vector<1x256x144xbf16> to vector<256x144xbf16>
    %c0_2 = arith.constant 0 : index
    %c0_3 = arith.constant 0 : index
    %2 = vector.load %arg3[%c0_2, %c0_3] : memref<144x16xbf16, #tpu.memory_space<vmem>>, vector<144x16xbf16>
    %cst = arith.constant dense<0.000000e+00> : vector<256x16xf32>
    %3 = tpu.matmul %1, %2, %cst {dimension_numbers = #tpu.dot_dimension_numbers<[1], [0], [0], [1], [0, 0, 1, 1], [], []>} : vector<256x144xbf16>, vector<144x16xbf16>, vector<256x16xf32> -> vector<256x16xf32>
    %c0_4 = arith.constant 0 : index
    %c0_5 = arith.constant 0 : index
    %4 = vector.load %arg4[%c0_4, %c0_5] : memref<1x16xf32, #tpu.memory_space<vmem>>, vector<1x16xf32>
    %5 = vector.broadcast %4 : vector<1x16xf32> to vector<256x16xf32>
    %6 = arith.addf %3, %5 : vector<256x16xf32>
    %cst_6 = arith.constant dense<0.000000e+00> : vector<16xf32>
    %7 = vector.multi_reduction <add>, %6, %cst_6 [0] : vector<256x16xf32> to vector<16xf32>
    %8 = vector.shape_cast %7 : vector<16xf32> to vector<1x16xf32>
    %cst_7 = arith.constant 2.560000e+02 : f32
    %9 = vector.broadcast %cst_7 : f32 to vector<1x16xf32>
    %10 = arith.divf %8, %9 : vector<1x16xf32>
    %c0_8 = arith.constant 0 : index
    %c0_9 = arith.constant 0 : index
    %11 = vector.load %arg5[%c0_8, %c0_9] : memref<16x16xf32, #tpu.memory_space<vmem>>, vector<16x16xf32>
    %cst_10 = arith.constant dense<0.000000e+00> : vector<1x16xf32>
    %12 = tpu.matmul %10, %11, %cst_10 {dimension_numbers = #tpu.dot_dimension_numbers<[1], [0], [0], [1], [0, 0, 1, 1], [], []>} : vector<1x16xf32>, vector<16x16xf32>, vector<1x16xf32> -> vector<1x16xf32>
    %c0_11 = arith.constant 0 : index
    %c0_12 = arith.constant 0 : index
    %13 = vector.load %arg7[%c0_11, %c0_12] : memref<1x16xf32, #tpu.memory_space<vmem>>, vector<1x16xf32>
    %cst_13 = arith.constant 0.000000e+00 : f32
    %14 = vector.broadcast %cst_13 : f32 to vector<1x16xf32>
    %15 = arith.cmpf oge, %12, %14 : vector<1x16xf32>
    %16 = arith.mulf %13, %12 : vector<1x16xf32>
    %17 = arith.select %15, %12, %16 : vector<1x16xi1>, vector<1x16xf32>
    %c0_14 = arith.constant 0 : index
    %c0_15 = arith.constant 0 : index
    %18 = vector.load %arg6[%c0_14, %c0_15] : memref<16x16xf32, #tpu.memory_space<vmem>>, vector<16x16xf32>
    %cst_16 = arith.constant dense<0.000000e+00> : vector<1x16xf32>
    %19 = tpu.matmul %17, %18, %cst_16 {dimension_numbers = #tpu.dot_dimension_numbers<[1], [0], [0], [1], [0, 0, 1, 1], [], []>} : vector<1x16xf32>, vector<16x16xf32>, vector<1x16xf32> -> vector<1x16xf32>
    %20 = arith.negf %19 : vector<1x16xf32>
    %21 = math.exp %20 : vector<1x16xf32>
    %cst_17 = arith.constant 1.000000e+00 : f32
    %22 = vector.broadcast %cst_17 : f32 to vector<1x16xf32>
    %23 = arith.addf %22, %21 : vector<1x16xf32>
    %24 = arith.divf %22, %23 : vector<1x16xf32>
    %25 = vector.broadcast %24 : vector<1x16xf32> to vector<256x16xf32>
    %26 = arith.mulf %6, %25 : vector<256x16xf32>
    %c0_18 = arith.constant 0 : index
    %c0_19 = arith.constant 0 : index
    %c0_20 = arith.constant 0 : index
    %27 = vector.load %arg2[%c0_18, %c0_19, %c0_20] : memref<1x256x16xf32, #tpu.memory_space<vmem>>, vector<1x256x16xf32>
    %28 = vector.shape_cast %27 : vector<1x256x16xf32> to vector<256x16xf32>
    %29 = arith.addf %26, %28 : vector<256x16xf32>
    %c0_21 = arith.constant 0 : index
    %c0_22 = arith.constant 0 : index
    %30 = vector.load %arg8[%c0_21, %c0_22] : memref<1x16xf32, #tpu.memory_space<vmem>>, vector<1x16xf32>
    %cst_23 = arith.constant 0.000000e+00 : f32
    %31 = vector.broadcast %cst_23 : f32 to vector<256x16xf32>
    %32 = arith.cmpf oge, %29, %31 : vector<256x16xf32>
    %33 = vector.broadcast %30 : vector<1x16xf32> to vector<256x16xf32>
    %34 = arith.mulf %33, %29 : vector<256x16xf32>
    %35 = arith.select %32, %29, %34 : vector<256x16xi1>, vector<256x16xf32>
    %c0_24 = arith.constant 0 : index
    %c0_25 = arith.constant 0 : index
    %c0_26 = arith.constant 0 : index
    %36 = vector.load %arg9[%c0_24, %c0_25, %c0_26] : memref<1x256x16xf32, #tpu.memory_space<vmem>>, vector<1x256x16xf32>
    %37 = vector.shape_cast %36 : vector<1x256x16xf32> to vector<256x16xf32>
    %38 = vector.shape_cast %35 : vector<256x16xf32> to vector<1x256x16xf32>
    tpu.vector_store %arg9[%c0_24, %c0_25, %c0_26], %38 {strides = array<i32>} : memref<1x256x16xf32, #tpu.memory_space<vmem>>, vector<1x256x16xf32>,
    return
  }
  func.func @transform_0(%arg0: i32) -> (i32, i32, i32) {
    %c0_i32 = arith.constant 0 : i32
    %c0_i32_0 = arith.constant 0 : i32
    %c0_i32_1 = arith.constant 0 : i32
    return %arg0, %c0_i32, %c0_i32_0 : i32, i32, i32
  }
  func.func @transform_1(%arg0: i32) -> (i32, i32, i32) {
    %c0_i32 = arith.constant 0 : i32
    %c0_i32_0 = arith.constant 0 : i32
    %c0_i32_1 = arith.constant 0 : i32
    return %arg0, %c0_i32, %c0_i32_0 : i32, i32, i32
  }
  func.func @transform_2(%arg0: i32) -> (i32, i32) {
    %c0_i32 = arith.constant 0 : i32
    %c0_i32_0 = arith.constant 0 : i32
    %c0_i32_1 = arith.constant 0 : i32
    return %c0_i32, %c0_i32_0 : i32, i32
  }
  func.func @transform_3(%arg0: i32) -> (i32, i32) {
    %c0_i32 = arith.constant 0 : i32
    %c0_i32_0 = arith.constant 0 : i32
    %c0_i32_1 = arith.constant 0 : i32
    return %c0_i32, %c0_i32_0 : i32, i32
  }
  func.func @transform_4(%arg0: i32) -> (i32, i32) {
    %c0_i32 = arith.constant 0 : i32
    %c0_i32_0 = arith.constant 0 : i32
    %c0_i32_1 = arith.constant 0 : i32
    return %c0_i32, %c0_i32_0 : i32, i32
  }
  func.func @transform_5(%arg0: i32) -> (i32, i32) {
    %c0_i32 = arith.constant 0 : i32
    %c0_i32_0 = arith.constant 0 : i32
    %c0_i32_1 = arith.constant 0 : i32
    return %c0_i32, %c0_i32_0 : i32, i32
  }
  func.func @transform_6(%arg0: i32) -> (i32, i32) {
    %c0_i32 = arith.constant 0 : i32
    %c0_i32_0 = arith.constant 0 : i32
    %c0_i32_1 = arith.constant 0 : i32
    return %c0_i32, %c0_i32_0 : i32, i32
  }
  func.func @transform_7(%arg0: i32) -> (i32, i32) {
    %c0_i32 = arith.constant 0 : i32
    %c0_i32_0 = arith.constant 0 : i32
    %c0_i32_1 = arith.constant 0 : i32
    return %c0_i32, %c0_i32_0 : i32, i32
  }
  func.func @transform_8(%arg0: i32) -> (i32, i32, i32) {
    %c0_i32 = arith.constant 0 : i32
    %c0_i32_0 = arith.constant 0 : i32
    %c0_i32_1 = arith.constant 0 : i32
    return %arg0, %c0_i32, %c0_i32_0 : i32, i32, i32
  }
}

module attributes {stable_mosaic.version = 11 : i64} {
  func.func @_matmul_bias_prelu_kernel(%arg0: i32, %arg1: memref<128x144xbf16, #tpu.memory_space<vmem>>, %arg2: memref<144x64xbf16, #tpu.memory_space<vmem>>, %arg3: memref<1x64xf32, #tpu.memory_space<vmem>>, %arg4: memref<1x64xf32, #tpu.memory_space<vmem>>, %arg5: memref<128x64xf32, #tpu.memory_space<vmem>>) attributes {dimension_semantics = [#tpu.dimension_semantics<parallel>], iteration_bounds = array<i64: 1>, scalar_prefetch = 0 : i64, scratch_operands = 0 : i64, tpu.core_type = #tpu.core_type<tc>, window_params = [{transform_indices = @transform_0, window_bounds = array<i64: 128, 144>}, {pipeline_mode = #tpu.pipeline_mode<synchronous>, transform_indices = @transform_1, window_bounds = array<i64: 144, 64>}, {pipeline_mode = #tpu.pipeline_mode<synchronous>, transform_indices = @transform_2, window_bounds = array<i64: 1, 64>}, {pipeline_mode = #tpu.pipeline_mode<synchronous>, transform_indices = @transform_3, window_bounds = array<i64: 1, 64>}, {transform_indices = @transform_4, window_bounds = array<i64: 128, 64>}]} {
    %c0 = arith.constant 0 : index
    %c0_0 = arith.constant 0 : index
    %0 = vector.load %arg1[%c0, %c0_0] : memref<128x144xbf16, #tpu.memory_space<vmem>>, vector<128x144xbf16>
    %c0_1 = arith.constant 0 : index
    %c0_2 = arith.constant 0 : index
    %1 = vector.load %arg2[%c0_1, %c0_2] : memref<144x64xbf16, #tpu.memory_space<vmem>>, vector<144x64xbf16>
    %cst = arith.constant dense<0.000000e+00> : vector<128x64xf32>
    %2 = tpu.matmul %0, %1, %cst {dimension_numbers = #tpu.dot_dimension_numbers<[1], [0], [0], [1], [0, 0, 1, 1], [], []>} : vector<128x144xbf16>, vector<144x64xbf16>, vector<128x64xf32> -> vector<128x64xf32>
    %c0_3 = arith.constant 0 : index
    %c0_4 = arith.constant 0 : index
    %3 = vector.load %arg3[%c0_3, %c0_4] : memref<1x64xf32, #tpu.memory_space<vmem>>, vector<1x64xf32>
    %4 = vector.broadcast %3 : vector<1x64xf32> to vector<128x64xf32>
    %5 = arith.addf %2, %4 : vector<128x64xf32>
    %c0_5 = arith.constant 0 : index
    %c0_6 = arith.constant 0 : index
    %6 = vector.load %arg4[%c0_5, %c0_6] : memref<1x64xf32, #tpu.memory_space<vmem>>, vector<1x64xf32>
    %cst_7 = arith.constant 0.000000e+00 : f32
    %7 = vector.broadcast %cst_7 : f32 to vector<128x64xf32>
    %8 = arith.cmpf oge, %5, %7 : vector<128x64xf32>
    %9 = vector.broadcast %6 : vector<1x64xf32> to vector<128x64xf32>
    %10 = arith.mulf %9, %5 : vector<128x64xf32>
    %11 = arith.select %8, %5, %10 : vector<128x64xi1>, vector<128x64xf32>
    %c0_8 = arith.constant 0 : index
    %c0_9 = arith.constant 0 : index
    %12 = vector.load %arg5[%c0_8, %c0_9] : memref<128x64xf32, #tpu.memory_space<vmem>>, vector<128x64xf32>
    tpu.vector_store %arg5[%c0_8, %c0_9], %11 {strides = array<i32>} : memref<128x64xf32, #tpu.memory_space<vmem>>, vector<128x64xf32>,
    return
  }
  func.func @transform_0(%arg0: i32) -> (i32, i32) {
    %c0_i32 = arith.constant 0 : i32
    %c0_i32_0 = arith.constant 0 : i32
    return %arg0, %c0_i32 : i32, i32
  }
  func.func @transform_1(%arg0: i32) -> (i32, i32) {
    %c0_i32 = arith.constant 0 : i32
    %c0_i32_0 = arith.constant 0 : i32
    %c0_i32_1 = arith.constant 0 : i32
    return %c0_i32, %c0_i32_0 : i32, i32
  }
  func.func @transform_2(%arg0: i32) -> (i32, i32) {
    %c0_i32 = arith.constant 0 : i32
    %c0_i32_0 = arith.constant 0 : i32
    %c0_i32_1 = arith.constant 0 : i32
    return %c0_i32, %c0_i32_0 : i32, i32
  }
  func.func @transform_3(%arg0: i32) -> (i32, i32) {
    %c0_i32 = arith.constant 0 : i32
    %c0_i32_0 = arith.constant 0 : i32
    %c0_i32_1 = arith.constant 0 : i32
    return %c0_i32, %c0_i32_0 : i32, i32
  }
  func.func @transform_4(%arg0: i32) -> (i32, i32) {
    %c0_i32 = arith.constant 0 : i32
    %c0_i32_0 = arith.constant 0 : i32
    return %arg0, %c0_i32 : i32, i32
  }
}

module attributes {stable_mosaic.version = 11 : i64} {
  func.func @_conv2_se_kernel(%arg0: i32, %arg1: memref<1x64x288xbf16, #tpu.memory_space<vmem>>, %arg2: memref<1x64x32xf32, #tpu.memory_space<vmem>>, %arg3: memref<288x32xbf16, #tpu.memory_space<vmem>>, %arg4: memref<1x32xf32, #tpu.memory_space<vmem>>, %arg5: memref<32x16xf32, #tpu.memory_space<vmem>>, %arg6: memref<16x32xf32, #tpu.memory_space<vmem>>, %arg7: memref<1x16xf32, #tpu.memory_space<vmem>>, %arg8: memref<1x32xf32, #tpu.memory_space<vmem>>, %arg9: memref<1x64x32xf32, #tpu.memory_space<vmem>>) attributes {dimension_semantics = [#tpu.dimension_semantics<parallel>], iteration_bounds = array<i64: 2>, scalar_prefetch = 0 : i64, scratch_operands = 0 : i64, tpu.core_type = #tpu.core_type<tc>, window_params = [{transform_indices = @transform_0, window_bounds = array<i64: 1, 64, 288>}, {transform_indices = @transform_1, window_bounds = array<i64: 1, 64, 32>}, {pipeline_mode = #tpu.pipeline_mode<synchronous>, transform_indices = @transform_2, window_bounds = array<i64: 288, 32>}, {pipeline_mode = #tpu.pipeline_mode<synchronous>, transform_indices = @transform_3, window_bounds = array<i64: 1, 32>}, {pipeline_mode = #tpu.pipeline_mode<synchronous>, transform_indices = @transform_4, window_bounds = array<i64: 32, 16>}, {pipeline_mode = #tpu.pipeline_mode<synchronous>, transform_indices = @transform_5, window_bounds = array<i64: 16, 32>}, {pipeline_mode = #tpu.pipeline_mode<synchronous>, transform_indices = @transform_6, window_bounds = array<i64: 1, 16>}, {pipeline_mode = #tpu.pipeline_mode<synchronous>, transform_indices = @transform_7, window_bounds = array<i64: 1, 32>}, {transform_indices = @transform_8, window_bounds = array<i64: 1, 64, 32>}]} {
    %c0 = arith.constant 0 : index
    %c0_0 = arith.constant 0 : index
    %c0_1 = arith.constant 0 : index
    %0 = vector.load %arg1[%c0, %c0_0, %c0_1] : memref<1x64x288xbf16, #tpu.memory_space<vmem>>, vector<1x64x288xbf16>
    %1 = vector.shape_cast %0 : vector<1x64x288xbf16> to vector<64x288xbf16>
    %c0_2 = arith.constant 0 : index
    %c0_3 = arith.constant 0 : index
    %2 = vector.load %arg3[%c0_2, %c0_3] : memref<288x32xbf16, #tpu.memory_space<vmem>>, vector<288x32xbf16>
    %cst = arith.constant dense<0.000000e+00> : vector<64x32xf32>
    %3 = tpu.matmul %1, %2, %cst {dimension_numbers = #tpu.dot_dimension_numbers<[1], [0], [0], [1], [0, 0, 1, 1], [], []>} : vector<64x288xbf16>, vector<288x32xbf16>, vector<64x32xf32> -> vector<64x32xf32>
    %c0_4 = arith.constant 0 : index
    %c0_5 = arith.constant 0 : index
    %4 = vector.load %arg4[%c0_4, %c0_5] : memref<1x32xf32, #tpu.memory_space<vmem>>, vector<1x32xf32>
    %5 = vector.broadcast %4 : vector<1x32xf32> to vector<64x32xf32>
    %6 = arith.addf %3, %5 : vector<64x32xf32>
    %cst_6 = arith.constant dense<0.000000e+00> : vector<32xf32>
    %7 = vector.multi_reduction <add>, %6, %cst_6 [0] : vector<64x32xf32> to vector<32xf32>
    %8 = vector.shape_cast %7 : vector<32xf32> to vector<1x32xf32>
    %cst_7 = arith.constant 6.400000e+01 : f32
    %9 = vector.broadcast %cst_7 : f32 to vector<1x32xf32>
    %10 = arith.divf %8, %9 : vector<1x32xf32>
    %c0_8 = arith.constant 0 : index
    %c0_9 = arith.constant 0 : index
    %11 = vector.load %arg5[%c0_8, %c0_9] : memref<32x16xf32, #tpu.memory_space<vmem>>, vector<32x16xf32>
    %cst_10 = arith.constant dense<0.000000e+00> : vector<1x16xf32>
    %12 = tpu.matmul %10, %11, %cst_10 {dimension_numbers = #tpu.dot_dimension_numbers<[1], [0], [0], [1], [0, 0, 1, 1], [], []>} : vector<1x32xf32>, vector<32x16xf32>, vector<1x16xf32> -> vector<1x16xf32>
    %c0_11 = arith.constant 0 : index
    %c0_12 = arith.constant 0 : index
    %13 = vector.load %arg7[%c0_11, %c0_12] : memref<1x16xf32, #tpu.memory_space<vmem>>, vector<1x16xf32>
    %cst_13 = arith.constant 0.000000e+00 : f32
    %14 = vector.broadcast %cst_13 : f32 to vector<1x16xf32>
    %15 = arith.cmpf oge, %12, %14 : vector<1x16xf32>
    %16 = arith.mulf %13, %12 : vector<1x16xf32>
    %17 = arith.select %15, %12, %16 : vector<1x16xi1>, vector<1x16xf32>
    %c0_14 = arith.constant 0 : index
    %c0_15 = arith.constant 0 : index
    %18 = vector.load %arg6[%c0_14, %c0_15] : memref<16x32xf32, #tpu.memory_space<vmem>>, vector<16x32xf32>
    %cst_16 = arith.constant dense<0.000000e+00> : vector<1x32xf32>
    %19 = tpu.matmul %17, %18, %cst_16 {dimension_numbers = #tpu.dot_dimension_numbers<[1], [0], [0], [1], [0, 0, 1, 1], [], []>} : vector<1x16xf32>, vector<16x32xf32>, vector<1x32xf32> -> vector<1x32xf32>
    %20 = arith.negf %19 : vector<1x32xf32>
    %21 = math.exp %20 : vector<1x32xf32>
    %cst_17 = arith.constant 1.000000e+00 : f32
    %22 = vector.broadcast %cst_17 : f32 to vector<1x32xf32>
    %23 = arith.addf %22, %21 : vector<1x32xf32>
    %24 = arith.divf %22, %23 : vector<1x32xf32>
    %25 = vector.broadcast %24 : vector<1x32xf32> to vector<64x32xf32>
    %26 = arith.mulf %6, %25 : vector<64x32xf32>
    %c0_18 = arith.constant 0 : index
    %c0_19 = arith.constant 0 : index
    %c0_20 = arith.constant 0 : index
    %27 = vector.load %arg2[%c0_18, %c0_19, %c0_20] : memref<1x64x32xf32, #tpu.memory_space<vmem>>, vector<1x64x32xf32>
    %28 = vector.shape_cast %27 : vector<1x64x32xf32> to vector<64x32xf32>
    %29 = arith.addf %26, %28 : vector<64x32xf32>
    %c0_21 = arith.constant 0 : index
    %c0_22 = arith.constant 0 : index
    %30 = vector.load %arg8[%c0_21, %c0_22] : memref<1x32xf32, #tpu.memory_space<vmem>>, vector<1x32xf32>
    %cst_23 = arith.constant 0.000000e+00 : f32
    %31 = vector.broadcast %cst_23 : f32 to vector<64x32xf32>
    %32 = arith.cmpf oge, %29, %31 : vector<64x32xf32>
    %33 = vector.broadcast %30 : vector<1x32xf32> to vector<64x32xf32>
    %34 = arith.mulf %33, %29 : vector<64x32xf32>
    %35 = arith.select %32, %29, %34 : vector<64x32xi1>, vector<64x32xf32>
    %c0_24 = arith.constant 0 : index
    %c0_25 = arith.constant 0 : index
    %c0_26 = arith.constant 0 : index
    %36 = vector.load %arg9[%c0_24, %c0_25, %c0_26] : memref<1x64x32xf32, #tpu.memory_space<vmem>>, vector<1x64x32xf32>
    %37 = vector.shape_cast %36 : vector<1x64x32xf32> to vector<64x32xf32>
    %38 = vector.shape_cast %35 : vector<64x32xf32> to vector<1x64x32xf32>
    tpu.vector_store %arg9[%c0_24, %c0_25, %c0_26], %38 {strides = array<i32>} : memref<1x64x32xf32, #tpu.memory_space<vmem>>, vector<1x64x32xf32>,
    return
  }
  func.func @transform_0(%arg0: i32) -> (i32, i32, i32) {
    %c0_i32 = arith.constant 0 : i32
    %c0_i32_0 = arith.constant 0 : i32
    %c0_i32_1 = arith.constant 0 : i32
    return %arg0, %c0_i32, %c0_i32_0 : i32, i32, i32
  }
  func.func @transform_1(%arg0: i32) -> (i32, i32, i32) {
    %c0_i32 = arith.constant 0 : i32
    %c0_i32_0 = arith.constant 0 : i32
    %c0_i32_1 = arith.constant 0 : i32
    return %arg0, %c0_i32, %c0_i32_0 : i32, i32, i32
  }
  func.func @transform_2(%arg0: i32) -> (i32, i32) {
    %c0_i32 = arith.constant 0 : i32
    %c0_i32_0 = arith.constant 0 : i32
    %c0_i32_1 = arith.constant 0 : i32
    return %c0_i32, %c0_i32_0 : i32, i32
  }
  func.func @transform_3(%arg0: i32) -> (i32, i32) {
    %c0_i32 = arith.constant 0 : i32
    %c0_i32_0 = arith.constant 0 : i32
    %c0_i32_1 = arith.constant 0 : i32
    return %c0_i32, %c0_i32_0 : i32, i32
  }
  func.func @transform_4(%arg0: i32) -> (i32, i32) {
    %c0_i32 = arith.constant 0 : i32
    %c0_i32_0 = arith.constant 0 : i32
    %c0_i32_1 = arith.constant 0 : i32
    return %c0_i32, %c0_i32_0 : i32, i32
  }
  func.func @transform_5(%arg0: i32) -> (i32, i32) {
    %c0_i32 = arith.constant 0 : i32
    %c0_i32_0 = arith.constant 0 : i32
    %c0_i32_1 = arith.constant 0 : i32
    return %c0_i32, %c0_i32_0 : i32, i32
  }
  func.func @transform_6(%arg0: i32) -> (i32, i32) {
    %c0_i32 = arith.constant 0 : i32
    %c0_i32_0 = arith.constant 0 : i32
    %c0_i32_1 = arith.constant 0 : i32
    return %c0_i32, %c0_i32_0 : i32, i32
  }
  func.func @transform_7(%arg0: i32) -> (i32, i32) {
    %c0_i32 = arith.constant 0 : i32
    %c0_i32_0 = arith.constant 0 : i32
    %c0_i32_1 = arith.constant 0 : i32
    return %c0_i32, %c0_i32_0 : i32, i32
  }
  func.func @transform_8(%arg0: i32) -> (i32, i32, i32) {
    %c0_i32 = arith.constant 0 : i32
    %c0_i32_0 = arith.constant 0 : i32
    %c0_i32_1 = arith.constant 0 : i32
    return %arg0, %c0_i32, %c0_i32_0 : i32, i32, i32
  }
}

module attributes {stable_mosaic.version = 11 : i64} {
  func.func @_matmul_bias_prelu_kernel(%arg0: i32, %arg1: memref<32x288xbf16, #tpu.memory_space<vmem>>, %arg2: memref<288x128xbf16, #tpu.memory_space<vmem>>, %arg3: memref<1x128xf32, #tpu.memory_space<vmem>>, %arg4: memref<1x128xf32, #tpu.memory_space<vmem>>, %arg5: memref<32x128xf32, #tpu.memory_space<vmem>>) attributes {dimension_semantics = [#tpu.dimension_semantics<parallel>], iteration_bounds = array<i64: 1>, scalar_prefetch = 0 : i64, scratch_operands = 0 : i64, tpu.core_type = #tpu.core_type<tc>, window_params = [{transform_indices = @transform_0, window_bounds = array<i64: 32, 288>}, {pipeline_mode = #tpu.pipeline_mode<synchronous>, transform_indices = @transform_1, window_bounds = array<i64: 288, 128>}, {pipeline_mode = #tpu.pipeline_mode<synchronous>, transform_indices = @transform_2, window_bounds = array<i64: 1, 128>}, {pipeline_mode = #tpu.pipeline_mode<synchronous>, transform_indices = @transform_3, window_bounds = array<i64: 1, 128>}, {transform_indices = @transform_4, window_bounds = array<i64: 32, 128>}]} {
    %c0 = arith.constant 0 : index
    %c0_0 = arith.constant 0 : index
    %0 = vector.load %arg1[%c0, %c0_0] : memref<32x288xbf16, #tpu.memory_space<vmem>>, vector<32x288xbf16>
    %c0_1 = arith.constant 0 : index
    %c0_2 = arith.constant 0 : index
    %1 = vector.load %arg2[%c0_1, %c0_2] : memref<288x128xbf16, #tpu.memory_space<vmem>>, vector<288x128xbf16>
    %cst = arith.constant dense<0.000000e+00> : vector<32x128xf32>
    %2 = tpu.matmul %0, %1, %cst {dimension_numbers = #tpu.dot_dimension_numbers<[1], [0], [0], [1], [0, 0, 1, 1], [], []>} : vector<32x288xbf16>, vector<288x128xbf16>, vector<32x128xf32> -> vector<32x128xf32>
    %c0_3 = arith.constant 0 : index
    %c0_4 = arith.constant 0 : index
    %3 = vector.load %arg3[%c0_3, %c0_4] : memref<1x128xf32, #tpu.memory_space<vmem>>, vector<1x128xf32>
    %4 = vector.broadcast %3 : vector<1x128xf32> to vector<32x128xf32>
    %5 = arith.addf %2, %4 : vector<32x128xf32>
    %c0_5 = arith.constant 0 : index
    %c0_6 = arith.constant 0 : index
    %6 = vector.load %arg4[%c0_5, %c0_6] : memref<1x128xf32, #tpu.memory_space<vmem>>, vector<1x128xf32>
    %cst_7 = arith.constant 0.000000e+00 : f32
    %7 = vector.broadcast %cst_7 : f32 to vector<32x128xf32>
    %8 = arith.cmpf oge, %5, %7 : vector<32x128xf32>
    %9 = vector.broadcast %6 : vector<1x128xf32> to vector<32x128xf32>
    %10 = arith.mulf %9, %5 : vector<32x128xf32>
    %11 = arith.select %8, %5, %10 : vector<32x128xi1>, vector<32x128xf32>
    %c0_8 = arith.constant 0 : index
    %c0_9 = arith.constant 0 : index
    %12 = vector.load %arg5[%c0_8, %c0_9] : memref<32x128xf32, #tpu.memory_space<vmem>>, vector<32x128xf32>
    tpu.vector_store %arg5[%c0_8, %c0_9], %11 {strides = array<i32>} : memref<32x128xf32, #tpu.memory_space<vmem>>, vector<32x128xf32>,
    return
  }
  func.func @transform_0(%arg0: i32) -> (i32, i32) {
    %c0_i32 = arith.constant 0 : i32
    %c0_i32_0 = arith.constant 0 : i32
    return %arg0, %c0_i32 : i32, i32
  }
  func.func @transform_1(%arg0: i32) -> (i32, i32) {
    %c0_i32 = arith.constant 0 : i32
    %c0_i32_0 = arith.constant 0 : i32
    %c0_i32_1 = arith.constant 0 : i32
    return %c0_i32, %c0_i32_0 : i32, i32
  }
  func.func @transform_2(%arg0: i32) -> (i32, i32) {
    %c0_i32 = arith.constant 0 : i32
    %c0_i32_0 = arith.constant 0 : i32
    %c0_i32_1 = arith.constant 0 : i32
    return %c0_i32, %c0_i32_0 : i32, i32
  }
  func.func @transform_3(%arg0: i32) -> (i32, i32) {
    %c0_i32 = arith.constant 0 : i32
    %c0_i32_0 = arith.constant 0 : i32
    %c0_i32_1 = arith.constant 0 : i32
    return %c0_i32, %c0_i32_0 : i32, i32
  }
  func.func @transform_4(%arg0: i32) -> (i32, i32) {
    %c0_i32 = arith.constant 0 : i32
    %c0_i32_0 = arith.constant 0 : i32
    return %arg0, %c0_i32 : i32, i32
  }
}

module attributes {stable_mosaic.version = 11 : i64} {
  func.func @_conv2_se_kernel(%arg0: i32, %arg1: memref<1x16x576xbf16, #tpu.memory_space<vmem>>, %arg2: memref<1x16x64xf32, #tpu.memory_space<vmem>>, %arg3: memref<576x64xbf16, #tpu.memory_space<vmem>>, %arg4: memref<1x64xf32, #tpu.memory_space<vmem>>, %arg5: memref<64x16xf32, #tpu.memory_space<vmem>>, %arg6: memref<16x64xf32, #tpu.memory_space<vmem>>, %arg7: memref<1x16xf32, #tpu.memory_space<vmem>>, %arg8: memref<1x64xf32, #tpu.memory_space<vmem>>, %arg9: memref<1x16x64xf32, #tpu.memory_space<vmem>>) attributes {dimension_semantics = [#tpu.dimension_semantics<parallel>], iteration_bounds = array<i64: 2>, scalar_prefetch = 0 : i64, scratch_operands = 0 : i64, tpu.core_type = #tpu.core_type<tc>, window_params = [{transform_indices = @transform_0, window_bounds = array<i64: 1, 16, 576>}, {transform_indices = @transform_1, window_bounds = array<i64: 1, 16, 64>}, {pipeline_mode = #tpu.pipeline_mode<synchronous>, transform_indices = @transform_2, window_bounds = array<i64: 576, 64>}, {pipeline_mode = #tpu.pipeline_mode<synchronous>, transform_indices = @transform_3, window_bounds = array<i64: 1, 64>}, {pipeline_mode = #tpu.pipeline_mode<synchronous>, transform_indices = @transform_4, window_bounds = array<i64: 64, 16>}, {pipeline_mode = #tpu.pipeline_mode<synchronous>, transform_indices = @transform_5, window_bounds = array<i64: 16, 64>}, {pipeline_mode = #tpu.pipeline_mode<synchronous>, transform_indices = @transform_6, window_bounds = array<i64: 1, 16>}, {pipeline_mode = #tpu.pipeline_mode<synchronous>, transform_indices = @transform_7, window_bounds = array<i64: 1, 64>}, {transform_indices = @transform_8, window_bounds = array<i64: 1, 16, 64>}]} {
    %c0 = arith.constant 0 : index
    %c0_0 = arith.constant 0 : index
    %c0_1 = arith.constant 0 : index
    %0 = vector.load %arg1[%c0, %c0_0, %c0_1] : memref<1x16x576xbf16, #tpu.memory_space<vmem>>, vector<1x16x576xbf16>
    %1 = vector.shape_cast %0 : vector<1x16x576xbf16> to vector<16x576xbf16>
    %c0_2 = arith.constant 0 : index
    %c0_3 = arith.constant 0 : index
    %2 = vector.load %arg3[%c0_2, %c0_3] : memref<576x64xbf16, #tpu.memory_space<vmem>>, vector<576x64xbf16>
    %cst = arith.constant dense<0.000000e+00> : vector<16x64xf32>
    %3 = tpu.matmul %1, %2, %cst {dimension_numbers = #tpu.dot_dimension_numbers<[1], [0], [0], [1], [0, 0, 1, 1], [], []>} : vector<16x576xbf16>, vector<576x64xbf16>, vector<16x64xf32> -> vector<16x64xf32>
    %c0_4 = arith.constant 0 : index
    %c0_5 = arith.constant 0 : index
    %4 = vector.load %arg4[%c0_4, %c0_5] : memref<1x64xf32, #tpu.memory_space<vmem>>, vector<1x64xf32>
    %5 = vector.broadcast %4 : vector<1x64xf32> to vector<16x64xf32>
    %6 = arith.addf %3, %5 : vector<16x64xf32>
    %cst_6 = arith.constant dense<0.000000e+00> : vector<64xf32>
    %7 = vector.multi_reduction <add>, %6, %cst_6 [0] : vector<16x64xf32> to vector<64xf32>
    %8 = vector.shape_cast %7 : vector<64xf32> to vector<1x64xf32>
    %cst_7 = arith.constant 1.600000e+01 : f32
    %9 = vector.broadcast %cst_7 : f32 to vector<1x64xf32>
    %10 = arith.divf %8, %9 : vector<1x64xf32>
    %c0_8 = arith.constant 0 : index
    %c0_9 = arith.constant 0 : index
    %11 = vector.load %arg5[%c0_8, %c0_9] : memref<64x16xf32, #tpu.memory_space<vmem>>, vector<64x16xf32>
    %cst_10 = arith.constant dense<0.000000e+00> : vector<1x16xf32>
    %12 = tpu.matmul %10, %11, %cst_10 {dimension_numbers = #tpu.dot_dimension_numbers<[1], [0], [0], [1], [0, 0, 1, 1], [], []>} : vector<1x64xf32>, vector<64x16xf32>, vector<1x16xf32> -> vector<1x16xf32>
    %c0_11 = arith.constant 0 : index
    %c0_12 = arith.constant 0 : index
    %13 = vector.load %arg7[%c0_11, %c0_12] : memref<1x16xf32, #tpu.memory_space<vmem>>, vector<1x16xf32>
    %cst_13 = arith.constant 0.000000e+00 : f32
    %14 = vector.broadcast %cst_13 : f32 to vector<1x16xf32>
    %15 = arith.cmpf oge, %12, %14 : vector<1x16xf32>
    %16 = arith.mulf %13, %12 : vector<1x16xf32>
    %17 = arith.select %15, %12, %16 : vector<1x16xi1>, vector<1x16xf32>
    %c0_14 = arith.constant 0 : index
    %c0_15 = arith.constant 0 : index
    %18 = vector.load %arg6[%c0_14, %c0_15] : memref<16x64xf32, #tpu.memory_space<vmem>>, vector<16x64xf32>
    %cst_16 = arith.constant dense<0.000000e+00> : vector<1x64xf32>
    %19 = tpu.matmul %17, %18, %cst_16 {dimension_numbers = #tpu.dot_dimension_numbers<[1], [0], [0], [1], [0, 0, 1, 1], [], []>} : vector<1x16xf32>, vector<16x64xf32>, vector<1x64xf32> -> vector<1x64xf32>
    %20 = arith.negf %19 : vector<1x64xf32>
    %21 = math.exp %20 : vector<1x64xf32>
    %cst_17 = arith.constant 1.000000e+00 : f32
    %22 = vector.broadcast %cst_17 : f32 to vector<1x64xf32>
    %23 = arith.addf %22, %21 : vector<1x64xf32>
    %24 = arith.divf %22, %23 : vector<1x64xf32>
    %25 = vector.broadcast %24 : vector<1x64xf32> to vector<16x64xf32>
    %26 = arith.mulf %6, %25 : vector<16x64xf32>
    %c0_18 = arith.constant 0 : index
    %c0_19 = arith.constant 0 : index
    %c0_20 = arith.constant 0 : index
    %27 = vector.load %arg2[%c0_18, %c0_19, %c0_20] : memref<1x16x64xf32, #tpu.memory_space<vmem>>, vector<1x16x64xf32>
    %28 = vector.shape_cast %27 : vector<1x16x64xf32> to vector<16x64xf32>
    %29 = arith.addf %26, %28 : vector<16x64xf32>
    %c0_21 = arith.constant 0 : index
    %c0_22 = arith.constant 0 : index
    %30 = vector.load %arg8[%c0_21, %c0_22] : memref<1x64xf32, #tpu.memory_space<vmem>>, vector<1x64xf32>
    %cst_23 = arith.constant 0.000000e+00 : f32
    %31 = vector.broadcast %cst_23 : f32 to vector<16x64xf32>
    %32 = arith.cmpf oge, %29, %31 : vector<16x64xf32>
    %33 = vector.broadcast %30 : vector<1x64xf32> to vector<16x64xf32>
    %34 = arith.mulf %33, %29 : vector<16x64xf32>
    %35 = arith.select %32, %29, %34 : vector<16x64xi1>, vector<16x64xf32>
    %c0_24 = arith.constant 0 : index
    %c0_25 = arith.constant 0 : index
    %c0_26 = arith.constant 0 : index
    %36 = vector.load %arg9[%c0_24, %c0_25, %c0_26] : memref<1x16x64xf32, #tpu.memory_space<vmem>>, vector<1x16x64xf32>
    %37 = vector.shape_cast %36 : vector<1x16x64xf32> to vector<16x64xf32>
    %38 = vector.shape_cast %35 : vector<16x64xf32> to vector<1x16x64xf32>
    tpu.vector_store %arg9[%c0_24, %c0_25, %c0_26], %38 {strides = array<i32>} : memref<1x16x64xf32, #tpu.memory_space<vmem>>, vector<1x16x64xf32>,
    return
  }
  func.func @transform_0(%arg0: i32) -> (i32, i32, i32) {
    %c0_i32 = arith.constant 0 : i32
    %c0_i32_0 = arith.constant 0 : i32
    %c0_i32_1 = arith.constant 0 : i32
    return %arg0, %c0_i32, %c0_i32_0 : i32, i32, i32
  }
  func.func @transform_1(%arg0: i32) -> (i32, i32, i32) {
    %c0_i32 = arith.constant 0 : i32
    %c0_i32_0 = arith.constant 0 : i32
    %c0_i32_1 = arith.constant 0 : i32
    return %arg0, %c0_i32, %c0_i32_0 : i32, i32, i32
  }
  func.func @transform_2(%arg0: i32) -> (i32, i32) {
    %c0_i32 = arith.constant 0 : i32
    %c0_i32_0 = arith.constant 0 : i32
    %c0_i32_1 = arith.constant 0 : i32
    return %c0_i32, %c0_i32_0 : i32, i32
  }
  func.func @transform_3(%arg0: i32) -> (i32, i32) {
    %c0_i32 = arith.constant 0 : i32
    %c0_i32_0 = arith.constant 0 : i32
    %c0_i32_1 = arith.constant 0 : i32
    return %c0_i32, %c0_i32_0 : i32, i32
  }
  func.func @transform_4(%arg0: i32) -> (i32, i32) {
    %c0_i32 = arith.constant 0 : i32
    %c0_i32_0 = arith.constant 0 : i32
    %c0_i32_1 = arith.constant 0 : i32
    return %c0_i32, %c0_i32_0 : i32, i32
  }
  func.func @transform_5(%arg0: i32) -> (i32, i32) {
    %c0_i32 = arith.constant 0 : i32
    %c0_i32_0 = arith.constant 0 : i32
    %c0_i32_1 = arith.constant 0 : i32
    return %c0_i32, %c0_i32_0 : i32, i32
  }
  func.func @transform_6(%arg0: i32) -> (i32, i32) {
    %c0_i32 = arith.constant 0 : i32
    %c0_i32_0 = arith.constant 0 : i32
    %c0_i32_1 = arith.constant 0 : i32
    return %c0_i32, %c0_i32_0 : i32, i32
  }
  func.func @transform_7(%arg0: i32) -> (i32, i32) {
    %c0_i32 = arith.constant 0 : i32
    %c0_i32_0 = arith.constant 0 : i32
    %c0_i32_1 = arith.constant 0 : i32
    return %c0_i32, %c0_i32_0 : i32, i32
  }
  func.func @transform_8(%arg0: i32) -> (i32, i32, i32) {
    %c0_i32 = arith.constant 0 : i32
    %c0_i32_0 = arith.constant 0 : i32
    %c0_i32_1 = arith.constant 0 : i32
    return %arg0, %c0_i32, %c0_i32_0 : i32, i32, i32
  }
}

module attributes {stable_mosaic.version = 11 : i64} {
  func.func @_matmul_bias_prelu_kernel(%arg0: i32, %arg1: memref<16x576xbf16, #tpu.memory_space<vmem>>, %arg2: memref<576x256xbf16, #tpu.memory_space<vmem>>, %arg3: memref<1x256xf32, #tpu.memory_space<vmem>>, %arg4: memref<1x256xf32, #tpu.memory_space<vmem>>, %arg5: memref<16x256xf32, #tpu.memory_space<vmem>>) attributes {dimension_semantics = [#tpu.dimension_semantics<parallel>], iteration_bounds = array<i64: 1>, scalar_prefetch = 0 : i64, scratch_operands = 0 : i64, tpu.core_type = #tpu.core_type<tc>, window_params = [{transform_indices = @transform_0, window_bounds = array<i64: 16, 576>}, {pipeline_mode = #tpu.pipeline_mode<synchronous>, transform_indices = @transform_1, window_bounds = array<i64: 576, 256>}, {pipeline_mode = #tpu.pipeline_mode<synchronous>, transform_indices = @transform_2, window_bounds = array<i64: 1, 256>}, {pipeline_mode = #tpu.pipeline_mode<synchronous>, transform_indices = @transform_3, window_bounds = array<i64: 1, 256>}, {transform_indices = @transform_4, window_bounds = array<i64: 16, 256>}]} {
    %c0 = arith.constant 0 : index
    %c0_0 = arith.constant 0 : index
    %0 = vector.load %arg1[%c0, %c0_0] : memref<16x576xbf16, #tpu.memory_space<vmem>>, vector<16x576xbf16>
    %c0_1 = arith.constant 0 : index
    %c0_2 = arith.constant 0 : index
    %1 = vector.load %arg2[%c0_1, %c0_2] : memref<576x256xbf16, #tpu.memory_space<vmem>>, vector<576x256xbf16>
    %cst = arith.constant dense<0.000000e+00> : vector<16x256xf32>
    %2 = tpu.matmul %0, %1, %cst {dimension_numbers = #tpu.dot_dimension_numbers<[1], [0], [0], [1], [0, 0, 1, 1], [], []>} : vector<16x576xbf16>, vector<576x256xbf16>, vector<16x256xf32> -> vector<16x256xf32>
    %c0_3 = arith.constant 0 : index
    %c0_4 = arith.constant 0 : index
    %3 = vector.load %arg3[%c0_3, %c0_4] : memref<1x256xf32, #tpu.memory_space<vmem>>, vector<1x256xf32>
    %4 = vector.broadcast %3 : vector<1x256xf32> to vector<16x256xf32>
    %5 = arith.addf %2, %4 : vector<16x256xf32>
    %c0_5 = arith.constant 0 : index
    %c0_6 = arith.constant 0 : index
    %6 = vector.load %arg4[%c0_5, %c0_6] : memref<1x256xf32, #tpu.memory_space<vmem>>, vector<1x256xf32>
    %cst_7 = arith.constant 0.000000e+00 : f32
    %7 = vector.broadcast %cst_7 : f32 to vector<16x256xf32>
    %8 = arith.cmpf oge, %5, %7 : vector<16x256xf32>
    %9 = vector.broadcast %6 : vector<1x256xf32> to vector<16x256xf32>
    %10 = arith.mulf %9, %5 : vector<16x256xf32>
    %11 = arith.select %8, %5, %10 : vector<16x256xi1>, vector<16x256xf32>
    %c0_8 = arith.constant 0 : index
    %c0_9 = arith.constant 0 : index
    %12 = vector.load %arg5[%c0_8, %c0_9] : memref<16x256xf32, #tpu.memory_space<vmem>>, vector<16x256xf32>
    tpu.vector_store %arg5[%c0_8, %c0_9], %11 {strides = array<i32>} : memref<16x256xf32, #tpu.memory_space<vmem>>, vector<16x256xf32>,
    return
  }
  func.func @transform_0(%arg0: i32) -> (i32, i32) {
    %c0_i32 = arith.constant 0 : i32
    %c0_i32_0 = arith.constant 0 : i32
    return %arg0, %c0_i32 : i32, i32
  }
  func.func @transform_1(%arg0: i32) -> (i32, i32) {
    %c0_i32 = arith.constant 0 : i32
    %c0_i32_0 = arith.constant 0 : i32
    %c0_i32_1 = arith.constant 0 : i32
    return %c0_i32, %c0_i32_0 : i32, i32
  }
  func.func @transform_2(%arg0: i32) -> (i32, i32) {
    %c0_i32 = arith.constant 0 : i32
    %c0_i32_0 = arith.constant 0 : i32
    %c0_i32_1 = arith.constant 0 : i32
    return %c0_i32, %c0_i32_0 : i32, i32
  }
  func.func @transform_3(%arg0: i32) -> (i32, i32) {
    %c0_i32 = arith.constant 0 : i32
    %c0_i32_0 = arith.constant 0 : i32
    %c0_i32_1 = arith.constant 0 : i32
    return %c0_i32, %c0_i32_0 : i32, i32
  }
  func.func @transform_4(%arg0: i32) -> (i32, i32) {
    %c0_i32 = arith.constant 0 : i32
    %c0_i32_0 = arith.constant 0 : i32
    return %arg0, %c0_i32 : i32, i32
  }
}

module attributes {stable_mosaic.version = 11 : i64} {
  func.func @_conv2_se_kernel(%arg0: i32, %arg1: memref<1x4x1152xbf16, #tpu.memory_space<vmem>>, %arg2: memref<1x4x128xf32, #tpu.memory_space<vmem>>, %arg3: memref<1152x128xbf16, #tpu.memory_space<vmem>>, %arg4: memref<1x128xf32, #tpu.memory_space<vmem>>, %arg5: memref<128x16xf32, #tpu.memory_space<vmem>>, %arg6: memref<16x128xf32, #tpu.memory_space<vmem>>, %arg7: memref<1x16xf32, #tpu.memory_space<vmem>>, %arg8: memref<1x128xf32, #tpu.memory_space<vmem>>, %arg9: memref<1x4x128xf32, #tpu.memory_space<vmem>>) attributes {dimension_semantics = [#tpu.dimension_semantics<parallel>], iteration_bounds = array<i64: 2>, scalar_prefetch = 0 : i64, scratch_operands = 0 : i64, tpu.core_type = #tpu.core_type<tc>, window_params = [{transform_indices = @transform_0, window_bounds = array<i64: 1, 4, 1152>}, {transform_indices = @transform_1, window_bounds = array<i64: 1, 4, 128>}, {pipeline_mode = #tpu.pipeline_mode<synchronous>, transform_indices = @transform_2, window_bounds = array<i64: 1152, 128>}, {pipeline_mode = #tpu.pipeline_mode<synchronous>, transform_indices = @transform_3, window_bounds = array<i64: 1, 128>}, {pipeline_mode = #tpu.pipeline_mode<synchronous>, transform_indices = @transform_4, window_bounds = array<i64: 128, 16>}, {pipeline_mode = #tpu.pipeline_mode<synchronous>, transform_indices = @transform_5, window_bounds = array<i64: 16, 128>}, {pipeline_mode = #tpu.pipeline_mode<synchronous>, transform_indices = @transform_6, window_bounds = array<i64: 1, 16>}, {pipeline_mode = #tpu.pipeline_mode<synchronous>, transform_indices = @transform_7, window_bounds = array<i64: 1, 128>}, {transform_indices = @transform_8, window_bounds = array<i64: 1, 4, 128>}]} {
    %c0 = arith.constant 0 : index
    %c0_0 = arith.constant 0 : index
    %c0_1 = arith.constant 0 : index
    %0 = vector.load %arg1[%c0, %c0_0, %c0_1] : memref<1x4x1152xbf16, #tpu.memory_space<vmem>>, vector<1x4x1152xbf16>
    %1 = vector.shape_cast %0 : vector<1x4x1152xbf16> to vector<4x1152xbf16>
    %c0_2 = arith.constant 0 : index
    %c0_3 = arith.constant 0 : index
    %2 = vector.load %arg3[%c0_2, %c0_3] : memref<1152x128xbf16, #tpu.memory_space<vmem>>, vector<1152x128xbf16>
    %cst = arith.constant dense<0.000000e+00> : vector<4x128xf32>
    %3 = tpu.matmul %1, %2, %cst {dimension_numbers = #tpu.dot_dimension_numbers<[1], [0], [0], [1], [0, 0, 1, 1], [], []>} : vector<4x1152xbf16>, vector<1152x128xbf16>, vector<4x128xf32> -> vector<4x128xf32>
    %c0_4 = arith.constant 0 : index
    %c0_5 = arith.constant 0 : index
    %4 = vector.load %arg4[%c0_4, %c0_5] : memref<1x128xf32, #tpu.memory_space<vmem>>, vector<1x128xf32>
    %5 = vector.broadcast %4 : vector<1x128xf32> to vector<4x128xf32>
    %6 = arith.addf %3, %5 : vector<4x128xf32>
    %cst_6 = arith.constant dense<0.000000e+00> : vector<128xf32>
    %7 = vector.multi_reduction <add>, %6, %cst_6 [0] : vector<4x128xf32> to vector<128xf32>
    %8 = vector.shape_cast %7 : vector<128xf32> to vector<1x128xf32>
    %cst_7 = arith.constant 4.000000e+00 : f32
    %9 = vector.broadcast %cst_7 : f32 to vector<1x128xf32>
    %10 = arith.divf %8, %9 : vector<1x128xf32>
    %c0_8 = arith.constant 0 : index
    %c0_9 = arith.constant 0 : index
    %11 = vector.load %arg5[%c0_8, %c0_9] : memref<128x16xf32, #tpu.memory_space<vmem>>, vector<128x16xf32>
    %cst_10 = arith.constant dense<0.000000e+00> : vector<1x16xf32>
    %12 = tpu.matmul %10, %11, %cst_10 {dimension_numbers = #tpu.dot_dimension_numbers<[1], [0], [0], [1], [0, 0, 1, 1], [], []>} : vector<1x128xf32>, vector<128x16xf32>, vector<1x16xf32> -> vector<1x16xf32>
    %c0_11 = arith.constant 0 : index
    %c0_12 = arith.constant 0 : index
    %13 = vector.load %arg7[%c0_11, %c0_12] : memref<1x16xf32, #tpu.memory_space<vmem>>, vector<1x16xf32>
    %cst_13 = arith.constant 0.000000e+00 : f32
    %14 = vector.broadcast %cst_13 : f32 to vector<1x16xf32>
    %15 = arith.cmpf oge, %12, %14 : vector<1x16xf32>
    %16 = arith.mulf %13, %12 : vector<1x16xf32>
    %17 = arith.select %15, %12, %16 : vector<1x16xi1>, vector<1x16xf32>
    %c0_14 = arith.constant 0 : index
    %c0_15 = arith.constant 0 : index
    %18 = vector.load %arg6[%c0_14, %c0_15] : memref<16x128xf32, #tpu.memory_space<vmem>>, vector<16x128xf32>
    %cst_16 = arith.constant dense<0.000000e+00> : vector<1x128xf32>
    %19 = tpu.matmul %17, %18, %cst_16 {dimension_numbers = #tpu.dot_dimension_numbers<[1], [0], [0], [1], [0, 0, 1, 1], [], []>} : vector<1x16xf32>, vector<16x128xf32>, vector<1x128xf32> -> vector<1x128xf32>
    %20 = arith.negf %19 : vector<1x128xf32>
    %21 = math.exp %20 : vector<1x128xf32>
    %cst_17 = arith.constant 1.000000e+00 : f32
    %22 = vector.broadcast %cst_17 : f32 to vector<1x128xf32>
    %23 = arith.addf %22, %21 : vector<1x128xf32>
    %24 = arith.divf %22, %23 : vector<1x128xf32>
    %25 = vector.broadcast %24 : vector<1x128xf32> to vector<4x128xf32>
    %26 = arith.mulf %6, %25 : vector<4x128xf32>
    %c0_18 = arith.constant 0 : index
    %c0_19 = arith.constant 0 : index
    %c0_20 = arith.constant 0 : index
    %27 = vector.load %arg2[%c0_18, %c0_19, %c0_20] : memref<1x4x128xf32, #tpu.memory_space<vmem>>, vector<1x4x128xf32>
    %28 = vector.shape_cast %27 : vector<1x4x128xf32> to vector<4x128xf32>
    %29 = arith.addf %26, %28 : vector<4x128xf32>
    %c0_21 = arith.constant 0 : index
    %c0_22 = arith.constant 0 : index
    %30 = vector.load %arg8[%c0_21, %c0_22] : memref<1x128xf32, #tpu.memory_space<vmem>>, vector<1x128xf32>
    %cst_23 = arith.constant 0.000000e+00 : f32
    %31 = vector.broadcast %cst_23 : f32 to vector<4x128xf32>
    %32 = arith.cmpf oge, %29, %31 : vector<4x128xf32>
    %33 = vector.broadcast %30 : vector<1x128xf32> to vector<4x128xf32>
    %34 = arith.mulf %33, %29 : vector<4x128xf32>
    %35 = arith.select %32, %29, %34 : vector<4x128xi1>, vector<4x128xf32>
    %c0_24 = arith.constant 0 : index
    %c0_25 = arith.constant 0 : index
    %c0_26 = arith.constant 0 : index
    %36 = vector.load %arg9[%c0_24, %c0_25, %c0_26] : memref<1x4x128xf32, #tpu.memory_space<vmem>>, vector<1x4x128xf32>
    %37 = vector.shape_cast %36 : vector<1x4x128xf32> to vector<4x128xf32>
    %38 = vector.shape_cast %35 : vector<4x128xf32> to vector<1x4x128xf32>
    tpu.vector_store %arg9[%c0_24, %c0_25, %c0_26], %38 {strides = array<i32>} : memref<1x4x128xf32, #tpu.memory_space<vmem>>, vector<1x4x128xf32>,
    return
  }
  func.func @transform_0(%arg0: i32) -> (i32, i32, i32) {
    %c0_i32 = arith.constant 0 : i32
    %c0_i32_0 = arith.constant 0 : i32
    %c0_i32_1 = arith.constant 0 : i32
    return %arg0, %c0_i32, %c0_i32_0 : i32, i32, i32
  }
  func.func @transform_1(%arg0: i32) -> (i32, i32, i32) {
    %c0_i32 = arith.constant 0 : i32
    %c0_i32_0 = arith.constant 0 : i32
    %c0_i32_1 = arith.constant 0 : i32
    return %arg0, %c0_i32, %c0_i32_0 : i32, i32, i32
  }
  func.func @transform_2(%arg0: i32) -> (i32, i32) {
    %c0_i32 = arith.constant 0 : i32
    %c0_i32_0 = arith.constant 0 : i32
    %c0_i32_1 = arith.constant 0 : i32
    return %c0_i32, %c0_i32_0 : i32, i32
  }
  func.func @transform_3(%arg0: i32) -> (i32, i32) {
    %c0_i32 = arith.constant 0 : i32
    %c0_i32_0 = arith.constant 0 : i32
    %c0_i32_1 = arith.constant 0 : i32
    return %c0_i32, %c0_i32_0 : i32, i32
  }
  func.func @transform_4(%arg0: i32) -> (i32, i32) {
    %c0_i32 = arith.constant 0 : i32
    %c0_i32_0 = arith.constant 0 : i32
    %c0_i32_1 = arith.constant 0 : i32
    return %c0_i32, %c0_i32_0 : i32, i32
  }
  func.func @transform_5(%arg0: i32) -> (i32, i32) {
    %c0_i32 = arith.constant 0 : i32
    %c0_i32_0 = arith.constant 0 : i32
    %c0_i32_1 = arith.constant 0 : i32
    return %c0_i32, %c0_i32_0 : i32, i32
  }
  func.func @transform_6(%arg0: i32) -> (i32, i32) {
    %c0_i32 = arith.constant 0 : i32
    %c0_i32_0 = arith.constant 0 : i32
    %c0_i32_1 = arith.constant 0 : i32
    return %c0_i32, %c0_i32_0 : i32, i32
  }
  func.func @transform_7(%arg0: i32) -> (i32, i32) {
    %c0_i32 = arith.constant 0 : i32
    %c0_i32_0 = arith.constant 0 : i32
    %c0_i32_1 = arith.constant 0 : i32
    return %c0_i32, %c0_i32_0 : i32, i32
  }
  func.func @transform_8(%arg0: i32) -> (i32, i32, i32) {
    %c0_i32 = arith.constant 0 : i32
    %c0_i32_0 = arith.constant 0 : i32
    %c0_i32_1 = arith.constant 0 : i32
    return %arg0, %c0_i32, %c0_i32_0 : i32, i32, i32
  }
}

</mosaic_0001>

<llo_original>
// kernel: context_net.8
$region0: #{context_net.8}
  #allocation0 [shape = 'u32[]', space=smem, size = 0x4, offset = 0x4, fixed_abs, tag = 'smem constant byte address 0x4 - core index']
  #allocation1 [shape = 'u32[144,128]{1,0:T(1,128)}', space=vmem, size = 0x12000, scoped, tag = 'internal scratch']
  %s0 = inlined_call_operand.vmem [shape: bf16[512,27], index: 0, kind: input, shape index: {}]
  %s1 = inlined_call_operand.vmem [shape: bf16[27,32], index: 1, kind: input, shape index: {}]
  %s2 = inlined_call_operand.vmem [shape: f32[1,32], index: 2, kind: input, shape index: {}]
  %s3 = inlined_call_operand.vmem [shape: f32[1,32], index: 3, kind: input, shape index: {}]
  %s4 = inlined_call_operand.vmem [shape: f32[512,32], index: 4, kind: output, shape index: {}]
  %s5 = sld [smem:[#allocation0]]
  $region26: #{context_net.8} parent=0
    _
  %s7 = ssub.s32 1, %s5
  %s8 = scalar_select 0, %s7, %s5
  // Predicated region
  $region2: #{context_net.8} parent=0 // pred_check
    _
  $region3: #{context_net.8} parent=0 // pred_check_branch
    %10 = sbr.rel (0) target = $region5
  $region4: #{context_net.8} parent=0 // pred_region
    _
  $region5: #{context_net.8} parent=0 // pred_fallthru
    _
  // Predicated region
  $region6: #{context_net.8} parent=0 // pred_check
    _
  $region7: #{context_net.8} parent=0 // pred_check_branch
    %12 = sbr.rel (0) target = $region9
  $region8: #{context_net.8} parent=0 // pred_region
    _
  $region9: #{context_net.8} parent=0 // pred_fallthru
    _
  // Predicated region
  $region10: #{context_net.8} parent=0 // pred_check
    _
  $region11: #{context_net.8} parent=0 // pred_check_branch
    %14 = sbr.rel (0) target = $region13
  $region12: #{context_net.8} parent=0 // pred_region
    _
  $region13: #{context_net.8} parent=0 // pred_fallthru
    _
  // Predicated region
  $region14: #{context_net.8} parent=0 // pred_check
    _
  $region15: #{context_net.8} parent=0 // pred_check_branch
    %16 = sbr.rel (0) target = $region17
  $region16: #{context_net.8} parent=0 // pred_region
    _
  $region17: #{context_net.8} parent=0 // pred_fallthru
    _
  %v18 = vld [vmem:[%s0] sm:$0xf]
  %v19 = vld [vmem:[%s0 + $0x4] sm:$0xf]
  %v20 = vld [vmem:[%s0 + $0x8] sm:$0xf]
  %v21 = vld [vmem:[%s0 + $0xc] sm:$0xf]
  %v22 = vld [vmem:[%s0 + $0x10] sm:$0xf]
  %v23 = vld [vmem:[%s0 + $0x14] sm:$0xf]
  %v24 = vld [vmem:[%s0 + $0x18] sm:$0xf]
  %v25 = vld [vmem:[%s0 + $0x1c] sm:$0xf]
  %v26 = vld [vmem:[%s0 + $0x20] sm:$0xf]
  %v27 = vld [vmem:[%s0 + $0x24] sm:$0xf]
  %v28 = vld [vmem:[%s0 + $0x28] sm:$0xf]
  %v29 = vld [vmem:[%s0 + $0x2c] sm:$0xf]
  %v30 = vld [vmem:[%s0 + $0x30] sm:$0xf]
  %v31 = vld [vmem:[%s0 + $0x34] sm:$0xf]
  %v32 = vld [vmem:[%s0 + $0x38] sm:$0xf]
  %v33 = vld [vmem:[%s0 + $0x3c] sm:$0xf]
  %v34 = vld [vmem:[%s0 + $0x40] sm:$0xf]
  %v35 = vld [vmem:[%s0 + $0x44] sm:$0xf]
  %v36 = vld [vmem:[%s0 + $0x48] sm:$0xf]
  %v37 = vld [vmem:[%s0 + $0x4c] sm:$0xf]
  %v38 = vld [vmem:[%s0 + $0x50] sm:$0xf]
  %v39 = vld [vmem:[%s0 + $0x54] sm:$0xf]
  %v40 = vld [vmem:[%s0 + $0x58] sm:$0xf]
  %v41 = vld [vmem:[%s0 + $0x5c] sm:$0xf]
  %v42 = vld [vmem:[%s0 + $0x60] sm:$0xf]
  %v43 = vld [vmem:[%s0 + $0x64] sm:$0xf]
  %v44 = vld [vmem:[%s0 + $0x68] sm:$0xf]
  %v45 = vld [vmem:[%s0 + $0x6c] sm:$0xf]
  %v46 = vld [vmem:[%s0 + $0x70] sm:$0xf]
  %v47 = vld [vmem:[%s0 + $0x74] sm:$0xf]
  %v48 = vld [vmem:[%s0 + $0x78] sm:$0xf]
  %v49 = vld [vmem:[%s0 + $0x7c] sm:$0xf]
  %v50 = vld [vmem:[%s0 + $0x80] sm:$0xf]
  %v51 = vld [vmem:[%s0 + $0x84] sm:$0xf]
  %v52 = vld [vmem:[%s0 + $0x88] sm:$0xf]
  %v53 = vld [vmem:[%s0 + $0x8c] sm:$0xf]
  %v54 = vld [vmem:[%s0 + $0x90] sm:$0xf]
  %v55 = vld [vmem:[%s0 + $0x94] sm:$0xf]
  %v56 = vld [vmem:[%s0 + $0x98] sm:$0xf]
  %v57 = vld [vmem:[%s0 + $0x9c] sm:$0xf]
  %v58 = vld [vmem:[%s0 + $0xa0] sm:$0xf]
  %v59 = vld [vmem:[%s0 + $0xa4] sm:$0xf]
  %v60 = vld [vmem:[%s0 + $0xa8] sm:$0xf]
  %v61 = vld [vmem:[%s0 + $0xac] sm:$0xf]
  %v62 = vld [vmem:[%s0 + $0xb0] sm:$0xf]
  %v63 = vld [vmem:[%s0 + $0xb4] sm:$0xf]
  %v64 = vld [vmem:[%s0 + $0xb8] sm:$0xf]
  %v65 = vld [vmem:[%s0 + $0xbc] sm:$0xf]
  %v66 = vld [vmem:[%s0 + $0xc0] sm:$0xf]
  %v67 = vld [vmem:[%s0 + $0xc4] sm:$0xf]
  %v68 = vld [vmem:[%s0 + $0xc8] sm:$0xf]
  %v69 = vld [vmem:[%s0 + $0xcc] sm:$0xf]
  %v70 = vld [vmem:[%s0 + $0xd0] sm:$0xf]
  %v71 = vld [vmem:[%s0 + $0xd4] sm:$0xf]
  %v72 = vld [vmem:[%s0 + $0xd8] sm:$0xf]
  %v73 = vld [vmem:[%s0 + $0xdc] sm:$0xf]
  %v74 = vld [vmem:[%s0 + $0xe0] sm:$0xf]
  %v75 = vld [vmem:[%s0 + $0xe4] sm:$0xf]
  %v76 = vld [vmem:[%s0 + $0xe8] sm:$0xf]
  %v77 = vld [vmem:[%s0 + $0xec] sm:$0xf]
  %v78 = vld [vmem:[%s0 + $0xf0] sm:$0xf]
  %v79 = vld [vmem:[%s0 + $0xf4] sm:$0xf]
  %v80 = vld [vmem:[%s0 + $0xf8] sm:$0xf]
  %v81 = vld [vmem:[%s0 + $0xfc] sm:$0xf]
  %v82 = vld [vmem:[%s1] sm:$0xf]
  %v83 = vld [vmem:[%s1 + $0x4] sm:$0xf]
  %v84 = vld [vmem:[%s1 + $0x8] sm:$0xf]
  %v85 = vld [vmem:[%s1 + $0xc] sm:$0x3]
  %v86 = vld [vmem:[%s2] sm:$0x1]
  %v88 = vlaneseq
  %v89 = vshrl.u32 %v88, 7
  %v90 = vsub.s32 0, %v89
  %v91 = vrot.slane %v86, %v90
  %v157 = vunpack.c.l.b16 %v18
  %v158 = vunpack.c.l.b16 %v19
  %v159 = vunpack.c.l.b16 %v20
  %v160 = vunpack.c.l.b16 %v21
  %v161 = vunpack.c.l.b16 %v22
  %v162 = vunpack.c.l.b16 %v23
  %v163 = vunpack.c.l.b16 %v24
  %v164 = vunpack.c.l.b16 %v25
  %v165 = vunpack.c.l.b16 %v26
  %v166 = vunpack.c.l.b16 %v27
  %v167 = vunpack.c.l.b16 %v28
  %v168 = vunpack.c.l.b16 %v29
  %v169 = vunpack.c.l.b16 %v30
  %v170 = vunpack.c.l.b16 %v31
  %v171 = vunpack.c.l.b16 %v32
  %v172 = vunpack.c.l.b16 %v33
  %v173 = vunpack.c.l.b16 %v34
  %v174 = vunpack.c.l.b16 %v35
  %v175 = vunpack.c.l.b16 %v36
  %v176 = vunpack.c.l.b16 %v37
  %v177 = vunpack.c.l.b16 %v38
  %v178 = vunpack.c.l.b16 %v39
  %v179 = vunpack.c.l.b16 %v40
  %v180 = vunpack.c.l.b16 %v41
  %v181 = vunpack.c.l.b16 %v42
  %v182 = vunpack.c.l.b16 %v43
  %v183 = vunpack.c.l.b16 %v44
  %v184 = vunpack.c.l.b16 %v45
  %v185 = vunpack.c.l.b16 %v46
  %v186 = vunpack.c.l.b16 %v47
  %v187 = vunpack.c.l.b16 %v48
  %v188 = vunpack.c.l.b16 %v49
  %v189 = vunpack.c.l.b16 %v50
  %v190 = vunpack.c.l.b16 %v51
  %v191 = vunpack.c.l.b16 %v52
  %v192 = vunpack.c.l.b16 %v53
  %v193 = vunpack.c.l.b16 %v54
  %v194 = vunpack.c.l.b16 %v55
  %v195 = vunpack.c.l.b16 %v56
  %v196 = vunpack.c.l.b16 %v57
  %v197 = vunpack.c.l.b16 %v58
  %v198 = vunpack.c.l.b16 %v59
  %v199 = vunpack.c.l.b16 %v60
  %v200 = vunpack.c.l.b16 %v61
  %v201 = vunpack.c.l.b16 %v62
  %v202 = vunpack.c.l.b16 %v63
  %v203 = vunpack.c.l.b16 %v64
  %v204 = vunpack.c.l.b16 %v65
  %v205 = vunpack.c.l.b16 %v66
  %v206 = vunpack.c.l.b16 %v67
  %v207 = vunpack.c.l.b16 %v68
  %v208 = vunpack.c.l.b16 %v69
  %v209 = vunpack.c.l.b16 %v70
  %v210 = vunpack.c.l.b16 %v71
  %v211 = vunpack.c.l.b16 %v72
  %v212 = vunpack.c.l.b16 %v73
  %v213 = vunpack.c.l.b16 %v74
  %v214 = vunpack.c.l.b16 %v75
  %v215 = vunpack.c.l.b16 %v76
  %v216 = vunpack.c.l.b16 %v77
  %v217 = vunpack.c.l.b16 %v78
  %v218 = vunpack.c.l.b16 %v79
  %v219 = vunpack.c.l.b16 %v80
  %v220 = vunpack.c.l.b16 %v81
  %v221 = vpack.c.b16 %v158, %v157
  %v222 = vpack.c.b16 %v160, %v159
  %v223 = vpack.c.b16 %v162, %v161
  %v224 = vpack.c.b16 %v164, %v163
  %v225 = vpack.c.b16 %v166, %v165
  %v226 = vpack.c.b16 %v168, %v167
  %v227 = vpack.c.b16 %v170, %v169
  %v228 = vpack.c.b16 %v172, %v171
  %v229 = vpack.c.b16 %v174, %v173
  %v230 = vpack.c.b16 %v176, %v175
  %v231 = vpack.c.b16 %v178, %v177
  %v232 = vpack.c.b16 %v180, %v179
  %v233 = vpack.c.b16 %v182, %v181
  %v234 = vpack.c.b16 %v184, %v183
  %v235 = vpack.c.b16 %v186, %v185
  %v236 = vpack.c.b16 %v188, %v187
  %v237 = vpack.c.b16 %v190, %v189
  %v238 = vpack.c.b16 %v192, %v191
  %v239 = vpack.c.b16 %v194, %v193
  %v240 = vpack.c.b16 %v196, %v195
  %v241 = vpack.c.b16 %v198, %v197
  %v242 = vpack.c.b16 %v200, %v199
  %v243 = vpack.c.b16 %v202, %v201
  %v244 = vpack.c.b16 %v204, %v203
  %v245 = vpack.c.b16 %v206, %v205
  %v246 = vpack.c.b16 %v208, %v207
  %v247 = vpack.c.b16 %v210, %v209
  %v248 = vpack.c.b16 %v212, %v211
  %v249 = vpack.c.b16 %v214, %v213
  %v250 = vpack.c.b16 %v216, %v215
  %v251 = vpack.c.b16 %v218, %v217
  %v252 = vpack.c.b16 %v220, %v219
  %v257 = vunpack.c.l.b16 %v82
  %v258 = vunpack.c.l.b16 %v83
  %v259 = vunpack.c.l.b16 %v84
  %v260 = vunpack.c.l.b16 %v85
  %v261 = vpack.c.b16 %v258, %v257
  %v262 = vpack.c.b16 %v260, %v259
  %vm264 = vcmask 220160
  %v266 = vsel %vm264, %v221, 0
  %v269 = vsel %vm264, %v222, 0
  %v272 = vsel %vm264, %v223, 0
  %v275 = vsel %vm264, %v224, 0
  %v278 = vsel %vm264, %v225, 0
  %v281 = vsel %vm264, %v226, 0
  %v284 = vsel %vm264, %v227, 0
  %v287 = vsel %vm264, %v228, 0
  %v290 = vsel %vm264, %v229, 0
  %v293 = vsel %vm264, %v230, 0
  %v296 = vsel %vm264, %v231, 0
  %v299 = vsel %vm264, %v232, 0
  %v302 = vsel %vm264, %v233, 0
  %v305 = vsel %vm264, %v234, 0
  %v308 = vsel %vm264, %v235, 0
  %v311 = vsel %vm264, %v236, 0
  %v314 = vsel %vm264, %v237, 0
  %v317 = vsel %vm264, %v238, 0
  %v320 = vsel %vm264, %v239, 0
  %v323 = vsel %vm264, %v240, 0
  %v326 = vsel %vm264, %v241, 0
  %v329 = vsel %vm264, %v242, 0
  %v332 = vsel %vm264, %v243, 0
  %v335 = vsel %vm264, %v244, 0
  %v338 = vsel %vm264, %v245, 0
  %v341 = vsel %vm264, %v246, 0
  %v344 = vsel %vm264, %v247, 0
  %v347 = vsel %vm264, %v248, 0
  %v350 = vsel %vm264, %v249, 0
  %v353 = vsel %vm264, %v250, 0
  %v356 = vsel %vm264, %v251, 0
  %v359 = vsel %vm264, %v252, 0
  %vm361 = vcmask 1044480
  %vm362 = vcmask 1045504
  %v363 = vsel %vm361, 4294967295, 65535
  %v364 = vsel %vm362, %v363, 0
  %v366 = vand.u32 %v262, %v364
  %368 = vmatprep.subr.bf16.mxu0 0
  %369 = vmatpush1.bf16.msra.mxu0 %v261
  %370 = vmatprep.subr.bf16.mxu0 0
  %371 = vmatpush1.bf16.msra.mxu0 %v366
  %372 = vmatprep.subr.bf16.mxu0 0
  %373 = vmatpush1.bf16.msra.mxu0 0
  %374 = vmatprep.subr.bf16.mxu0 0
  %375 = vmatpush1.bf16.msra.mxu0 0
  %376 = vmatprep.subr.bf16.mxu0 0
  %377 = vmatpush1.bf16.msra.mxu0 0
  %378 = vmatprep.subr.bf16.mxu0 0
  %379 = vmatpush1.bf16.msra.mxu0 0
  %380 = vmatprep.subr.bf16.mxu0 0
  %381 = vmatpush1.bf16.msra.mxu0 0
  %382 = vmatprep.subr.bf16.mxu0 0
  %383 = vmatpush1.bf16.msra.mxu0 0
  %384 = vmatprep.subr.bf16.mxu0 0
  %385 = vmatpush1.bf16.msra.mxu0 0
  %386 = vmatprep.subr.bf16.mxu0 0
  %387 = vmatpush1.bf16.msra.mxu0 0
  %388 = vmatprep.subr.bf16.mxu0 0
  %389 = vmatpush1.bf16.msra.mxu0 0
  %390 = vmatprep.subr.bf16.mxu0 0
  %391 = vmatpush1.bf16.msra.mxu0 0
  %392 = vmatprep.subr.bf16.mxu0 0
  %393 = vmatpush1.bf16.msra.mxu0 0
  %394 = vmatprep.subr.bf16.mxu0 0
  %395 = vmatpush1.bf16.msra.mxu0 0
  %396 = vmatprep.subr.bf16.mxu0 0
  %397 = vmatpush1.bf16.msra.mxu0 0
  %398 = vmatprep.subr.bf16.mxu0 0
  %399 = vmatpush1.bf16.msra.mxu0 0
  %400 = vmatprep.mubr.bf16.mxu0 0
  %401 = vmatmul.mubr.bf16.gmra.mrb[0].mxu0 %v266
  %v402 = vpop.f32.mrb[0].mxu0
  %v403 = vadd.f32 %v91, %v402
  %v404 = vpop.f32.mrb[0].mxu0
  %v405 = vpop.f32.mrb[0].mxu0
  %v406 = vadd.f32 %v91, %v405
  %v407 = vpop.f32.mrb[0].mxu0
  %408 = vmatprep.mubr.bf16.mxu0 0
  %409 = vmatmul.mubr.bf16.gmra.mrb[0].mxu0 %v269
  %v410 = vpop.f32.mrb[0].mxu0
  %v411 = vadd.f32 %v91, %v410
  %v412 = vpop.f32.mrb[0].mxu0
  %v413 = vpop.f32.mrb[0].mxu0
  %v414 = vadd.f32 %v91, %v413
  %v415 = vpop.f32.mrb[0].mxu0
  %416 = vmatprep.mubr.bf16.mxu0 0
  %417 = vmatmul.mubr.bf16.gmra.mrb[0].mxu0 %v272
  %v418 = vpop.f32.mrb[0].mxu0
  %v419 = vadd.f32 %v91, %v418
  %v420 = vpop.f32.mrb[0].mxu0
  %v421 = vpop.f32.mrb[0].mxu0
  %v422 = vadd.f32 %v91, %v421
  %v423 = vpop.f32.mrb[0].mxu0
  %424 = vmatprep.mubr.bf16.mxu0 0
  %425 = vmatmul.mubr.bf16.gmra.mrb[0].mxu0 %v275
  %v426 = vpop.f32.mrb[0].mxu0
  %v427 = vadd.f32 %v91, %v426
  %v428 = vpop.f32.mrb[0].mxu0
  %v429 = vpop.f32.mrb[0].mxu0
  %v430 = vadd.f32 %v91, %v429
  %v431 = vpop.f32.mrb[0].mxu0
  %432 = vmatprep.mubr.bf16.mxu0 0
  %433 = vmatmul.mubr.bf16.gmra.mrb[0].mxu0 %v278
  %v434 = vpop.f32.mrb[0].mxu0
  %v435 = vadd.f32 %v91, %v434
  %v436 = vpop.f32.mrb[0].mxu0
  %v437 = vpop.f32.mrb[0].mxu0
  %v438 = vadd.f32 %v91, %v437
  %v439 = vpop.f32.mrb[0].mxu0
  %440 = vmatprep.mubr.bf16.mxu0 0
  %441 = vmatmul.mubr.bf16.gmra.mrb[0].mxu0 %v281
  %v442 = vpop.f32.mrb[0].mxu0
  %v443 = vadd.f32 %v91, %v442
  %v444 = vpop.f32.mrb[0].mxu0
  %v445 = vpop.f32.mrb[0].mxu0
  %v446 = vadd.f32 %v91, %v445
  %v447 = vpop.f32.mrb[0].mxu0
  %448 = vmatprep.mubr.bf16.mxu0 0
  %449 = vmatmul.mubr.bf16.gmra.mrb[0].mxu0 %v284
  %v450 = vpop.f32.mrb[0].mxu0
  %v451 = vadd.f32 %v91, %v450
  %v452 = vpop.f32.mrb[0].mxu0
  %v453 = vpop.f32.mrb[0].mxu0
  %v454 = vadd.f32 %v91, %v453
  %v455 = vpop.f32.mrb[0].mxu0
  %456 = vmatprep.mubr.bf16.mxu0 0
  %457 = vmatmul.mubr.bf16.gmra.mrb[0].mxu0 %v287
  %v458 = vpop.f32.mrb[0].mxu0
  %v459 = vadd.f32 %v91, %v458
  %v460 = vpop.f32.mrb[0].mxu0
  %v461 = vpop.f32.mrb[0].mxu0
  %v462 = vadd.f32 %v91, %v461
  %v463 = vpop.f32.mrb[0].mxu0
  %464 = vmatprep.mubr.bf16.mxu0 0
  %465 = vmatmul.mubr.bf16.gmra.mrb[0].mxu0 %v290
  %v466 = vpop.f32.mrb[0].mxu0
  %v467 = vadd.f32 %v91, %v466
  %v468 = vpop.f32.mrb[0].mxu0
  %v469 = vpop.f32.mrb[0].mxu0
  %v470 = vadd.f32 %v91, %v469
  %v471 = vpop.f32.mrb[0].mxu0
  %472 = vmatprep.mubr.bf16.mxu0 0
  %473 = vmatmul.mubr.bf16.gmra.mrb[0].mxu0 %v293
  %v474 = vpop.f32.mrb[0].mxu0
  %v475 = vadd.f32 %v91, %v474
  %v476 = vpop.f32.mrb[0].mxu0
  %v477 = vpop.f32.mrb[0].mxu0
  %v478 = vadd.f32 %v91, %v477
  %v479 = vpop.f32.mrb[0].mxu0
  %480 = vmatprep.mubr.bf16.mxu0 0
  %481 = vmatmul.mubr.bf16.gmra.mrb[0].mxu0 %v296
  %v482 = vpop.f32.mrb[0].mxu0
  %v483 = vadd.f32 %v91, %v482
  %v484 = vpop.f32.mrb[0].mxu0
  %v485 = vpop.f32.mrb[0].mxu0
  %v486 = vadd.f32 %v91, %v485
  %v487 = vpop.f32.mrb[0].mxu0
  %488 = vmatprep.mubr.bf16.mxu0 0
  %489 = vmatmul.mubr.bf16.gmra.mrb[0].mxu0 %v299
  %v490 = vpop.f32.mrb[0].mxu0
  %v491 = vadd.f32 %v91, %v490
  %v492 = vpop.f32.mrb[0].mxu0
  %v493 = vpop.f32.mrb[0].mxu0
  %v494 = vadd.f32 %v91, %v493
  %v495 = vpop.f32.mrb[0].mxu0
  %496 = vmatprep.mubr.bf16.mxu0 0
  %497 = vmatmul.mubr.bf16.gmra.mrb[0].mxu0 %v302
  %v498 = vpop.f32.mrb[0].mxu0
  %v499 = vadd.f32 %v91, %v498
  %v500 = vpop.f32.mrb[0].mxu0
  %v501 = vpop.f32.mrb[0].mxu0
  %v502 = vadd.f32 %v91, %v501
  %v503 = vpop.f32.mrb[0].mxu0
  %504 = vmatprep.mubr.bf16.mxu0 0
  %505 = vmatmul.mubr.bf16.gmra.mrb[0].mxu0 %v305
  %v506 = vpop.f32.mrb[0].mxu0
  %v507 = vadd.f32 %v91, %v506
  %v508 = vpop.f32.mrb[0].mxu0
  %v509 = vpop.f32.mrb[0].mxu0
  %v510 = vadd.f32 %v91, %v509
  %v511 = vpop.f32.mrb[0].mxu0
  %512 = vmatprep.mubr.bf16.mxu0 0
  %513 = vmatmul.mubr.bf16.gmra.mrb[0].mxu0 %v308
  %v514 = vpop.f32.mrb[0].mxu0
  %v515 = vadd.f32 %v91, %v514
  %v516 = vpop.f32.mrb[0].mxu0
  %v517 = vpop.f32.mrb[0].mxu0
  %v518 = vadd.f32 %v91, %v517
  %v519 = vpop.f32.mrb[0].mxu0
  %520 = vmatprep.mubr.bf16.mxu0 0
  %521 = vmatmul.mubr.bf16.gmra.mrb[0].mxu0 %v311
  %v522 = vpop.f32.mrb[0].mxu0
  %v523 = vadd.f32 %v91, %v522
  %v524 = vpop.f32.mrb[0].mxu0
  %v525 = vpop.f32.mrb[0].mxu0
  %v526 = vadd.f32 %v91, %v525
  %v527 = vpop.f32.mrb[0].mxu0
  %528 = vmatprep.mubr.bf16.mxu0 0
  %529 = vmatmul.mubr.bf16.gmra.mrb[0].mxu0 %v314
  %v530 = vpop.f32.mrb[0].mxu0
  %v531 = vadd.f32 %v91, %v530
  %v532 = vpop.f32.mrb[0].mxu0
  %v533 = vpop.f32.mrb[0].mxu0
  %v534 = vadd.f32 %v91, %v533
  %v535 = vpop.f32.mrb[0].mxu0
  %536 = vmatprep.mubr.bf16.mxu0 0
  %537 = vmatmul.mubr.bf16.gmra.mrb[0].mxu0 %v317
  %v538 = vpop.f32.mrb[0].mxu0
  %v539 = vadd.f32 %v91, %v538
  %v540 = vpop.f32.mrb[0].mxu0
  %v541 = vpop.f32.mrb[0].mxu0
  %v542 = vadd.f32 %v91, %v541
  %v543 = vpop.f32.mrb[0].mxu0
  %544 = vmatprep.mubr.bf16.mxu0 0
  %545 = vmatmul.mubr.bf16.gmra.mrb[0].mxu0 %v320
  %v546 = vpop.f32.mrb[0].mxu0
  %v547 = vadd.f32 %v91, %v546
  %v548 = vpop.f32.mrb[0].mxu0
  %v549 = vpop.f32.mrb[0].mxu0
  %v550 = vadd.f32 %v91, %v549
  %v551 = vpop.f32.mrb[0].mxu0
  %552 = vmatprep.mubr.bf16.mxu0 0
  %553 = vmatmul.mubr.bf16.gmra.mrb[0].mxu0 %v323
  %v554 = vpop.f32.mrb[0].mxu0
  %v555 = vadd.f32 %v91, %v554
  %v556 = vpop.f32.mrb[0].mxu0
  %v557 = vpop.f32.mrb[0].mxu0
  %v558 = vadd.f32 %v91, %v557
  %v559 = vpop.f32.mrb[0].mxu0
  %560 = vmatprep.mubr.bf16.mxu0 0
  %561 = vmatmul.mubr.bf16.gmra.mrb[0].mxu0 %v326
  %v562 = vpop.f32.mrb[0].mxu0
  %v563 = vadd.f32 %v91, %v562
  %v564 = vpop.f32.mrb[0].mxu0
  %v565 = vpop.f32.mrb[0].mxu0
  %v566 = vadd.f32 %v91, %v565
  %v567 = vpop.f32.mrb[0].mxu0
  %568 = vmatprep.mubr.bf16.mxu0 0
  %569 = vmatmul.mubr.bf16.gmra.mrb[0].mxu0 %v329
  %v570 = vpop.f32.mrb[0].mxu0
  %v571 = vadd.f32 %v91, %v570
  %v572 = vpop.f32.mrb[0].mxu0
  %v573 = vpop.f32.mrb[0].mxu0
  %v574 = vadd.f32 %v91, %v573
  %v575 = vpop.f32.mrb[0].mxu0
  %576 = vmatprep.mubr.bf16.mxu0 0
  %577 = vmatmul.mubr.bf16.gmra.mrb[0].mxu0 %v332
  %v578 = vpop.f32.mrb[0].mxu0
  %v579 = vadd.f32 %v91, %v578
  %v580 = vpop.f32.mrb[0].mxu0
  %v581 = vpop.f32.mrb[0].mxu0
  %v582 = vadd.f32 %v91, %v581
  %v583 = vpop.f32.mrb[0].mxu0
  %584 = vmatprep.mubr.bf16.mxu0 0
  %585 = vmatmul.mubr.bf16.gmra.mrb[0].mxu0 %v335
  %v586 = vpop.f32.mrb[0].mxu0
  %v587 = vadd.f32 %v91, %v586
  %v588 = vpop.f32.mrb[0].mxu0
  %v589 = vpop.f32.mrb[0].mxu0
  %v590 = vadd.f32 %v91, %v589
  %v591 = vpop.f32.mrb[0].mxu0
  %592 = vmatprep.mubr.bf16.mxu0 0
  %593 = vmatmul.mubr.bf16.gmra.mrb[0].mxu0 %v338
  %v594 = vpop.f32.mrb[0].mxu0
  %v595 = vadd.f32 %v91, %v594
  %v596 = vpop.f32.mrb[0].mxu0
  %v597 = vpop.f32.mrb[0].mxu0
  %v598 = vadd.f32 %v91, %v597
  %v599 = vpop.f32.mrb[0].mxu0
  %600 = vmatprep.mubr.bf16.mxu0 0
  %601 = vmatmul.mubr.bf16.gmra.mrb[0].mxu0 %v341
  %v602 = vpop.f32.mrb[0].mxu0
  %v603 = vadd.f32 %v91, %v602
  %v604 = vpop.f32.mrb[0].mxu0
  %v605 = vpop.f32.mrb[0].mxu0
  %v606 = vadd.f32 %v91, %v605
  %v607 = vpop.f32.mrb[0].mxu0
  %608 = vmatprep.mubr.bf16.mxu0 0
  %609 = vmatmul.mubr.bf16.gmra.mrb[0].mxu0 %v344
  %v610 = vpop.f32.mrb[0].mxu0
  %v611 = vadd.f32 %v91, %v610
  %v612 = vpop.f32.mrb[0].mxu0
  %v613 = vpop.f32.mrb[0].mxu0
  %v614 = vadd.f32 %v91, %v613
  %v615 = vpop.f32.mrb[0].mxu0
  %616 = vmatprep.mubr.bf16.mxu0 0
  %617 = vmatmul.mubr.bf16.gmra.mrb[0].mxu0 %v347
  %v618 = vpop.f32.mrb[0].mxu0
  %v619 = vadd.f32 %v91, %v618
  %v620 = vpop.f32.mrb[0].mxu0
  %v621 = vpop.f32.mrb[0].mxu0
  %v622 = vadd.f32 %v91, %v621
  %v623 = vpop.f32.mrb[0].mxu0
  %624 = vmatprep.mubr.bf16.mxu0 0
  %625 = vmatmul.mubr.bf16.gmra.mrb[0].mxu0 %v350
  %v626 = vpop.f32.mrb[0].mxu0
  %v627 = vadd.f32 %v91, %v626
  %v628 = vpop.f32.mrb[0].mxu0
  %v629 = vpop.f32.mrb[0].mxu0
  %v630 = vadd.f32 %v91, %v629
  %v631 = vpop.f32.mrb[0].mxu0
  %632 = vmatprep.mubr.bf16.mxu0 0
  %633 = vmatmul.mubr.bf16.gmra.mrb[0].mxu0 %v353
  %v634 = vpop.f32.mrb[0].mxu0
  %v635 = vadd.f32 %v91, %v634
  %v636 = vpop.f32.mrb[0].mxu0
  %v637 = vpop.f32.mrb[0].mxu0
  %v638 = vadd.f32 %v91, %v637
  %v639 = vpop.f32.mrb[0].mxu0
  %640 = vmatprep.mubr.bf16.mxu0 0
  %641 = vmatmul.mubr.bf16.gmra.mrb[0].mxu0 %v356
  %v642 = vpop.f32.mrb[0].mxu0
  %v643 = vadd.f32 %v91, %v642
  %v644 = vpop.f32.mrb[0].mxu0
  %v645 = vpop.f32.mrb[0].mxu0
  %v646 = vadd.f32 %v91, %v645
  %v647 = vpop.f32.mrb[0].mxu0
  %648 = vmatprep.mubr.bf16.mxu0 0
  %649 = vmatmul.mubr.bf16.gmra.mrb[0].mxu0 %v359
  %v650 = vpop.f32.mrb[0].mxu0
  %v651 = vadd.f32 %v91, %v650
  %v652 = vpop.f32.mrb[0].mxu0
  %v653 = vpop.f32.mrb[0].mxu0
  %v654 = vadd.f32 %v91, %v653
  %v655 = vpop.f32.mrb[0].mxu0
  %656 = vdwg.mxu0
  %v657 = vld [vmem:[%s3] sm:$0x1]
  %vm658 = vcmp.ge.f32.partialorder %v403, 0.0
  %vm659 = vcmp.ge.f32.partialorder %v406, 0.0
  %vm660 = vcmp.ge.f32.partialorder %v411, 0.0
  %vm661 = vcmp.ge.f32.partialorder %v414, 0.0
  %vm662 = vcmp.ge.f32.partialorder %v419, 0.0
  %vm663 = vcmp.ge.f32.partialorder %v422, 0.0
  %vm664 = vcmp.ge.f32.partialorder %v427, 0.0
  %vm665 = vcmp.ge.f32.partialorder %v430, 0.0
  %vm666 = vcmp.ge.f32.partialorder %v435, 0.0
  %vm667 = vcmp.ge.f32.partialorder %v438, 0.0
  %vm668 = vcmp.ge.f32.partialorder %v443, 0.0
  %vm669 = vcmp.ge.f32.partialorder %v446, 0.0
  %vm670 = vcmp.ge.f32.partialorder %v451, 0.0
  %vm671 = vcmp.ge.f32.partialorder %v454, 0.0
  %vm672 = vcmp.ge.f32.partialorder %v459, 0.0
  %vm673 = vcmp.ge.f32.partialorder %v462, 0.0
  %vm674 = vcmp.ge.f32.partialorder %v467, 0.0
  %vm675 = vcmp.ge.f32.partialorder %v470, 0.0
  %vm676 = vcmp.ge.f32.partialorder %v475, 0.0
  %vm677 = vcmp.ge.f32.partialorder %v478, 0.0
  %vm678 = vcmp.ge.f32.partialorder %v483, 0.0
  %vm679 = vcmp.ge.f32.partialorder %v486, 0.0
  %vm680 = vcmp.ge.f32.partialorder %v491, 0.0
  %vm681 = vcmp.ge.f32.partialorder %v494, 0.0
  %vm682 = vcmp.ge.f32.partialorder %v499, 0.0
  %vm683 = vcmp.ge.f32.partialorder %v502, 0.0
  %vm684 = vcmp.ge.f32.partialorder %v507, 0.0
  %vm685 = vcmp.ge.f32.partialorder %v510, 0.0
  %vm686 = vcmp.ge.f32.partialorder %v515, 0.0
  %vm687 = vcmp.ge.f32.partialorder %v518, 0.0
  %vm688 = vcmp.ge.f32.partialorder %v523, 0.0
  %vm689 = vcmp.ge.f32.partialorder %v526, 0.0
  %vm690 = vcmp.ge.f32.partialorder %v531, 0.0
  %vm691 = vcmp.ge.f32.partialorder %v534, 0.0
  %vm692 = vcmp.ge.f32.partialorder %v539, 0.0
  %vm693 = vcmp.ge.f32.partialorder %v542, 0.0
  %vm694 = vcmp.ge.f32.partialorder %v547, 0.0
  %vm695 = vcmp.ge.f32.partialorder %v550, 0.0
  %vm696 = vcmp.ge.f32.partialorder %v555, 0.0
  %vm697 = vcmp.ge.f32.partialorder %v558, 0.0
  %vm698 = vcmp.ge.f32.partialorder %v563, 0.0
  %vm699 = vcmp.ge.f32.partialorder %v566, 0.0
  %vm700 = vcmp.ge.f32.partialorder %v571, 0.0
  %vm701 = vcmp.ge.f32.partialorder %v574, 0.0
  %vm702 = vcmp.ge.f32.partialorder %v579, 0.0
  %vm703 = vcmp.ge.f32.partialorder %v582, 0.0
  %vm704 = vcmp.ge.f32.partialorder %v587, 0.0
  %vm705 = vcmp.ge.f32.partialorder %v590, 0.0
  %vm706 = vcmp.ge.f32.partialorder %v595, 0.0
  %vm707 = vcmp.ge.f32.partialorder %v598, 0.0
  %vm708 = vcmp.ge.f32.partialorder %v603, 0.0
  %vm709 = vcmp.ge.f32.partialorder %v606, 0.0
  %vm710 = vcmp.ge.f32.partialorder %v611, 0.0
  %vm711 = vcmp.ge.f32.partialorder %v614, 0.0
  %vm712 = vcmp.ge.f32.partialorder %v619, 0.0
  %vm713 = vcmp.ge.f32.partialorder %v622, 0.0
  %vm714 = vcmp.ge.f32.partialorder %v627, 0.0
  %vm715 = vcmp.ge.f32.partialorder %v630, 0.0
  %vm716 = vcmp.ge.f32.partialorder %v635, 0.0
  %vm717 = vcmp.ge.f32.partialorder %v638, 0.0
  %vm718 = vcmp.ge.f32.partialorder %v643, 0.0
  %vm719 = vcmp.ge.f32.partialorder %v646, 0.0
  %vm720 = vcmp.ge.f32.partialorder %v651, 0.0
  %vm721 = vcmp.ge.f32.partialorder %v654, 0.0
  %v723 = vlaneseq
  %v724 = vshrl.u32 %v723, 7
  %v725 = vsub.s32 0, %v724
  %v726 = vrot.slane %v657, %v725
  %v728 = vmul.f32 %v726, %v403
  %v729 = vmul.f32 %v726, %v406
  %v730 = vmul.f32 %v726, %v411
  %v731 = vmul.f32 %v726, %v414
  %v732 = vmul.f32 %v726, %v419
  %v733 = vmul.f32 %v726, %v422
  %v734 = vmul.f32 %v726, %v427
  %v735 = vmul.f32 %v726, %v430
  %v736 = vmul.f32 %v726, %v435
  %v737 = vmul.f32 %v726, %v438
  %v738 = vmul.f32 %v726, %v443
  %v739 = vmul.f32 %v726, %v446
  %v740 = vmul.f32 %v726, %v451
  %v741 = vmul.f32 %v726, %v454
  %v742 = vmul.f32 %v726, %v459
  %v743 = vmul.f32 %v726, %v462
  %v744 = vmul.f32 %v726, %v467
  %v745 = vmul.f32 %v726, %v470
  %v746 = vmul.f32 %v726, %v475
  %v747 = vmul.f32 %v726, %v478
  %v748 = vmul.f32 %v726, %v483
  %v749 = vmul.f32 %v726, %v486
  %v750 = vmul.f32 %v726, %v491
  %v751 = vmul.f32 %v726, %v494
  %v752 = vmul.f32 %v726, %v499
  %v753 = vmul.f32 %v726, %v502
  %v754 = vmul.f32 %v726, %v507
  %v755 = vmul.f32 %v726, %v510
  %v756 = vmul.f32 %v726, %v515
  %v757 = vmul.f32 %v726, %v518
  %v758 = vmul.f32 %v726, %v523
  %v759 = vmul.f32 %v726, %v526
  %v760 = vmul.f32 %v726, %v531
  %v761 = vmul.f32 %v726, %v534
  %v762 = vmul.f32 %v726, %v539
  %v763 = vmul.f32 %v726, %v542
  %v764 = vmul.f32 %v726, %v547
  %v765 = vmul.f32 %v726, %v550
  %v766 = vmul.f32 %v726, %v555
  %v767 = vmul.f32 %v726, %v558
  %v768 = vmul.f32 %v726, %v563
  %v769 = vmul.f32 %v726, %v566
  %v770 = vmul.f32 %v726, %v571
  %v771 = vmul.f32 %v726, %v574
  %v772 = vmul.f32 %v726, %v579
  %v773 = vmul.f32 %v726, %v582
  %v774 = vmul.f32 %v726, %v587
  %v775 = vmul.f32 %v726, %v590
  %v776 = vmul.f32 %v726, %v595
  %v777 = vmul.f32 %v726, %v598
  %v778 = vmul.f32 %v726, %v603
  %v779 = vmul.f32 %v726, %v606
  %v780 = vmul.f32 %v726, %v611
  %v781 = vmul.f32 %v726, %v614
  %v782 = vmul.f32 %v726, %v619
  %v783 = vmul.f32 %v726, %v622
  %v784 = vmul.f32 %v726, %v627
  %v785 = vmul.f32 %v726, %v630
  %v786 = vmul.f32 %v726, %v635
  %v787 = vmul.f32 %v726, %v638
  %v788 = vmul.f32 %v726, %v643
  %v789 = vmul.f32 %v726, %v646
  %v790 = vmul.f32 %v726, %v651
  %v791 = vmul.f32 %v726, %v654
  %v792 = vsel %vm658, %v403, %v728
  %v793 = vsel %vm659, %v406, %v729
  %v794 = vsel %vm660, %v411, %v730
  %v795 = vsel %vm661, %v414, %v731
  %v796 = vsel %vm662, %v419, %v732
  %v797 = vsel %vm663, %v422, %v733
  %v798 = vsel %vm664, %v427, %v734
  %v799 = vsel %vm665, %v430, %v735
  %v800 = vsel %vm666, %v435, %v736
  %v801 = vsel %vm667, %v438, %v737
  %v802 = vsel %vm668, %v443, %v738
  %v803 = vsel %vm669, %v446, %v739
  %v804 = vsel %vm670, %v451, %v740
  %v805 = vsel %vm671, %v454, %v741
  %v806 = vsel %vm672, %v459, %v742
  %v807 = vsel %vm673, %v462, %v743
  %v808 = vsel %vm674, %v467, %v744
  %v809 = vsel %vm675, %v470, %v745
  %v810 = vsel %vm676, %v475, %v746
  %v811 = vsel %vm677, %v478, %v747
  %v812 = vsel %vm678, %v483, %v748
  %v813 = vsel %vm679, %v486, %v749
  %v814 = vsel %vm680, %v491, %v750
  %v815 = vsel %vm681, %v494, %v751
  %v816 = vsel %vm682, %v499, %v752
  %v817 = vsel %vm683, %v502, %v753
  %v818 = vsel %vm684, %v507, %v754
  %v819 = vsel %vm685, %v510, %v755
  %v820 = vsel %vm686, %v515, %v756
  %v821 = vsel %vm687, %v518, %v757
  %v822 = vsel %vm688, %v523, %v758
  %v823 = vsel %vm689, %v526, %v759
  %v824 = vsel %vm690, %v531, %v760
  %v825 = vsel %vm691, %v534, %v761
  %v826 = vsel %vm692, %v539, %v762
  %v827 = vsel %vm693, %v542, %v763
  %v828 = vsel %vm694, %v547, %v764
  %v829 = vsel %vm695, %v550, %v765
  %v830 = vsel %vm696, %v555, %v766
  %v831 = vsel %vm697, %v558, %v767
  %v832 = vsel %vm698, %v563, %v768
  %v833 = vsel %vm699, %v566, %v769
  %v834 = vsel %vm700, %v571, %v770
  %v835 = vsel %vm701, %v574, %v771
  %v836 = vsel %vm702, %v579, %v772
  %v837 = vsel %vm703, %v582, %v773
  %v838 = vsel %vm704, %v587, %v774
  %v839 = vsel %vm705, %v590, %v775
  %v840 = vsel %vm706, %v595, %v776
  %v841 = vsel %vm707, %v598, %v777
  %v842 = vsel %vm708, %v603, %v778
  %v843 = vsel %vm709, %v606, %v779
  %v844 = vsel %vm710, %v611, %v780
  %v845 = vsel %vm711, %v614, %v781
  %v846 = vsel %vm712, %v619, %v782
  %v847 = vsel %vm713, %v622, %v783
  %v848 = vsel %vm714, %v627, %v784
  %v849 = vsel %vm715, %v630, %v785
  %v850 = vsel %vm716, %v635, %v786
  %v851 = vsel %vm717, %v638, %v787
  %v852 = vsel %vm718, %v643, %v788
  %v853 = vsel %vm719, %v646, %v789
  %v854 = vsel %vm720, %v651, %v790
  %v855 = vsel %vm721, %v654, %v791
  %vm856 = vcmask 261120
  %857 = vst.msk [vmem:[%s4] sm:$0xff] %vm856, %v792
  %858 = vst.msk [vmem:[%s4 + $0x8] sm:$0xff] %vm856, %v793
  %859 = vst.msk [vmem:[%s4 + $0x10] sm:$0xff] %vm856, %v794
  %860 = vst.msk [vmem:[%s4 + $0x18] sm:$0xff] %vm856, %v795
  %861 = vst.msk [vmem:[%s4 + $0x20] sm:$0xff] %vm856, %v796
  %862 = vst.msk [vmem:[%s4 + $0x28] sm:$0xff] %vm856, %v797
  %863 = vst.msk [vmem:[%s4 + $0x30] sm:$0xff] %vm856, %v798
  %864 = vst.msk [vmem:[%s4 + $0x38] sm:$0xff] %vm856, %v799
  %865 = vst.msk [vmem:[%s4 + $0x40] sm:$0xff] %vm856, %v800
  %866 = vst.msk [vmem:[%s4 + $0x48] sm:$0xff] %vm856, %v801
  %867 = vst.msk [vmem:[%s4 + $0x50] sm:$0xff] %vm856, %v802
  %868 = vst.msk [vmem:[%s4 + $0x58] sm:$0xff] %vm856, %v803
  %869 = vst.msk [vmem:[%s4 + $0x60] sm:$0xff] %vm856, %v804
  %870 = vst.msk [vmem:[%s4 + $0x68] sm:$0xff] %vm856, %v805
  %871 = vst.msk [vmem:[%s4 + $0x70] sm:$0xff] %vm856, %v806
  %872 = vst.msk [vmem:[%s4 + $0x78] sm:$0xff] %vm856, %v807
  %873 = vst.msk [vmem:[%s4 + $0x80] sm:$0xff] %vm856, %v808
  %874 = vst.msk [vmem:[%s4 + $0x88] sm:$0xff] %vm856, %v809
  %875 = vst.msk [vmem:[%s4 + $0x90] sm:$0xff] %vm856, %v810
  %876 = vst.msk [vmem:[%s4 + $0x98] sm:$0xff] %vm856, %v811
  %877 = vst.msk [vmem:[%s4 + $0xa0] sm:$0xff] %vm856, %v812
  %878 = vst.msk [vmem:[%s4 + $0xa8] sm:$0xff] %vm856, %v813
  %879 = vst.msk [vmem:[%s4 + $0xb0] sm:$0xff] %vm856, %v814
  %880 = vst.msk [vmem:[%s4 + $0xb8] sm:$0xff] %vm856, %v815
  %881 = vst.msk [vmem:[%s4 + $0xc0] sm:$0xff] %vm856, %v816
  %882 = vst.msk [vmem:[%s4 + $0xc8] sm:$0xff] %vm856, %v817
  %883 = vst.msk [vmem:[%s4 + $0xd0] sm:$0xff] %vm856, %v818
  %884 = vst.msk [vmem:[%s4 + $0xd8] sm:$0xff] %vm856, %v819
  %885 = vst.msk [vmem:[%s4 + $0xe0] sm:$0xff] %vm856, %v820
  %886 = vst.msk [vmem:[%s4 + $0xe8] sm:$0xff] %vm856, %v821
  %887 = vst.msk [vmem:[%s4 + $0xf0] sm:$0xff] %vm856, %v822
  %888 = vst.msk [vmem:[%s4 + $0xf8] sm:$0xff] %vm856, %v823
  %889 = vst.msk [vmem:[%s4 + $0x100] sm:$0xff] %vm856, %v824
  %890 = vst.msk [vmem:[%s4 + $0x108] sm:$0xff] %vm856, %v825
  %891 = vst.msk [vmem:[%s4 + $0x110] sm:$0xff] %vm856, %v826
  %892 = vst.msk [vmem:[%s4 + $0x118] sm:$0xff] %vm856, %v827
  %893 = vst.msk [vmem:[%s4 + $0x120] sm:$0xff] %vm856, %v828
  %894 = vst.msk [vmem:[%s4 + $0x128] sm:$0xff] %vm856, %v829
  %895 = vst.msk [vmem:[%s4 + $0x130] sm:$0xff] %vm856, %v830
  %896 = vst.msk [vmem:[%s4 + $0x138] sm:$0xff] %vm856, %v831
  %897 = vst.msk [vmem:[%s4 + $0x140] sm:$0xff] %vm856, %v832
  %898 = vst.msk [vmem:[%s4 + $0x148] sm:$0xff] %vm856, %v833
  %899 = vst.msk [vmem:[%s4 + $0x150] sm:$0xff] %vm856, %v834
  %900 = vst.msk [vmem:[%s4 + $0x158] sm:$0xff] %vm856, %v835
  %901 = vst.msk [vmem:[%s4 + $0x160] sm:$0xff] %vm856, %v836
  %902 = vst.msk [vmem:[%s4 + $0x168] sm:$0xff] %vm856, %v837
  %903 = vst.msk [vmem:[%s4 + $0x170] sm:$0xff] %vm856, %v838
  %904 = vst.msk [vmem:[%s4 + $0x178] sm:$0xff] %vm856, %v839
  %905 = vst.msk [vmem:[%s4 + $0x180] sm:$0xff] %vm856, %v840
  %906 = vst.msk [vmem:[%s4 + $0x188] sm:$0xff] %vm856, %v841
  %907 = vst.msk [vmem:[%s4 + $0x190] sm:$0xff] %vm856, %v842
  %908 = vst.msk [vmem:[%s4 + $0x198] sm:$0xff] %vm856, %v843
  %909 = vst.msk [vmem:[%s4 + $0x1a0] sm:$0xff] %vm856, %v844
  %910 = vst.msk [vmem:[%s4 + $0x1a8] sm:$0xff] %vm856, %v845
  %911 = vst.msk [vmem:[%s4 + $0x1b0] sm:$0xff] %vm856, %v846
  %912 = vst.msk [vmem:[%s4 + $0x1b8] sm:$0xff] %vm856, %v847
  %913 = vst.msk [vmem:[%s4 + $0x1c0] sm:$0xff] %vm856, %v848
  %914 = vst.msk [vmem:[%s4 + $0x1c8] sm:$0xff] %vm856, %v849
  %915 = vst.msk [vmem:[%s4 + $0x1d0] sm:$0xff] %vm856, %v850
  %916 = vst.msk [vmem:[%s4 + $0x1d8] sm:$0xff] %vm856, %v851
  %917 = vst.msk [vmem:[%s4 + $0x1e0] sm:$0xff] %vm856, %v852
  %918 = vst.msk [vmem:[%s4 + $0x1e8] sm:$0xff] %vm856, %v853
  %919 = vst.msk [vmem:[%s4 + $0x1f0] sm:$0xff] %vm856, %v854
  %920 = vst.msk [vmem:[%s4 + $0x1f8] sm:$0xff] %vm856, %v855
  // Predicated region
  $region18: #{context_net.8} parent=0 // pred_check
    _
  $region19: #{context_net.8} parent=0 // pred_check_branch
    %922 = sbr.rel (0) target = $region21
  $region20: #{context_net.8} parent=0 // pred_region
    _
  $region21: #{context_net.8} parent=0 // pred_fallthru
    _
  // Predicated region
  $region22: #{context_net.8} parent=0 // pred_check
    _
  $region23: #{context_net.8} parent=0 // pred_check_branch
    %924 = sbr.rel (0) target = $region25
  $region24: #{context_net.8} parent=0 // pred_region
    _
  $region25: #{context_net.8} parent=0 // pred_fallthru
    _

// kernel: context_net.9
$region0: #{context_net.9}
  #allocation0 [shape = 'u32[]', space=smem, size = 0x4, offset = 0x4, fixed_abs, tag = 'smem constant byte address 0x4 - core index']
  #allocation1 [shape = 'u32[144,128]{1,0:T(1,128)}', space=vmem, size = 0x12000, scoped, tag = 'internal scratch']
  %s0 = inlined_call_operand.vmem [shape: bf16[2,256,144], index: 0, kind: input, shape index: {}]
  %s1 = inlined_call_operand.vmem [shape: f32[2,256,16], index: 1, kind: input, shape index: {}]
  %s2 = inlined_call_operand.vmem [shape: bf16[144,16], index: 2, kind: input, shape index: {}]
  %s3 = inlined_call_operand.vmem [shape: f32[1,16], index: 3, kind: input, shape index: {}]
  %s4 = inlined_call_operand.vmem [shape: f32[16,16], index: 4, kind: input, shape index: {}]
  %s5 = inlined_call_operand.vmem [shape: f32[16,16], index: 5, kind: input, shape index: {}]
  %s6 = inlined_call_operand.vmem [shape: f32[1,16], index: 6, kind: input, shape index: {}]
  %s7 = inlined_call_operand.vmem [shape: f32[1,16], index: 7, kind: input, shape index: {}]
  %s8 = inlined_call_operand.vmem [shape: f32[2,256,16], index: 8, kind: output, shape index: {}]
  %s9 = sld [smem:[#allocation0]]
  $region65: #{context_net.9} parent=0
    _
  %s11 = ssub.s32 1, %s9
  %s12 = scalar_select 0, %s11, %s9
  loop: start=0, step=1, limit=4
  $region2: #{context_net.9} parent=0 // loop_pre_header
    _
  $region3: #{context_net.9} parent=0 // loop_header
    %s14 = sphi 0, %s18
    %p15 = scmp.ge.s32.totalorder %s14, 4
    %s24 = sphi 0, %s26
    %s27 = sphi 0, %s24
    %s28 = sphi 0, %s27
    %s44 = sphi 0, %s28
    %s50 = sphi 0, %s52
    %s53 = sphi 0, %s50
    %s54 = sphi 0, %s53
    %s70 = sphi 0, %s54
    %s74 = sphi 0, %s74
    %s76 = sphi 0, %s74
    %s77 = sphi 0, %s76
    %s91 = sphi 0, %s77
    %s95 = sphi 0, %s95
    %s97 = sphi 0, %s95
    %s98 = sphi 0, %s97
    %s112 = sphi 0, %s98
    %s116 = sphi 0, %s116
    %s118 = sphi 0, %s116
    %s119 = sphi 0, %s118
    %s133 = sphi 0, %s119
    %s137 = sphi 0, %s137
    %s139 = sphi 0, %s137
    %s140 = sphi 0, %s139
    %s154 = sphi 0, %s140
    %s158 = sphi 0, %s158
    %s160 = sphi 0, %s158
    %s161 = sphi 0, %s160
    %s175 = sphi 0, %s161
    %s179 = sphi 0, %s179
    %s181 = sphi 0, %s179
    %s182 = sphi 0, %s181
    %s196 = sphi 0, %s182
    %s202 = sphi 0, %s204
    %s205 = sphi 0, %s202
    %s206 = sphi 0, %s205
    %s222 = sphi 0, %s206
  $region4: #{context_net.9} parent=0 // loop_header_branch
    %17 = sbr.rel (%p15) target = $region8
  $region5: #{context_net.9} parent=0 // loop_body
    %s19 = ssub.s32 %s14, 1
    %s20 = ssub.s32 %s14, 2
    %s21 = sadd.s32 %s14, 1
    %s22 = ssub.s32 %s14, %s21
    %p23 = scmp.eq.s32.totalorder %s22, 0
    %s25 = sadd.s32 %s24, 1
    %s26 = scalar_select %p23, %s24, %s25
    %p29 = pneg %p23
    %p30 = scmp.eq.s32.totalorder %s14, 1
    %p31 = por %p29, %p30
    %p32 = scmp.ne.s32.totalorder %s24, %s27
    %p33 = scmp.eq.s32.totalorder %s14, 0
    %p34 = por %p32, %p33
    %p35 = scmp.ne.s32.totalorder %s24, %s27
    %p36 = scmp.eq.s32.totalorder %s19, 1
    %p37 = por %p35, %p36
    %p38 = scmp.ne.s32.totalorder %s27, %s28
    %p39 = scmp.eq.s32.totalorder %s19, 0
    %p40 = por %p38, %p39
    %p41 = scmp.ne.s32.totalorder %s27, %s28
    %p42 = scmp.eq.s32.totalorder %s20, 1
    %p43 = por %p41, %p42
    %p45 = scmp.ne.s32.totalorder %s28, %s44
    %p46 = scmp.eq.s32.totalorder %s20, 0
    %p47 = por %p45, %p46
    %s48 = ssub.s32 %s14, %s21
    %p49 = scmp.eq.s32.totalorder %s48, 0
    %s51 = sadd.s32 %s50, 1
    %s52 = scalar_select %p49, %s50, %s51
    %p55 = pneg %p49
    %p56 = scmp.eq.s32.totalorder %s14, 1
    %p57 = por %p55, %p56
    %p58 = scmp.ne.s32.totalorder %s50, %s53
    %p59 = scmp.eq.s32.totalorder %s14, 0
    %p60 = por %p58, %p59
    %p61 = scmp.ne.s32.totalorder %s50, %s53
    %p62 = scmp.eq.s32.totalorder %s19, 1
    %p63 = por %p61, %p62
    %p64 = scmp.ne.s32.totalorder %s53, %s54
    %p65 = scmp.eq.s32.totalorder %s19, 0
    %p66 = por %p64, %p65
    %p67 = scmp.ne.s32.totalorder %s53, %s54
    %p68 = scmp.eq.s32.totalorder %s20, 1
    %p69 = por %p67, %p68
    %p71 = scmp.ne.s32.totalorder %s54, %s70
    %p72 = scmp.eq.s32.totalorder %s20, 0
    %p73 = por %p71, %p72
    %s75 = sadd.s32 %s74, 1
    %p78 = scmp.eq.s32.totalorder %s14, 1
    %p79 = scmp.ne.s32.totalorder %s74, %s76
    %p80 = scmp.eq.s32.totalorder %s14, 0
    %p81 = por %p79, %p80
    %p82 = scmp.ne.s32.totalorder %s74, %s76
    %p83 = scmp.eq.s32.totalorder %s19, 1
    %p84 = por %p82, %p83
    %p85 = scmp.ne.s32.totalorder %s76, %s77
    %p86 = scmp.eq.s32.totalorder %s19, 0
    %p87 = por %p85, %p86
    %p88 = scmp.ne.s32.totalorder %s76, %s77
    %p89 = scmp.eq.s32.totalorder %s20, 1
    %p90 = por %p88, %p89
    %p92 = scmp.ne.s32.totalorder %s77, %s91
    %p93 = scmp.eq.s32.totalorder %s20, 0
    %p94 = por %p92, %p93
    %s96 = sadd.s32 %s95, 1
    %p99 = scmp.eq.s32.totalorder %s14, 1
    %p100 = scmp.ne.s32.totalorder %s95, %s97
    %p101 = scmp.eq.s32.totalorder %s14, 0
    %p102 = por %p100, %p101
    %p103 = scmp.ne.s32.totalorder %s95, %s97
    %p104 = scmp.eq.s32.totalorder %s19, 1
    %p105 = por %p103, %p104
    %p106 = scmp.ne.s32.totalorder %s97, %s98
    %p107 = scmp.eq.s32.totalorder %s19, 0
    %p108 = por %p106, %p107
    %p109 = scmp.ne.s32.totalorder %s97, %s98
    %p110 = scmp.eq.s32.totalorder %s20, 1
    %p111 = por %p109, %p110
    %p113 = scmp.ne.s32.totalorder %s98, %s112
    %p114 = scmp.eq.s32.totalorder %s20, 0
    %p115 = por %p113, %p114
    %s117 = sadd.s32 %s116, 1
    %p120 = scmp.eq.s32.totalorder %s14, 1
    %p121 = scmp.ne.s32.totalorder %s116, %s118
    %p122 = scmp.eq.s32.totalorder %s14, 0
    %p123 = por %p121, %p122
    %p124 = scmp.ne.s32.totalorder %s116, %s118
    %p125 = scmp.eq.s32.totalorder %s19, 1
    %p126 = por %p124, %p125
    %p127 = scmp.ne.s32.totalorder %s118, %s119
    %p128 = scmp.eq.s32.totalorder %s19, 0
    %p129 = por %p127, %p128
    %p130 = scmp.ne.s32.totalorder %s118, %s119
    %p131 = scmp.eq.s32.totalorder %s20, 1
    %p132 = por %p130, %p131
    %p134 = scmp.ne.s32.totalorder %s119, %s133
    %p135 = scmp.eq.s32.totalorder %s20, 0
    %p136 = por %p134, %p135
    %s138 = sadd.s32 %s137, 1
    %p141 = scmp.eq.s32.totalorder %s14, 1
    %p142 = scmp.ne.s32.totalorder %s137, %s139
    %p143 = scmp.eq.s32.totalorder %s14, 0
    %p144 = por %p142, %p143
    %p145 = scmp.ne.s32.totalorder %s137, %s139
    %p146 = scmp.eq.s32.totalorder %s19, 1
    %p147 = por %p145, %p146
    %p148 = scmp.ne.s32.totalorder %s139, %s140
    %p149 = scmp.eq.s32.totalorder %s19, 0
    %p150 = por %p148, %p149
    %p151 = scmp.ne.s32.totalorder %s139, %s140
    %p152 = scmp.eq.s32.totalorder %s20, 1
    %p153 = por %p151, %p152
    %p155 = scmp.ne.s32.totalorder %s140, %s154
    %p156 = scmp.eq.s32.totalorder %s20, 0
    %p157 = por %p155, %p156
    %s159 = sadd.s32 %s158, 1
    %p162 = scmp.eq.s32.totalorder %s14, 1
    %p163 = scmp.ne.s32.totalorder %s158, %s160
    %p164 = scmp.eq.s32.totalorder %s14, 0
    %p165 = por %p163, %p164
    %p166 = scmp.ne.s32.totalorder %s158, %s160
    %p167 = scmp.eq.s32.totalorder %s19, 1
    %p168 = por %p166, %p167
    %p169 = scmp.ne.s32.totalorder %s160, %s161
    %p170 = scmp.eq.s32.totalorder %s19, 0
    %p171 = por %p169, %p170
    %p172 = scmp.ne.s32.totalorder %s160, %s161
    %p173 = scmp.eq.s32.totalorder %s20, 1
    %p174 = por %p172, %p173
    %p176 = scmp.ne.s32.totalorder %s161, %s175
    %p177 = scmp.eq.s32.totalorder %s20, 0
    %p178 = por %p176, %p177
    %s180 = sadd.s32 %s179, 1
    %p183 = scmp.eq.s32.totalorder %s14, 1
    %p184 = scmp.ne.s32.totalorder %s179, %s181
    %p185 = scmp.eq.s32.totalorder %s14, 0
    %p186 = por %p184, %p185
    %p187 = scmp.ne.s32.totalorder %s179, %s181
    %p188 = scmp.eq.s32.totalorder %s19, 1
    %p189 = por %p187, %p188
    %p190 = scmp.ne.s32.totalorder %s181, %s182
    %p191 = scmp.eq.s32.totalorder %s19, 0
    %p192 = por %p190, %p191
    %p193 = scmp.ne.s32.totalorder %s181, %s182
    %p194 = scmp.eq.s32.totalorder %s20, 1
    %p195 = por %p193, %p194
    %p197 = scmp.ne.s32.totalorder %s182, %s196
    %p198 = scmp.eq.s32.totalorder %s20, 0
    %p199 = por %p197, %p198
    %s200 = ssub.s32 %s14, %s21
    %p201 = scmp.eq.s32.totalorder %s200, 0
    %s203 = sadd.s32 %s202, 1
    %s204 = scalar_select %p201, %s202, %s203
    %p207 = pneg %p201
    %p208 = scmp.eq.s32.totalorder %s14, 1
    %p209 = por %p207, %p208
    %p210 = scmp.ne.s32.totalorder %s202, %s205
    %p211 = scmp.eq.s32.totalorder %s14, 0
    %p212 = por %p210, %p211
    %p213 = scmp.ne.s32.totalorder %s202, %s205
    %p214 = scmp.eq.s32.totalorder %s19, 1
    %p215 = por %p213, %p214
    %p216 = scmp.ne.s32.totalorder %s205, %s206
    %p217 = scmp.eq.s32.totalorder %s19, 0
    %p218 = por %p216, %p217
    %p219 = scmp.ne.s32.totalorder %s205, %s206
    %p220 = scmp.eq.s32.totalorder %s20, 1
    %p221 = por %p219, %p220
    %p223 = scmp.ne.s32.totalorder %s206, %s222
    %p224 = scmp.eq.s32.totalorder %s20, 0
    %p225 = por %p223, %p224
    %p226 = scmp.le.s32.totalorder 1, %s14
    %p227 = scmp.lt.s32.totalorder %s14, 3
    %p228 = pnand %p226, %p227
    %p229 = pneg %p228
    // Predicated region
    $region9: #{context_net.9} parent=5 // pred_check
      _
    $region10: #{context_net.9} parent=5 // pred_check_branch
      %231 = sbr.rel (%p228) target = $region12
    $region11: #{context_net.9} parent=5 // pred_region
      %s232 = ssub.s32 %s14, 1
      // Predicated region
      $region13: #{context_net.9} parent=11 // pred_check
        %p233 = pneg %p87
      $region14: #{context_net.9} parent=11 // pred_check_branch
        %235 = sbr.rel (%p233) target = $region16
      $region15: #{context_net.9} parent=11 // pred_region
        _
      $region16: #{context_net.9} parent=11 // pred_fallthru
        _
      // Predicated region
      $region17: #{context_net.9} parent=11 // pred_check
        %p236 = pneg %p108
      $region18: #{context_net.9} parent=11 // pred_check_branch
        %238 = sbr.rel (%p236) target = $region20
      $region19: #{context_net.9} parent=11 // pred_region
        _
      $region20: #{context_net.9} parent=11 // pred_fallthru
        _
      // Predicated region
      $region21: #{context_net.9} parent=11 // pred_check
        %p239 = pneg %p129
      $region22: #{context_net.9} parent=11 // pred_check_branch
        %241 = sbr.rel (%p239) target = $region24
      $region23: #{context_net.9} parent=11 // pred_region
        _
      $region24: #{context_net.9} parent=11 // pred_fallthru
        _
      // Predicated region
      $region25: #{context_net.9} parent=11 // pred_check
        %p242 = pneg %p150
      $region26: #{context_net.9} parent=11 // pred_check_branch
        %244 = sbr.rel (%p242) target = $region28
      $region27: #{context_net.9} parent=11 // pred_region
        _
      $region28: #{context_net.9} parent=11 // pred_fallthru
        _
      // Predicated region
      $region29: #{context_net.9} parent=11 // pred_check
        %p245 = pneg %p171
      $region30: #{context_net.9} parent=11 // pred_check_branch
        %247 = sbr.rel (%p245) target = $region32
      $region31: #{context_net.9} parent=11 // pred_region
        _
      $region32: #{context_net.9} parent=11 // pred_fallthru
        _
      // Predicated region
      $region33: #{context_net.9} parent=11 // pred_check
        %p248 = pneg %p192
      $region34: #{context_net.9} parent=11 // pred_check_branch
        %250 = sbr.rel (%p248) target = $region36
      $region35: #{context_net.9} parent=11 // pred_region
        _
      $region36: #{context_net.9} parent=11 // pred_fallthru
        _
    $region12: #{context_net.9} parent=5 // pred_fallthru
      _
    %p251 = scmp.lt.s32.totalorder %s14, 2
    // Predicated region
    $region37: #{context_net.9} parent=5 // pred_check
      %p252 = pneg %p251
    $region38: #{context_net.9} parent=5 // pred_check_branch
      %254 = sbr.rel (%p252) target = $region40
    $region39: #{context_net.9} parent=5 // pred_region
      // Predicated region
      $region41: #{context_net.9} parent=39 // pred_check
        %p255 = pneg %p34
      $region42: #{context_net.9} parent=39 // pred_check_branch
        %257 = sbr.rel (%p255) target = $region44
      $region43: #{context_net.9} parent=39 // pred_region
        %p258 = scmp.lt.s32.totalorder %s14, 1
        %s259 = scalar_select %p258, %s14, 1
        %s260 = smul.addr %s259, 64
        %s261 = smul.addr %s260, 4
        %s262 = scalar_lea.vmem %s0, %s261
      $region44: #{context_net.9} parent=39 // pred_fallthru
        _
      // Predicated region
      $region45: #{context_net.9} parent=39 // pred_check
        %p263 = pneg %p60
      $region46: #{context_net.9} parent=39 // pred_check_branch
        %265 = sbr.rel (%p263) target = $region48
      $region47: #{context_net.9} parent=39 // pred_region
        %p266 = scmp.lt.s32.totalorder %s14, 1
        %s267 = scalar_select %p266, %s14, 1
        %s268 = smul.addr %s267, 32
        %s269 = smul.addr %s268, 8
        %s270 = scalar_lea.vmem %s1, %s269
      $region48: #{context_net.9} parent=39 // pred_fallthru
        _
    $region40: #{context_net.9} parent=5 // pred_fallthru
      _
    %p271 = scmp.le.s32.totalorder 1, %s14
    %p272 = scmp.lt.s32.totalorder %s14, 3
    %p273 = pnand %p271, %p272
    %p274 = pneg %p273
    // Predicated region
    $region49: #{context_net.9} parent=5 // pred_check
      _
    $region50: #{context_net.9} parent=5 // pred_check_branch
      %276 = sbr.rel (%p273) target = $region52
    $region51: #{context_net.9} parent=5 // pred_region
      %s277 = ssub.s32 %s14, 1
      %p278 = scmp.lt.s32.totalorder %s19, 1
      %s279 = scalar_select %p278, %s19, 1
      %s280 = smul.addr %s279, 64
      %s281 = smul.addr %s280, 4
      %s282 = scalar_lea.vmem %s0, %s281
      %p283 = pneg %p40
      %p284 = pneg %p37
      %p285 = scmp.lt.s32.totalorder %s19, 1
      %s286 = scalar_select %p285, %s19, 1
      %s287 = smul.addr %s286, 32
      %s288 = smul.addr %s287, 8
      %s289 = scalar_lea.vmem %s1, %s288
      %p290 = pneg %p66
      %p291 = pneg %p63
      %p292 = pneg %p87
      %p293 = pneg %p84
      %p294 = pneg %p108
      %p295 = pneg %p105
      %p296 = pneg %p129
      %p297 = pneg %p126
      %p298 = pneg %p150
      %p299 = pneg %p147
      %p300 = pneg %p171
      %p301 = pneg %p168
      %p302 = pneg %p192
      %p303 = pneg %p189
      %p304 = pneg %p218
      %p305 = pneg %p215
      %p306 = scmp.lt.s32.totalorder %s19, 1
      %s307 = scalar_select %p306, %s19, 1
      %s308 = smul.addr %s307, 32
      %s309 = smul.addr %s308, 8
      %s310 = scalar_lea.vmem %s8, %s309
      %p311 = scmp.lt.s32.totalorder %s19, 1
      %s312 = scalar_select %p311, %s19, 1
      %s313 = smul.addr %s312, 64
      %s314 = smul.addr %s313, 4
      %s315 = scalar_lea.vmem %s0, %s314
      %p316 = scmp.lt.s32.totalorder %s19, 1
      %s317 = scalar_select %p316, %s19, 1
      %s318 = smul.addr %s317, 32
      %s319 = smul.addr %s318, 8
      %s320 = scalar_lea.vmem %s1, %s319
      %p321 = scmp.lt.s32.totalorder %s19, 1
      %s322 = scalar_select %p321, %s19, 1
      %s323 = smul.addr %s322, 32
      %s324 = smul.addr %s323, 8
      %s325 = scalar_lea.vmem %s8, %s324
      %v327 = vld [vmem:[%s315] sm:$0xff]
      %v328 = vld [vmem:[%s315 + $0x8] sm:$0xff]
      %v329 = vld [vmem:[%s315 + $0x10] sm:$0xff]
      %v330 = vld [vmem:[%s315 + $0x18] sm:$0xff]
      %v331 = vld [vmem:[%s315 + $0x20] sm:$0xff]
      %v332 = vld [vmem:[%s315 + $0x28] sm:$0xff]
      %v333 = vld [vmem:[%s315 + $0x30] sm:$0xff]
      %v334 = vld [vmem:[%s315 + $0x38] sm:$0xff]
      %v335 = vld [vmem:[%s315 + $0x40] sm:$0xff]
      %v336 = vld [vmem:[%s315 + $0x48] sm:$0xff]
      %v337 = vld [vmem:[%s315 + $0x50] sm:$0xff]
      %v338 = vld [vmem:[%s315 + $0x58] sm:$0xff]
      %v339 = vld [vmem:[%s315 + $0x60] sm:$0xff]
      %v340 = vld [vmem:[%s315 + $0x68] sm:$0xff]
      %v341 = vld [vmem:[%s315 + $0x70] sm:$0xff]
      %v342 = vld [vmem:[%s315 + $0x78] sm:$0xff]
      %v343 = vld [vmem:[%s315 + $0x80] sm:$0xff]
      %v344 = vld [vmem:[%s315 + $0x88] sm:$0xff]
      %v345 = vld [vmem:[%s315 + $0x90] sm:$0xff]
      %v346 = vld [vmem:[%s315 + $0x98] sm:$0xff]
      %v347 = vld [vmem:[%s315 + $0xa0] sm:$0xff]
      %v348 = vld [vmem:[%s315 + $0xa8] sm:$0xff]
      %v349 = vld [vmem:[%s315 + $0xb0] sm:$0xff]
      %v350 = vld [vmem:[%s315 + $0xb8] sm:$0xff]
      %v351 = vld [vmem:[%s315 + $0xc0] sm:$0xff]
      %v352 = vld [vmem:[%s315 + $0xc8] sm:$0xff]
      %v353 = vld [vmem:[%s315 + $0xd0] sm:$0xff]
      %v354 = vld [vmem:[%s315 + $0xd8] sm:$0xff]
      %v355 = vld [vmem:[%s315 + $0xe0] sm:$0xff]
      %v356 = vld [vmem:[%s315 + $0xe8] sm:$0xff]
      %v357 = vld [vmem:[%s315 + $0xf0] sm:$0xff]
      %v358 = vld [vmem:[%s315 + $0xf8] sm:$0xff]
      %v359 = vld [vmem:[%s2] sm:$0xf]
      %v360 = vld [vmem:[%s2 + $0x4] sm:$0xf]
      %v361 = vld [vmem:[%s2 + $0x8] sm:$0xf]
      %v362 = vld [vmem:[%s2 + $0xc] sm:$0xf]
      %v363 = vld [vmem:[%s2 + $0x10] sm:$0xf]
      %v364 = vld [vmem:[%s2 + $0x14] sm:$0xf]
      %v365 = vld [vmem:[%s2 + $0x18] sm:$0xf]
      %v366 = vld [vmem:[%s2 + $0x1c] sm:$0xf]
      %v367 = vld [vmem:[%s2 + $0x20] sm:$0xf]
      %v368 = vld [vmem:[%s2 + $0x24] sm:$0xf]
      %v369 = vld [vmem:[%s2 + $0x28] sm:$0xf]
      %v370 = vld [vmem:[%s2 + $0x2c] sm:$0xf]
      %v371 = vld [vmem:[%s2 + $0x30] sm:$0xf]
      %v372 = vld [vmem:[%s2 + $0x34] sm:$0xf]
      %v373 = vld [vmem:[%s2 + $0x38] sm:$0xf]
      %v374 = vld [vmem:[%s2 + $0x3c] sm:$0xf]
      %v375 = vld [vmem:[%s2 + $0x40] sm:$0xf]
      %v376 = vld [vmem:[%s2 + $0x44] sm:$0xf]
      %v377 = vld [vmem:[%s3] sm:$0x1]
      %v379 = vlaneseq
      %v380 = vshrl.u32 %v379, 7
      %v381 = vsub.s32 0, %v380
      %v382 = vrot.slane %v377, %v381
      %v416 = vunpack.c.l.b16 %v327
      %v417 = vunpack.c.h.b16 %v327
      %v418 = vunpack.c.l.b16 %v328
      %v419 = vunpack.c.h.b16 %v328
      %v420 = vunpack.c.l.b16 %v329
      %v421 = vunpack.c.h.b16 %v329
      %v422 = vunpack.c.l.b16 %v330
      %v423 = vunpack.c.h.b16 %v330
      %v424 = vunpack.c.l.b16 %v331
      %v425 = vunpack.c.h.b16 %v331
      %v426 = vunpack.c.l.b16 %v332
      %v427 = vunpack.c.h.b16 %v332
      %v428 = vunpack.c.l.b16 %v333
      %v429 = vunpack.c.h.b16 %v333
      %v430 = vunpack.c.l.b16 %v334
      %v431 = vunpack.c.h.b16 %v334
      %v432 = vunpack.c.l.b16 %v335
      %v433 = vunpack.c.h.b16 %v335
      %v434 = vunpack.c.l.b16 %v336
      %v435 = vunpack.c.h.b16 %v336
      %v436 = vunpack.c.l.b16 %v337
      %v437 = vunpack.c.h.b16 %v337
      %v438 = vunpack.c.l.b16 %v338
      %v439 = vunpack.c.h.b16 %v338
      %v440 = vunpack.c.l.b16 %v339
      %v441 = vunpack.c.h.b16 %v339
      %v442 = vunpack.c.l.b16 %v340
      %v443 = vunpack.c.h.b16 %v340
      %v444 = vunpack.c.l.b16 %v341
      %v445 = vunpack.c.h.b16 %v341
      %v446 = vunpack.c.l.b16 %v342
      %v447 = vunpack.c.h.b16 %v342
      %v448 = vunpack.c.l.b16 %v343
      %v449 = vunpack.c.h.b16 %v343
      %v450 = vunpack.c.l.b16 %v344
      %v451 = vunpack.c.h.b16 %v344
      %v452 = vunpack.c.l.b16 %v345
      %v453 = vunpack.c.h.b16 %v345
      %v454 = vunpack.c.l.b16 %v346
      %v455 = vunpack.c.h.b16 %v346
      %v456 = vunpack.c.l.b16 %v347
      %v457 = vunpack.c.h.b16 %v347
      %v458 = vunpack.c.l.b16 %v348
      %v459 = vunpack.c.h.b16 %v348
      %v460 = vunpack.c.l.b16 %v349
      %v461 = vunpack.c.h.b16 %v349
      %v462 = vunpack.c.l.b16 %v350
      %v463 = vunpack.c.h.b16 %v350
      %v464 = vunpack.c.l.b16 %v351
      %v465 = vunpack.c.h.b16 %v351
      %v466 = vunpack.c.l.b16 %v352
      %v467 = vunpack.c.h.b16 %v352
      %v468 = vunpack.c.l.b16 %v353
      %v469 = vunpack.c.h.b16 %v353
      %v470 = vunpack.c.l.b16 %v354
      %v471 = vunpack.c.h.b16 %v354
      %v472 = vunpack.c.l.b16 %v355
      %v473 = vunpack.c.h.b16 %v355
      %v474 = vunpack.c.l.b16 %v356
      %v475 = vunpack.c.h.b16 %v356
      %v476 = vunpack.c.l.b16 %v357
      %v477 = vunpack.c.h.b16 %v357
      %v478 = vunpack.c.l.b16 %v358
      %v479 = vunpack.c.h.b16 %v358
      %v480 = vpack.c.b16 %v418, %v416
      %v481 = vpack.c.b16 %v419, %v417
      %v482 = vpack.c.b16 %v422, %v420
      %v483 = vpack.c.b16 %v423, %v421
      %v484 = vpack.c.b16 %v426, %v424
      %v485 = vpack.c.b16 %v427, %v425
      %v486 = vpack.c.b16 %v430, %v428
      %v487 = vpack.c.b16 %v431, %v429
      %v488 = vpack.c.b16 %v434, %v432
      %v489 = vpack.c.b16 %v435, %v433
      %v490 = vpack.c.b16 %v438, %v436
      %v491 = vpack.c.b16 %v439, %v437
      %v492 = vpack.c.b16 %v442, %v440
      %v493 = vpack.c.b16 %v443, %v441
      %v494 = vpack.c.b16 %v446, %v444
      %v495 = vpack.c.b16 %v447, %v445
      %v496 = vpack.c.b16 %v450, %v448
      %v497 = vpack.c.b16 %v451, %v449
      %v498 = vpack.c.b16 %v454, %v452
      %v499 = vpack.c.b16 %v455, %v453
      %v500 = vpack.c.b16 %v458, %v456
      %v501 = vpack.c.b16 %v459, %v457
      %v502 = vpack.c.b16 %v462, %v460
      %v503 = vpack.c.b16 %v463, %v461
      %v504 = vpack.c.b16 %v466, %v464
      %v505 = vpack.c.b16 %v467, %v465
      %v506 = vpack.c.b16 %v470, %v468
      %v507 = vpack.c.b16 %v471, %v469
      %v508 = vpack.c.b16 %v474, %v472
      %v509 = vpack.c.b16 %v475, %v473
      %v510 = vpack.c.b16 %v478, %v476
      %v511 = vpack.c.b16 %v479, %v477
      %v546 = vunpack.c.l.b16 %v359
      %v547 = vunpack.c.l.b16 %v360
      %v548 = vunpack.c.l.b16 %v361
      %v549 = vunpack.c.l.b16 %v362
      %v550 = vunpack.c.l.b16 %v363
      %v551 = vunpack.c.l.b16 %v364
      %v552 = vunpack.c.l.b16 %v365
      %v553 = vunpack.c.l.b16 %v366
      %v554 = vunpack.c.l.b16 %v367
      %v555 = vunpack.c.l.b16 %v368
      %v556 = vunpack.c.l.b16 %v369
      %v557 = vunpack.c.l.b16 %v370
      %v558 = vunpack.c.l.b16 %v371
      %v559 = vunpack.c.l.b16 %v372
      %v560 = vunpack.c.l.b16 %v373
      %v561 = vunpack.c.l.b16 %v374
      %v562 = vunpack.c.l.b16 %v375
      %v563 = vunpack.c.l.b16 %v376
      %v564 = vpack.c.b16 %v547, %v546
      %v565 = vpack.c.b16 %v549, %v548
      %v566 = vpack.c.b16 %v551, %v550
      %v567 = vpack.c.b16 %v553, %v552
      %v568 = vpack.c.b16 %v555, %v554
      %v569 = vpack.c.b16 %v557, %v556
      %v570 = vpack.c.b16 %v559, %v558
      %v571 = vpack.c.b16 %v561, %v560
      %v572 = vpack.c.b16 %v563, %v562
      %vm582 = vcmask 130048
      %v584 = vsel %vm582, %v481, 0
      %v587 = vsel %vm582, %v483, 0
      %v590 = vsel %vm582, %v485, 0
      %v593 = vsel %vm582, %v487, 0
      %v596 = vsel %vm582, %v489, 0
      %v599 = vsel %vm582, %v491, 0
      %v602 = vsel %vm582, %v493, 0
      %v605 = vsel %vm582, %v495, 0
      %v608 = vsel %vm582, %v497, 0
      %v611 = vsel %vm582, %v499, 0
      %v614 = vsel %vm582, %v501, 0
      %v617 = vsel %vm582, %v503, 0
      %v620 = vsel %vm582, %v505, 0
      %v623 = vsel %vm582, %v507, 0
      %v626 = vsel %vm582, %v509, 0
      %v629 = vsel %vm582, %v511, 0
      %631 = vmatprep.subr.bf16.mxu0 0
      %632 = vmatpush1.bf16.msra.mxu0 %v564
      %633 = vmatprep.subr.bf16.mxu0 0
      %634 = vmatpush1.bf16.msra.mxu0 %v565
      %635 = vmatprep.subr.bf16.mxu0 0
      %636 = vmatpush1.bf16.msra.mxu0 %v566
      %637 = vmatprep.subr.bf16.mxu0 0
      %638 = vmatpush1.bf16.msra.mxu0 %v567
      %639 = vmatprep.subr.bf16.mxu0 0
      %640 = vmatpush1.bf16.msra.mxu0 %v568
      %641 = vmatprep.subr.bf16.mxu0 0
      %642 = vmatpush1.bf16.msra.mxu0 %v569
      %643 = vmatprep.subr.bf16.mxu0 0
      %644 = vmatpush1.bf16.msra.mxu0 %v570
      %645 = vmatprep.subr.bf16.mxu0 0
      %646 = vmatpush1.bf16.msra.mxu0 %v571
      %647 = vmatprep.subr.bf16.mxu0 0
      %648 = vmatpush1.bf16.msra.mxu0 %v572
      %649 = vmatprep.subr.bf16.mxu0 0
      %650 = vmatpush1.bf16.msra.mxu0 0
      %651 = vmatprep.subr.bf16.mxu0 0
      %652 = vmatpush1.bf16.msra.mxu0 0
      %653 = vmatprep.subr.bf16.mxu0 0
      %654 = vmatpush1.bf16.msra.mxu0 0
      %655 = vmatprep.subr.bf16.mxu0 0
      %656 = vmatpush1.bf16.msra.mxu0 0
      %657 = vmatprep.subr.bf16.mxu0 0
      %658 = vmatpush1.bf16.msra.mxu0 0
      %659 = vmatprep.subr.bf16.mxu0 0
      %660 = vmatpush1.bf16.msra.mxu0 0
      %661 = vmatprep.subr.bf16.mxu0 0
      %662 = vmatpush1.bf16.msra.mxu0 0
      %663 = vmatprep.mubr.bf16.mxu0 %v584
      %664 = vmatmul.mubr.bf16.gmra.mrb[0].mxu0 %v480
      %v665 = vpop.f32.mrb[0].mxu0
      %v666 = vadd.f32 %v382, %v665
      %v667 = vpop.f32.mrb[0].mxu0
      %v668 = vpop.f32.mrb[0].mxu0
      %v669 = vadd.f32 %v382, %v668
      %v670 = vpop.f32.mrb[0].mxu0
      %671 = vmatprep.mubr.bf16.mxu0 %v587
      %672 = vmatmul.mubr.bf16.gmra.mrb[0].mxu0 %v482
      %v673 = vpop.f32.mrb[0].mxu0
      %v674 = vadd.f32 %v382, %v673
      %v675 = vpop.f32.mrb[0].mxu0
      %v676 = vpop.f32.mrb[0].mxu0
      %v677 = vadd.f32 %v382, %v676
      %v678 = vpop.f32.mrb[0].mxu0
      %679 = vmatprep.mubr.bf16.mxu0 %v590
      %680 = vmatmul.mubr.bf16.gmra.mrb[0].mxu0 %v484
      %v681 = vpop.f32.mrb[0].mxu0
      %v682 = vadd.f32 %v382, %v681
      %v683 = vpop.f32.mrb[0].mxu0
      %v684 = vpop.f32.mrb[0].mxu0
      %v685 = vadd.f32 %v382, %v684
      %v686 = vpop.f32.mrb[0].mxu0
      %687 = vmatprep.mubr.bf16.mxu0 %v593
      %688 = vmatmul.mubr.bf16.gmra.mrb[0].mxu0 %v486
      %v689 = vpop.f32.mrb[0].mxu0
      %v690 = vadd.f32 %v382, %v689
      %v691 = vpop.f32.mrb[0].mxu0
      %v692 = vpop.f32.mrb[0].mxu0
      %v693 = vadd.f32 %v382, %v692
      %v694 = vpop.f32.mrb[0].mxu0
      %695 = vmatprep.mubr.bf16.mxu0 %v596
      %696 = vmatmul.mubr.bf16.gmra.mrb[0].mxu0 %v488
      %v697 = vpop.f32.mrb[0].mxu0
      %v698 = vadd.f32 %v382, %v697
      %v699 = vpop.f32.mrb[0].mxu0
      %v700 = vpop.f32.mrb[0].mxu0
      %v701 = vadd.f32 %v382, %v700
      %v702 = vpop.f32.mrb[0].mxu0
      %703 = vmatprep.mubr.bf16.mxu0 %v599
      %704 = vmatmul.mubr.bf16.gmra.mrb[0].mxu0 %v490
      %v705 = vpop.f32.mrb[0].mxu0
      %v706 = vadd.f32 %v382, %v705
      %v707 = vpop.f32.mrb[0].mxu0
      %v708 = vpop.f32.mrb[0].mxu0
      %v709 = vadd.f32 %v382, %v708
      %v710 = vpop.f32.mrb[0].mxu0
      %711 = vmatprep.mubr.bf16.mxu0 %v602
      %712 = vmatmul.mubr.bf16.gmra.mrb[0].mxu0 %v492
      %v713 = vpop.f32.mrb[0].mxu0
      %v714 = vadd.f32 %v382, %v713
      %v715 = vpop.f32.mrb[0].mxu0
      %v716 = vpop.f32.mrb[0].mxu0
      %v717 = vadd.f32 %v382, %v716
      %v718 = vpop.f32.mrb[0].mxu0
      %719 = vmatprep.mubr.bf16.mxu0 %v605
      %720 = vmatmul.mubr.bf16.gmra.mrb[0].mxu0 %v494
      %v721 = vpop.f32.mrb[0].mxu0
      %v722 = vadd.f32 %v382, %v721
      %v723 = vpop.f32.mrb[0].mxu0
      %v724 = vpop.f32.mrb[0].mxu0
      %v725 = vadd.f32 %v382, %v724
      %v726 = vpop.f32.mrb[0].mxu0
      %727 = vmatprep.mubr.bf16.mxu0 %v608
      %728 = vmatmul.mubr.bf16.gmra.mrb[0].mxu0 %v496
      %v729 = vpop.f32.mrb[0].mxu0
      %v730 = vadd.f32 %v382, %v729
      %v731 = vpop.f32.mrb[0].mxu0
      %v732 = vpop.f32.mrb[0].mxu0
      %v733 = vadd.f32 %v382, %v732
      %v734 = vpop.f32.mrb[0].mxu0
      %735 = vmatprep.mubr.bf16.mxu0 %v611
      %736 = vmatmul.mubr.bf16.gmra.mrb[0].mxu0 %v498
      %v737 = vpop.f32.mrb[0].mxu0
      %v738 = vadd.f32 %v382, %v737
      %v739 = vpop.f32.mrb[0].mxu0
      %v740 = vpop.f32.mrb[0].mxu0
      %v741 = vadd.f32 %v382, %v740
      %v742 = vpop.f32.mrb[0].mxu0
      %743 = vmatprep.mubr.bf16.mxu0 %v614
      %744 = vmatmul.mubr.bf16.gmra.mrb[0].mxu0 %v500
      %v745 = vpop.f32.mrb[0].mxu0
      %v746 = vadd.f32 %v382, %v745
      %v747 = vpop.f32.mrb[0].mxu0
      %v748 = vpop.f32.mrb[0].mxu0
      %v749 = vadd.f32 %v382, %v748
      %v750 = vpop.f32.mrb[0].mxu0
      %751 = vmatprep.mubr.bf16.mxu0 %v617
      %752 = vmatmul.mubr.bf16.gmra.mrb[0].mxu0 %v502
      %v753 = vpop.f32.mrb[0].mxu0
      %v754 = vadd.f32 %v382, %v753
      %v755 = vpop.f32.mrb[0].mxu0
      %v756 = vpop.f32.mrb[0].mxu0
      %v757 = vadd.f32 %v382, %v756
      %v758 = vpop.f32.mrb[0].mxu0
      %759 = vmatprep.mubr.bf16.mxu0 %v620
      %760 = vmatmul.mubr.bf16.gmra.mrb[0].mxu0 %v504
      %v761 = vpop.f32.mrb[0].mxu0
      %v762 = vadd.f32 %v382, %v761
      %v763 = vpop.f32.mrb[0].mxu0
      %v764 = vpop.f32.mrb[0].mxu0
      %v765 = vadd.f32 %v382, %v764
      %v766 = vpop.f32.mrb[0].mxu0
      %767 = vmatprep.mubr.bf16.mxu0 %v623
      %768 = vmatmul.mubr.bf16.gmra.mrb[0].mxu0 %v506
      %v769 = vpop.f32.mrb[0].mxu0
      %v770 = vadd.f32 %v382, %v769
      %v771 = vpop.f32.mrb[0].mxu0
      %v772 = vpop.f32.mrb[0].mxu0
      %v773 = vadd.f32 %v382, %v772
      %v774 = vpop.f32.mrb[0].mxu0
      %775 = vmatprep.mubr.bf16.mxu0 %v626
      %776 = vmatmul.mubr.bf16.gmra.mrb[0].mxu0 %v508
      %v777 = vpop.f32.mrb[0].mxu0
      %v778 = vadd.f32 %v382, %v777
      %v779 = vpop.f32.mrb[0].mxu0
      %v780 = vpop.f32.mrb[0].mxu0
      %v781 = vadd.f32 %v382, %v780
      %v782 = vpop.f32.mrb[0].mxu0
      %783 = vmatprep.mubr.bf16.mxu0 %v629
      %784 = vmatmul.mubr.bf16.gmra.mrb[0].mxu0 %v510
      %v785 = vpop.f32.mrb[0].mxu0
      %v786 = vadd.f32 %v382, %v785
      %v787 = vpop.f32.mrb[0].mxu0
      %v788 = vpop.f32.mrb[0].mxu0
      %v789 = vadd.f32 %v382, %v788
      %v790 = vpop.f32.mrb[0].mxu0
      %791 = vdwg.mxu0
      %v792 = vsel %vm582, %v666, 0.0
      %v793 = vsel %vm582, %v669, 0.0
      %v794 = vadd.f32 %v792, %v793
      %v795 = vsel %vm582, %v674, 0.0
      %v796 = vadd.f32 %v794, %v795
      %v797 = vsel %vm582, %v677, 0.0
      %v798 = vadd.f32 %v796, %v797
      %v799 = vsel %vm582, %v682, 0.0
      %v800 = vadd.f32 %v798, %v799
      %v801 = vsel %vm582, %v685, 0.0
      %v802 = vadd.f32 %v800, %v801
      %v803 = vsel %vm582, %v690, 0.0
      %v804 = vadd.f32 %v802, %v803
      %v805 = vsel %vm582, %v693, 0.0
      %v806 = vadd.f32 %v804, %v805
      %v807 = vsel %vm582, %v698, 0.0
      %v808 = vadd.f32 %v806, %v807
      %v809 = vsel %vm582, %v701, 0.0
      %v810 = vadd.f32 %v808, %v809
      %v811 = vsel %vm582, %v706, 0.0
      %v812 = vadd.f32 %v810, %v811
      %v813 = vsel %vm582, %v709, 0.0
      %v814 = vadd.f32 %v812, %v813
      %v815 = vsel %vm582, %v714, 0.0
      %v816 = vadd.f32 %v814, %v815
      %v817 = vsel %vm582, %v717, 0.0
      %v818 = vadd.f32 %v816, %v817
      %v819 = vsel %vm582, %v722, 0.0
      %v820 = vadd.f32 %v818, %v819
      %v821 = vsel %vm582, %v725, 0.0
      %v822 = vadd.f32 %v820, %v821
      %v823 = vsel %vm582, %v730, 0.0
      %v824 = vadd.f32 %v822, %v823
      %v825 = vsel %vm582, %v733, 0.0
      %v826 = vadd.f32 %v824, %v825
      %v827 = vsel %vm582, %v738, 0.0
      %v828 = vadd.f32 %v826, %v827
      %v829 = vsel %vm582, %v741, 0.0
      %v830 = vadd.f32 %v828, %v829
      %v831 = vsel %vm582, %v746, 0.0
      %v832 = vadd.f32 %v830, %v831
      %v833 = vsel %vm582, %v749, 0.0
      %v834 = vadd.f32 %v832, %v833
      %v835 = vsel %vm582, %v754, 0.0
      %v836 = vadd.f32 %v834, %v835
      %v837 = vsel %vm582, %v757, 0.0
      %v838 = vadd.f32 %v836, %v837
      %v839 = vsel %vm582, %v762, 0.0
      %v840 = vadd.f32 %v838, %v839
      %v841 = vsel %vm582, %v765, 0.0
      %v842 = vadd.f32 %v840, %v841
      %v843 = vsel %vm582, %v770, 0.0
      %v844 = vadd.f32 %v842, %v843
      %v845 = vsel %vm582, %v773, 0.0
      %v846 = vadd.f32 %v844, %v845
      %v847 = vsel %vm582, %v778, 0.0
      %v848 = vadd.f32 %v846, %v847
      %v849 = vsel %vm582, %v781, 0.0
      %v850 = vadd.f32 %v848, %v849
      %v851 = vsel %vm582, %v786, 0.0
      %v852 = vadd.f32 %v850, %v851
      %v853 = vsel %vm582, %v789, 0.0
      %v854 = vadd.f32 %v852, %v853
      %v855 = vrot.slane %v854, 4
      %v856 = vadd.f32 %v854, %v855
      %v857 = vrot.slane %v856, 2
      %v858 = vadd.f32 %v856, %v857
      %v859 = vrot.slane %v858, 1
      %v860 = vadd.f32 %v858, %v859
      %v861 = vrcp.pop 256.0
      %v862 = vmul.f32 %v860, %v861
      %v863 = vld [vmem:[%s4] sm:$0xff]
      %v864 = vld [vmem:[%s4 + $0x8] sm:$0xff]
      %v866 = vsel %vm582, %v862, 0
      %868 = vmatprep.subr.mxu0 0.0
      %869 = vmatpush1.msra.mxu0 %v863
      %870 = vmatprep.subr.mxu0 0.0
      %871 = vmatpush1.msra.mxu0 %v864
      %872 = vmatprep.subr.mxu0 0.0
      %873 = vmatpush1.msra.mxu0 0.0
      %874 = vmatprep.subr.mxu0 0.0
      %875 = vmatpush1.msra.mxu0 0.0
      %876 = vmatprep.subr.mxu0 0.0
      %877 = vmatpush1.msra.mxu0 0.0
      %878 = vmatprep.subr.mxu0 0.0
      %879 = vmatpush1.msra.mxu0 0.0
      %880 = vmatprep.subr.mxu0 0.0
      %881 = vmatpush1.msra.mxu0 0.0
      %882 = vmatprep.subr.mxu0 0.0
      %883 = vmatpush1.msra.mxu0 0.0
      %884 = vmatprep.subr.mxu0 0.0
      %885 = vmatpush1.msra.mxu0 0.0
      %886 = vmatprep.subr.mxu0 0.0
      %887 = vmatpush1.msra.mxu0 0.0
      %888 = vmatprep.subr.mxu0 0.0
      %889 = vmatpush1.msra.mxu0 0.0
      %890 = vmatprep.subr.mxu0 0.0
      %891 = vmatpush1.msra.mxu0 0.0
      %892 = vmatprep.subr.mxu0 0.0
      %893 = vmatpush1.msra.mxu0 0.0
      %894 = vmatprep.subr.mxu0 0.0
      %895 = vmatpush1.msra.mxu0 0.0
      %896 = vmatprep.subr.mxu0 0.0
      %897 = vmatpush1.msra.mxu0 0.0
      %898 = vmatprep.subr.mxu0 0.0
      %899 = vmatpush1.msra.mxu0 0.0
      %900 = vmatprep.subr.mxu0 0.0
      %901 = vmatpush1.msra.mxu0 0.0
      %902 = vmatprep.subr.mxu0 0.0
      %903 = vmatpush1.msra.mxu0 0.0
      %904 = vmatprep.subr.mxu0 0.0
      %905 = vmatpush1.msra.mxu0 0.0
      %906 = vmatprep.subr.mxu0 0.0
      %907 = vmatpush1.msra.mxu0 0.0
      %908 = vmatprep.subr.mxu0 0.0
      %909 = vmatpush1.msra.mxu0 0.0
      %910 = vmatprep.subr.mxu0 0.0
      %911 = vmatpush1.msra.mxu0 0.0
      %912 = vmatprep.subr.mxu0 0.0
      %913 = vmatpush1.msra.mxu0 0.0
      %914 = vmatprep.subr.mxu0 0.0
      %915 = vmatpush1.msra.mxu0 0.0
      %916 = vmatprep.subr.mxu0 0.0
      %917 = vmatpush1.msra.mxu0 0.0
      %918 = vmatprep.subr.mxu0 0.0
      %919 = vmatpush1.msra.mxu0 0.0
      %920 = vmatprep.subr.mxu0 0.0
      %921 = vmatpush1.msra.mxu0 0.0
      %922 = vmatprep.subr.mxu0 0.0
      %923 = vmatpush1.msra.mxu0 0.0
      %924 = vmatprep.subr.mxu0 0.0
      %925 = vmatpush1.msra.mxu0 0.0
      %926 = vmatprep.subr.mxu0 0.0
      %927 = vmatpush1.msra.mxu0 0.0
      %928 = vmatprep.subr.mxu0 0.0
      %929 = vmatpush1.msra.mxu0 0.0
      %930 = vmatprep.subr.mxu0 0.0
      %931 = vmatpush1.msra.mxu0 0.0
      %932 = vmatprep.mubr.f32.mxu0 0.0
      %933 = vmatmul.mubr.f32.gmra.mrb[0].mxu0 %v866
      %v934 = vpop.f32.mrb[0].mxu0
      %v935 = vadd.f32 0.0, %v934
      %v936 = vpop.f32.mrb[0].mxu0
      %937 = vdwg.mxu0
      %v938 = vld [vmem:[%s6] sm:$0x1]
      %vm939 = vcmp.ge.f32.partialorder %v935, 0.0
      %v940 = vmul.f32 %v938, %v935
      %v941 = vsel %vm939, %v935, %v940
      %v942 = vld [vmem:[%s5] sm:$0xff]
      %v943 = vld [vmem:[%s5 + $0x8] sm:$0xff]
      %v945 = vsel %vm582, %v941, 0
      %947 = vmatprep.subr.mxu0 0.0
      %948 = vmatpush1.msra.mxu0 %v942
      %949 = vmatprep.subr.mxu0 0.0
      %950 = vmatpush1.msra.mxu0 %v943
      %951 = vmatprep.subr.mxu0 0.0
      %952 = vmatpush1.msra.mxu0 0.0
      %953 = vmatprep.subr.mxu0 0.0
      %954 = vmatpush1.msra.mxu0 0.0
      %955 = vmatprep.subr.mxu0 0.0
      %956 = vmatpush1.msra.mxu0 0.0
      %957 = vmatprep.subr.mxu0 0.0
      %958 = vmatpush1.msra.mxu0 0.0
      %959 = vmatprep.subr.mxu0 0.0
      %960 = vmatpush1.msra.mxu0 0.0
      %961 = vmatprep.subr.mxu0 0.0
      %962 = vmatpush1.msra.mxu0 0.0
      %963 = vmatprep.subr.mxu0 0.0
      %964 = vmatpush1.msra.mxu0 0.0
      %965 = vmatprep.subr.mxu0 0.0
      %966 = vmatpush1.msra.mxu0 0.0
      %967 = vmatprep.subr.mxu0 0.0
      %968 = vmatpush1.msra.mxu0 0.0
      %969 = vmatprep.subr.mxu0 0.0
      %970 = vmatpush1.msra.mxu0 0.0
      %971 = vmatprep.subr.mxu0 0.0
      %972 = vmatpush1.msra.mxu0 0.0
      %973 = vmatprep.subr.mxu0 0.0
      %974 = vmatpush1.msra.mxu0 0.0
      %975 = vmatprep.subr.mxu0 0.0
      %976 = vmatpush1.msra.mxu0 0.0
      %977 = vmatprep.subr.mxu0 0.0
      %978 = vmatpush1.msra.mxu0 0.0
      %979 = vmatprep.subr.mxu0 0.0
      %980 = vmatpush1.msra.mxu0 0.0
      %981 = vmatprep.subr.mxu0 0.0
      %982 = vmatpush1.msra.mxu0 0.0
      %983 = vmatprep.subr.mxu0 0.0
      %984 = vmatpush1.msra.mxu0 0.0
      %985 = vmatprep.subr.mxu0 0.0
      %986 = vmatpush1.msra.mxu0 0.0
      %987 = vmatprep.subr.mxu0 0.0
      %988 = vmatpush1.msra.mxu0 0.0
      %989 = vmatprep.subr.mxu0 0.0
      %990 = vmatpush1.msra.mxu0 0.0
      %991 = vmatprep.subr.mxu0 0.0
      %992 = vmatpush1.msra.mxu0 0.0
      %993 = vmatprep.subr.mxu0 0.0
      %994 = vmatpush1.msra.mxu0 0.0
      %995 = vmatprep.subr.mxu0 0.0
      %996 = vmatpush1.msra.mxu0 0.0
      %997 = vmatprep.subr.mxu0 0.0
      %998 = vmatpush1.msra.mxu0 0.0
      %999 = vmatprep.subr.mxu0 0.0
      %1000 = vmatpush1.msra.mxu0 0.0
      %1001 = vmatprep.subr.mxu0 0.0
      %1002 = vmatpush1.msra.mxu0 0.0
      %1003 = vmatprep.subr.mxu0 0.0
      %1004 = vmatpush1.msra.mxu0 0.0
      %1005 = vmatprep.subr.mxu0 0.0
      %1006 = vmatpush1.msra.mxu0 0.0
      %1007 = vmatprep.subr.mxu0 0.0
      %1008 = vmatpush1.msra.mxu0 0.0
      %1009 = vmatprep.subr.mxu0 0.0
      %1010 = vmatpush1.msra.mxu0 0.0
      %1011 = vmatprep.mubr.f32.mxu0 0.0
      %1012 = vmatmul.mubr.f32.gmra.mrb[0].mxu0 %v945
      %v1013 = vpop.f32.mrb[0].mxu0
      %v1014 = vadd.f32 0.0, %v1013
      %v1015 = vpop.f32.mrb[0].mxu0
      %1016 = vdwg.mxu0
      %v1017 = vxor.u32 %v1014, 2147483648
      %v1018 = vmul.f32 %v1017, 1.442695
      %v1019 = vpow.pop %v1018
      %v1020 = vadd.f32 %v1019, 1.0
      %v1021 = vrcp.pop %v1020
      %v1022 = vmul.f32 1.0, %v1021
      %v1023 = vlaneseq
      %v1024 = vshrl.u32 %v1023, 7
      %v1025 = vsub.s32 0, %v1024
      %v1026 = vrot.slane %v1022, %v1025
      %v1027 = vmul.f32 %v666, %v1026
      %v1028 = vmul.f32 %v669, %v1026
      %v1029 = vmul.f32 %v674, %v1026
      %v1030 = vmul.f32 %v677, %v1026
      %v1031 = vmul.f32 %v682, %v1026
      %v1032 = vmul.f32 %v685, %v1026
      %v1033 = vmul.f32 %v690, %v1026
      %v1034 = vmul.f32 %v693, %v1026
      %v1035 = vmul.f32 %v698, %v1026
      %v1036 = vmul.f32 %v701, %v1026
      %v1037 = vmul.f32 %v706, %v1026
      %v1038 = vmul.f32 %v709, %v1026
      %v1039 = vmul.f32 %v714, %v1026
      %v1040 = vmul.f32 %v717, %v1026
      %v1041 = vmul.f32 %v722, %v1026
      %v1042 = vmul.f32 %v725, %v1026
      %v1043 = vmul.f32 %v730, %v1026
      %v1044 = vmul.f32 %v733, %v1026
      %v1045 = vmul.f32 %v738, %v1026
      %v1046 = vmul.f32 %v741, %v1026
      %v1047 = vmul.f32 %v746, %v1026
      %v1048 = vmul.f32 %v749, %v1026
      %v1049 = vmul.f32 %v754, %v1026
      %v1050 = vmul.f32 %v757, %v1026
      %v1051 = vmul.f32 %v762, %v1026
      %v1052 = vmul.f32 %v765, %v1026
      %v1053 = vmul.f32 %v770, %v1026
      %v1054 = vmul.f32 %v773, %v1026
      %v1055 = vmul.f32 %v778, %v1026
      %v1056 = vmul.f32 %v781, %v1026
      %v1057 = vmul.f32 %v786, %v1026
      %v1058 = vmul.f32 %v789, %v1026
      %v1059 = vld [vmem:[%s320] sm:$0xff]
      %v1060 = vld [vmem:[%s320 + $0x8] sm:$0xff]
      %v1061 = vld [vmem:[%s320 + $0x10] sm:$0xff]
      %v1062 = vld [vmem:[%s320 + $0x18] sm:$0xff]
      %v1063 = vld [vmem:[%s320 + $0x20] sm:$0xff]
      %v1064 = vld [vmem:[%s320 + $0x28] sm:$0xff]
      %v1065 = vld [vmem:[%s320 + $0x30] sm:$0xff]
      %v1066 = vld [vmem:[%s320 + $0x38] sm:$0xff]
      %v1067 = vld [vmem:[%s320 + $0x40] sm:$0xff]
      %v1068 = vld [vmem:[%s320 + $0x48] sm:$0xff]
      %v1069 = vld [vmem:[%s320 + $0x50] sm:$0xff]
      %v1070 = vld [vmem:[%s320 + $0x58] sm:$0xff]
      %v1071 = vld [vmem:[%s320 + $0x60] sm:$0xff]
      %v1072 = vld [vmem:[%s320 + $0x68] sm:$0xff]
      %v1073 = vld [vmem:[%s320 + $0x70] sm:$0xff]
      %v1074 = vld [vmem:[%s320 + $0x78] sm:$0xff]
      %v1075 = vld [vmem:[%s320 + $0x80] sm:$0xff]
      %v1076 = vld [vmem:[%s320 + $0x88] sm:$0xff]
      %v1077 = vld [vmem:[%s320 + $0x90] sm:$0xff]
      %v1078 = vld [vmem:[%s320 + $0x98] sm:$0xff]
      %v1079 = vld [vmem:[%s320 + $0xa0] sm:$0xff]
      %v1080 = vld [vmem:[%s320 + $0xa8] sm:$0xff]
      %v1081 = vld [vmem:[%s320 + $0xb0] sm:$0xff]
      %v1082 = vld [vmem:[%s320 + $0xb8] sm:$0xff]
      %v1083 = vld [vmem:[%s320 + $0xc0] sm:$0xff]
      %v1084 = vld [vmem:[%s320 + $0xc8] sm:$0xff]
      %v1085 = vld [vmem:[%s320 + $0xd0] sm:$0xff]
      %v1086 = vld [vmem:[%s320 + $0xd8] sm:$0xff]
      %v1087 = vld [vmem:[%s320 + $0xe0] sm:$0xff]
      %v1088 = vld [vmem:[%s320 + $0xe8] sm:$0xff]
      %v1089 = vld [vmem:[%s320 + $0xf0] sm:$0xff]
      %v1090 = vld [vmem:[%s320 + $0xf8] sm:$0xff]
      %v1091 = vadd.f32 %v1027, %v1059
      %v1092 = vadd.f32 %v1028, %v1060
      %v1093 = vadd.f32 %v1029, %v1061
      %v1094 = vadd.f32 %v1030, %v1062
      %v1095 = vadd.f32 %v1031, %v1063
      %v1096 = vadd.f32 %v1032, %v1064
      %v1097 = vadd.f32 %v1033, %v1065
      %v1098 = vadd.f32 %v1034, %v1066
      %v1099 = vadd.f32 %v1035, %v1067
      %v1100 = vadd.f32 %v1036, %v1068
      %v1101 = vadd.f32 %v1037, %v1069
      %v1102 = vadd.f32 %v1038, %v1070
      %v1103 = vadd.f32 %v1039, %v1071
      %v1104 = vadd.f32 %v1040, %v1072
      %v1105 = vadd.f32 %v1041, %v1073
      %v1106 = vadd.f32 %v1042, %v1074
      %v1107 = vadd.f32 %v1043, %v1075
      %v1108 = vadd.f32 %v1044, %v1076
      %v1109 = vadd.f32 %v1045, %v1077
      %v1110 = vadd.f32 %v1046, %v1078
      %v1111 = vadd.f32 %v1047, %v1079
      %v1112 = vadd.f32 %v1048, %v1080
      %v1113 = vadd.f32 %v1049, %v1081
      %v1114 = vadd.f32 %v1050, %v1082
      %v1115 = vadd.f32 %v1051, %v1083
      %v1116 = vadd.f32 %v1052, %v1084
      %v1117 = vadd.f32 %v1053, %v1085
      %v1118 = vadd.f32 %v1054, %v1086
      %v1119 = vadd.f32 %v1055, %v1087
      %v1120 = vadd.f32 %v1056, %v1088
      %v1121 = vadd.f32 %v1057, %v1089
      %v1122 = vadd.f32 %v1058, %v1090
      %v1123 = vld [vmem:[%s7] sm:$0x1]
      %vm1124 = vcmp.ge.f32.partialorder %v1091, 0.0
      %vm1125 = vcmp.ge.f32.partialorder %v1092, 0.0
      %vm1126 = vcmp.ge.f32.partialorder %v1093, 0.0
      %vm1127 = vcmp.ge.f32.partialorder %v1094, 0.0
      %vm1128 = vcmp.ge.f32.partialorder %v1095, 0.0
      %vm1129 = vcmp.ge.f32.partialorder %v1096, 0.0
      %vm1130 = vcmp.ge.f32.partialorder %v1097, 0.0
      %vm1131 = vcmp.ge.f32.partialorder %v1098, 0.0
      %vm1132 = vcmp.ge.f32.partialorder %v1099, 0.0
      %vm1133 = vcmp.ge.f32.partialorder %v1100, 0.0
      %vm1134 = vcmp.ge.f32.partialorder %v1101, 0.0
      %vm1135 = vcmp.ge.f32.partialorder %v1102, 0.0
      %vm1136 = vcmp.ge.f32.partialorder %v1103, 0.0
      %vm1137 = vcmp.ge.f32.partialorder %v1104, 0.0
      %vm1138 = vcmp.ge.f32.partialorder %v1105, 0.0
      %vm1139 = vcmp.ge.f32.partialorder %v1106, 0.0
      %vm1140 = vcmp.ge.f32.partialorder %v1107, 0.0
      %vm1141 = vcmp.ge.f32.partialorder %v1108, 0.0
      %vm1142 = vcmp.ge.f32.partialorder %v1109, 0.0
      %vm1143 = vcmp.ge.f32.partialorder %v1110, 0.0
      %vm1144 = vcmp.ge.f32.partialorder %v1111, 0.0
      %vm1145 = vcmp.ge.f32.partialorder %v1112, 0.0
      %vm1146 = vcmp.ge.f32.partialorder %v1113, 0.0
      %vm1147 = vcmp.ge.f32.partialorder %v1114, 0.0
      %vm1148 = vcmp.ge.f32.partialorder %v1115, 0.0
      %vm1149 = vcmp.ge.f32.partialorder %v1116, 0.0
      %vm1150 = vcmp.ge.f32.partialorder %v1117, 0.0
      %vm1151 = vcmp.ge.f32.partialorder %v1118, 0.0
      %vm1152 = vcmp.ge.f32.partialorder %v1119, 0.0
      %vm1153 = vcmp.ge.f32.partialorder %v1120, 0.0
      %vm1154 = vcmp.ge.f32.partialorder %v1121, 0.0
      %vm1155 = vcmp.ge.f32.partialorder %v1122, 0.0
      %v1157 = vlaneseq
      %v1158 = vshrl.u32 %v1157, 7
      %v1159 = vsub.s32 0, %v1158
      %v1160 = vrot.slane %v1123, %v1159
      %v1162 = vmul.f32 %v1160, %v1091
      %v1163 = vmul.f32 %v1160, %v1092
      %v1164 = vmul.f32 %v1160, %v1093
      %v1165 = vmul.f32 %v1160, %v1094
      %v1166 = vmul.f32 %v1160, %v1095
      %v1167 = vmul.f32 %v1160, %v1096
      %v1168 = vmul.f32 %v1160, %v1097
      %v1169 = vmul.f32 %v1160, %v1098
      %v1170 = vmul.f32 %v1160, %v1099
      %v1171 = vmul.f32 %v1160, %v1100
      %v1172 = vmul.f32 %v1160, %v1101
      %v1173 = vmul.f32 %v1160, %v1102
      %v1174 = vmul.f32 %v1160, %v1103
      %v1175 = vmul.f32 %v1160, %v1104
      %v1176 = vmul.f32 %v1160, %v1105
      %v1177 = vmul.f32 %v1160, %v1106
      %v1178 = vmul.f32 %v1160, %v1107
      %v1179 = vmul.f32 %v1160, %v1108
      %v1180 = vmul.f32 %v1160, %v1109
      %v1181 = vmul.f32 %v1160, %v1110
      %v1182 = vmul.f32 %v1160, %v1111
      %v1183 = vmul.f32 %v1160, %v1112
      %v1184 = vmul.f32 %v1160, %v1113
      %v1185 = vmul.f32 %v1160, %v1114
      %v1186 = vmul.f32 %v1160, %v1115
      %v1187 = vmul.f32 %v1160, %v1116
      %v1188 = vmul.f32 %v1160, %v1117
      %v1189 = vmul.f32 %v1160, %v1118
      %v1190 = vmul.f32 %v1160, %v1119
      %v1191 = vmul.f32 %v1160, %v1120
      %v1192 = vmul.f32 %v1160, %v1121
      %v1193 = vmul.f32 %v1160, %v1122
      %v1194 = vsel %vm1124, %v1091, %v1162
      %v1195 = vsel %vm1125, %v1092, %v1163
      %v1196 = vsel %vm1126, %v1093, %v1164
      %v1197 = vsel %vm1127, %v1094, %v1165
      %v1198 = vsel %vm1128, %v1095, %v1166
      %v1199 = vsel %vm1129, %v1096, %v1167
      %v1200 = vsel %vm1130, %v1097, %v1168
      %v1201 = vsel %vm1131, %v1098, %v1169
      %v1202 = vsel %vm1132, %v1099, %v1170
      %v1203 = vsel %vm1133, %v1100, %v1171
      %v1204 = vsel %vm1134, %v1101, %v1172
      %v1205 = vsel %vm1135, %v1102, %v1173
      %v1206 = vsel %vm1136, %v1103, %v1174
      %v1207 = vsel %vm1137, %v1104, %v1175
      %v1208 = vsel %vm1138, %v1105, %v1176
      %v1209 = vsel %vm1139, %v1106, %v1177
      %v1210 = vsel %vm1140, %v1107, %v1178
      %v1211 = vsel %vm1141, %v1108, %v1179
      %v1212 = vsel %vm1142, %v1109, %v1180
      %v1213 = vsel %vm1143, %v1110, %v1181
      %v1214 = vsel %vm1144, %v1111, %v1182
      %v1215 = vsel %vm1145, %v1112, %v1183
      %v1216 = vsel %vm1146, %v1113, %v1184
      %v1217 = vsel %vm1147, %v1114, %v1185
      %v1218 = vsel %vm1148, %v1115, %v1186
      %v1219 = vsel %vm1149, %v1116, %v1187
      %v1220 = vsel %vm1150, %v1117, %v1188
      %v1221 = vsel %vm1151, %v1118, %v1189
      %v1222 = vsel %vm1152, %v1119, %v1190
      %v1223 = vsel %vm1153, %v1120, %v1191
      %v1224 = vsel %vm1154, %v1121, %v1192
      %v1225 = vsel %vm1155, %v1122, %v1193
      %1226 = vst.msk [vmem:[%s325] sm:$0xff] %vm582, %v1194
      %1227 = vst.msk [vmem:[%s325 + $0x8] sm:$0xff] %vm582, %v1195
      %1228 = vst.msk [vmem:[%s325 + $0x10] sm:$0xff] %vm582, %v1196
      %1229 = vst.msk [vmem:[%s325 + $0x18] sm:$0xff] %vm582, %v1197
      %1230 = vst.msk [vmem:[%s325 + $0x20] sm:$0xff] %vm582, %v1198
      %1231 = vst.msk [vmem:[%s325 + $0x28] sm:$0xff] %vm582, %v1199
      %1232 = vst.msk [vmem:[%s325 + $0x30] sm:$0xff] %vm582, %v1200
      %1233 = vst.msk [vmem:[%s325 + $0x38] sm:$0xff] %vm582, %v1201
      %1234 = vst.msk [vmem:[%s325 + $0x40] sm:$0xff] %vm582, %v1202
      %1235 = vst.msk [vmem:[%s325 + $0x48] sm:$0xff] %vm582, %v1203
      %1236 = vst.msk [vmem:[%s325 + $0x50] sm:$0xff] %vm582, %v1204
      %1237 = vst.msk [vmem:[%s325 + $0x58] sm:$0xff] %vm582, %v1205
      %1238 = vst.msk [vmem:[%s325 + $0x60] sm:$0xff] %vm582, %v1206
      %1239 = vst.msk [vmem:[%s325 + $0x68] sm:$0xff] %vm582, %v1207
      %1240 = vst.msk [vmem:[%s325 + $0x70] sm:$0xff] %vm582, %v1208
      %1241 = vst.msk [vmem:[%s325 + $0x78] sm:$0xff] %vm582, %v1209
      %1242 = vst.msk [vmem:[%s325 + $0x80] sm:$0xff] %vm582, %v1210
      %1243 = vst.msk [vmem:[%s325 + $0x88] sm:$0xff] %vm582, %v1211
      %1244 = vst.msk [vmem:[%s325 + $0x90] sm:$0xff] %vm582, %v1212
      %1245 = vst.msk [vmem:[%s325 + $0x98] sm:$0xff] %vm582, %v1213
      %1246 = vst.msk [vmem:[%s325 + $0xa0] sm:$0xff] %vm582, %v1214
      %1247 = vst.msk [vmem:[%s325 + $0xa8] sm:$0xff] %vm582, %v1215
      %1248 = vst.msk [vmem:[%s325 + $0xb0] sm:$0xff] %vm582, %v1216
      %1249 = vst.msk [vmem:[%s325 + $0xb8] sm:$0xff] %vm582, %v1217
      %1250 = vst.msk [vmem:[%s325 + $0xc0] sm:$0xff] %vm582, %v1218
      %1251 = vst.msk [vmem:[%s325 + $0xc8] sm:$0xff] %vm582, %v1219
      %1252 = vst.msk [vmem:[%s325 + $0xd0] sm:$0xff] %vm582, %v1220
      %1253 = vst.msk [vmem:[%s325 + $0xd8] sm:$0xff] %vm582, %v1221
      %1254 = vst.msk [vmem:[%s325 + $0xe0] sm:$0xff] %vm582, %v1222
      %1255 = vst.msk [vmem:[%s325 + $0xe8] sm:$0xff] %vm582, %v1223
      %1256 = vst.msk [vmem:[%s325 + $0xf0] sm:$0xff] %vm582, %v1224
      %1257 = vst.msk [vmem:[%s325 + $0xf8] sm:$0xff] %vm582, %v1225
      %p1258 = scmp.lt.s32.totalorder %s19, 1
      %s1259 = scalar_select %p1258, %s19, 1
      %s1260 = smul.addr %s1259, 32
      %s1261 = smul.addr %s1260, 8
      %s1262 = scalar_lea.vmem %s8, %s1261
      // Predicated region
      $region53: #{context_net.9} parent=51 // pred_check
        %p1263 = pneg %p215
      $region54: #{context_net.9} parent=51 // pred_check_branch
        %1265 = sbr.rel (%p1263) target = $region56
      $region55: #{context_net.9} parent=51 // pred_region
        _
      $region56: #{context_net.9} parent=51 // pred_fallthru
        _
    $region52: #{context_net.9} parent=5 // pred_fallthru
      _
    %p1266 = scmp.le.s32.totalorder 2, %s14
    // Predicated region
    $region57: #{context_net.9} parent=5 // pred_check
      %p1267 = pneg %p1266
    $region58: #{context_net.9} parent=5 // pred_check_branch
      %1269 = sbr.rel (%p1267) target = $region60
    $region59: #{context_net.9} parent=5 // pred_region
      %s1270 = ssub.s32 %s14, 2
      // Predicated region
      $region61: #{context_net.9} parent=59 // pred_check
        %p1271 = pneg %p221
      $region62: #{context_net.9} parent=59 // pred_check_branch
        %1273 = sbr.rel (%p1271) target = $region64
      $region63: #{context_net.9} parent=59 // pred_region
        %p1274 = scmp.lt.s32.totalorder %s20, 1
        %s1275 = scalar_select %p1274, %s20, 1
        %s1276 = smul.addr %s1275, 32
        %s1277 = smul.addr %s1276, 8
        %s1278 = scalar_lea.vmem %s8, %s1277
      $region64: #{context_net.9} parent=59 // pred_fallthru
        _
    $region60: #{context_net.9} parent=5 // pred_fallthru
      _
  $region6: #{context_net.9} parent=0 // loop_footer
    %s18 = sadd.s32 1, %s14
  $region7: #{context_net.9} parent=0 // loop_footer_branch
    %13 = sbr.rel target = $region3
  $region8: #{context_net.9} parent=0 // loop_exit
    _

// kernel: context_net.10
$region0: #{context_net.10}
  #allocation0 [shape = 'u32[]', space=smem, size = 0x4, offset = 0x4, fixed_abs, tag = 'smem constant byte address 0x4 - core index']
  #allocation1 [shape = 'u32[144,128]{1,0:T(1,128)}', space=vmem, size = 0x12000, scoped, tag = 'internal scratch']
  %s0 = inlined_call_operand.vmem [shape: bf16[128,144], index: 0, kind: input, shape index: {}]
  %s1 = inlined_call_operand.vmem [shape: bf16[144,64], index: 1, kind: input, shape index: {}]
  %s2 = inlined_call_operand.vmem [shape: f32[1,64], index: 2, kind: input, shape index: {}]
  %s3 = inlined_call_operand.vmem [shape: f32[1,64], index: 3, kind: input, shape index: {}]
  %s4 = inlined_call_operand.vmem [shape: f32[128,64], index: 4, kind: output, shape index: {}]
  %s5 = sld [smem:[#allocation0]]
  $region26: #{context_net.10} parent=0
    _
  %s7 = ssub.s32 1, %s5
  %s8 = scalar_select 0, %s7, %s5
  // Predicated region
  $region2: #{context_net.10} parent=0 // pred_check
    _
  $region3: #{context_net.10} parent=0 // pred_check_branch
    %10 = sbr.rel (0) target = $region5
  $region4: #{context_net.10} parent=0 // pred_region
    _
  $region5: #{context_net.10} parent=0 // pred_fallthru
    _
  // Predicated region
  $region6: #{context_net.10} parent=0 // pred_check
    _
  $region7: #{context_net.10} parent=0 // pred_check_branch
    %12 = sbr.rel (0) target = $region9
  $region8: #{context_net.10} parent=0 // pred_region
    _
  $region9: #{context_net.10} parent=0 // pred_fallthru
    _
  // Predicated region
  $region10: #{context_net.10} parent=0 // pred_check
    _
  $region11: #{context_net.10} parent=0 // pred_check_branch
    %14 = sbr.rel (0) target = $region13
  $region12: #{context_net.10} parent=0 // pred_region
    _
  $region13: #{context_net.10} parent=0 // pred_fallthru
    _
  // Predicated region
  $region14: #{context_net.10} parent=0 // pred_check
    _
  $region15: #{context_net.10} parent=0 // pred_check_branch
    %16 = sbr.rel (0) target = $region17
  $region16: #{context_net.10} parent=0 // pred_region
    _
  $region17: #{context_net.10} parent=0 // pred_fallthru
    _
  %v18 = vld [vmem:[%s0] sm:$0xff]
  %v19 = vld [vmem:[%s0 + $0x8] sm:$0xff]
  %v20 = vld [vmem:[%s0 + $0x10] sm:$0xff]
  %v21 = vld [vmem:[%s0 + $0x18] sm:$0xff]
  %v22 = vld [vmem:[%s0 + $0x20] sm:$0xff]
  %v23 = vld [vmem:[%s0 + $0x28] sm:$0xff]
  %v24 = vld [vmem:[%s0 + $0x30] sm:$0xff]
  %v25 = vld [vmem:[%s0 + $0x38] sm:$0xff]
  %v26 = vld [vmem:[%s0 + $0x40] sm:$0xff]
  %v27 = vld [vmem:[%s0 + $0x48] sm:$0xff]
  %v28 = vld [vmem:[%s0 + $0x50] sm:$0xff]
  %v29 = vld [vmem:[%s0 + $0x58] sm:$0xff]
  %v30 = vld [vmem:[%s0 + $0x60] sm:$0xff]
  %v31 = vld [vmem:[%s0 + $0x68] sm:$0xff]
  %v32 = vld [vmem:[%s0 + $0x70] sm:$0xff]
  %v33 = vld [vmem:[%s0 + $0x78] sm:$0xff]
  %v34 = vld [vmem:[%s1] sm:$0xf]
  %v35 = vld [vmem:[%s1 + $0x4] sm:$0xf]
  %v36 = vld [vmem:[%s1 + $0x8] sm:$0xf]
  %v37 = vld [vmem:[%s1 + $0xc] sm:$0xf]
  %v38 = vld [vmem:[%s1 + $0x10] sm:$0xf]
  %v39 = vld [vmem:[%s1 + $0x14] sm:$0xf]
  %v40 = vld [vmem:[%s1 + $0x18] sm:$0xf]
  %v41 = vld [vmem:[%s1 + $0x1c] sm:$0xf]
  %v42 = vld [vmem:[%s1 + $0x20] sm:$0xf]
  %v43 = vld [vmem:[%s1 + $0x24] sm:$0xf]
  %v44 = vld [vmem:[%s1 + $0x28] sm:$0xf]
  %v45 = vld [vmem:[%s1 + $0x2c] sm:$0xf]
  %v46 = vld [vmem:[%s1 + $0x30] sm:$0xf]
  %v47 = vld [vmem:[%s1 + $0x34] sm:$0xf]
  %v48 = vld [vmem:[%s1 + $0x38] sm:$0xf]
  %v49 = vld [vmem:[%s1 + $0x3c] sm:$0xf]
  %v50 = vld [vmem:[%s1 + $0x40] sm:$0xf]
  %v51 = vld [vmem:[%s1 + $0x44] sm:$0xf]
  %v52 = vld [vmem:[%s2] sm:$0x1]
  %v54 = vlaneseq
  %v55 = vshrl.u32 %v54, 7
  %v56 = vsub.s32 0, %v55
  %v57 = vrot.slane %v52, %v56
  %v75 = vunpack.c.l.b16 %v18
  %v76 = vunpack.c.h.b16 %v18
  %v77 = vunpack.c.l.b16 %v19
  %v78 = vunpack.c.h.b16 %v19
  %v79 = vunpack.c.l.b16 %v20
  %v80 = vunpack.c.h.b16 %v20
  %v81 = vunpack.c.l.b16 %v21
  %v82 = vunpack.c.h.b16 %v21
  %v83 = vunpack.c.l.b16 %v22
  %v84 = vunpack.c.h.b16 %v22
  %v85 = vunpack.c.l.b16 %v23
  %v86 = vunpack.c.h.b16 %v23
  %v87 = vunpack.c.l.b16 %v24
  %v88 = vunpack.c.h.b16 %v24
  %v89 = vunpack.c.l.b16 %v25
  %v90 = vunpack.c.h.b16 %v25
  %v91 = vunpack.c.l.b16 %v26
  %v92 = vunpack.c.h.b16 %v26
  %v93 = vunpack.c.l.b16 %v27
  %v94 = vunpack.c.h.b16 %v27
  %v95 = vunpack.c.l.b16 %v28
  %v96 = vunpack.c.h.b16 %v28
  %v97 = vunpack.c.l.b16 %v29
  %v98 = vunpack.c.h.b16 %v29
  %v99 = vunpack.c.l.b16 %v30
  %v100 = vunpack.c.h.b16 %v30
  %v101 = vunpack.c.l.b16 %v31
  %v102 = vunpack.c.h.b16 %v31
  %v103 = vunpack.c.l.b16 %v32
  %v104 = vunpack.c.h.b16 %v32
  %v105 = vunpack.c.l.b16 %v33
  %v106 = vunpack.c.h.b16 %v33
  %v107 = vpack.c.b16 %v77, %v75
  %v108 = vpack.c.b16 %v78, %v76
  %v109 = vpack.c.b16 %v81, %v79
  %v110 = vpack.c.b16 %v82, %v80
  %v111 = vpack.c.b16 %v85, %v83
  %v112 = vpack.c.b16 %v86, %v84
  %v113 = vpack.c.b16 %v89, %v87
  %v114 = vpack.c.b16 %v90, %v88
  %v115 = vpack.c.b16 %v93, %v91
  %v116 = vpack.c.b16 %v94, %v92
  %v117 = vpack.c.b16 %v97, %v95
  %v118 = vpack.c.b16 %v98, %v96
  %v119 = vpack.c.b16 %v101, %v99
  %v120 = vpack.c.b16 %v102, %v100
  %v121 = vpack.c.b16 %v105, %v103
  %v122 = vpack.c.b16 %v106, %v104
  %v149 = vunpack.c.l.b16 %v34
  %v150 = vunpack.c.l.b16 %v35
  %v151 = vunpack.c.l.b16 %v36
  %v152 = vunpack.c.l.b16 %v37
  %v153 = vunpack.c.l.b16 %v38
  %v154 = vunpack.c.l.b16 %v39
  %v155 = vunpack.c.l.b16 %v40
  %v156 = vunpack.c.l.b16 %v41
  %v157 = vunpack.c.l.b16 %v42
  %v158 = vunpack.c.l.b16 %v43
  %v159 = vunpack.c.l.b16 %v44
  %v160 = vunpack.c.l.b16 %v45
  %v161 = vunpack.c.l.b16 %v46
  %v162 = vunpack.c.l.b16 %v47
  %v163 = vunpack.c.l.b16 %v48
  %v164 = vunpack.c.l.b16 %v49
  %v165 = vunpack.c.l.b16 %v50
  %v166 = vunpack.c.l.b16 %v51
  %v167 = vpack.c.b16 %v150, %v149
  %v168 = vpack.c.b16 %v152, %v151
  %v169 = vpack.c.b16 %v154, %v153
  %v170 = vpack.c.b16 %v156, %v155
  %v171 = vpack.c.b16 %v158, %v157
  %v172 = vpack.c.b16 %v160, %v159
  %v173 = vpack.c.b16 %v162, %v161
  %v174 = vpack.c.b16 %v164, %v163
  %v175 = vpack.c.b16 %v166, %v165
  %vm185 = vcmask 130048
  %v187 = vsel %vm185, %v108, 0
  %v190 = vsel %vm185, %v110, 0
  %v193 = vsel %vm185, %v112, 0
  %v196 = vsel %vm185, %v114, 0
  %v199 = vsel %vm185, %v116, 0
  %v202 = vsel %vm185, %v118, 0
  %v205 = vsel %vm185, %v120, 0
  %v208 = vsel %vm185, %v122, 0
  %210 = vmatprep.subr.bf16.mxu0 0
  %211 = vmatpush1.bf16.msra.mxu0 %v167
  %212 = vmatprep.subr.bf16.mxu0 0
  %213 = vmatpush1.bf16.msra.mxu0 %v168
  %214 = vmatprep.subr.bf16.mxu0 0
  %215 = vmatpush1.bf16.msra.mxu0 %v169
  %216 = vmatprep.subr.bf16.mxu0 0
  %217 = vmatpush1.bf16.msra.mxu0 %v170
  %218 = vmatprep.subr.bf16.mxu0 0
  %219 = vmatpush1.bf16.msra.mxu0 %v171
  %220 = vmatprep.subr.bf16.mxu0 0
  %221 = vmatpush1.bf16.msra.mxu0 %v172
  %222 = vmatprep.subr.bf16.mxu0 0
  %223 = vmatpush1.bf16.msra.mxu0 %v173
  %224 = vmatprep.subr.bf16.mxu0 0
  %225 = vmatpush1.bf16.msra.mxu0 %v174
  %226 = vmatprep.subr.bf16.mxu0 0
  %227 = vmatpush1.bf16.msra.mxu0 %v175
  %228 = vmatprep.subr.bf16.mxu0 0
  %229 = vmatpush1.bf16.msra.mxu0 0
  %230 = vmatprep.subr.bf16.mxu0 0
  %231 = vmatpush1.bf16.msra.mxu0 0
  %232 = vmatprep.subr.bf16.mxu0 0
  %233 = vmatpush1.bf16.msra.mxu0 0
  %234 = vmatprep.subr.bf16.mxu0 0
  %235 = vmatpush1.bf16.msra.mxu0 0
  %236 = vmatprep.subr.bf16.mxu0 0
  %237 = vmatpush1.bf16.msra.mxu0 0
  %238 = vmatprep.subr.bf16.mxu0 0
  %239 = vmatpush1.bf16.msra.mxu0 0
  %240 = vmatprep.subr.bf16.mxu0 0
  %241 = vmatpush1.bf16.msra.mxu0 0
  %242 = vmatprep.mubr.bf16.mxu0 %v187
  %243 = vmatmul.mubr.bf16.gmra.mrb[0].mxu0 %v107
  %v244 = vpop.f32.mrb[0].mxu0
  %v245 = vadd.f32 %v57, %v244
  %v246 = vpop.f32.mrb[0].mxu0
  %v247 = vpop.f32.mrb[0].mxu0
  %v248 = vadd.f32 %v57, %v247
  %v249 = vpop.f32.mrb[0].mxu0
  %250 = vmatprep.mubr.bf16.mxu0 %v190
  %251 = vmatmul.mubr.bf16.gmra.mrb[0].mxu0 %v109
  %v252 = vpop.f32.mrb[0].mxu0
  %v253 = vadd.f32 %v57, %v252
  %v254 = vpop.f32.mrb[0].mxu0
  %v255 = vpop.f32.mrb[0].mxu0
  %v256 = vadd.f32 %v57, %v255
  %v257 = vpop.f32.mrb[0].mxu0
  %258 = vmatprep.mubr.bf16.mxu0 %v193
  %259 = vmatmul.mubr.bf16.gmra.mrb[0].mxu0 %v111
  %v260 = vpop.f32.mrb[0].mxu0
  %v261 = vadd.f32 %v57, %v260
  %v262 = vpop.f32.mrb[0].mxu0
  %v263 = vpop.f32.mrb[0].mxu0
  %v264 = vadd.f32 %v57, %v263
  %v265 = vpop.f32.mrb[0].mxu0
  %266 = vmatprep.mubr.bf16.mxu0 %v196
  %267 = vmatmul.mubr.bf16.gmra.mrb[0].mxu0 %v113
  %v268 = vpop.f32.mrb[0].mxu0
  %v269 = vadd.f32 %v57, %v268
  %v270 = vpop.f32.mrb[0].mxu0
  %v271 = vpop.f32.mrb[0].mxu0
  %v272 = vadd.f32 %v57, %v271
  %v273 = vpop.f32.mrb[0].mxu0
  %274 = vmatprep.mubr.bf16.mxu0 %v199
  %275 = vmatmul.mubr.bf16.gmra.mrb[0].mxu0 %v115
  %v276 = vpop.f32.mrb[0].mxu0
  %v277 = vadd.f32 %v57, %v276
  %v278 = vpop.f32.mrb[0].mxu0
  %v279 = vpop.f32.mrb[0].mxu0
  %v280 = vadd.f32 %v57, %v279
  %v281 = vpop.f32.mrb[0].mxu0
  %282 = vmatprep.mubr.bf16.mxu0 %v202
  %283 = vmatmul.mubr.bf16.gmra.mrb[0].mxu0 %v117
  %v284 = vpop.f32.mrb[0].mxu0
  %v285 = vadd.f32 %v57, %v284
  %v286 = vpop.f32.mrb[0].mxu0
  %v287 = vpop.f32.mrb[0].mxu0
  %v288 = vadd.f32 %v57, %v287
  %v289 = vpop.f32.mrb[0].mxu0
  %290 = vmatprep.mubr.bf16.mxu0 %v205
  %291 = vmatmul.mubr.bf16.gmra.mrb[0].mxu0 %v119
  %v292 = vpop.f32.mrb[0].mxu0
  %v293 = vadd.f32 %v57, %v292
  %v294 = vpop.f32.mrb[0].mxu0
  %v295 = vpop.f32.mrb[0].mxu0
  %v296 = vadd.f32 %v57, %v295
  %v297 = vpop.f32.mrb[0].mxu0
  %298 = vmatprep.mubr.bf16.mxu0 %v208
  %299 = vmatmul.mubr.bf16.gmra.mrb[0].mxu0 %v121
  %v300 = vpop.f32.mrb[0].mxu0
  %v301 = vadd.f32 %v57, %v300
  %v302 = vpop.f32.mrb[0].mxu0
  %v303 = vpop.f32.mrb[0].mxu0
  %v304 = vadd.f32 %v57, %v303
  %v305 = vpop.f32.mrb[0].mxu0
  %306 = vdwg.mxu0
  %v307 = vld [vmem:[%s3] sm:$0x1]
  %vm308 = vcmp.ge.f32.partialorder %v245, 0.0
  %vm309 = vcmp.ge.f32.partialorder %v248, 0.0
  %vm310 = vcmp.ge.f32.partialorder %v253, 0.0
  %vm311 = vcmp.ge.f32.partialorder %v256, 0.0
  %vm312 = vcmp.ge.f32.partialorder %v261, 0.0
  %vm313 = vcmp.ge.f32.partialorder %v264, 0.0
  %vm314 = vcmp.ge.f32.partialorder %v269, 0.0
  %vm315 = vcmp.ge.f32.partialorder %v272, 0.0
  %vm316 = vcmp.ge.f32.partialorder %v277, 0.0
  %vm317 = vcmp.ge.f32.partialorder %v280, 0.0
  %vm318 = vcmp.ge.f32.partialorder %v285, 0.0
  %vm319 = vcmp.ge.f32.partialorder %v288, 0.0
  %vm320 = vcmp.ge.f32.partialorder %v293, 0.0
  %vm321 = vcmp.ge.f32.partialorder %v296, 0.0
  %vm322 = vcmp.ge.f32.partialorder %v301, 0.0
  %vm323 = vcmp.ge.f32.partialorder %v304, 0.0
  %v325 = vlaneseq
  %v326 = vshrl.u32 %v325, 7
  %v327 = vsub.s32 0, %v326
  %v328 = vrot.slane %v307, %v327
  %v330 = vmul.f32 %v328, %v245
  %v331 = vmul.f32 %v328, %v248
  %v332 = vmul.f32 %v328, %v253
  %v333 = vmul.f32 %v328, %v256
  %v334 = vmul.f32 %v328, %v261
  %v335 = vmul.f32 %v328, %v264
  %v336 = vmul.f32 %v328, %v269
  %v337 = vmul.f32 %v328, %v272
  %v338 = vmul.f32 %v328, %v277
  %v339 = vmul.f32 %v328, %v280
  %v340 = vmul.f32 %v328, %v285
  %v341 = vmul.f32 %v328, %v288
  %v342 = vmul.f32 %v328, %v293
  %v343 = vmul.f32 %v328, %v296
  %v344 = vmul.f32 %v328, %v301
  %v345 = vmul.f32 %v328, %v304
  %v346 = vsel %vm308, %v245, %v330
  %v347 = vsel %vm309, %v248, %v331
  %v348 = vsel %vm310, %v253, %v332
  %v349 = vsel %vm311, %v256, %v333
  %v350 = vsel %vm312, %v261, %v334
  %v351 = vsel %vm313, %v264, %v335
  %v352 = vsel %vm314, %v269, %v336
  %v353 = vsel %vm315, %v272, %v337
  %v354 = vsel %vm316, %v277, %v338
  %v355 = vsel %vm317, %v280, %v339
  %v356 = vsel %vm318, %v285, %v340
  %v357 = vsel %vm319, %v288, %v341
  %v358 = vsel %vm320, %v293, %v342
  %v359 = vsel %vm321, %v296, %v343
  %v360 = vsel %vm322, %v301, %v344
  %v361 = vsel %vm323, %v304, %v345
  %vm362 = vcmask 523264
  %363 = vst.msk [vmem:[%s4] sm:$0xff] %vm362, %v346
  %364 = vst.msk [vmem:[%s4 + $0x8] sm:$0xff] %vm362, %v347
  %365 = vst.msk [vmem:[%s4 + $0x10] sm:$0xff] %vm362, %v348
  %366 = vst.msk [vmem:[%s4 + $0x18] sm:$0xff] %vm362, %v349
  %367 = vst.msk [vmem:[%s4 + $0x20] sm:$0xff] %vm362, %v350
  %368 = vst.msk [vmem:[%s4 + $0x28] sm:$0xff] %vm362, %v351
  %369 = vst.msk [vmem:[%s4 + $0x30] sm:$0xff] %vm362, %v352
  %370 = vst.msk [vmem:[%s4 + $0x38] sm:$0xff] %vm362, %v353
  %371 = vst.msk [vmem:[%s4 + $0x40] sm:$0xff] %vm362, %v354
  %372 = vst.msk [vmem:[%s4 + $0x48] sm:$0xff] %vm362, %v355
  %373 = vst.msk [vmem:[%s4 + $0x50] sm:$0xff] %vm362, %v356
  %374 = vst.msk [vmem:[%s4 + $0x58] sm:$0xff] %vm362, %v357
  %375 = vst.msk [vmem:[%s4 + $0x60] sm:$0xff] %vm362, %v358
  %376 = vst.msk [vmem:[%s4 + $0x68] sm:$0xff] %vm362, %v359
  %377 = vst.msk [vmem:[%s4 + $0x70] sm:$0xff] %vm362, %v360
  %378 = vst.msk [vmem:[%s4 + $0x78] sm:$0xff] %vm362, %v361
  // Predicated region
  $region18: #{context_net.10} parent=0 // pred_check
    _
  $region19: #{context_net.10} parent=0 // pred_check_branch
    %380 = sbr.rel (0) target = $region21
  $region20: #{context_net.10} parent=0 // pred_region
    _
  $region21: #{context_net.10} parent=0 // pred_fallthru
    _
  // Predicated region
  $region22: #{context_net.10} parent=0 // pred_check
    _
  $region23: #{context_net.10} parent=0 // pred_check_branch
    %382 = sbr.rel (0) target = $region25
  $region24: #{context_net.10} parent=0 // pred_region
    _
  $region25: #{context_net.10} parent=0 // pred_fallthru
    _

// kernel: context_net.11
$region0: #{context_net.11}
  #allocation0 [shape = 'u32[]', space=smem, size = 0x4, offset = 0x4, fixed_abs, tag = 'smem constant byte address 0x4 - core index']
  #allocation1 [shape = 'u32[144,128]{1,0:T(1,128)}', space=vmem, size = 0x12000, scoped, tag = 'internal scratch']
  %s0 = inlined_call_operand.vmem [shape: bf16[2,64,288], index: 0, kind: input, shape index: {}]
  %s1 = inlined_call_operand.vmem [shape: f32[2,64,32], index: 1, kind: input, shape index: {}]
  %s2 = inlined_call_operand.vmem [shape: bf16[288,32], index: 2, kind: input, shape index: {}]
  %s3 = inlined_call_operand.vmem [shape: f32[1,32], index: 3, kind: input, shape index: {}]
  %s4 = inlined_call_operand.vmem [shape: f32[32,16], index: 4, kind: input, shape index: {}]
  %s5 = inlined_call_operand.vmem [shape: f32[16,32], index: 5, kind: input, shape index: {}]
  %s6 = inlined_call_operand.vmem [shape: f32[1,16], index: 6, kind: input, shape index: {}]
  %s7 = inlined_call_operand.vmem [shape: f32[1,32], index: 7, kind: input, shape index: {}]
  %s8 = inlined_call_operand.vmem [shape: f32[2,64,32], index: 8, kind: output, shape index: {}]
  %s9 = sld [smem:[#allocation0]]
  $region65: #{context_net.11} parent=0
    _
  %s11 = ssub.s32 1, %s9
  %s12 = scalar_select 0, %s11, %s9
  loop: start=0, step=1, limit=4
  $region2: #{context_net.11} parent=0 // loop_pre_header
    _
  $region3: #{context_net.11} parent=0 // loop_header
    %s14 = sphi 0, %s18
    %p15 = scmp.ge.s32.totalorder %s14, 4
    %s24 = sphi 0, %s26
    %s27 = sphi 0, %s24
    %s28 = sphi 0, %s27
    %s44 = sphi 0, %s28
    %s50 = sphi 0, %s52
    %s53 = sphi 0, %s50
    %s54 = sphi 0, %s53
    %s70 = sphi 0, %s54
    %s74 = sphi 0, %s74
    %s76 = sphi 0, %s74
    %s77 = sphi 0, %s76
    %s91 = sphi 0, %s77
    %s95 = sphi 0, %s95
    %s97 = sphi 0, %s95
    %s98 = sphi 0, %s97
    %s112 = sphi 0, %s98
    %s116 = sphi 0, %s116
    %s118 = sphi 0, %s116
    %s119 = sphi 0, %s118
    %s133 = sphi 0, %s119
    %s137 = sphi 0, %s137
    %s139 = sphi 0, %s137
    %s140 = sphi 0, %s139
    %s154 = sphi 0, %s140
    %s158 = sphi 0, %s158
    %s160 = sphi 0, %s158
    %s161 = sphi 0, %s160
    %s175 = sphi 0, %s161
    %s179 = sphi 0, %s179
    %s181 = sphi 0, %s179
    %s182 = sphi 0, %s181
    %s196 = sphi 0, %s182
    %s202 = sphi 0, %s204
    %s205 = sphi 0, %s202
    %s206 = sphi 0, %s205
    %s222 = sphi 0, %s206
  $region4: #{context_net.11} parent=0 // loop_header_branch
    %17 = sbr.rel (%p15) target = $region8
  $region5: #{context_net.11} parent=0 // loop_body
    %s19 = ssub.s32 %s14, 1
    %s20 = ssub.s32 %s14, 2
    %s21 = sadd.s32 %s14, 1
    %s22 = ssub.s32 %s14, %s21
    %p23 = scmp.eq.s32.totalorder %s22, 0
    %s25 = sadd.s32 %s24, 1
    %s26 = scalar_select %p23, %s24, %s25
    %p29 = pneg %p23
    %p30 = scmp.eq.s32.totalorder %s14, 1
    %p31 = por %p29, %p30
    %p32 = scmp.ne.s32.totalorder %s24, %s27
    %p33 = scmp.eq.s32.totalorder %s14, 0
    %p34 = por %p32, %p33
    %p35 = scmp.ne.s32.totalorder %s24, %s27
    %p36 = scmp.eq.s32.totalorder %s19, 1
    %p37 = por %p35, %p36
    %p38 = scmp.ne.s32.totalorder %s27, %s28
    %p39 = scmp.eq.s32.totalorder %s19, 0
    %p40 = por %p38, %p39
    %p41 = scmp.ne.s32.totalorder %s27, %s28
    %p42 = scmp.eq.s32.totalorder %s20, 1
    %p43 = por %p41, %p42
    %p45 = scmp.ne.s32.totalorder %s28, %s44
    %p46 = scmp.eq.s32.totalorder %s20, 0
    %p47 = por %p45, %p46
    %s48 = ssub.s32 %s14, %s21
    %p49 = scmp.eq.s32.totalorder %s48, 0
    %s51 = sadd.s32 %s50, 1
    %s52 = scalar_select %p49, %s50, %s51
    %p55 = pneg %p49
    %p56 = scmp.eq.s32.totalorder %s14, 1
    %p57 = por %p55, %p56
    %p58 = scmp.ne.s32.totalorder %s50, %s53
    %p59 = scmp.eq.s32.totalorder %s14, 0
    %p60 = por %p58, %p59
    %p61 = scmp.ne.s32.totalorder %s50, %s53
    %p62 = scmp.eq.s32.totalorder %s19, 1
    %p63 = por %p61, %p62
    %p64 = scmp.ne.s32.totalorder %s53, %s54
    %p65 = scmp.eq.s32.totalorder %s19, 0
    %p66 = por %p64, %p65
    %p67 = scmp.ne.s32.totalorder %s53, %s54
    %p68 = scmp.eq.s32.totalorder %s20, 1
    %p69 = por %p67, %p68
    %p71 = scmp.ne.s32.totalorder %s54, %s70
    %p72 = scmp.eq.s32.totalorder %s20, 0
    %p73 = por %p71, %p72
    %s75 = sadd.s32 %s74, 1
    %p78 = scmp.eq.s32.totalorder %s14, 1
    %p79 = scmp.ne.s32.totalorder %s74, %s76
    %p80 = scmp.eq.s32.totalorder %s14, 0
    %p81 = por %p79, %p80
    %p82 = scmp.ne.s32.totalorder %s74, %s76
    %p83 = scmp.eq.s32.totalorder %s19, 1
    %p84 = por %p82, %p83
    %p85 = scmp.ne.s32.totalorder %s76, %s77
    %p86 = scmp.eq.s32.totalorder %s19, 0
    %p87 = por %p85, %p86
    %p88 = scmp.ne.s32.totalorder %s76, %s77
    %p89 = scmp.eq.s32.totalorder %s20, 1
    %p90 = por %p88, %p89
    %p92 = scmp.ne.s32.totalorder %s77, %s91
    %p93 = scmp.eq.s32.totalorder %s20, 0
    %p94 = por %p92, %p93
    %s96 = sadd.s32 %s95, 1
    %p99 = scmp.eq.s32.totalorder %s14, 1
    %p100 = scmp.ne.s32.totalorder %s95, %s97
    %p101 = scmp.eq.s32.totalorder %s14, 0
    %p102 = por %p100, %p101
    %p103 = scmp.ne.s32.totalorder %s95, %s97
    %p104 = scmp.eq.s32.totalorder %s19, 1
    %p105 = por %p103, %p104
    %p106 = scmp.ne.s32.totalorder %s97, %s98
    %p107 = scmp.eq.s32.totalorder %s19, 0
    %p108 = por %p106, %p107
    %p109 = scmp.ne.s32.totalorder %s97, %s98
    %p110 = scmp.eq.s32.totalorder %s20, 1
    %p111 = por %p109, %p110
    %p113 = scmp.ne.s32.totalorder %s98, %s112
    %p114 = scmp.eq.s32.totalorder %s20, 0
    %p115 = por %p113, %p114
    %s117 = sadd.s32 %s116, 1
    %p120 = scmp.eq.s32.totalorder %s14, 1
    %p121 = scmp.ne.s32.totalorder %s116, %s118
    %p122 = scmp.eq.s32.totalorder %s14, 0
    %p123 = por %p121, %p122
    %p124 = scmp.ne.s32.totalorder %s116, %s118
    %p125 = scmp.eq.s32.totalorder %s19, 1
    %p126 = por %p124, %p125
    %p127 = scmp.ne.s32.totalorder %s118, %s119
    %p128 = scmp.eq.s32.totalorder %s19, 0
    %p129 = por %p127, %p128
    %p130 = scmp.ne.s32.totalorder %s118, %s119
    %p131 = scmp.eq.s32.totalorder %s20, 1
    %p132 = por %p130, %p131
    %p134 = scmp.ne.s32.totalorder %s119, %s133
    %p135 = scmp.eq.s32.totalorder %s20, 0
    %p136 = por %p134, %p135
    %s138 = sadd.s32 %s137, 1
    %p141 = scmp.eq.s32.totalorder %s14, 1
    %p142 = scmp.ne.s32.totalorder %s137, %s139
    %p143 = scmp.eq.s32.totalorder %s14, 0
    %p144 = por %p142, %p143
    %p145 = scmp.ne.s32.totalorder %s137, %s139
    %p146 = scmp.eq.s32.totalorder %s19, 1
    %p147 = por %p145, %p146
    %p148 = scmp.ne.s32.totalorder %s139, %s140
    %p149 = scmp.eq.s32.totalorder %s19, 0
    %p150 = por %p148, %p149
    %p151 = scmp.ne.s32.totalorder %s139, %s140
    %p152 = scmp.eq.s32.totalorder %s20, 1
    %p153 = por %p151, %p152
    %p155 = scmp.ne.s32.totalorder %s140, %s154
    %p156 = scmp.eq.s32.totalorder %s20, 0
    %p157 = por %p155, %p156
    %s159 = sadd.s32 %s158, 1
    %p162 = scmp.eq.s32.totalorder %s14, 1
    %p163 = scmp.ne.s32.totalorder %s158, %s160
    %p164 = scmp.eq.s32.totalorder %s14, 0
    %p165 = por %p163, %p164
    %p166 = scmp.ne.s32.totalorder %s158, %s160
    %p167 = scmp.eq.s32.totalorder %s19, 1
    %p168 = por %p166, %p167
    %p169 = scmp.ne.s32.totalorder %s160, %s161
    %p170 = scmp.eq.s32.totalorder %s19, 0
    %p171 = por %p169, %p170
    %p172 = scmp.ne.s32.totalorder %s160, %s161
    %p173 = scmp.eq.s32.totalorder %s20, 1
    %p174 = por %p172, %p173
    %p176 = scmp.ne.s32.totalorder %s161, %s175
    %p177 = scmp.eq.s32.totalorder %s20, 0
    %p178 = por %p176, %p177
    %s180 = sadd.s32 %s179, 1
    %p183 = scmp.eq.s32.totalorder %s14, 1
    %p184 = scmp.ne.s32.totalorder %s179, %s181
    %p185 = scmp.eq.s32.totalorder %s14, 0
    %p186 = por %p184, %p185
    %p187 = scmp.ne.s32.totalorder %s179, %s181
    %p188 = scmp.eq.s32.totalorder %s19, 1
    %p189 = por %p187, %p188
    %p190 = scmp.ne.s32.totalorder %s181, %s182
    %p191 = scmp.eq.s32.totalorder %s19, 0
    %p192 = por %p190, %p191
    %p193 = scmp.ne.s32.totalorder %s181, %s182
    %p194 = scmp.eq.s32.totalorder %s20, 1
    %p195 = por %p193, %p194
    %p197 = scmp.ne.s32.totalorder %s182, %s196
    %p198 = scmp.eq.s32.totalorder %s20, 0
    %p199 = por %p197, %p198
    %s200 = ssub.s32 %s14, %s21
    %p201 = scmp.eq.s32.totalorder %s200, 0
    %s203 = sadd.s32 %s202, 1
    %s204 = scalar_select %p201, %s202, %s203
    %p207 = pneg %p201
    %p208 = scmp.eq.s32.totalorder %s14, 1
    %p209 = por %p207, %p208
    %p210 = scmp.ne.s32.totalorder %s202, %s205
    %p211 = scmp.eq.s32.totalorder %s14, 0
    %p212 = por %p210, %p211
    %p213 = scmp.ne.s32.totalorder %s202, %s205
    %p214 = scmp.eq.s32.totalorder %s19, 1
    %p215 = por %p213, %p214
    %p216 = scmp.ne.s32.totalorder %s205, %s206
    %p217 = scmp.eq.s32.totalorder %s19, 0
    %p218 = por %p216, %p217
    %p219 = scmp.ne.s32.totalorder %s205, %s206
    %p220 = scmp.eq.s32.totalorder %s20, 1
    %p221 = por %p219, %p220
    %p223 = scmp.ne.s32.totalorder %s206, %s222
    %p224 = scmp.eq.s32.totalorder %s20, 0
    %p225 = por %p223, %p224
    %p226 = scmp.le.s32.totalorder 1, %s14
    %p227 = scmp.lt.s32.totalorder %s14, 3
    %p228 = pnand %p226, %p227
    %p229 = pneg %p228
    // Predicated region
    $region9: #{context_net.11} parent=5 // pred_check
      _
    $region10: #{context_net.11} parent=5 // pred_check_branch
      %231 = sbr.rel (%p228) target = $region12
    $region11: #{context_net.11} parent=5 // pred_region
      %s232 = ssub.s32 %s14, 1
      // Predicated region
      $region13: #{context_net.11} parent=11 // pred_check
        %p233 = pneg %p87
      $region14: #{context_net.11} parent=11 // pred_check_branch
        %235 = sbr.rel (%p233) target = $region16
      $region15: #{context_net.11} parent=11 // pred_region
        _
      $region16: #{context_net.11} parent=11 // pred_fallthru
        _
      // Predicated region
      $region17: #{context_net.11} parent=11 // pred_check
        %p236 = pneg %p108
      $region18: #{context_net.11} parent=11 // pred_check_branch
        %238 = sbr.rel (%p236) target = $region20
      $region19: #{context_net.11} parent=11 // pred_region
        _
      $region20: #{context_net.11} parent=11 // pred_fallthru
        _
      // Predicated region
      $region21: #{context_net.11} parent=11 // pred_check
        %p239 = pneg %p129
      $region22: #{context_net.11} parent=11 // pred_check_branch
        %241 = sbr.rel (%p239) target = $region24
      $region23: #{context_net.11} parent=11 // pred_region
        _
      $region24: #{context_net.11} parent=11 // pred_fallthru
        _
      // Predicated region
      $region25: #{context_net.11} parent=11 // pred_check
        %p242 = pneg %p150
      $region26: #{context_net.11} parent=11 // pred_check_branch
        %244 = sbr.rel (%p242) target = $region28
      $region27: #{context_net.11} parent=11 // pred_region
        _
      $region28: #{context_net.11} parent=11 // pred_fallthru
        _
      // Predicated region
      $region29: #{context_net.11} parent=11 // pred_check
        %p245 = pneg %p171
      $region30: #{context_net.11} parent=11 // pred_check_branch
        %247 = sbr.rel (%p245) target = $region32
      $region31: #{context_net.11} parent=11 // pred_region
        _
      $region32: #{context_net.11} parent=11 // pred_fallthru
        _
      // Predicated region
      $region33: #{context_net.11} parent=11 // pred_check
        %p248 = pneg %p192
      $region34: #{context_net.11} parent=11 // pred_check_branch
        %250 = sbr.rel (%p248) target = $region36
      $region35: #{context_net.11} parent=11 // pred_region
        _
      $region36: #{context_net.11} parent=11 // pred_fallthru
        _
    $region12: #{context_net.11} parent=5 // pred_fallthru
      _
    %p251 = scmp.lt.s32.totalorder %s14, 2
    // Predicated region
    $region37: #{context_net.11} parent=5 // pred_check
      %p252 = pneg %p251
    $region38: #{context_net.11} parent=5 // pred_check_branch
      %254 = sbr.rel (%p252) target = $region40
    $region39: #{context_net.11} parent=5 // pred_region
      // Predicated region
      $region41: #{context_net.11} parent=39 // pred_check
        %p255 = pneg %p34
      $region42: #{context_net.11} parent=39 // pred_check_branch
        %257 = sbr.rel (%p255) target = $region44
      $region43: #{context_net.11} parent=39 // pred_region
        %p258 = scmp.lt.s32.totalorder %s14, 1
        %s259 = scalar_select %p258, %s14, 1
        %s260 = smul.addr %s259, 24
        %s261 = smul.addr %s260, 4
        %s262 = scalar_lea.vmem %s0, %s261
      $region44: #{context_net.11} parent=39 // pred_fallthru
        _
      // Predicated region
      $region45: #{context_net.11} parent=39 // pred_check
        %p263 = pneg %p60
      $region46: #{context_net.11} parent=39 // pred_check_branch
        %265 = sbr.rel (%p263) target = $region48
      $region47: #{context_net.11} parent=39 // pred_region
        %p266 = scmp.lt.s32.totalorder %s14, 1
        %s267 = scalar_select %p266, %s14, 1
        %s268 = smul.addr %s267, 8
        %s269 = smul.addr %s268, 8
        %s270 = scalar_lea.vmem %s1, %s269
      $region48: #{context_net.11} parent=39 // pred_fallthru
        _
    $region40: #{context_net.11} parent=5 // pred_fallthru
      _
    %p271 = scmp.le.s32.totalorder 1, %s14
    %p272 = scmp.lt.s32.totalorder %s14, 3
    %p273 = pnand %p271, %p272
    %p274 = pneg %p273
    // Predicated region
    $region49: #{context_net.11} parent=5 // pred_check
      _
    $region50: #{context_net.11} parent=5 // pred_check_branch
      %276 = sbr.rel (%p273) target = $region52
    $region51: #{context_net.11} parent=5 // pred_region
      %s277 = ssub.s32 %s14, 1
      %p278 = scmp.lt.s32.totalorder %s19, 1
      %s279 = scalar_select %p278, %s19, 1
      %s280 = smul.addr %s279, 24
      %s281 = smul.addr %s280, 4
      %s282 = scalar_lea.vmem %s0, %s281
      %p283 = pneg %p40
      %p284 = pneg %p37
      %p285 = scmp.lt.s32.totalorder %s19, 1
      %s286 = scalar_select %p285, %s19, 1
      %s287 = smul.addr %s286, 8
      %s288 = smul.addr %s287, 8
      %s289 = scalar_lea.vmem %s1, %s288
      %p290 = pneg %p66
      %p291 = pneg %p63
      %p292 = pneg %p87
      %p293 = pneg %p84
      %p294 = pneg %p108
      %p295 = pneg %p105
      %p296 = pneg %p129
      %p297 = pneg %p126
      %p298 = pneg %p150
      %p299 = pneg %p147
      %p300 = pneg %p171
      %p301 = pneg %p168
      %p302 = pneg %p192
      %p303 = pneg %p189
      %p304 = pneg %p218
      %p305 = pneg %p215
      %p306 = scmp.lt.s32.totalorder %s19, 1
      %s307 = scalar_select %p306, %s19, 1
      %s308 = smul.addr %s307, 8
      %s309 = smul.addr %s308, 8
      %s310 = scalar_lea.vmem %s8, %s309
      %p311 = scmp.lt.s32.totalorder %s19, 1
      %s312 = scalar_select %p311, %s19, 1
      %s313 = smul.addr %s312, 24
      %s314 = smul.addr %s313, 4
      %s315 = scalar_lea.vmem %s0, %s314
      %p316 = scmp.lt.s32.totalorder %s19, 1
      %s317 = scalar_select %p316, %s19, 1
      %s318 = smul.addr %s317, 8
      %s319 = smul.addr %s318, 8
      %s320 = scalar_lea.vmem %s1, %s319
      %p321 = scmp.lt.s32.totalorder %s19, 1
      %s322 = scalar_select %p321, %s19, 1
      %s323 = smul.addr %s322, 8
      %s324 = smul.addr %s323, 8
      %s325 = scalar_lea.vmem %s8, %s324
      %v327 = vld [vmem:[%s315] sm:$0xff]
      %v328 = vld [vmem:[%s315 + $0x8] sm:$0xf]
      %v329 = vld [vmem:[%s315 + $0xc] sm:$0xff]
      %v330 = vld [vmem:[%s315 + $0x14] sm:$0xf]
      %v331 = vld [vmem:[%s315 + $0x18] sm:$0xff]
      %v332 = vld [vmem:[%s315 + $0x20] sm:$0xf]
      %v333 = vld [vmem:[%s315 + $0x24] sm:$0xff]
      %v334 = vld [vmem:[%s315 + $0x2c] sm:$0xf]
      %v335 = vld [vmem:[%s315 + $0x30] sm:$0xff]
      %v336 = vld [vmem:[%s315 + $0x38] sm:$0xf]
      %v337 = vld [vmem:[%s315 + $0x3c] sm:$0xff]
      %v338 = vld [vmem:[%s315 + $0x44] sm:$0xf]
      %v339 = vld [vmem:[%s315 + $0x48] sm:$0xff]
      %v340 = vld [vmem:[%s315 + $0x50] sm:$0xf]
      %v341 = vld [vmem:[%s315 + $0x54] sm:$0xff]
      %v342 = vld [vmem:[%s315 + $0x5c] sm:$0xf]
      %v343 = vld [vmem:[%s2] sm:$0xf]
      %v344 = vld [vmem:[%s2 + $0x4] sm:$0xf]
      %v345 = vld [vmem:[%s2 + $0x8] sm:$0xf]
      %v346 = vld [vmem:[%s2 + $0xc] sm:$0xf]
      %v347 = vld [vmem:[%s2 + $0x10] sm:$0xf]
      %v348 = vld [vmem:[%s2 + $0x14] sm:$0xf]
      %v349 = vld [vmem:[%s2 + $0x18] sm:$0xf]
      %v350 = vld [vmem:[%s2 + $0x1c] sm:$0xf]
      %v351 = vld [vmem:[%s2 + $0x20] sm:$0xf]
      %v352 = vld [vmem:[%s2 + $0x24] sm:$0xf]
      %v353 = vld [vmem:[%s2 + $0x28] sm:$0xf]
      %v354 = vld [vmem:[%s2 + $0x2c] sm:$0xf]
      %v355 = vld [vmem:[%s2 + $0x30] sm:$0xf]
      %v356 = vld [vmem:[%s2 + $0x34] sm:$0xf]
      %v357 = vld [vmem:[%s2 + $0x38] sm:$0xf]
      %v358 = vld [vmem:[%s2 + $0x3c] sm:$0xf]
      %v359 = vld [vmem:[%s2 + $0x40] sm:$0xf]
      %v360 = vld [vmem:[%s2 + $0x44] sm:$0xf]
      %v361 = vld [vmem:[%s2 + $0x48] sm:$0xf]
      %v362 = vld [vmem:[%s2 + $0x4c] sm:$0xf]
      %v363 = vld [vmem:[%s2 + $0x50] sm:$0xf]
      %v364 = vld [vmem:[%s2 + $0x54] sm:$0xf]
      %v365 = vld [vmem:[%s2 + $0x58] sm:$0xf]
      %v366 = vld [vmem:[%s2 + $0x5c] sm:$0xf]
      %v367 = vld [vmem:[%s2 + $0x60] sm:$0xf]
      %v368 = vld [vmem:[%s2 + $0x64] sm:$0xf]
      %v369 = vld [vmem:[%s2 + $0x68] sm:$0xf]
      %v370 = vld [vmem:[%s2 + $0x6c] sm:$0xf]
      %v371 = vld [vmem:[%s2 + $0x70] sm:$0xf]
      %v372 = vld [vmem:[%s2 + $0x74] sm:$0xf]
      %v373 = vld [vmem:[%s2 + $0x78] sm:$0xf]
      %v374 = vld [vmem:[%s2 + $0x7c] sm:$0xf]
      %v375 = vld [vmem:[%s2 + $0x80] sm:$0xf]
      %v376 = vld [vmem:[%s2 + $0x84] sm:$0xf]
      %v377 = vld [vmem:[%s2 + $0x88] sm:$0xf]
      %v378 = vld [vmem:[%s2 + $0x8c] sm:$0xf]
      %v379 = vld [vmem:[%s3] sm:$0x1]
      %v381 = vlaneseq
      %v382 = vshrl.u32 %v381, 7
      %v383 = vsub.s32 0, %v382
      %v384 = vrot.slane %v379, %v383
      %v402 = vunpack.c.l.b16 %v327
      %v403 = vunpack.c.h.b16 %v327
      %v404 = vunpack.c.l.b16 %v328
      %v405 = vunpack.c.l.b16 %v329
      %v406 = vunpack.c.h.b16 %v329
      %v407 = vunpack.c.l.b16 %v330
      %v408 = vunpack.c.l.b16 %v331
      %v409 = vunpack.c.h.b16 %v331
      %v410 = vunpack.c.l.b16 %v332
      %v411 = vunpack.c.l.b16 %v333
      %v412 = vunpack.c.h.b16 %v333
      %v413 = vunpack.c.l.b16 %v334
      %v414 = vunpack.c.l.b16 %v335
      %v415 = vunpack.c.h.b16 %v335
      %v416 = vunpack.c.l.b16 %v336
      %v417 = vunpack.c.l.b16 %v337
      %v418 = vunpack.c.h.b16 %v337
      %v419 = vunpack.c.l.b16 %v338
      %v420 = vunpack.c.l.b16 %v339
      %v421 = vunpack.c.h.b16 %v339
      %v422 = vunpack.c.l.b16 %v340
      %v423 = vunpack.c.l.b16 %v341
      %v424 = vunpack.c.h.b16 %v341
      %v425 = vunpack.c.l.b16 %v342
      %v426 = vpack.c.b16 %v405, %v402
      %v427 = vpack.c.b16 %v406, %v403
      %v428 = vpack.c.b16 %v407, %v404
      %v429 = vpack.c.b16 %v411, %v408
      %v430 = vpack.c.b16 %v412, %v409
      %v431 = vpack.c.b16 %v413, %v410
      %v432 = vpack.c.b16 %v417, %v414
      %v433 = vpack.c.b16 %v418, %v415
      %v434 = vpack.c.b16 %v419, %v416
      %v435 = vpack.c.b16 %v423, %v420
      %v436 = vpack.c.b16 %v424, %v421
      %v437 = vpack.c.b16 %v425, %v422
      %v482 = vunpack.c.l.b16 %v343
      %v483 = vunpack.c.l.b16 %v344
      %v484 = vunpack.c.l.b16 %v345
      %v485 = vunpack.c.l.b16 %v346
      %v486 = vunpack.c.l.b16 %v347
      %v487 = vunpack.c.l.b16 %v348
      %v488 = vunpack.c.l.b16 %v349
      %v489 = vunpack.c.l.b16 %v350
      %v490 = vunpack.c.l.b16 %v351
      %v491 = vunpack.c.l.b16 %v352
      %v492 = vunpack.c.l.b16 %v353
      %v493 = vunpack.c.l.b16 %v354
      %v494 = vunpack.c.l.b16 %v355
      %v495 = vunpack.c.l.b16 %v356
      %v496 = vunpack.c.l.b16 %v357
      %v497 = vunpack.c.l.b16 %v358
      %v498 = vunpack.c.l.b16 %v359
      %v499 = vunpack.c.l.b16 %v360
      %v500 = vunpack.c.l.b16 %v361
      %v501 = vunpack.c.l.b16 %v362
      %v502 = vunpack.c.l.b16 %v363
      %v503 = vunpack.c.l.b16 %v364
      %v504 = vunpack.c.l.b16 %v365
      %v505 = vunpack.c.l.b16 %v366
      %v506 = vunpack.c.l.b16 %v367
      %v507 = vunpack.c.l.b16 %v368
      %v508 = vunpack.c.l.b16 %v369
      %v509 = vunpack.c.l.b16 %v370
      %v510 = vunpack.c.l.b16 %v371
      %v511 = vunpack.c.l.b16 %v372
      %v512 = vunpack.c.l.b16 %v373
      %v513 = vunpack.c.l.b16 %v374
      %v514 = vunpack.c.l.b16 %v375
      %v515 = vunpack.c.l.b16 %v376
      %v516 = vunpack.c.l.b16 %v377
      %v517 = vunpack.c.l.b16 %v378
      %v518 = vpack.c.b16 %v483, %v482
      %v519 = vpack.c.b16 %v485, %v484
      %v520 = vpack.c.b16 %v487, %v486
      %v521 = vpack.c.b16 %v489, %v488
      %v522 = vpack.c.b16 %v491, %v490
      %v523 = vpack.c.b16 %v493, %v492
      %v524 = vpack.c.b16 %v495, %v494
      %v525 = vpack.c.b16 %v497, %v496
      %v526 = vpack.c.b16 %v499, %v498
      %v527 = vpack.c.b16 %v501, %v500
      %v528 = vpack.c.b16 %v503, %v502
      %v529 = vpack.c.b16 %v505, %v504
      %v530 = vpack.c.b16 %v507, %v506
      %v531 = vpack.c.b16 %v509, %v508
      %v532 = vpack.c.b16 %v511, %v510
      %v533 = vpack.c.b16 %v513, %v512
      %v534 = vpack.c.b16 %v515, %v514
      %v535 = vpack.c.b16 %v517, %v516
      %vm554 = vcmask 261120
      %v556 = vsel %vm554, %v428, 0
      %v559 = vsel %vm554, %v431, 0
      %v562 = vsel %vm554, %v434, 0
      %v565 = vsel %vm554, %v437, 0
      %567 = vmatprep.subr.bf16.mxu0 0
      %568 = vmatpush1.bf16.msra.mxu0 %v518
      %569 = vmatprep.subr.bf16.mxu0 0
      %570 = vmatpush1.bf16.msra.mxu0 %v519
      %571 = vmatprep.subr.bf16.mxu0 0
      %572 = vmatpush1.bf16.msra.mxu0 %v520
      %573 = vmatprep.subr.bf16.mxu0 0
      %574 = vmatpush1.bf16.msra.mxu0 %v521
      %575 = vmatprep.subr.bf16.mxu0 0
      %576 = vmatpush1.bf16.msra.mxu0 %v522
      %577 = vmatprep.subr.bf16.mxu0 0
      %578 = vmatpush1.bf16.msra.mxu0 %v523
      %579 = vmatprep.subr.bf16.mxu0 0
      %580 = vmatpush1.bf16.msra.mxu0 %v524
      %581 = vmatprep.subr.bf16.mxu0 0
      %582 = vmatpush1.bf16.msra.mxu0 %v525
      %583 = vmatprep.subr.bf16.mxu0 0
      %584 = vmatpush1.bf16.msra.mxu0 %v526
      %585 = vmatprep.subr.bf16.mxu0 0
      %586 = vmatpush1.bf16.msra.mxu0 %v527
      %587 = vmatprep.subr.bf16.mxu0 0
      %588 = vmatpush1.bf16.msra.mxu0 %v528
      %589 = vmatprep.subr.bf16.mxu0 0
      %590 = vmatpush1.bf16.msra.mxu0 %v529
      %591 = vmatprep.subr.bf16.mxu0 0
      %592 = vmatpush1.bf16.msra.mxu0 %v530
      %593 = vmatprep.subr.bf16.mxu0 0
      %594 = vmatpush1.bf16.msra.mxu0 %v531
      %595 = vmatprep.subr.bf16.mxu0 0
      %596 = vmatpush1.bf16.msra.mxu0 %v532
      %597 = vmatprep.subr.bf16.mxu0 0
      %598 = vmatpush1.bf16.msra.mxu0 %v533
      %599 = vmatprep.mubr.bf16.mxu0 %v427
      %600 = vmatmul.mubr.bf16.gmra.mrb[0].mxu0 %v426
      %v601 = vpop.f32.mrb[0].mxu0
      %v602 = vadd.f32 %v384, %v601
      %v603 = vpop.f32.mrb[0].mxu0
      %v604 = vpop.f32.mrb[0].mxu0
      %v605 = vadd.f32 %v384, %v604
      %v606 = vpop.f32.mrb[0].mxu0
      %607 = vmatprep.mubr.bf16.mxu0 %v430
      %608 = vmatmul.mubr.bf16.gmra.mrb[0].mxu0 %v429
      %v609 = vpop.f32.mrb[0].mxu0
      %v610 = vadd.f32 %v384, %v609
      %v611 = vpop.f32.mrb[0].mxu0
      %v612 = vpop.f32.mrb[0].mxu0
      %v613 = vadd.f32 %v384, %v612
      %v614 = vpop.f32.mrb[0].mxu0
      %615 = vmatprep.mubr.bf16.mxu0 %v433
      %616 = vmatmul.mubr.bf16.gmra.mrb[0].mxu0 %v432
      %v617 = vpop.f32.mrb[0].mxu0
      %v618 = vadd.f32 %v384, %v617
      %v619 = vpop.f32.mrb[0].mxu0
      %v620 = vpop.f32.mrb[0].mxu0
      %v621 = vadd.f32 %v384, %v620
      %v622 = vpop.f32.mrb[0].mxu0
      %623 = vmatprep.mubr.bf16.mxu0 %v436
      %624 = vmatmul.mubr.bf16.gmra.mrb[0].mxu0 %v435
      %v625 = vpop.f32.mrb[0].mxu0
      %v626 = vadd.f32 %v384, %v625
      %v627 = vpop.f32.mrb[0].mxu0
      %v628 = vpop.f32.mrb[0].mxu0
      %v629 = vadd.f32 %v384, %v628
      %v630 = vpop.f32.mrb[0].mxu0
      %631 = vdwg.mxu0
      %632 = vmatprep.subr.bf16.mxu0 0
      %633 = vmatpush1.bf16.msra.mxu0 %v534
      %634 = vmatprep.subr.bf16.mxu0 0
      %635 = vmatpush1.bf16.msra.mxu0 %v535
      %636 = vmatprep.subr.bf16.mxu0 0
      %637 = vmatpush1.bf16.msra.mxu0 0
      %638 = vmatprep.subr.bf16.mxu0 0
      %639 = vmatpush1.bf16.msra.mxu0 0
      %640 = vmatprep.subr.bf16.mxu0 0
      %641 = vmatpush1.bf16.msra.mxu0 0
      %642 = vmatprep.subr.bf16.mxu0 0
      %643 = vmatpush1.bf16.msra.mxu0 0
      %644 = vmatprep.subr.bf16.mxu0 0
      %645 = vmatpush1.bf16.msra.mxu0 0
      %646 = vmatprep.subr.bf16.mxu0 0
      %647 = vmatpush1.bf16.msra.mxu0 0
      %648 = vmatprep.subr.bf16.mxu0 0
      %649 = vmatpush1.bf16.msra.mxu0 0
      %650 = vmatprep.subr.bf16.mxu0 0
      %651 = vmatpush1.bf16.msra.mxu0 0
      %652 = vmatprep.subr.bf16.mxu0 0
      %653 = vmatpush1.bf16.msra.mxu0 0
      %654 = vmatprep.subr.bf16.mxu0 0
      %655 = vmatpush1.bf16.msra.mxu0 0
      %656 = vmatprep.subr.bf16.mxu0 0
      %657 = vmatpush1.bf16.msra.mxu0 0
      %658 = vmatprep.subr.bf16.mxu0 0
      %659 = vmatpush1.bf16.msra.mxu0 0
      %660 = vmatprep.subr.bf16.mxu0 0
      %661 = vmatpush1.bf16.msra.mxu0 0
      %662 = vmatprep.subr.bf16.mxu0 0
      %663 = vmatpush1.bf16.msra.mxu0 0
      %664 = vmatprep.mubr.bf16.mxu0 0
      %665 = vmatmul.mubr.bf16.gmra.mrb[0].mxu0 %v556
      %v666 = vpop.f32.mrb[0].mxu0
      %v667 = vadd.f32 %v602, %v666
      %v668 = vpop.f32.mrb[0].mxu0
      %v669 = vpop.f32.mrb[0].mxu0
      %v670 = vadd.f32 %v605, %v669
      %v671 = vpop.f32.mrb[0].mxu0
      %672 = vmatprep.mubr.bf16.mxu0 0
      %673 = vmatmul.mubr.bf16.gmra.mrb[0].mxu0 %v559
      %v674 = vpop.f32.mrb[0].mxu0
      %v675 = vadd.f32 %v610, %v674
      %v676 = vpop.f32.mrb[0].mxu0
      %v677 = vpop.f32.mrb[0].mxu0
      %v678 = vadd.f32 %v613, %v677
      %v679 = vpop.f32.mrb[0].mxu0
      %680 = vmatprep.mubr.bf16.mxu0 0
      %681 = vmatmul.mubr.bf16.gmra.mrb[0].mxu0 %v562
      %v682 = vpop.f32.mrb[0].mxu0
      %v683 = vadd.f32 %v618, %v682
      %v684 = vpop.f32.mrb[0].mxu0
      %v685 = vpop.f32.mrb[0].mxu0
      %v686 = vadd.f32 %v621, %v685
      %v687 = vpop.f32.mrb[0].mxu0
      %688 = vmatprep.mubr.bf16.mxu0 0
      %689 = vmatmul.mubr.bf16.gmra.mrb[0].mxu0 %v565
      %v690 = vpop.f32.mrb[0].mxu0
      %v691 = vadd.f32 %v626, %v690
      %v692 = vpop.f32.mrb[0].mxu0
      %v693 = vpop.f32.mrb[0].mxu0
      %v694 = vadd.f32 %v629, %v693
      %v695 = vpop.f32.mrb[0].mxu0
      %696 = vdwg.mxu0
      %v697 = vsel %vm554, %v667, 0.0
      %v698 = vsel %vm554, %v670, 0.0
      %v699 = vadd.f32 %v697, %v698
      %v700 = vsel %vm554, %v675, 0.0
      %v701 = vadd.f32 %v699, %v700
      %v702 = vsel %vm554, %v678, 0.0
      %v703 = vadd.f32 %v701, %v702
      %v704 = vsel %vm554, %v683, 0.0
      %v705 = vadd.f32 %v703, %v704
      %v706 = vsel %vm554, %v686, 0.0
      %v707 = vadd.f32 %v705, %v706
      %v708 = vsel %vm554, %v691, 0.0
      %v709 = vadd.f32 %v707, %v708
      %v710 = vsel %vm554, %v694, 0.0
      %v711 = vadd.f32 %v709, %v710
      %v712 = vrot.slane %v711, 4
      %v713 = vadd.f32 %v711, %v712
      %v714 = vrot.slane %v713, 2
      %v715 = vadd.f32 %v713, %v714
      %v716 = vrot.slane %v715, 1
      %v717 = vadd.f32 %v715, %v716
      %v718 = vrcp.pop 64.0
      %v719 = vmul.f32 %v717, %v718
      %v720 = vld [vmem:[%s4] sm:$0xff]
      %v721 = vld [vmem:[%s4 + $0x8] sm:$0xff]
      %v722 = vld [vmem:[%s4 + $0x10] sm:$0xff]
      %v723 = vld [vmem:[%s4 + $0x18] sm:$0xff]
      %v725 = vsel %vm554, %v719, 0
      %727 = vmatprep.subr.mxu0 0.0
      %728 = vmatpush1.msra.mxu0 %v720
      %729 = vmatprep.subr.mxu0 0.0
      %730 = vmatpush1.msra.mxu0 %v721
      %731 = vmatprep.subr.mxu0 0.0
      %732 = vmatpush1.msra.mxu0 %v722
      %733 = vmatprep.subr.mxu0 0.0
      %734 = vmatpush1.msra.mxu0 %v723
      %735 = vmatprep.subr.mxu0 0.0
      %736 = vmatpush1.msra.mxu0 0.0
      %737 = vmatprep.subr.mxu0 0.0
      %738 = vmatpush1.msra.mxu0 0.0
      %739 = vmatprep.subr.mxu0 0.0
      %740 = vmatpush1.msra.mxu0 0.0
      %741 = vmatprep.subr.mxu0 0.0
      %742 = vmatpush1.msra.mxu0 0.0
      %743 = vmatprep.subr.mxu0 0.0
      %744 = vmatpush1.msra.mxu0 0.0
      %745 = vmatprep.subr.mxu0 0.0
      %746 = vmatpush1.msra.mxu0 0.0
      %747 = vmatprep.subr.mxu0 0.0
      %748 = vmatpush1.msra.mxu0 0.0
      %749 = vmatprep.subr.mxu0 0.0
      %750 = vmatpush1.msra.mxu0 0.0
      %751 = vmatprep.subr.mxu0 0.0
      %752 = vmatpush1.msra.mxu0 0.0
      %753 = vmatprep.subr.mxu0 0.0
      %754 = vmatpush1.msra.mxu0 0.0
      %755 = vmatprep.subr.mxu0 0.0
      %756 = vmatpush1.msra.mxu0 0.0
      %757 = vmatprep.subr.mxu0 0.0
      %758 = vmatpush1.msra.mxu0 0.0
      %759 = vmatprep.subr.mxu0 0.0
      %760 = vmatpush1.msra.mxu0 0.0
      %761 = vmatprep.subr.mxu0 0.0
      %762 = vmatpush1.msra.mxu0 0.0
      %763 = vmatprep.subr.mxu0 0.0
      %764 = vmatpush1.msra.mxu0 0.0
      %765 = vmatprep.subr.mxu0 0.0
      %766 = vmatpush1.msra.mxu0 0.0
      %767 = vmatprep.subr.mxu0 0.0
      %768 = vmatpush1.msra.mxu0 0.0
      %769 = vmatprep.subr.mxu0 0.0
      %770 = vmatpush1.msra.mxu0 0.0
      %771 = vmatprep.subr.mxu0 0.0
      %772 = vmatpush1.msra.mxu0 0.0
      %773 = vmatprep.subr.mxu0 0.0
      %774 = vmatpush1.msra.mxu0 0.0
      %775 = vmatprep.subr.mxu0 0.0
      %776 = vmatpush1.msra.mxu0 0.0
      %777 = vmatprep.subr.mxu0 0.0
      %778 = vmatpush1.msra.mxu0 0.0
      %779 = vmatprep.subr.mxu0 0.0
      %780 = vmatpush1.msra.mxu0 0.0
      %781 = vmatprep.subr.mxu0 0.0
      %782 = vmatpush1.msra.mxu0 0.0
      %783 = vmatprep.subr.mxu0 0.0
      %784 = vmatpush1.msra.mxu0 0.0
      %785 = vmatprep.subr.mxu0 0.0
      %786 = vmatpush1.msra.mxu0 0.0
      %787 = vmatprep.subr.mxu0 0.0
      %788 = vmatpush1.msra.mxu0 0.0
      %789 = vmatprep.subr.mxu0 0.0
      %790 = vmatpush1.msra.mxu0 0.0
      %791 = vmatprep.mubr.f32.mxu0 0.0
      %792 = vmatmul.mubr.f32.gmra.mrb[0].mxu0 %v725
      %v793 = vpop.f32.mrb[0].mxu0
      %v794 = vadd.f32 0.0, %v793
      %v795 = vpop.f32.mrb[0].mxu0
      %796 = vdwg.mxu0
      %v797 = vld [vmem:[%s6] sm:$0x1]
      %vm798 = vcmp.ge.f32.partialorder %v794, 0.0
      %v799 = vmul.f32 %v797, %v794
      %v800 = vsel %vm798, %v794, %v799
      %v801 = vld [vmem:[%s5] sm:$0xff]
      %v802 = vld [vmem:[%s5 + $0x8] sm:$0xff]
      %vm803 = vcmask 130048
      %v805 = vsel %vm803, %v800, 0
      %807 = vmatprep.subr.mxu0 0.0
      %808 = vmatpush1.msra.mxu0 %v801
      %809 = vmatprep.subr.mxu0 0.0
      %810 = vmatpush1.msra.mxu0 %v802
      %811 = vmatprep.subr.mxu0 0.0
      %812 = vmatpush1.msra.mxu0 0.0
      %813 = vmatprep.subr.mxu0 0.0
      %814 = vmatpush1.msra.mxu0 0.0
      %815 = vmatprep.subr.mxu0 0.0
      %816 = vmatpush1.msra.mxu0 0.0
      %817 = vmatprep.subr.mxu0 0.0
      %818 = vmatpush1.msra.mxu0 0.0
      %819 = vmatprep.subr.mxu0 0.0
      %820 = vmatpush1.msra.mxu0 0.0
      %821 = vmatprep.subr.mxu0 0.0
      %822 = vmatpush1.msra.mxu0 0.0
      %823 = vmatprep.subr.mxu0 0.0
      %824 = vmatpush1.msra.mxu0 0.0
      %825 = vmatprep.subr.mxu0 0.0
      %826 = vmatpush1.msra.mxu0 0.0
      %827 = vmatprep.subr.mxu0 0.0
      %828 = vmatpush1.msra.mxu0 0.0
      %829 = vmatprep.subr.mxu0 0.0
      %830 = vmatpush1.msra.mxu0 0.0
      %831 = vmatprep.subr.mxu0 0.0
      %832 = vmatpush1.msra.mxu0 0.0
      %833 = vmatprep.subr.mxu0 0.0
      %834 = vmatpush1.msra.mxu0 0.0
      %835 = vmatprep.subr.mxu0 0.0
      %836 = vmatpush1.msra.mxu0 0.0
      %837 = vmatprep.subr.mxu0 0.0
      %838 = vmatpush1.msra.mxu0 0.0
      %839 = vmatprep.subr.mxu0 0.0
      %840 = vmatpush1.msra.mxu0 0.0
      %841 = vmatprep.subr.mxu0 0.0
      %842 = vmatpush1.msra.mxu0 0.0
      %843 = vmatprep.subr.mxu0 0.0
      %844 = vmatpush1.msra.mxu0 0.0
      %845 = vmatprep.subr.mxu0 0.0
      %846 = vmatpush1.msra.mxu0 0.0
      %847 = vmatprep.subr.mxu0 0.0
      %848 = vmatpush1.msra.mxu0 0.0
      %849 = vmatprep.subr.mxu0 0.0
      %850 = vmatpush1.msra.mxu0 0.0
      %851 = vmatprep.subr.mxu0 0.0
      %852 = vmatpush1.msra.mxu0 0.0
      %853 = vmatprep.subr.mxu0 0.0
      %854 = vmatpush1.msra.mxu0 0.0
      %855 = vmatprep.subr.mxu0 0.0
      %856 = vmatpush1.msra.mxu0 0.0
      %857 = vmatprep.subr.mxu0 0.0
      %858 = vmatpush1.msra.mxu0 0.0
      %859 = vmatprep.subr.mxu0 0.0
      %860 = vmatpush1.msra.mxu0 0.0
      %861 = vmatprep.subr.mxu0 0.0
      %862 = vmatpush1.msra.mxu0 0.0
      %863 = vmatprep.subr.mxu0 0.0
      %864 = vmatpush1.msra.mxu0 0.0
      %865 = vmatprep.subr.mxu0 0.0
      %866 = vmatpush1.msra.mxu0 0.0
      %867 = vmatprep.subr.mxu0 0.0
      %868 = vmatpush1.msra.mxu0 0.0
      %869 = vmatprep.subr.mxu0 0.0
      %870 = vmatpush1.msra.mxu0 0.0
      %871 = vmatprep.mubr.f32.mxu0 0.0
      %872 = vmatmul.mubr.f32.gmra.mrb[0].mxu0 %v805
      %v873 = vpop.f32.mrb[0].mxu0
      %v874 = vadd.f32 0.0, %v873
      %v875 = vpop.f32.mrb[0].mxu0
      %876 = vdwg.mxu0
      %v877 = vxor.u32 %v874, 2147483648
      %v878 = vmul.f32 %v877, 1.442695
      %v879 = vpow.pop %v878
      %v880 = vadd.f32 %v879, 1.0
      %v881 = vrcp.pop %v880
      %v882 = vmul.f32 1.0, %v881
      %v883 = vlaneseq
      %v884 = vshrl.u32 %v883, 7
      %v885 = vsub.s32 0, %v884
      %v886 = vrot.slane %v882, %v885
      %v887 = vmul.f32 %v667, %v886
      %v888 = vmul.f32 %v670, %v886
      %v889 = vmul.f32 %v675, %v886
      %v890 = vmul.f32 %v678, %v886
      %v891 = vmul.f32 %v683, %v886
      %v892 = vmul.f32 %v686, %v886
      %v893 = vmul.f32 %v691, %v886
      %v894 = vmul.f32 %v694, %v886
      %v895 = vld [vmem:[%s320] sm:$0xff]
      %v896 = vld [vmem:[%s320 + $0x8] sm:$0xff]
      %v897 = vld [vmem:[%s320 + $0x10] sm:$0xff]
      %v898 = vld [vmem:[%s320 + $0x18] sm:$0xff]
      %v899 = vld [vmem:[%s320 + $0x20] sm:$0xff]
      %v900 = vld [vmem:[%s320 + $0x28] sm:$0xff]
      %v901 = vld [vmem:[%s320 + $0x30] sm:$0xff]
      %v902 = vld [vmem:[%s320 + $0x38] sm:$0xff]
      %v903 = vadd.f32 %v887, %v895
      %v904 = vadd.f32 %v888, %v896
      %v905 = vadd.f32 %v889, %v897
      %v906 = vadd.f32 %v890, %v898
      %v907 = vadd.f32 %v891, %v899
      %v908 = vadd.f32 %v892, %v900
      %v909 = vadd.f32 %v893, %v901
      %v910 = vadd.f32 %v894, %v902
      %v911 = vld [vmem:[%s7] sm:$0x1]
      %vm912 = vcmp.ge.f32.partialorder %v903, 0.0
      %vm913 = vcmp.ge.f32.partialorder %v904, 0.0
      %vm914 = vcmp.ge.f32.partialorder %v905, 0.0
      %vm915 = vcmp.ge.f32.partialorder %v906, 0.0
      %vm916 = vcmp.ge.f32.partialorder %v907, 0.0
      %vm917 = vcmp.ge.f32.partialorder %v908, 0.0
      %vm918 = vcmp.ge.f32.partialorder %v909, 0.0
      %vm919 = vcmp.ge.f32.partialorder %v910, 0.0
      %v921 = vlaneseq
      %v922 = vshrl.u32 %v921, 7
      %v923 = vsub.s32 0, %v922
      %v924 = vrot.slane %v911, %v923
      %v926 = vmul.f32 %v924, %v903
      %v927 = vmul.f32 %v924, %v904
      %v928 = vmul.f32 %v924, %v905
      %v929 = vmul.f32 %v924, %v906
      %v930 = vmul.f32 %v924, %v907
      %v931 = vmul.f32 %v924, %v908
      %v932 = vmul.f32 %v924, %v909
      %v933 = vmul.f32 %v924, %v910
      %v934 = vsel %vm912, %v903, %v926
      %v935 = vsel %vm913, %v904, %v927
      %v936 = vsel %vm914, %v905, %v928
      %v937 = vsel %vm915, %v906, %v929
      %v938 = vsel %vm916, %v907, %v930
      %v939 = vsel %vm917, %v908, %v931
      %v940 = vsel %vm918, %v909, %v932
      %v941 = vsel %vm919, %v910, %v933
      %942 = vst.msk [vmem:[%s325] sm:$0xff] %vm554, %v934
      %943 = vst.msk [vmem:[%s325 + $0x8] sm:$0xff] %vm554, %v935
      %944 = vst.msk [vmem:[%s325 + $0x10] sm:$0xff] %vm554, %v936
      %945 = vst.msk [vmem:[%s325 + $0x18] sm:$0xff] %vm554, %v937
      %946 = vst.msk [vmem:[%s325 + $0x20] sm:$0xff] %vm554, %v938
      %947 = vst.msk [vmem:[%s325 + $0x28] sm:$0xff] %vm554, %v939
      %948 = vst.msk [vmem:[%s325 + $0x30] sm:$0xff] %vm554, %v940
      %949 = vst.msk [vmem:[%s325 + $0x38] sm:$0xff] %vm554, %v941
      %p950 = scmp.lt.s32.totalorder %s19, 1
      %s951 = scalar_select %p950, %s19, 1
      %s952 = smul.addr %s951, 8
      %s953 = smul.addr %s952, 8
      %s954 = scalar_lea.vmem %s8, %s953
      // Predicated region
      $region53: #{context_net.11} parent=51 // pred_check
        %p955 = pneg %p215
      $region54: #{context_net.11} parent=51 // pred_check_branch
        %957 = sbr.rel (%p955) target = $region56
      $region55: #{context_net.11} parent=51 // pred_region
        _
      $region56: #{context_net.11} parent=51 // pred_fallthru
        _
    $region52: #{context_net.11} parent=5 // pred_fallthru
      _
    %p958 = scmp.le.s32.totalorder 2, %s14
    // Predicated region
    $region57: #{context_net.11} parent=5 // pred_check
      %p959 = pneg %p958
    $region58: #{context_net.11} parent=5 // pred_check_branch
      %961 = sbr.rel (%p959) target = $region60
    $region59: #{context_net.11} parent=5 // pred_region
      %s962 = ssub.s32 %s14, 2
      // Predicated region
      $region61: #{context_net.11} parent=59 // pred_check
        %p963 = pneg %p221
      $region62: #{context_net.11} parent=59 // pred_check_branch
        %965 = sbr.rel (%p963) target = $region64
      $region63: #{context_net.11} parent=59 // pred_region
        %p966 = scmp.lt.s32.totalorder %s20, 1
        %s967 = scalar_select %p966, %s20, 1
        %s968 = smul.addr %s967, 8
        %s969 = smul.addr %s968, 8
        %s970 = scalar_lea.vmem %s8, %s969
      $region64: #{context_net.11} parent=59 // pred_fallthru
        _
    $region60: #{context_net.11} parent=5 // pred_fallthru
      _
  $region6: #{context_net.11} parent=0 // loop_footer
    %s18 = sadd.s32 1, %s14
  $region7: #{context_net.11} parent=0 // loop_footer_branch
    %13 = sbr.rel target = $region3
  $region8: #{context_net.11} parent=0 // loop_exit
    _

// kernel: context_net.12
$region0: #{context_net.12}
  #allocation0 [shape = 'u32[]', space=smem, size = 0x4, offset = 0x4, fixed_abs, tag = 'smem constant byte address 0x4 - core index']
  #allocation1 [shape = 'u32[144,128]{1,0:T(1,128)}', space=vmem, size = 0x12000, scoped, tag = 'internal scratch']
  %s0 = inlined_call_operand.vmem [shape: bf16[32,288], index: 0, kind: input, shape index: {}]
  %s1 = inlined_call_operand.vmem [shape: bf16[288,128], index: 1, kind: input, shape index: {}]
  %s2 = inlined_call_operand.vmem [shape: f32[1,128], index: 2, kind: input, shape index: {}]
  %s3 = inlined_call_operand.vmem [shape: f32[1,128], index: 3, kind: input, shape index: {}]
  %s4 = inlined_call_operand.vmem [shape: f32[32,128], index: 4, kind: output, shape index: {}]
  %s5 = sld [smem:[#allocation0]]
  $region26: #{context_net.12} parent=0
    _
  %s7 = ssub.s32 1, %s5
  %s8 = scalar_select 0, %s7, %s5
  // Predicated region
  $region2: #{context_net.12} parent=0 // pred_check
    _
  $region3: #{context_net.12} parent=0 // pred_check_branch
    %10 = sbr.rel (0) target = $region5
  $region4: #{context_net.12} parent=0 // pred_region
    _
  $region5: #{context_net.12} parent=0 // pred_fallthru
    _
  // Predicated region
  $region6: #{context_net.12} parent=0 // pred_check
    _
  $region7: #{context_net.12} parent=0 // pred_check_branch
    %12 = sbr.rel (0) target = $region9
  $region8: #{context_net.12} parent=0 // pred_region
    _
  $region9: #{context_net.12} parent=0 // pred_fallthru
    _
  // Predicated region
  $region10: #{context_net.12} parent=0 // pred_check
    _
  $region11: #{context_net.12} parent=0 // pred_check_branch
    %14 = sbr.rel (0) target = $region13
  $region12: #{context_net.12} parent=0 // pred_region
    _
  $region13: #{context_net.12} parent=0 // pred_fallthru
    _
  // Predicated region
  $region14: #{context_net.12} parent=0 // pred_check
    _
  $region15: #{context_net.12} parent=0 // pred_check_branch
    %16 = sbr.rel (0) target = $region17
  $region16: #{context_net.12} parent=0 // pred_region
    _
  $region17: #{context_net.12} parent=0 // pred_fallthru
    _
  %v18 = vld [vmem:[%s0] sm:$0xff]
  %v19 = vld [vmem:[%s0 + $0x8] sm:$0xf]
  %v20 = vld [vmem:[%s0 + $0xc] sm:$0xff]
  %v21 = vld [vmem:[%s0 + $0x14] sm:$0xf]
  %v22 = vld [vmem:[%s0 + $0x18] sm:$0xff]
  %v23 = vld [vmem:[%s0 + $0x20] sm:$0xf]
  %v24 = vld [vmem:[%s0 + $0x24] sm:$0xff]
  %v25 = vld [vmem:[%s0 + $0x2c] sm:$0xf]
  %v26 = vld [vmem:[%s1] sm:$0xf]
  %v27 = vld [vmem:[%s1 + $0x4] sm:$0xf]
  %v28 = vld [vmem:[%s1 + $0x8] sm:$0xf]
  %v29 = vld [vmem:[%s1 + $0xc] sm:$0xf]
  %v30 = vld [vmem:[%s1 + $0x10] sm:$0xf]
  %v31 = vld [vmem:[%s1 + $0x14] sm:$0xf]
  %v32 = vld [vmem:[%s1 + $0x18] sm:$0xf]
  %v33 = vld [vmem:[%s1 + $0x1c] sm:$0xf]
  %v34 = vld [vmem:[%s1 + $0x20] sm:$0xf]
  %v35 = vld [vmem:[%s1 + $0x24] sm:$0xf]
  %v36 = vld [vmem:[%s1 + $0x28] sm:$0xf]
  %v37 = vld [vmem:[%s1 + $0x2c] sm:$0xf]
  %v38 = vld [vmem:[%s1 + $0x30] sm:$0xf]
  %v39 = vld [vmem:[%s1 + $0x34] sm:$0xf]
  %v40 = vld [vmem:[%s1 + $0x38] sm:$0xf]
  %v41 = vld [vmem:[%s1 + $0x3c] sm:$0xf]
  %v42 = vld [vmem:[%s1 + $0x40] sm:$0xf]
  %v43 = vld [vmem:[%s1 + $0x44] sm:$0xf]
  %v44 = vld [vmem:[%s1 + $0x48] sm:$0xf]
  %v45 = vld [vmem:[%s1 + $0x4c] sm:$0xf]
  %v46 = vld [vmem:[%s1 + $0x50] sm:$0xf]
  %v47 = vld [vmem:[%s1 + $0x54] sm:$0xf]
  %v48 = vld [vmem:[%s1 + $0x58] sm:$0xf]
  %v49 = vld [vmem:[%s1 + $0x5c] sm:$0xf]
  %v50 = vld [vmem:[%s1 + $0x60] sm:$0xf]
  %v51 = vld [vmem:[%s1 + $0x64] sm:$0xf]
  %v52 = vld [vmem:[%s1 + $0x68] sm:$0xf]
  %v53 = vld [vmem:[%s1 + $0x6c] sm:$0xf]
  %v54 = vld [vmem:[%s1 + $0x70] sm:$0xf]
  %v55 = vld [vmem:[%s1 + $0x74] sm:$0xf]
  %v56 = vld [vmem:[%s1 + $0x78] sm:$0xf]
  %v57 = vld [vmem:[%s1 + $0x7c] sm:$0xf]
  %v58 = vld [vmem:[%s1 + $0x80] sm:$0xf]
  %v59 = vld [vmem:[%s1 + $0x84] sm:$0xf]
  %v60 = vld [vmem:[%s1 + $0x88] sm:$0xf]
  %v61 = vld [vmem:[%s1 + $0x8c] sm:$0xf]
  %v62 = vld [vmem:[%s2] sm:$0x1]
  %v64 = vlaneseq
  %v65 = vshrl.u32 %v64, 7
  %v66 = vsub.s32 0, %v65
  %v67 = vrot.slane %v62, %v66
  %v77 = vunpack.c.l.b16 %v18
  %v78 = vunpack.c.h.b16 %v18
  %v79 = vunpack.c.l.b16 %v19
  %v80 = vunpack.c.l.b16 %v20
  %v81 = vunpack.c.h.b16 %v20
  %v82 = vunpack.c.l.b16 %v21
  %v83 = vunpack.c.l.b16 %v22
  %v84 = vunpack.c.h.b16 %v22
  %v85 = vunpack.c.l.b16 %v23
  %v86 = vunpack.c.l.b16 %v24
  %v87 = vunpack.c.h.b16 %v24
  %v88 = vunpack.c.l.b16 %v25
  %v89 = vpack.c.b16 %v80, %v77
  %v90 = vpack.c.b16 %v81, %v78
  %v91 = vpack.c.b16 %v82, %v79
  %v92 = vpack.c.b16 %v86, %v83
  %v93 = vpack.c.b16 %v87, %v84
  %v94 = vpack.c.b16 %v88, %v85
  %v135 = vunpack.c.l.b16 %v26
  %v136 = vunpack.c.l.b16 %v27
  %v137 = vunpack.c.l.b16 %v28
  %v138 = vunpack.c.l.b16 %v29
  %v139 = vunpack.c.l.b16 %v30
  %v140 = vunpack.c.l.b16 %v31
  %v141 = vunpack.c.l.b16 %v32
  %v142 = vunpack.c.l.b16 %v33
  %v143 = vunpack.c.l.b16 %v34
  %v144 = vunpack.c.l.b16 %v35
  %v145 = vunpack.c.l.b16 %v36
  %v146 = vunpack.c.l.b16 %v37
  %v147 = vunpack.c.l.b16 %v38
  %v148 = vunpack.c.l.b16 %v39
  %v149 = vunpack.c.l.b16 %v40
  %v150 = vunpack.c.l.b16 %v41
  %v151 = vunpack.c.l.b16 %v42
  %v152 = vunpack.c.l.b16 %v43
  %v153 = vunpack.c.l.b16 %v44
  %v154 = vunpack.c.l.b16 %v45
  %v155 = vunpack.c.l.b16 %v46
  %v156 = vunpack.c.l.b16 %v47
  %v157 = vunpack.c.l.b16 %v48
  %v158 = vunpack.c.l.b16 %v49
  %v159 = vunpack.c.l.b16 %v50
  %v160 = vunpack.c.l.b16 %v51
  %v161 = vunpack.c.l.b16 %v52
  %v162 = vunpack.c.l.b16 %v53
  %v163 = vunpack.c.l.b16 %v54
  %v164 = vunpack.c.l.b16 %v55
  %v165 = vunpack.c.l.b16 %v56
  %v166 = vunpack.c.l.b16 %v57
  %v167 = vunpack.c.l.b16 %v58
  %v168 = vunpack.c.l.b16 %v59
  %v169 = vunpack.c.l.b16 %v60
  %v170 = vunpack.c.l.b16 %v61
  %v171 = vpack.c.b16 %v136, %v135
  %v172 = vpack.c.b16 %v138, %v137
  %v173 = vpack.c.b16 %v140, %v139
  %v174 = vpack.c.b16 %v142, %v141
  %v175 = vpack.c.b16 %v144, %v143
  %v176 = vpack.c.b16 %v146, %v145
  %v177 = vpack.c.b16 %v148, %v147
  %v178 = vpack.c.b16 %v150, %v149
  %v179 = vpack.c.b16 %v152, %v151
  %v180 = vpack.c.b16 %v154, %v153
  %v181 = vpack.c.b16 %v156, %v155
  %v182 = vpack.c.b16 %v158, %v157
  %v183 = vpack.c.b16 %v160, %v159
  %v184 = vpack.c.b16 %v162, %v161
  %v185 = vpack.c.b16 %v164, %v163
  %v186 = vpack.c.b16 %v166, %v165
  %v187 = vpack.c.b16 %v168, %v167
  %v188 = vpack.c.b16 %v170, %v169
  %vm207 = vcmask 261120
  %v209 = vsel %vm207, %v91, 0
  %v212 = vsel %vm207, %v94, 0
  %214 = vmatprep.subr.bf16.mxu0 0
  %215 = vmatpush1.bf16.msra.mxu0 %v171
  %216 = vmatprep.subr.bf16.mxu0 0
  %217 = vmatpush1.bf16.msra.mxu0 %v172
  %218 = vmatprep.subr.bf16.mxu0 0
  %219 = vmatpush1.bf16.msra.mxu0 %v173
  %220 = vmatprep.subr.bf16.mxu0 0
  %221 = vmatpush1.bf16.msra.mxu0 %v174
  %222 = vmatprep.subr.bf16.mxu0 0
  %223 = vmatpush1.bf16.msra.mxu0 %v175
  %224 = vmatprep.subr.bf16.mxu0 0
  %225 = vmatpush1.bf16.msra.mxu0 %v176
  %226 = vmatprep.subr.bf16.mxu0 0
  %227 = vmatpush1.bf16.msra.mxu0 %v177
  %228 = vmatprep.subr.bf16.mxu0 0
  %229 = vmatpush1.bf16.msra.mxu0 %v178
  %230 = vmatprep.subr.bf16.mxu0 0
  %231 = vmatpush1.bf16.msra.mxu0 %v179
  %232 = vmatprep.subr.bf16.mxu0 0
  %233 = vmatpush1.bf16.msra.mxu0 %v180
  %234 = vmatprep.subr.bf16.mxu0 0
  %235 = vmatpush1.bf16.msra.mxu0 %v181
  %236 = vmatprep.subr.bf16.mxu0 0
  %237 = vmatpush1.bf16.msra.mxu0 %v182
  %238 = vmatprep.subr.bf16.mxu0 0
  %239 = vmatpush1.bf16.msra.mxu0 %v183
  %240 = vmatprep.subr.bf16.mxu0 0
  %241 = vmatpush1.bf16.msra.mxu0 %v184
  %242 = vmatprep.subr.bf16.mxu0 0
  %243 = vmatpush1.bf16.msra.mxu0 %v185
  %244 = vmatprep.subr.bf16.mxu0 0
  %245 = vmatpush1.bf16.msra.mxu0 %v186
  %246 = vmatprep.mubr.bf16.mxu0 %v90
  %247 = vmatmul.mubr.bf16.gmra.mrb[0].mxu0 %v89
  %v248 = vpop.f32.mrb[0].mxu0
  %v249 = vadd.f32 %v67, %v248
  %v250 = vpop.f32.mrb[0].mxu0
  %v251 = vpop.f32.mrb[0].mxu0
  %v252 = vadd.f32 %v67, %v251
  %v253 = vpop.f32.mrb[0].mxu0
  %254 = vmatprep.mubr.bf16.mxu0 %v93
  %255 = vmatmul.mubr.bf16.gmra.mrb[0].mxu0 %v92
  %v256 = vpop.f32.mrb[0].mxu0
  %v257 = vadd.f32 %v67, %v256
  %v258 = vpop.f32.mrb[0].mxu0
  %v259 = vpop.f32.mrb[0].mxu0
  %v260 = vadd.f32 %v67, %v259
  %v261 = vpop.f32.mrb[0].mxu0
  %262 = vdwg.mxu0
  %263 = vmatprep.subr.bf16.mxu0 0
  %264 = vmatpush1.bf16.msra.mxu0 %v187
  %265 = vmatprep.subr.bf16.mxu0 0
  %266 = vmatpush1.bf16.msra.mxu0 %v188
  %267 = vmatprep.subr.bf16.mxu0 0
  %268 = vmatpush1.bf16.msra.mxu0 0
  %269 = vmatprep.subr.bf16.mxu0 0
  %270 = vmatpush1.bf16.msra.mxu0 0
  %271 = vmatprep.subr.bf16.mxu0 0
  %272 = vmatpush1.bf16.msra.mxu0 0
  %273 = vmatprep.subr.bf16.mxu0 0
  %274 = vmatpush1.bf16.msra.mxu0 0
  %275 = vmatprep.subr.bf16.mxu0 0
  %276 = vmatpush1.bf16.msra.mxu0 0
  %277 = vmatprep.subr.bf16.mxu0 0
  %278 = vmatpush1.bf16.msra.mxu0 0
  %279 = vmatprep.subr.bf16.mxu0 0
  %280 = vmatpush1.bf16.msra.mxu0 0
  %281 = vmatprep.subr.bf16.mxu0 0
  %282 = vmatpush1.bf16.msra.mxu0 0
  %283 = vmatprep.subr.bf16.mxu0 0
  %284 = vmatpush1.bf16.msra.mxu0 0
  %285 = vmatprep.subr.bf16.mxu0 0
  %286 = vmatpush1.bf16.msra.mxu0 0
  %287 = vmatprep.subr.bf16.mxu0 0
  %288 = vmatpush1.bf16.msra.mxu0 0
  %289 = vmatprep.subr.bf16.mxu0 0
  %290 = vmatpush1.bf16.msra.mxu0 0
  %291 = vmatprep.subr.bf16.mxu0 0
  %292 = vmatpush1.bf16.msra.mxu0 0
  %293 = vmatprep.subr.bf16.mxu0 0
  %294 = vmatpush1.bf16.msra.mxu0 0
  %295 = vmatprep.mubr.bf16.mxu0 0
  %296 = vmatmul.mubr.bf16.gmra.mrb[0].mxu0 %v209
  %v297 = vpop.f32.mrb[0].mxu0
  %v298 = vadd.f32 %v249, %v297
  %v299 = vpop.f32.mrb[0].mxu0
  %v300 = vpop.f32.mrb[0].mxu0
  %v301 = vadd.f32 %v252, %v300
  %v302 = vpop.f32.mrb[0].mxu0
  %303 = vmatprep.mubr.bf16.mxu0 0
  %304 = vmatmul.mubr.bf16.gmra.mrb[0].mxu0 %v212
  %v305 = vpop.f32.mrb[0].mxu0
  %v306 = vadd.f32 %v257, %v305
  %v307 = vpop.f32.mrb[0].mxu0
  %v308 = vpop.f32.mrb[0].mxu0
  %v309 = vadd.f32 %v260, %v308
  %v310 = vpop.f32.mrb[0].mxu0
  %311 = vdwg.mxu0
  %v312 = vld [vmem:[%s3] sm:$0x1]
  %vm313 = vcmp.ge.f32.partialorder %v298, 0.0
  %vm314 = vcmp.ge.f32.partialorder %v301, 0.0
  %vm315 = vcmp.ge.f32.partialorder %v306, 0.0
  %vm316 = vcmp.ge.f32.partialorder %v309, 0.0
  %v318 = vlaneseq
  %v319 = vshrl.u32 %v318, 7
  %v320 = vsub.s32 0, %v319
  %v321 = vrot.slane %v312, %v320
  %v323 = vmul.f32 %v321, %v298
  %v324 = vmul.f32 %v321, %v301
  %v325 = vmul.f32 %v321, %v306
  %v326 = vmul.f32 %v321, %v309
  %v327 = vsel %vm313, %v298, %v323
  %v328 = vsel %vm314, %v301, %v324
  %v329 = vsel %vm315, %v306, %v325
  %v330 = vsel %vm316, %v309, %v326
  %331 = vst [vmem:[%s4] sm:$0xff] %v327
  %332 = vst [vmem:[%s4 + $0x8] sm:$0xff] %v328
  %333 = vst [vmem:[%s4 + $0x10] sm:$0xff] %v329
  %334 = vst [vmem:[%s4 + $0x18] sm:$0xff] %v330
  // Predicated region
  $region18: #{context_net.12} parent=0 // pred_check
    _
  $region19: #{context_net.12} parent=0 // pred_check_branch
    %336 = sbr.rel (0) target = $region21
  $region20: #{context_net.12} parent=0 // pred_region
    _
  $region21: #{context_net.12} parent=0 // pred_fallthru
    _
  // Predicated region
  $region22: #{context_net.12} parent=0 // pred_check
    _
  $region23: #{context_net.12} parent=0 // pred_check_branch
    %338 = sbr.rel (0) target = $region25
  $region24: #{context_net.12} parent=0 // pred_region
    _
  $region25: #{context_net.12} parent=0 // pred_fallthru
    _

// kernel: context_net.13
$region0: #{context_net.13}
  #allocation0 [shape = 'u32[]', space=smem, size = 0x4, offset = 0x4, fixed_abs, tag = 'smem constant byte address 0x4 - core index']
  #allocation1 [shape = 'u32[144,128]{1,0:T(1,128)}', space=vmem, size = 0x12000, scoped, tag = 'internal scratch']
  %s0 = inlined_call_operand.vmem [shape: bf16[2,16,576], index: 0, kind: input, shape index: {}]
  %s1 = inlined_call_operand.vmem [shape: f32[2,16,64], index: 1, kind: input, shape index: {}]
  %s2 = inlined_call_operand.vmem [shape: bf16[576,64], index: 2, kind: input, shape index: {}]
  %s3 = inlined_call_operand.vmem [shape: f32[1,64], index: 3, kind: input, shape index: {}]
  %s4 = inlined_call_operand.vmem [shape: f32[64,16], index: 4, kind: input, shape index: {}]
  %s5 = inlined_call_operand.vmem [shape: f32[16,64], index: 5, kind: input, shape index: {}]
  %s6 = inlined_call_operand.vmem [shape: f32[1,16], index: 6, kind: input, shape index: {}]
  %s7 = inlined_call_operand.vmem [shape: f32[1,64], index: 7, kind: input, shape index: {}]
  %s8 = inlined_call_operand.vmem [shape: f32[2,16,64], index: 8, kind: output, shape index: {}]
  %s9 = sld [smem:[#allocation0]]
  $region65: #{context_net.13} parent=0
    _
  %s11 = ssub.s32 1, %s9
  %s12 = scalar_select 0, %s11, %s9
  loop: start=0, step=1, limit=4
  $region2: #{context_net.13} parent=0 // loop_pre_header
    _
  $region3: #{context_net.13} parent=0 // loop_header
    %s14 = sphi 0, %s18
    %p15 = scmp.ge.s32.totalorder %s14, 4
    %s24 = sphi 0, %s26
    %s27 = sphi 0, %s24
    %s28 = sphi 0, %s27
    %s44 = sphi 0, %s28
    %s50 = sphi 0, %s52
    %s53 = sphi 0, %s50
    %s54 = sphi 0, %s53
    %s70 = sphi 0, %s54
    %s74 = sphi 0, %s74
    %s76 = sphi 0, %s74
    %s77 = sphi 0, %s76
    %s91 = sphi 0, %s77
    %s95 = sphi 0, %s95
    %s97 = sphi 0, %s95
    %s98 = sphi 0, %s97
    %s112 = sphi 0, %s98
    %s116 = sphi 0, %s116
    %s118 = sphi 0, %s116
    %s119 = sphi 0, %s118
    %s133 = sphi 0, %s119
    %s137 = sphi 0, %s137
    %s139 = sphi 0, %s137
    %s140 = sphi 0, %s139
    %s154 = sphi 0, %s140
    %s158 = sphi 0, %s158
    %s160 = sphi 0, %s158
    %s161 = sphi 0, %s160
    %s175 = sphi 0, %s161
    %s179 = sphi 0, %s179
    %s181 = sphi 0, %s179
    %s182 = sphi 0, %s181
    %s196 = sphi 0, %s182
    %s202 = sphi 0, %s204
    %s205 = sphi 0, %s202
    %s206 = sphi 0, %s205
    %s222 = sphi 0, %s206
  $region4: #{context_net.13} parent=0 // loop_header_branch
    %17 = sbr.rel (%p15) target = $region8
  $region5: #{context_net.13} parent=0 // loop_body
    %s19 = ssub.s32 %s14, 1
    %s20 = ssub.s32 %s14, 2
    %s21 = sadd.s32 %s14, 1
    %s22 = ssub.s32 %s14, %s21
    %p23 = scmp.eq.s32.totalorder %s22, 0
    %s25 = sadd.s32 %s24, 1
    %s26 = scalar_select %p23, %s24, %s25
    %p29 = pneg %p23
    %p30 = scmp.eq.s32.totalorder %s14, 1
    %p31 = por %p29, %p30
    %p32 = scmp.ne.s32.totalorder %s24, %s27
    %p33 = scmp.eq.s32.totalorder %s14, 0
    %p34 = por %p32, %p33
    %p35 = scmp.ne.s32.totalorder %s24, %s27
    %p36 = scmp.eq.s32.totalorder %s19, 1
    %p37 = por %p35, %p36
    %p38 = scmp.ne.s32.totalorder %s27, %s28
    %p39 = scmp.eq.s32.totalorder %s19, 0
    %p40 = por %p38, %p39
    %p41 = scmp.ne.s32.totalorder %s27, %s28
    %p42 = scmp.eq.s32.totalorder %s20, 1
    %p43 = por %p41, %p42
    %p45 = scmp.ne.s32.totalorder %s28, %s44
    %p46 = scmp.eq.s32.totalorder %s20, 0
    %p47 = por %p45, %p46
    %s48 = ssub.s32 %s14, %s21
    %p49 = scmp.eq.s32.totalorder %s48, 0
    %s51 = sadd.s32 %s50, 1
    %s52 = scalar_select %p49, %s50, %s51
    %p55 = pneg %p49
    %p56 = scmp.eq.s32.totalorder %s14, 1
    %p57 = por %p55, %p56
    %p58 = scmp.ne.s32.totalorder %s50, %s53
    %p59 = scmp.eq.s32.totalorder %s14, 0
    %p60 = por %p58, %p59
    %p61 = scmp.ne.s32.totalorder %s50, %s53
    %p62 = scmp.eq.s32.totalorder %s19, 1
    %p63 = por %p61, %p62
    %p64 = scmp.ne.s32.totalorder %s53, %s54
    %p65 = scmp.eq.s32.totalorder %s19, 0
    %p66 = por %p64, %p65
    %p67 = scmp.ne.s32.totalorder %s53, %s54
    %p68 = scmp.eq.s32.totalorder %s20, 1
    %p69 = por %p67, %p68
    %p71 = scmp.ne.s32.totalorder %s54, %s70
    %p72 = scmp.eq.s32.totalorder %s20, 0
    %p73 = por %p71, %p72
    %s75 = sadd.s32 %s74, 1
    %p78 = scmp.eq.s32.totalorder %s14, 1
    %p79 = scmp.ne.s32.totalorder %s74, %s76
    %p80 = scmp.eq.s32.totalorder %s14, 0
    %p81 = por %p79, %p80
    %p82 = scmp.ne.s32.totalorder %s74, %s76
    %p83 = scmp.eq.s32.totalorder %s19, 1
    %p84 = por %p82, %p83
    %p85 = scmp.ne.s32.totalorder %s76, %s77
    %p86 = scmp.eq.s32.totalorder %s19, 0
    %p87 = por %p85, %p86
    %p88 = scmp.ne.s32.totalorder %s76, %s77
    %p89 = scmp.eq.s32.totalorder %s20, 1
    %p90 = por %p88, %p89
    %p92 = scmp.ne.s32.totalorder %s77, %s91
    %p93 = scmp.eq.s32.totalorder %s20, 0
    %p94 = por %p92, %p93
    %s96 = sadd.s32 %s95, 1
    %p99 = scmp.eq.s32.totalorder %s14, 1
    %p100 = scmp.ne.s32.totalorder %s95, %s97
    %p101 = scmp.eq.s32.totalorder %s14, 0
    %p102 = por %p100, %p101
    %p103 = scmp.ne.s32.totalorder %s95, %s97
    %p104 = scmp.eq.s32.totalorder %s19, 1
    %p105 = por %p103, %p104
    %p106 = scmp.ne.s32.totalorder %s97, %s98
    %p107 = scmp.eq.s32.totalorder %s19, 0
    %p108 = por %p106, %p107
    %p109 = scmp.ne.s32.totalorder %s97, %s98
    %p110 = scmp.eq.s32.totalorder %s20, 1
    %p111 = por %p109, %p110
    %p113 = scmp.ne.s32.totalorder %s98, %s112
    %p114 = scmp.eq.s32.totalorder %s20, 0
    %p115 = por %p113, %p114
    %s117 = sadd.s32 %s116, 1
    %p120 = scmp.eq.s32.totalorder %s14, 1
    %p121 = scmp.ne.s32.totalorder %s116, %s118
    %p122 = scmp.eq.s32.totalorder %s14, 0
    %p123 = por %p121, %p122
    %p124 = scmp.ne.s32.totalorder %s116, %s118
    %p125 = scmp.eq.s32.totalorder %s19, 1
    %p126 = por %p124, %p125
    %p127 = scmp.ne.s32.totalorder %s118, %s119
    %p128 = scmp.eq.s32.totalorder %s19, 0
    %p129 = por %p127, %p128
    %p130 = scmp.ne.s32.totalorder %s118, %s119
    %p131 = scmp.eq.s32.totalorder %s20, 1
    %p132 = por %p130, %p131
    %p134 = scmp.ne.s32.totalorder %s119, %s133
    %p135 = scmp.eq.s32.totalorder %s20, 0
    %p136 = por %p134, %p135
    %s138 = sadd.s32 %s137, 1
    %p141 = scmp.eq.s32.totalorder %s14, 1
    %p142 = scmp.ne.s32.totalorder %s137, %s139
    %p143 = scmp.eq.s32.totalorder %s14, 0
    %p144 = por %p142, %p143
    %p145 = scmp.ne.s32.totalorder %s137, %s139
    %p146 = scmp.eq.s32.totalorder %s19, 1
    %p147 = por %p145, %p146
    %p148 = scmp.ne.s32.totalorder %s139, %s140
    %p149 = scmp.eq.s32.totalorder %s19, 0
    %p150 = por %p148, %p149
    %p151 = scmp.ne.s32.totalorder %s139, %s140
    %p152 = scmp.eq.s32.totalorder %s20, 1
    %p153 = por %p151, %p152
    %p155 = scmp.ne.s32.totalorder %s140, %s154
    %p156 = scmp.eq.s32.totalorder %s20, 0
    %p157 = por %p155, %p156
    %s159 = sadd.s32 %s158, 1
    %p162 = scmp.eq.s32.totalorder %s14, 1
    %p163 = scmp.ne.s32.totalorder %s158, %s160
    %p164 = scmp.eq.s32.totalorder %s14, 0
    %p165 = por %p163, %p164
    %p166 = scmp.ne.s32.totalorder %s158, %s160
    %p167 = scmp.eq.s32.totalorder %s19, 1
    %p168 = por %p166, %p167
    %p169 = scmp.ne.s32.totalorder %s160, %s161
    %p170 = scmp.eq.s32.totalorder %s19, 0
    %p171 = por %p169, %p170
    %p172 = scmp.ne.s32.totalorder %s160, %s161
    %p173 = scmp.eq.s32.totalorder %s20, 1
    %p174 = por %p172, %p173
    %p176 = scmp.ne.s32.totalorder %s161, %s175
    %p177 = scmp.eq.s32.totalorder %s20, 0
    %p178 = por %p176, %p177
    %s180 = sadd.s32 %s179, 1
    %p183 = scmp.eq.s32.totalorder %s14, 1
    %p184 = scmp.ne.s32.totalorder %s179, %s181
    %p185 = scmp.eq.s32.totalorder %s14, 0
    %p186 = por %p184, %p185
    %p187 = scmp.ne.s32.totalorder %s179, %s181
    %p188 = scmp.eq.s32.totalorder %s19, 1
    %p189 = por %p187, %p188
    %p190 = scmp.ne.s32.totalorder %s181, %s182
    %p191 = scmp.eq.s32.totalorder %s19, 0
    %p192 = por %p190, %p191
    %p193 = scmp.ne.s32.totalorder %s181, %s182
    %p194 = scmp.eq.s32.totalorder %s20, 1
    %p195 = por %p193, %p194
    %p197 = scmp.ne.s32.totalorder %s182, %s196
    %p198 = scmp.eq.s32.totalorder %s20, 0
    %p199 = por %p197, %p198
    %s200 = ssub.s32 %s14, %s21
    %p201 = scmp.eq.s32.totalorder %s200, 0
    %s203 = sadd.s32 %s202, 1
    %s204 = scalar_select %p201, %s202, %s203
    %p207 = pneg %p201
    %p208 = scmp.eq.s32.totalorder %s14, 1
    %p209 = por %p207, %p208
    %p210 = scmp.ne.s32.totalorder %s202, %s205
    %p211 = scmp.eq.s32.totalorder %s14, 0
    %p212 = por %p210, %p211
    %p213 = scmp.ne.s32.totalorder %s202, %s205
    %p214 = scmp.eq.s32.totalorder %s19, 1
    %p215 = por %p213, %p214
    %p216 = scmp.ne.s32.totalorder %s205, %s206
    %p217 = scmp.eq.s32.totalorder %s19, 0
    %p218 = por %p216, %p217
    %p219 = scmp.ne.s32.totalorder %s205, %s206
    %p220 = scmp.eq.s32.totalorder %s20, 1
    %p221 = por %p219, %p220
    %p223 = scmp.ne.s32.totalorder %s206, %s222
    %p224 = scmp.eq.s32.totalorder %s20, 0
    %p225 = por %p223, %p224
    %p226 = scmp.le.s32.totalorder 1, %s14
    %p227 = scmp.lt.s32.totalorder %s14, 3
    %p228 = pnand %p226, %p227
    %p229 = pneg %p228
    // Predicated region
    $region9: #{context_net.13} parent=5 // pred_check
      _
    $region10: #{context_net.13} parent=5 // pred_check_branch
      %231 = sbr.rel (%p228) target = $region12
    $region11: #{context_net.13} parent=5 // pred_region
      %s232 = ssub.s32 %s14, 1
      // Predicated region
      $region13: #{context_net.13} parent=11 // pred_check
        %p233 = pneg %p87
      $region14: #{context_net.13} parent=11 // pred_check_branch
        %235 = sbr.rel (%p233) target = $region16
      $region15: #{context_net.13} parent=11 // pred_region
        _
      $region16: #{context_net.13} parent=11 // pred_fallthru
        _
      // Predicated region
      $region17: #{context_net.13} parent=11 // pred_check
        %p236 = pneg %p108
      $region18: #{context_net.13} parent=11 // pred_check_branch
        %238 = sbr.rel (%p236) target = $region20
      $region19: #{context_net.13} parent=11 // pred_region
        _
      $region20: #{context_net.13} parent=11 // pred_fallthru
        _
      // Predicated region
      $region21: #{context_net.13} parent=11 // pred_check
        %p239 = pneg %p129
      $region22: #{context_net.13} parent=11 // pred_check_branch
        %241 = sbr.rel (%p239) target = $region24
      $region23: #{context_net.13} parent=11 // pred_region
        _
      $region24: #{context_net.13} parent=11 // pred_fallthru
        _
      // Predicated region
      $region25: #{context_net.13} parent=11 // pred_check
        %p242 = pneg %p150
      $region26: #{context_net.13} parent=11 // pred_check_branch
        %244 = sbr.rel (%p242) target = $region28
      $region27: #{context_net.13} parent=11 // pred_region
        _
      $region28: #{context_net.13} parent=11 // pred_fallthru
        _
      // Predicated region
      $region29: #{context_net.13} parent=11 // pred_check
        %p245 = pneg %p171
      $region30: #{context_net.13} parent=11 // pred_check_branch
        %247 = sbr.rel (%p245) target = $region32
      $region31: #{context_net.13} parent=11 // pred_region
        _
      $region32: #{context_net.13} parent=11 // pred_fallthru
        _
      // Predicated region
      $region33: #{context_net.13} parent=11 // pred_check
        %p248 = pneg %p192
      $region34: #{context_net.13} parent=11 // pred_check_branch
        %250 = sbr.rel (%p248) target = $region36
      $region35: #{context_net.13} parent=11 // pred_region
        _
      $region36: #{context_net.13} parent=11 // pred_fallthru
        _
    $region12: #{context_net.13} parent=5 // pred_fallthru
      _
    %p251 = scmp.lt.s32.totalorder %s14, 2
    // Predicated region
    $region37: #{context_net.13} parent=5 // pred_check
      %p252 = pneg %p251
    $region38: #{context_net.13} parent=5 // pred_check_branch
      %254 = sbr.rel (%p252) target = $region40
    $region39: #{context_net.13} parent=5 // pred_region
      // Predicated region
      $region41: #{context_net.13} parent=39 // pred_check
        %p255 = pneg %p34
      $region42: #{context_net.13} parent=39 // pred_check_branch
        %257 = sbr.rel (%p255) target = $region44
      $region43: #{context_net.13} parent=39 // pred_region
        %p258 = scmp.lt.s32.totalorder %s14, 1
        %s259 = scalar_select %p258, %s14, 1
        %s260 = smul.addr %s259, 10
        %s261 = smul.addr %s260, 4
        %s262 = scalar_lea.vmem %s0, %s261
      $region44: #{context_net.13} parent=39 // pred_fallthru
        _
      // Predicated region
      $region45: #{context_net.13} parent=39 // pred_check
        %p263 = pneg %p60
      $region46: #{context_net.13} parent=39 // pred_check_branch
        %265 = sbr.rel (%p263) target = $region48
      $region47: #{context_net.13} parent=39 // pred_region
        %p266 = scmp.lt.s32.totalorder %s14, 1
        %s267 = scalar_select %p266, %s14, 1
        %s268 = smul.addr %s267, 2
        %s269 = smul.addr %s268, 8
        %s270 = scalar_lea.vmem %s1, %s269
      $region48: #{context_net.13} parent=39 // pred_fallthru
        _
    $region40: #{context_net.13} parent=5 // pred_fallthru
      _
    %p271 = scmp.le.s32.totalorder 1, %s14
    %p272 = scmp.lt.s32.totalorder %s14, 3
    %p273 = pnand %p271, %p272
    %p274 = pneg %p273
    // Predicated region
    $region49: #{context_net.13} parent=5 // pred_check
      _
    $region50: #{context_net.13} parent=5 // pred_check_branch
      %276 = sbr.rel (%p273) target = $region52
    $region51: #{context_net.13} parent=5 // pred_region
      %s277 = ssub.s32 %s14, 1
      %p278 = scmp.lt.s32.totalorder %s19, 1
      %s279 = scalar_select %p278, %s19, 1
      %s280 = smul.addr %s279, 10
      %s281 = smul.addr %s280, 4
      %s282 = scalar_lea.vmem %s0, %s281
      %p283 = pneg %p40
      %p284 = pneg %p37
      %p285 = scmp.lt.s32.totalorder %s19, 1
      %s286 = scalar_select %p285, %s19, 1
      %s287 = smul.addr %s286, 2
      %s288 = smul.addr %s287, 8
      %s289 = scalar_lea.vmem %s1, %s288
      %p290 = pneg %p66
      %p291 = pneg %p63
      %p292 = pneg %p87
      %p293 = pneg %p84
      %p294 = pneg %p108
      %p295 = pneg %p105
      %p296 = pneg %p129
      %p297 = pneg %p126
      %p298 = pneg %p150
      %p299 = pneg %p147
      %p300 = pneg %p171
      %p301 = pneg %p168
      %p302 = pneg %p192
      %p303 = pneg %p189
      %p304 = pneg %p218
      %p305 = pneg %p215
      %p306 = scmp.lt.s32.totalorder %s19, 1
      %s307 = scalar_select %p306, %s19, 1
      %s308 = smul.addr %s307, 2
      %s309 = smul.addr %s308, 8
      %s310 = scalar_lea.vmem %s8, %s309
      %p311 = scmp.lt.s32.totalorder %s19, 1
      %s312 = scalar_select %p311, %s19, 1
      %s313 = smul.addr %s312, 10
      %s314 = smul.addr %s313, 4
      %s315 = scalar_lea.vmem %s0, %s314
      %p316 = scmp.lt.s32.totalorder %s19, 1
      %s317 = scalar_select %p316, %s19, 1
      %s318 = smul.addr %s317, 2
      %s319 = smul.addr %s318, 8
      %s320 = scalar_lea.vmem %s1, %s319
      %p321 = scmp.lt.s32.totalorder %s19, 1
      %s322 = scalar_select %p321, %s19, 1
      %s323 = smul.addr %s322, 2
      %s324 = smul.addr %s323, 8
      %s325 = scalar_lea.vmem %s8, %s324
      %v327 = vld [vmem:[%s315] sm:$0xff]
      %v328 = vld [vmem:[%s315 + $0x8] sm:$0xff]
      %v329 = vld [vmem:[%s315 + $0x10] sm:$0xf]
      %v330 = vld [vmem:[%s315 + $0x14] sm:$0xff]
      %v331 = vld [vmem:[%s315 + $0x1c] sm:$0xff]
      %v332 = vld [vmem:[%s315 + $0x24] sm:$0xf]
      %v333 = vld [vmem:[%s2] sm:$0xf]
      %v334 = vld [vmem:[%s2 + $0x4] sm:$0xf]
      %v335 = vld [vmem:[%s2 + $0x8] sm:$0xf]
      %v336 = vld [vmem:[%s2 + $0xc] sm:$0xf]
      %v337 = vld [vmem:[%s2 + $0x10] sm:$0xf]
      %v338 = vld [vmem:[%s2 + $0x14] sm:$0xf]
      %v339 = vld [vmem:[%s2 + $0x18] sm:$0xf]
      %v340 = vld [vmem:[%s2 + $0x1c] sm:$0xf]
      %v341 = vld [vmem:[%s2 + $0x20] sm:$0xf]
      %v342 = vld [vmem:[%s2 + $0x24] sm:$0xf]
      %v343 = vld [vmem:[%s2 + $0x28] sm:$0xf]
      %v344 = vld [vmem:[%s2 + $0x2c] sm:$0xf]
      %v345 = vld [vmem:[%s2 + $0x30] sm:$0xf]
      %v346 = vld [vmem:[%s2 + $0x34] sm:$0xf]
      %v347 = vld [vmem:[%s2 + $0x38] sm:$0xf]
      %v348 = vld [vmem:[%s2 + $0x3c] sm:$0xf]
      %v349 = vld [vmem:[%s2 + $0x40] sm:$0xf]
      %v350 = vld [vmem:[%s2 + $0x44] sm:$0xf]
      %v351 = vld [vmem:[%s2 + $0x48] sm:$0xf]
      %v352 = vld [vmem:[%s2 + $0x4c] sm:$0xf]
      %v353 = vld [vmem:[%s2 + $0x50] sm:$0xf]
      %v354 = vld [vmem:[%s2 + $0x54] sm:$0xf]
      %v355 = vld [vmem:[%s2 + $0x58] sm:$0xf]
      %v356 = vld [vmem:[%s2 + $0x5c] sm:$0xf]
      %v357 = vld [vmem:[%s2 + $0x60] sm:$0xf]
      %v358 = vld [vmem:[%s2 + $0x64] sm:$0xf]
      %v359 = vld [vmem:[%s2 + $0x68] sm:$0xf]
      %v360 = vld [vmem:[%s2 + $0x6c] sm:$0xf]
      %v361 = vld [vmem:[%s2 + $0x70] sm:$0xf]
      %v362 = vld [vmem:[%s2 + $0x74] sm:$0xf]
      %v363 = vld [vmem:[%s2 + $0x78] sm:$0xf]
      %v364 = vld [vmem:[%s2 + $0x7c] sm:$0xf]
      %v365 = vld [vmem:[%s2 + $0x80] sm:$0xf]
      %v366 = vld [vmem:[%s2 + $0x84] sm:$0xf]
      %v367 = vld [vmem:[%s2 + $0x88] sm:$0xf]
      %v368 = vld [vmem:[%s2 + $0x8c] sm:$0xf]
      %v369 = vld [vmem:[%s2 + $0x90] sm:$0xf]
      %v370 = vld [vmem:[%s2 + $0x94] sm:$0xf]
      %v371 = vld [vmem:[%s2 + $0x98] sm:$0xf]
      %v372 = vld [vmem:[%s2 + $0x9c] sm:$0xf]
      %v373 = vld [vmem:[%s2 + $0xa0] sm:$0xf]
      %v374 = vld [vmem:[%s2 + $0xa4] sm:$0xf]
      %v375 = vld [vmem:[%s2 + $0xa8] sm:$0xf]
      %v376 = vld [vmem:[%s2 + $0xac] sm:$0xf]
      %v377 = vld [vmem:[%s2 + $0xb0] sm:$0xf]
      %v378 = vld [vmem:[%s2 + $0xb4] sm:$0xf]
      %v379 = vld [vmem:[%s2 + $0xb8] sm:$0xf]
      %v380 = vld [vmem:[%s2 + $0xbc] sm:$0xf]
      %v381 = vld [vmem:[%s2 + $0xc0] sm:$0xf]
      %v382 = vld [vmem:[%s2 + $0xc4] sm:$0xf]
      %v383 = vld [vmem:[%s2 + $0xc8] sm:$0xf]
      %v384 = vld [vmem:[%s2 + $0xcc] sm:$0xf]
      %v385 = vld [vmem:[%s2 + $0xd0] sm:$0xf]
      %v386 = vld [vmem:[%s2 + $0xd4] sm:$0xf]
      %v387 = vld [vmem:[%s2 + $0xd8] sm:$0xf]
      %v388 = vld [vmem:[%s2 + $0xdc] sm:$0xf]
      %v389 = vld [vmem:[%s2 + $0xe0] sm:$0xf]
      %v390 = vld [vmem:[%s2 + $0xe4] sm:$0xf]
      %v391 = vld [vmem:[%s2 + $0xe8] sm:$0xf]
      %v392 = vld [vmem:[%s2 + $0xec] sm:$0xf]
      %v393 = vld [vmem:[%s2 + $0xf0] sm:$0xf]
      %v394 = vld [vmem:[%s2 + $0xf4] sm:$0xf]
      %v395 = vld [vmem:[%s2 + $0xf8] sm:$0xf]
      %v396 = vld [vmem:[%s2 + $0xfc] sm:$0xf]
      %v397 = vld [vmem:[%s2 + $0x100] sm:$0xf]
      %v398 = vld [vmem:[%s2 + $0x104] sm:$0xf]
      %v399 = vld [vmem:[%s2 + $0x108] sm:$0xf]
      %v400 = vld [vmem:[%s2 + $0x10c] sm:$0xf]
      %v401 = vld [vmem:[%s2 + $0x110] sm:$0xf]
      %v402 = vld [vmem:[%s2 + $0x114] sm:$0xf]
      %v403 = vld [vmem:[%s2 + $0x118] sm:$0xf]
      %v404 = vld [vmem:[%s2 + $0x11c] sm:$0xf]
      %v405 = vld [vmem:[%s3] sm:$0x1]
      %v407 = vlaneseq
      %v408 = vshrl.u32 %v407, 7
      %v409 = vsub.s32 0, %v408
      %v410 = vrot.slane %v405, %v409
      %v418 = vunpack.c.l.b16 %v327
      %v419 = vunpack.c.h.b16 %v327
      %v420 = vunpack.c.l.b16 %v328
      %v421 = vunpack.c.h.b16 %v328
      %v422 = vunpack.c.l.b16 %v329
      %v423 = vunpack.c.l.b16 %v330
      %v424 = vunpack.c.h.b16 %v330
      %v425 = vunpack.c.l.b16 %v331
      %v426 = vunpack.c.h.b16 %v331
      %v427 = vunpack.c.l.b16 %v332
      %v428 = vpack.c.b16 %v423, %v418
      %v429 = vpack.c.b16 %v424, %v419
      %v430 = vpack.c.b16 %v425, %v420
      %v431 = vpack.c.b16 %v426, %v421
      %v432 = vpack.c.b16 %v427, %v422
      %v509 = vunpack.c.l.b16 %v333
      %v510 = vunpack.c.l.b16 %v334
      %v511 = vunpack.c.l.b16 %v335
      %v512 = vunpack.c.l.b16 %v336
      %v513 = vunpack.c.l.b16 %v337
      %v514 = vunpack.c.l.b16 %v338
      %v515 = vunpack.c.l.b16 %v339
      %v516 = vunpack.c.l.b16 %v340
      %v517 = vunpack.c.l.b16 %v341
      %v518 = vunpack.c.l.b16 %v342
      %v519 = vunpack.c.l.b16 %v343
      %v520 = vunpack.c.l.b16 %v344
      %v521 = vunpack.c.l.b16 %v345
      %v522 = vunpack.c.l.b16 %v346
      %v523 = vunpack.c.l.b16 %v347
      %v524 = vunpack.c.l.b16 %v348
      %v525 = vunpack.c.l.b16 %v349
      %v526 = vunpack.c.l.b16 %v350
      %v527 = vunpack.c.l.b16 %v351
      %v528 = vunpack.c.l.b16 %v352
      %v529 = vunpack.c.l.b16 %v353
      %v530 = vunpack.c.l.b16 %v354
      %v531 = vunpack.c.l.b16 %v355
      %v532 = vunpack.c.l.b16 %v356
      %v533 = vunpack.c.l.b16 %v357
      %v534 = vunpack.c.l.b16 %v358
      %v535 = vunpack.c.l.b16 %v359
      %v536 = vunpack.c.l.b16 %v360
      %v537 = vunpack.c.l.b16 %v361
      %v538 = vunpack.c.l.b16 %v362
      %v539 = vunpack.c.l.b16 %v363
      %v540 = vunpack.c.l.b16 %v364
      %v541 = vunpack.c.l.b16 %v365
      %v542 = vunpack.c.l.b16 %v366
      %v543 = vunpack.c.l.b16 %v367
      %v544 = vunpack.c.l.b16 %v368
      %v545 = vunpack.c.l.b16 %v369
      %v546 = vunpack.c.l.b16 %v370
      %v547 = vunpack.c.l.b16 %v371
      %v548 = vunpack.c.l.b16 %v372
      %v549 = vunpack.c.l.b16 %v373
      %v550 = vunpack.c.l.b16 %v374
      %v551 = vunpack.c.l.b16 %v375
      %v552 = vunpack.c.l.b16 %v376
      %v553 = vunpack.c.l.b16 %v377
      %v554 = vunpack.c.l.b16 %v378
      %v555 = vunpack.c.l.b16 %v379
      %v556 = vunpack.c.l.b16 %v380
      %v557 = vunpack.c.l.b16 %v381
      %v558 = vunpack.c.l.b16 %v382
      %v559 = vunpack.c.l.b16 %v383
      %v560 = vunpack.c.l.b16 %v384
      %v561 = vunpack.c.l.b16 %v385
      %v562 = vunpack.c.l.b16 %v386
      %v563 = vunpack.c.l.b16 %v387
      %v564 = vunpack.c.l.b16 %v388
      %v565 = vunpack.c.l.b16 %v389
      %v566 = vunpack.c.l.b16 %v390
      %v567 = vunpack.c.l.b16 %v391
      %v568 = vunpack.c.l.b16 %v392
      %v569 = vunpack.c.l.b16 %v393
      %v570 = vunpack.c.l.b16 %v394
      %v571 = vunpack.c.l.b16 %v395
      %v572 = vunpack.c.l.b16 %v396
      %v573 = vunpack.c.l.b16 %v397
      %v574 = vunpack.c.l.b16 %v398
      %v575 = vunpack.c.l.b16 %v399
      %v576 = vunpack.c.l.b16 %v400
      %v577 = vunpack.c.l.b16 %v401
      %v578 = vunpack.c.l.b16 %v402
      %v579 = vunpack.c.l.b16 %v403
      %v580 = vunpack.c.l.b16 %v404
      %v581 = vpack.c.b16 %v510, %v509
      %v582 = vpack.c.b16 %v512, %v511
      %v583 = vpack.c.b16 %v514, %v513
      %v584 = vpack.c.b16 %v516, %v515
      %v585 = vpack.c.b16 %v518, %v517
      %v586 = vpack.c.b16 %v520, %v519
      %v587 = vpack.c.b16 %v522, %v521
      %v588 = vpack.c.b16 %v524, %v523
      %v589 = vpack.c.b16 %v526, %v525
      %v590 = vpack.c.b16 %v528, %v527
      %v591 = vpack.c.b16 %v530, %v529
      %v592 = vpack.c.b16 %v532, %v531
      %v593 = vpack.c.b16 %v534, %v533
      %v594 = vpack.c.b16 %v536, %v535
      %v595 = vpack.c.b16 %v538, %v537
      %v596 = vpack.c.b16 %v540, %v539
      %v597 = vpack.c.b16 %v542, %v541
      %v598 = vpack.c.b16 %v544, %v543
      %v599 = vpack.c.b16 %v546, %v545
      %v600 = vpack.c.b16 %v548, %v547
      %v601 = vpack.c.b16 %v550, %v549
      %v602 = vpack.c.b16 %v552, %v551
      %v603 = vpack.c.b16 %v554, %v553
      %v604 = vpack.c.b16 %v556, %v555
      %v605 = vpack.c.b16 %v558, %v557
      %v606 = vpack.c.b16 %v560, %v559
      %v607 = vpack.c.b16 %v562, %v561
      %v608 = vpack.c.b16 %v564, %v563
      %v609 = vpack.c.b16 %v566, %v565
      %v610 = vpack.c.b16 %v568, %v567
      %v611 = vpack.c.b16 %v570, %v569
      %v612 = vpack.c.b16 %v572, %v571
      %v613 = vpack.c.b16 %v574, %v573
      %v614 = vpack.c.b16 %v576, %v575
      %v615 = vpack.c.b16 %v578, %v577
      %v616 = vpack.c.b16 %v580, %v579
      %vm653 = vcmask 523264
      %v655 = vsel %vm653, %v432, 0
      %657 = vmatprep.subr.bf16.mxu0 0
      %658 = vmatpush1.bf16.msra.mxu0 %v581
      %659 = vmatprep.subr.bf16.mxu0 0
      %660 = vmatpush1.bf16.msra.mxu0 %v582
      %661 = vmatprep.subr.bf16.mxu0 0
      %662 = vmatpush1.bf16.msra.mxu0 %v583
      %663 = vmatprep.subr.bf16.mxu0 0
      %664 = vmatpush1.bf16.msra.mxu0 %v584
      %665 = vmatprep.subr.bf16.mxu0 0
      %666 = vmatpush1.bf16.msra.mxu0 %v585
      %667 = vmatprep.subr.bf16.mxu0 0
      %668 = vmatpush1.bf16.msra.mxu0 %v586
      %669 = vmatprep.subr.bf16.mxu0 0
      %670 = vmatpush1.bf16.msra.mxu0 %v587
      %671 = vmatprep.subr.bf16.mxu0 0
      %672 = vmatpush1.bf16.msra.mxu0 %v588
      %673 = vmatprep.subr.bf16.mxu0 0
      %674 = vmatpush1.bf16.msra.mxu0 %v589
      %675 = vmatprep.subr.bf16.mxu0 0
      %676 = vmatpush1.bf16.msra.mxu0 %v590
      %677 = vmatprep.subr.bf16.mxu0 0
      %678 = vmatpush1.bf16.msra.mxu0 %v591
      %679 = vmatprep.subr.bf16.mxu0 0
      %680 = vmatpush1.bf16.msra.mxu0 %v592
      %681 = vmatprep.subr.bf16.mxu0 0
      %682 = vmatpush1.bf16.msra.mxu0 %v593
      %683 = vmatprep.subr.bf16.mxu0 0
      %684 = vmatpush1.bf16.msra.mxu0 %v594
      %685 = vmatprep.subr.bf16.mxu0 0
      %686 = vmatpush1.bf16.msra.mxu0 %v595
      %687 = vmatprep.subr.bf16.mxu0 0
      %688 = vmatpush1.bf16.msra.mxu0 %v596
      %689 = vmatprep.mubr.bf16.mxu0 %v429
      %690 = vmatmul.mubr.bf16.gmra.mrb[0].mxu0 %v428
      %v691 = vpop.f32.mrb[0].mxu0
      %v692 = vadd.f32 %v410, %v691
      %v693 = vpop.f32.mrb[0].mxu0
      %v694 = vpop.f32.mrb[0].mxu0
      %v695 = vadd.f32 %v410, %v694
      %v696 = vpop.f32.mrb[0].mxu0
      %697 = vdwg.mxu0
      %698 = vmatprep.subr.bf16.mxu0 0
      %699 = vmatpush1.bf16.msra.mxu0 %v597
      %700 = vmatprep.subr.bf16.mxu0 0
      %701 = vmatpush1.bf16.msra.mxu0 %v598
      %702 = vmatprep.subr.bf16.mxu0 0
      %703 = vmatpush1.bf16.msra.mxu0 %v599
      %704 = vmatprep.subr.bf16.mxu0 0
      %705 = vmatpush1.bf16.msra.mxu0 %v600
      %706 = vmatprep.subr.bf16.mxu0 0
      %707 = vmatpush1.bf16.msra.mxu0 %v601
      %708 = vmatprep.subr.bf16.mxu0 0
      %709 = vmatpush1.bf16.msra.mxu0 %v602
      %710 = vmatprep.subr.bf16.mxu0 0
      %711 = vmatpush1.bf16.msra.mxu0 %v603
      %712 = vmatprep.subr.bf16.mxu0 0
      %713 = vmatpush1.bf16.msra.mxu0 %v604
      %714 = vmatprep.subr.bf16.mxu0 0
      %715 = vmatpush1.bf16.msra.mxu0 %v605
      %716 = vmatprep.subr.bf16.mxu0 0
      %717 = vmatpush1.bf16.msra.mxu0 %v606
      %718 = vmatprep.subr.bf16.mxu0 0
      %719 = vmatpush1.bf16.msra.mxu0 %v607
      %720 = vmatprep.subr.bf16.mxu0 0
      %721 = vmatpush1.bf16.msra.mxu0 %v608
      %722 = vmatprep.subr.bf16.mxu0 0
      %723 = vmatpush1.bf16.msra.mxu0 %v609
      %724 = vmatprep.subr.bf16.mxu0 0
      %725 = vmatpush1.bf16.msra.mxu0 %v610
      %726 = vmatprep.subr.bf16.mxu0 0
      %727 = vmatpush1.bf16.msra.mxu0 %v611
      %728 = vmatprep.subr.bf16.mxu0 0
      %729 = vmatpush1.bf16.msra.mxu0 %v612
      %730 = vmatprep.mubr.bf16.mxu0 %v431
      %731 = vmatmul.mubr.bf16.gmra.mrb[0].mxu0 %v430
      %v732 = vpop.f32.mrb[0].mxu0
      %v733 = vadd.f32 %v692, %v732
      %v734 = vpop.f32.mrb[0].mxu0
      %v735 = vpop.f32.mrb[0].mxu0
      %v736 = vadd.f32 %v695, %v735
      %v737 = vpop.f32.mrb[0].mxu0
      %738 = vdwg.mxu0
      %739 = vmatprep.subr.bf16.mxu0 0
      %740 = vmatpush1.bf16.msra.mxu0 %v613
      %741 = vmatprep.subr.bf16.mxu0 0
      %742 = vmatpush1.bf16.msra.mxu0 %v614
      %743 = vmatprep.subr.bf16.mxu0 0
      %744 = vmatpush1.bf16.msra.mxu0 %v615
      %745 = vmatprep.subr.bf16.mxu0 0
      %746 = vmatpush1.bf16.msra.mxu0 %v616
      %747 = vmatprep.subr.bf16.mxu0 0
      %748 = vmatpush1.bf16.msra.mxu0 0
      %749 = vmatprep.subr.bf16.mxu0 0
      %750 = vmatpush1.bf16.msra.mxu0 0
      %751 = vmatprep.subr.bf16.mxu0 0
      %752 = vmatpush1.bf16.msra.mxu0 0
      %753 = vmatprep.subr.bf16.mxu0 0
      %754 = vmatpush1.bf16.msra.mxu0 0
      %755 = vmatprep.subr.bf16.mxu0 0
      %756 = vmatpush1.bf16.msra.mxu0 0
      %757 = vmatprep.subr.bf16.mxu0 0
      %758 = vmatpush1.bf16.msra.mxu0 0
      %759 = vmatprep.subr.bf16.mxu0 0
      %760 = vmatpush1.bf16.msra.mxu0 0
      %761 = vmatprep.subr.bf16.mxu0 0
      %762 = vmatpush1.bf16.msra.mxu0 0
      %763 = vmatprep.subr.bf16.mxu0 0
      %764 = vmatpush1.bf16.msra.mxu0 0
      %765 = vmatprep.subr.bf16.mxu0 0
      %766 = vmatpush1.bf16.msra.mxu0 0
      %767 = vmatprep.subr.bf16.mxu0 0
      %768 = vmatpush1.bf16.msra.mxu0 0
      %769 = vmatprep.subr.bf16.mxu0 0
      %770 = vmatpush1.bf16.msra.mxu0 0
      %771 = vmatprep.mubr.bf16.mxu0 0
      %772 = vmatmul.mubr.bf16.gmra.mrb[0].mxu0 %v655
      %v773 = vpop.f32.mrb[0].mxu0
      %v774 = vadd.f32 %v733, %v773
      %v775 = vpop.f32.mrb[0].mxu0
      %v776 = vpop.f32.mrb[0].mxu0
      %v777 = vadd.f32 %v736, %v776
      %v778 = vpop.f32.mrb[0].mxu0
      %779 = vdwg.mxu0
      %v780 = vsel %vm653, %v774, 0.0
      %v781 = vsel %vm653, %v777, 0.0
      %v782 = vadd.f32 %v780, %v781
      %v783 = vrot.slane %v782, 4
      %v784 = vadd.f32 %v782, %v783
      %v785 = vrot.slane %v784, 2
      %v786 = vadd.f32 %v784, %v785
      %v787 = vrot.slane %v786, 1
      %v788 = vadd.f32 %v786, %v787
      %v789 = vrcp.pop 16.0
      %v790 = vmul.f32 %v788, %v789
      %v791 = vld [vmem:[%s4] sm:$0xff]
      %v792 = vld [vmem:[%s4 + $0x8] sm:$0xff]
      %v793 = vld [vmem:[%s4 + $0x10] sm:$0xff]
      %v794 = vld [vmem:[%s4 + $0x18] sm:$0xff]
      %v795 = vld [vmem:[%s4 + $0x20] sm:$0xff]
      %v796 = vld [vmem:[%s4 + $0x28] sm:$0xff]
      %v797 = vld [vmem:[%s4 + $0x30] sm:$0xff]
      %v798 = vld [vmem:[%s4 + $0x38] sm:$0xff]
      %v800 = vsel %vm653, %v790, 0
      %802 = vmatprep.subr.mxu0 0.0
      %803 = vmatpush1.msra.mxu0 %v791
      %804 = vmatprep.subr.mxu0 0.0
      %805 = vmatpush1.msra.mxu0 %v792
      %806 = vmatprep.subr.mxu0 0.0
      %807 = vmatpush1.msra.mxu0 %v793
      %808 = vmatprep.subr.mxu0 0.0
      %809 = vmatpush1.msra.mxu0 %v794
      %810 = vmatprep.subr.mxu0 0.0
      %811 = vmatpush1.msra.mxu0 %v795
      %812 = vmatprep.subr.mxu0 0.0
      %813 = vmatpush1.msra.mxu0 %v796
      %814 = vmatprep.subr.mxu0 0.0
      %815 = vmatpush1.msra.mxu0 %v797
      %816 = vmatprep.subr.mxu0 0.0
      %817 = vmatpush1.msra.mxu0 %v798
      %818 = vmatprep.subr.mxu0 0.0
      %819 = vmatpush1.msra.mxu0 0.0
      %820 = vmatprep.subr.mxu0 0.0
      %821 = vmatpush1.msra.mxu0 0.0
      %822 = vmatprep.subr.mxu0 0.0
      %823 = vmatpush1.msra.mxu0 0.0
      %824 = vmatprep.subr.mxu0 0.0
      %825 = vmatpush1.msra.mxu0 0.0
      %826 = vmatprep.subr.mxu0 0.0
      %827 = vmatpush1.msra.mxu0 0.0
      %828 = vmatprep.subr.mxu0 0.0
      %829 = vmatpush1.msra.mxu0 0.0
      %830 = vmatprep.subr.mxu0 0.0
      %831 = vmatpush1.msra.mxu0 0.0
      %832 = vmatprep.subr.mxu0 0.0
      %833 = vmatpush1.msra.mxu0 0.0
      %834 = vmatprep.subr.mxu0 0.0
      %835 = vmatpush1.msra.mxu0 0.0
      %836 = vmatprep.subr.mxu0 0.0
      %837 = vmatpush1.msra.mxu0 0.0
      %838 = vmatprep.subr.mxu0 0.0
      %839 = vmatpush1.msra.mxu0 0.0
      %840 = vmatprep.subr.mxu0 0.0
      %841 = vmatpush1.msra.mxu0 0.0
      %842 = vmatprep.subr.mxu0 0.0
      %843 = vmatpush1.msra.mxu0 0.0
      %844 = vmatprep.subr.mxu0 0.0
      %845 = vmatpush1.msra.mxu0 0.0
      %846 = vmatprep.subr.mxu0 0.0
      %847 = vmatpush1.msra.mxu0 0.0
      %848 = vmatprep.subr.mxu0 0.0
      %849 = vmatpush1.msra.mxu0 0.0
      %850 = vmatprep.subr.mxu0 0.0
      %851 = vmatpush1.msra.mxu0 0.0
      %852 = vmatprep.subr.mxu0 0.0
      %853 = vmatpush1.msra.mxu0 0.0
      %854 = vmatprep.subr.mxu0 0.0
      %855 = vmatpush1.msra.mxu0 0.0
      %856 = vmatprep.subr.mxu0 0.0
      %857 = vmatpush1.msra.mxu0 0.0
      %858 = vmatprep.subr.mxu0 0.0
      %859 = vmatpush1.msra.mxu0 0.0
      %860 = vmatprep.subr.mxu0 0.0
      %861 = vmatpush1.msra.mxu0 0.0
      %862 = vmatprep.subr.mxu0 0.0
      %863 = vmatpush1.msra.mxu0 0.0
      %864 = vmatprep.subr.mxu0 0.0
      %865 = vmatpush1.msra.mxu0 0.0
      %866 = vmatprep.mubr.f32.mxu0 0.0
      %867 = vmatmul.mubr.f32.gmra.mrb[0].mxu0 %v800
      %v868 = vpop.f32.mrb[0].mxu0
      %v869 = vadd.f32 0.0, %v868
      %v870 = vpop.f32.mrb[0].mxu0
      %871 = vdwg.mxu0
      %v872 = vld [vmem:[%s6] sm:$0x1]
      %vm873 = vcmp.ge.f32.partialorder %v869, 0.0
      %v874 = vmul.f32 %v872, %v869
      %v875 = vsel %vm873, %v869, %v874
      %v876 = vld [vmem:[%s5] sm:$0xff]
      %v877 = vld [vmem:[%s5 + $0x8] sm:$0xff]
      %vm878 = vcmask 130048
      %v880 = vsel %vm878, %v875, 0
      %882 = vmatprep.subr.mxu0 0.0
      %883 = vmatpush1.msra.mxu0 %v876
      %884 = vmatprep.subr.mxu0 0.0
      %885 = vmatpush1.msra.mxu0 %v877
      %886 = vmatprep.subr.mxu0 0.0
      %887 = vmatpush1.msra.mxu0 0.0
      %888 = vmatprep.subr.mxu0 0.0
      %889 = vmatpush1.msra.mxu0 0.0
      %890 = vmatprep.subr.mxu0 0.0
      %891 = vmatpush1.msra.mxu0 0.0
      %892 = vmatprep.subr.mxu0 0.0
      %893 = vmatpush1.msra.mxu0 0.0
      %894 = vmatprep.subr.mxu0 0.0
      %895 = vmatpush1.msra.mxu0 0.0
      %896 = vmatprep.subr.mxu0 0.0
      %897 = vmatpush1.msra.mxu0 0.0
      %898 = vmatprep.subr.mxu0 0.0
      %899 = vmatpush1.msra.mxu0 0.0
      %900 = vmatprep.subr.mxu0 0.0
      %901 = vmatpush1.msra.mxu0 0.0
      %902 = vmatprep.subr.mxu0 0.0
      %903 = vmatpush1.msra.mxu0 0.0
      %904 = vmatprep.subr.mxu0 0.0
      %905 = vmatpush1.msra.mxu0 0.0
      %906 = vmatprep.subr.mxu0 0.0
      %907 = vmatpush1.msra.mxu0 0.0
      %908 = vmatprep.subr.mxu0 0.0
      %909 = vmatpush1.msra.mxu0 0.0
      %910 = vmatprep.subr.mxu0 0.0
      %911 = vmatpush1.msra.mxu0 0.0
      %912 = vmatprep.subr.mxu0 0.0
      %913 = vmatpush1.msra.mxu0 0.0
      %914 = vmatprep.subr.mxu0 0.0
      %915 = vmatpush1.msra.mxu0 0.0
      %916 = vmatprep.subr.mxu0 0.0
      %917 = vmatpush1.msra.mxu0 0.0
      %918 = vmatprep.subr.mxu0 0.0
      %919 = vmatpush1.msra.mxu0 0.0
      %920 = vmatprep.subr.mxu0 0.0
      %921 = vmatpush1.msra.mxu0 0.0
      %922 = vmatprep.subr.mxu0 0.0
      %923 = vmatpush1.msra.mxu0 0.0
      %924 = vmatprep.subr.mxu0 0.0
      %925 = vmatpush1.msra.mxu0 0.0
      %926 = vmatprep.subr.mxu0 0.0
      %927 = vmatpush1.msra.mxu0 0.0
      %928 = vmatprep.subr.mxu0 0.0
      %929 = vmatpush1.msra.mxu0 0.0
      %930 = vmatprep.subr.mxu0 0.0
      %931 = vmatpush1.msra.mxu0 0.0
      %932 = vmatprep.subr.mxu0 0.0
      %933 = vmatpush1.msra.mxu0 0.0
      %934 = vmatprep.subr.mxu0 0.0
      %935 = vmatpush1.msra.mxu0 0.0
      %936 = vmatprep.subr.mxu0 0.0
      %937 = vmatpush1.msra.mxu0 0.0
      %938 = vmatprep.subr.mxu0 0.0
      %939 = vmatpush1.msra.mxu0 0.0
      %940 = vmatprep.subr.mxu0 0.0
      %941 = vmatpush1.msra.mxu0 0.0
      %942 = vmatprep.subr.mxu0 0.0
      %943 = vmatpush1.msra.mxu0 0.0
      %944 = vmatprep.subr.mxu0 0.0
      %945 = vmatpush1.msra.mxu0 0.0
      %946 = vmatprep.mubr.f32.mxu0 0.0
      %947 = vmatmul.mubr.f32.gmra.mrb[0].mxu0 %v880
      %v948 = vpop.f32.mrb[0].mxu0
      %v949 = vadd.f32 0.0, %v948
      %v950 = vpop.f32.mrb[0].mxu0
      %951 = vdwg.mxu0
      %v952 = vxor.u32 %v949, 2147483648
      %v953 = vmul.f32 %v952, 1.442695
      %v954 = vpow.pop %v953
      %v955 = vadd.f32 %v954, 1.0
      %v956 = vrcp.pop %v955
      %v957 = vmul.f32 1.0, %v956
      %v958 = vlaneseq
      %v959 = vshrl.u32 %v958, 7
      %v960 = vsub.s32 0, %v959
      %v961 = vrot.slane %v957, %v960
      %v962 = vmul.f32 %v774, %v961
      %v963 = vmul.f32 %v777, %v961
      %v964 = vld [vmem:[%s320] sm:$0xff]
      %v965 = vld [vmem:[%s320 + $0x8] sm:$0xff]
      %v966 = vadd.f32 %v962, %v964
      %v967 = vadd.f32 %v963, %v965
      %v968 = vld [vmem:[%s7] sm:$0x1]
      %vm969 = vcmp.ge.f32.partialorder %v966, 0.0
      %vm970 = vcmp.ge.f32.partialorder %v967, 0.0
      %v972 = vlaneseq
      %v973 = vshrl.u32 %v972, 7
      %v974 = vsub.s32 0, %v973
      %v975 = vrot.slane %v968, %v974
      %v977 = vmul.f32 %v975, %v966
      %v978 = vmul.f32 %v975, %v967
      %v979 = vsel %vm969, %v966, %v977
      %v980 = vsel %vm970, %v967, %v978
      %981 = vst.msk [vmem:[%s325] sm:$0xff] %vm653, %v979
      %982 = vst.msk [vmem:[%s325 + $0x8] sm:$0xff] %vm653, %v980
      %p983 = scmp.lt.s32.totalorder %s19, 1
      %s984 = scalar_select %p983, %s19, 1
      %s985 = smul.addr %s984, 2
      %s986 = smul.addr %s985, 8
      %s987 = scalar_lea.vmem %s8, %s986
      // Predicated region
      $region53: #{context_net.13} parent=51 // pred_check
        %p988 = pneg %p215
      $region54: #{context_net.13} parent=51 // pred_check_branch
        %990 = sbr.rel (%p988) target = $region56
      $region55: #{context_net.13} parent=51 // pred_region
        _
      $region56: #{context_net.13} parent=51 // pred_fallthru
        _
    $region52: #{context_net.13} parent=5 // pred_fallthru
      _
    %p991 = scmp.le.s32.totalorder 2, %s14
    // Predicated region
    $region57: #{context_net.13} parent=5 // pred_check
      %p992 = pneg %p991
    $region58: #{context_net.13} parent=5 // pred_check_branch
      %994 = sbr.rel (%p992) target = $region60
    $region59: #{context_net.13} parent=5 // pred_region
      %s995 = ssub.s32 %s14, 2
      // Predicated region
      $region61: #{context_net.13} parent=59 // pred_check
        %p996 = pneg %p221
      $region62: #{context_net.13} parent=59 // pred_check_branch
        %998 = sbr.rel (%p996) target = $region64
      $region63: #{context_net.13} parent=59 // pred_region
        %p999 = scmp.lt.s32.totalorder %s20, 1
        %s1000 = scalar_select %p999, %s20, 1
        %s1001 = smul.addr %s1000, 2
        %s1002 = smul.addr %s1001, 8
        %s1003 = scalar_lea.vmem %s8, %s1002
      $region64: #{context_net.13} parent=59 // pred_fallthru
        _
    $region60: #{context_net.13} parent=5 // pred_fallthru
      _
  $region6: #{context_net.13} parent=0 // loop_footer
    %s18 = sadd.s32 1, %s14
  $region7: #{context_net.13} parent=0 // loop_footer_branch
    %13 = sbr.rel target = $region3
  $region8: #{context_net.13} parent=0 // loop_exit
    _

// kernel: context_net.14
$region0: #{context_net.14}
  #allocation0 [shape = 'u32[]', space=smem, size = 0x4, offset = 0x4, fixed_abs, tag = 'smem constant byte address 0x4 - core index']
  #allocation1 [shape = 'u32[144,128]{1,0:T(1,128)}', space=vmem, size = 0x12000, scoped, tag = 'internal scratch']
  %s0 = inlined_call_operand.vmem [shape: bf16[16,576], index: 0, kind: input, shape index: {}]
  %s1 = inlined_call_operand.vmem [shape: bf16[576,256], index: 1, kind: input, shape index: {}]
  %s2 = inlined_call_operand.vmem [shape: f32[1,256], index: 2, kind: input, shape index: {}]
  %s3 = inlined_call_operand.vmem [shape: f32[1,256], index: 3, kind: input, shape index: {}]
  %s4 = inlined_call_operand.vmem [shape: f32[16,256], index: 4, kind: output, shape index: {}]
  %s5 = sld [smem:[#allocation0]]
  $region26: #{context_net.14} parent=0
    _
  %s7 = ssub.s32 1, %s5
  %s8 = scalar_select 0, %s7, %s5
  // Predicated region
  $region2: #{context_net.14} parent=0 // pred_check
    _
  $region3: #{context_net.14} parent=0 // pred_check_branch
    %10 = sbr.rel (0) target = $region5
  $region4: #{context_net.14} parent=0 // pred_region
    _
  $region5: #{context_net.14} parent=0 // pred_fallthru
    _
  // Predicated region
  $region6: #{context_net.14} parent=0 // pred_check
    _
  $region7: #{context_net.14} parent=0 // pred_check_branch
    %12 = sbr.rel (0) target = $region9
  $region8: #{context_net.14} parent=0 // pred_region
    _
  $region9: #{context_net.14} parent=0 // pred_fallthru
    _
  // Predicated region
  $region10: #{context_net.14} parent=0 // pred_check
    _
  $region11: #{context_net.14} parent=0 // pred_check_branch
    %14 = sbr.rel (0) target = $region13
  $region12: #{context_net.14} parent=0 // pred_region
    _
  $region13: #{context_net.14} parent=0 // pred_fallthru
    _
  // Predicated region
  $region14: #{context_net.14} parent=0 // pred_check
    _
  $region15: #{context_net.14} parent=0 // pred_check_branch
    %16 = sbr.rel (0) target = $region17
  $region16: #{context_net.14} parent=0 // pred_region
    _
  $region17: #{context_net.14} parent=0 // pred_fallthru
    _
  %v18 = vld [vmem:[%s0] sm:$0xff]
  %v19 = vld [vmem:[%s0 + $0x8] sm:$0xff]
  %v20 = vld [vmem:[%s0 + $0x10] sm:$0xf]
  %v21 = vld [vmem:[%s0 + $0x14] sm:$0xff]
  %v22 = vld [vmem:[%s0 + $0x1c] sm:$0xff]
  %v23 = vld [vmem:[%s0 + $0x24] sm:$0xf]
  %v24 = vld [vmem:[%s1] sm:$0xff]
  %v25 = vld [vmem:[%s1 + $0x8] sm:$0xff]
  %v26 = vld [vmem:[%s1 + $0x10] sm:$0xff]
  %v27 = vld [vmem:[%s1 + $0x18] sm:$0xff]
  %v28 = vld [vmem:[%s1 + $0x20] sm:$0xff]
  %v29 = vld [vmem:[%s1 + $0x28] sm:$0xff]
  %v30 = vld [vmem:[%s1 + $0x30] sm:$0xff]
  %v31 = vld [vmem:[%s1 + $0x38] sm:$0xff]
  %v32 = vld [vmem:[%s1 + $0x40] sm:$0xff]
  %v33 = vld [vmem:[%s1 + $0x48] sm:$0xff]
  %v34 = vld [vmem:[%s1 + $0x50] sm:$0xff]
  %v35 = vld [vmem:[%s1 + $0x58] sm:$0xff]
  %v36 = vld [vmem:[%s1 + $0x60] sm:$0xff]
  %v37 = vld [vmem:[%s1 + $0x68] sm:$0xff]
  %v38 = vld [vmem:[%s1 + $0x70] sm:$0xff]
  %v39 = vld [vmem:[%s1 + $0x78] sm:$0xff]
  %v40 = vld [vmem:[%s1 + $0x80] sm:$0xff]
  %v41 = vld [vmem:[%s1 + $0x88] sm:$0xff]
  %v42 = vld [vmem:[%s1 + $0x90] sm:$0xff]
  %v43 = vld [vmem:[%s1 + $0x98] sm:$0xff]
  %v44 = vld [vmem:[%s1 + $0xa0] sm:$0xff]
  %v45 = vld [vmem:[%s1 + $0xa8] sm:$0xff]
  %v46 = vld [vmem:[%s1 + $0xb0] sm:$0xff]
  %v47 = vld [vmem:[%s1 + $0xb8] sm:$0xff]
  %v48 = vld [vmem:[%s1 + $0xc0] sm:$0xff]
  %v49 = vld [vmem:[%s1 + $0xc8] sm:$0xff]
  %v50 = vld [vmem:[%s1 + $0xd0] sm:$0xff]
  %v51 = vld [vmem:[%s1 + $0xd8] sm:$0xff]
  %v52 = vld [vmem:[%s1 + $0xe0] sm:$0xff]
  %v53 = vld [vmem:[%s1 + $0xe8] sm:$0xff]
  %v54 = vld [vmem:[%s1 + $0xf0] sm:$0xff]
  %v55 = vld [vmem:[%s1 + $0xf8] sm:$0xff]
  %v56 = vld [vmem:[%s1 + $0x100] sm:$0xff]
  %v57 = vld [vmem:[%s1 + $0x108] sm:$0xff]
  %v58 = vld [vmem:[%s1 + $0x110] sm:$0xff]
  %v59 = vld [vmem:[%s1 + $0x118] sm:$0xff]
  %v60 = vld [vmem:[%s1 + $0x120] sm:$0xff]
  %v61 = vld [vmem:[%s1 + $0x128] sm:$0xff]
  %v62 = vld [vmem:[%s1 + $0x130] sm:$0xff]
  %v63 = vld [vmem:[%s1 + $0x138] sm:$0xff]
  %v64 = vld [vmem:[%s1 + $0x140] sm:$0xff]
  %v65 = vld [vmem:[%s1 + $0x148] sm:$0xff]
  %v66 = vld [vmem:[%s1 + $0x150] sm:$0xff]
  %v67 = vld [vmem:[%s1 + $0x158] sm:$0xff]
  %v68 = vld [vmem:[%s1 + $0x160] sm:$0xff]
  %v69 = vld [vmem:[%s1 + $0x168] sm:$0xff]
  %v70 = vld [vmem:[%s1 + $0x170] sm:$0xff]
  %v71 = vld [vmem:[%s1 + $0x178] sm:$0xff]
  %v72 = vld [vmem:[%s1 + $0x180] sm:$0xff]
  %v73 = vld [vmem:[%s1 + $0x188] sm:$0xff]
  %v74 = vld [vmem:[%s1 + $0x190] sm:$0xff]
  %v75 = vld [vmem:[%s1 + $0x198] sm:$0xff]
  %v76 = vld [vmem:[%s1 + $0x1a0] sm:$0xff]
  %v77 = vld [vmem:[%s1 + $0x1a8] sm:$0xff]
  %v78 = vld [vmem:[%s1 + $0x1b0] sm:$0xff]
  %v79 = vld [vmem:[%s1 + $0x1b8] sm:$0xff]
  %v80 = vld [vmem:[%s1 + $0x1c0] sm:$0xff]
  %v81 = vld [vmem:[%s1 + $0x1c8] sm:$0xff]
  %v82 = vld [vmem:[%s1 + $0x1d0] sm:$0xff]
  %v83 = vld [vmem:[%s1 + $0x1d8] sm:$0xff]
  %v84 = vld [vmem:[%s1 + $0x1e0] sm:$0xff]
  %v85 = vld [vmem:[%s1 + $0x1e8] sm:$0xff]
  %v86 = vld [vmem:[%s1 + $0x1f0] sm:$0xff]
  %v87 = vld [vmem:[%s1 + $0x1f8] sm:$0xff]
  %v88 = vld [vmem:[%s1 + $0x200] sm:$0xff]
  %v89 = vld [vmem:[%s1 + $0x208] sm:$0xff]
  %v90 = vld [vmem:[%s1 + $0x210] sm:$0xff]
  %v91 = vld [vmem:[%s1 + $0x218] sm:$0xff]
  %v92 = vld [vmem:[%s1 + $0x220] sm:$0xff]
  %v93 = vld [vmem:[%s1 + $0x228] sm:$0xff]
  %v94 = vld [vmem:[%s1 + $0x230] sm:$0xff]
  %v95 = vld [vmem:[%s1 + $0x238] sm:$0xff]
  %v96 = vld [vmem:[%s2] sm:$0x3]
  %v98 = vlaneseq
  %v99 = vshrl.u32 %v98, 7
  %v100 = vsub.s32 0, %v99
  %v101 = vrot.slane %v96, %v100
  %v102 = vlaneseq
  %v103 = vshrl.u32 %v102, 7
  %v104 = vsub.s32 1, %v103
  %v105 = vrot.slane %v96, %v104
  %v114 = vunpack.c.l.b16 %v18
  %v115 = vunpack.c.h.b16 %v18
  %v116 = vunpack.c.l.b16 %v19
  %v117 = vunpack.c.h.b16 %v19
  %v118 = vunpack.c.l.b16 %v20
  %v119 = vunpack.c.l.b16 %v21
  %v120 = vunpack.c.h.b16 %v21
  %v121 = vunpack.c.l.b16 %v22
  %v122 = vunpack.c.h.b16 %v22
  %v123 = vunpack.c.l.b16 %v23
  %v124 = vpack.c.b16 %v119, %v114
  %v125 = vpack.c.b16 %v120, %v115
  %v126 = vpack.c.b16 %v121, %v116
  %v127 = vpack.c.b16 %v122, %v117
  %v128 = vpack.c.b16 %v123, %v118
  %v205 = vunpack.c.l.b16 %v24
  %v206 = vunpack.c.h.b16 %v24
  %v207 = vunpack.c.l.b16 %v25
  %v208 = vunpack.c.h.b16 %v25
  %v209 = vunpack.c.l.b16 %v26
  %v210 = vunpack.c.h.b16 %v26
  %v211 = vunpack.c.l.b16 %v27
  %v212 = vunpack.c.h.b16 %v27
  %v213 = vunpack.c.l.b16 %v28
  %v214 = vunpack.c.h.b16 %v28
  %v215 = vunpack.c.l.b16 %v29
  %v216 = vunpack.c.h.b16 %v29
  %v217 = vunpack.c.l.b16 %v30
  %v218 = vunpack.c.h.b16 %v30
  %v219 = vunpack.c.l.b16 %v31
  %v220 = vunpack.c.h.b16 %v31
  %v221 = vunpack.c.l.b16 %v32
  %v222 = vunpack.c.h.b16 %v32
  %v223 = vunpack.c.l.b16 %v33
  %v224 = vunpack.c.h.b16 %v33
  %v225 = vunpack.c.l.b16 %v34
  %v226 = vunpack.c.h.b16 %v34
  %v227 = vunpack.c.l.b16 %v35
  %v228 = vunpack.c.h.b16 %v35
  %v229 = vunpack.c.l.b16 %v36
  %v230 = vunpack.c.h.b16 %v36
  %v231 = vunpack.c.l.b16 %v37
  %v232 = vunpack.c.h.b16 %v37
  %v233 = vunpack.c.l.b16 %v38
  %v234 = vunpack.c.h.b16 %v38
  %v235 = vunpack.c.l.b16 %v39
  %v236 = vunpack.c.h.b16 %v39
  %v237 = vunpack.c.l.b16 %v40
  %v238 = vunpack.c.h.b16 %v40
  %v239 = vunpack.c.l.b16 %v41
  %v240 = vunpack.c.h.b16 %v41
  %v241 = vunpack.c.l.b16 %v42
  %v242 = vunpack.c.h.b16 %v42
  %v243 = vunpack.c.l.b16 %v43
  %v244 = vunpack.c.h.b16 %v43
  %v245 = vunpack.c.l.b16 %v44
  %v246 = vunpack.c.h.b16 %v44
  %v247 = vunpack.c.l.b16 %v45
  %v248 = vunpack.c.h.b16 %v45
  %v249 = vunpack.c.l.b16 %v46
  %v250 = vunpack.c.h.b16 %v46
  %v251 = vunpack.c.l.b16 %v47
  %v252 = vunpack.c.h.b16 %v47
  %v253 = vunpack.c.l.b16 %v48
  %v254 = vunpack.c.h.b16 %v48
  %v255 = vunpack.c.l.b16 %v49
  %v256 = vunpack.c.h.b16 %v49
  %v257 = vunpack.c.l.b16 %v50
  %v258 = vunpack.c.h.b16 %v50
  %v259 = vunpack.c.l.b16 %v51
  %v260 = vunpack.c.h.b16 %v51
  %v261 = vunpack.c.l.b16 %v52
  %v262 = vunpack.c.h.b16 %v52
  %v263 = vunpack.c.l.b16 %v53
  %v264 = vunpack.c.h.b16 %v53
  %v265 = vunpack.c.l.b16 %v54
  %v266 = vunpack.c.h.b16 %v54
  %v267 = vunpack.c.l.b16 %v55
  %v268 = vunpack.c.h.b16 %v55
  %v269 = vunpack.c.l.b16 %v56
  %v270 = vunpack.c.h.b16 %v56
  %v271 = vunpack.c.l.b16 %v57
  %v272 = vunpack.c.h.b16 %v57
  %v273 = vunpack.c.l.b16 %v58
  %v274 = vunpack.c.h.b16 %v58
  %v275 = vunpack.c.l.b16 %v59
  %v276 = vunpack.c.h.b16 %v59
  %v277 = vunpack.c.l.b16 %v60
  %v278 = vunpack.c.h.b16 %v60
  %v279 = vunpack.c.l.b16 %v61
  %v280 = vunpack.c.h.b16 %v61
  %v281 = vunpack.c.l.b16 %v62
  %v282 = vunpack.c.h.b16 %v62
  %v283 = vunpack.c.l.b16 %v63
  %v284 = vunpack.c.h.b16 %v63
  %v285 = vunpack.c.l.b16 %v64
  %v286 = vunpack.c.h.b16 %v64
  %v287 = vunpack.c.l.b16 %v65
  %v288 = vunpack.c.h.b16 %v65
  %v289 = vunpack.c.l.b16 %v66
  %v290 = vunpack.c.h.b16 %v66
  %v291 = vunpack.c.l.b16 %v67
  %v292 = vunpack.c.h.b16 %v67
  %v293 = vunpack.c.l.b16 %v68
  %v294 = vunpack.c.h.b16 %v68
  %v295 = vunpack.c.l.b16 %v69
  %v296 = vunpack.c.h.b16 %v69
  %v297 = vunpack.c.l.b16 %v70
  %v298 = vunpack.c.h.b16 %v70
  %v299 = vunpack.c.l.b16 %v71
  %v300 = vunpack.c.h.b16 %v71
  %v301 = vunpack.c.l.b16 %v72
  %v302 = vunpack.c.h.b16 %v72
  %v303 = vunpack.c.l.b16 %v73
  %v304 = vunpack.c.h.b16 %v73
  %v305 = vunpack.c.l.b16 %v74
  %v306 = vunpack.c.h.b16 %v74
  %v307 = vunpack.c.l.b16 %v75
  %v308 = vunpack.c.h.b16 %v75
  %v309 = vunpack.c.l.b16 %v76
  %v310 = vunpack.c.h.b16 %v76
  %v311 = vunpack.c.l.b16 %v77
  %v312 = vunpack.c.h.b16 %v77
  %v313 = vunpack.c.l.b16 %v78
  %v314 = vunpack.c.h.b16 %v78
  %v315 = vunpack.c.l.b16 %v79
  %v316 = vunpack.c.h.b16 %v79
  %v317 = vunpack.c.l.b16 %v80
  %v318 = vunpack.c.h.b16 %v80
  %v319 = vunpack.c.l.b16 %v81
  %v320 = vunpack.c.h.b16 %v81
  %v321 = vunpack.c.l.b16 %v82
  %v322 = vunpack.c.h.b16 %v82
  %v323 = vunpack.c.l.b16 %v83
  %v324 = vunpack.c.h.b16 %v83
  %v325 = vunpack.c.l.b16 %v84
  %v326 = vunpack.c.h.b16 %v84
  %v327 = vunpack.c.l.b16 %v85
  %v328 = vunpack.c.h.b16 %v85
  %v329 = vunpack.c.l.b16 %v86
  %v330 = vunpack.c.h.b16 %v86
  %v331 = vunpack.c.l.b16 %v87
  %v332 = vunpack.c.h.b16 %v87
  %v333 = vunpack.c.l.b16 %v88
  %v334 = vunpack.c.h.b16 %v88
  %v335 = vunpack.c.l.b16 %v89
  %v336 = vunpack.c.h.b16 %v89
  %v337 = vunpack.c.l.b16 %v90
  %v338 = vunpack.c.h.b16 %v90
  %v339 = vunpack.c.l.b16 %v91
  %v340 = vunpack.c.h.b16 %v91
  %v341 = vunpack.c.l.b16 %v92
  %v342 = vunpack.c.h.b16 %v92
  %v343 = vunpack.c.l.b16 %v93
  %v344 = vunpack.c.h.b16 %v93
  %v345 = vunpack.c.l.b16 %v94
  %v346 = vunpack.c.h.b16 %v94
  %v347 = vunpack.c.l.b16 %v95
  %v348 = vunpack.c.h.b16 %v95
  %v349 = vpack.c.b16 %v207, %v205
  %v350 = vpack.c.b16 %v208, %v206
  %v351 = vpack.c.b16 %v211, %v209
  %v352 = vpack.c.b16 %v212, %v210
  %v353 = vpack.c.b16 %v215, %v213
  %v354 = vpack.c.b16 %v216, %v214
  %v355 = vpack.c.b16 %v219, %v217
  %v356 = vpack.c.b16 %v220, %v218
  %v357 = vpack.c.b16 %v223, %v221
  %v358 = vpack.c.b16 %v224, %v222
  %v359 = vpack.c.b16 %v227, %v225
  %v360 = vpack.c.b16 %v228, %v226
  %v361 = vpack.c.b16 %v231, %v229
  %v362 = vpack.c.b16 %v232, %v230
  %v363 = vpack.c.b16 %v235, %v233
  %v364 = vpack.c.b16 %v236, %v234
  %v365 = vpack.c.b16 %v239, %v237
  %v366 = vpack.c.b16 %v240, %v238
  %v367 = vpack.c.b16 %v243, %v241
  %v368 = vpack.c.b16 %v244, %v242
  %v369 = vpack.c.b16 %v247, %v245
  %v370 = vpack.c.b16 %v248, %v246
  %v371 = vpack.c.b16 %v251, %v249
  %v372 = vpack.c.b16 %v252, %v250
  %v373 = vpack.c.b16 %v255, %v253
  %v374 = vpack.c.b16 %v256, %v254
  %v375 = vpack.c.b16 %v259, %v257
  %v376 = vpack.c.b16 %v260, %v258
  %v377 = vpack.c.b16 %v263, %v261
  %v378 = vpack.c.b16 %v264, %v262
  %v379 = vpack.c.b16 %v267, %v265
  %v380 = vpack.c.b16 %v268, %v266
  %v381 = vpack.c.b16 %v271, %v269
  %v382 = vpack.c.b16 %v272, %v270
  %v383 = vpack.c.b16 %v275, %v273
  %v384 = vpack.c.b16 %v276, %v274
  %v385 = vpack.c.b16 %v279, %v277
  %v386 = vpack.c.b16 %v280, %v278
  %v387 = vpack.c.b16 %v283, %v281
  %v388 = vpack.c.b16 %v284, %v282
  %v389 = vpack.c.b16 %v287, %v285
  %v390 = vpack.c.b16 %v288, %v286
  %v391 = vpack.c.b16 %v291, %v289
  %v392 = vpack.c.b16 %v292, %v290
  %v393 = vpack.c.b16 %v295, %v293
  %v394 = vpack.c.b16 %v296, %v294
  %v395 = vpack.c.b16 %v299, %v297
  %v396 = vpack.c.b16 %v300, %v298
  %v397 = vpack.c.b16 %v303, %v301
  %v398 = vpack.c.b16 %v304, %v302
  %v399 = vpack.c.b16 %v307, %v305
  %v400 = vpack.c.b16 %v308, %v306
  %v401 = vpack.c.b16 %v311, %v309
  %v402 = vpack.c.b16 %v312, %v310
  %v403 = vpack.c.b16 %v315, %v313
  %v404 = vpack.c.b16 %v316, %v314
  %v405 = vpack.c.b16 %v319, %v317
  %v406 = vpack.c.b16 %v320, %v318
  %v407 = vpack.c.b16 %v323, %v321
  %v408 = vpack.c.b16 %v324, %v322
  %v409 = vpack.c.b16 %v327, %v325
  %v410 = vpack.c.b16 %v328, %v326
  %v411 = vpack.c.b16 %v331, %v329
  %v412 = vpack.c.b16 %v332, %v330
  %v413 = vpack.c.b16 %v335, %v333
  %v414 = vpack.c.b16 %v336, %v334
  %v415 = vpack.c.b16 %v339, %v337
  %v416 = vpack.c.b16 %v340, %v338
  %v417 = vpack.c.b16 %v343, %v341
  %v418 = vpack.c.b16 %v344, %v342
  %v419 = vpack.c.b16 %v347, %v345
  %v420 = vpack.c.b16 %v348, %v346
  %vm493 = vcmask 523264
  %v495 = vsel %vm493, %v128, 0
  %497 = vmatprep.subr.bf16.mxu0 %v350
  %498 = vmatpush1.bf16.msra.mxu0 %v349
  %499 = vmatprep.subr.bf16.mxu0 %v352
  %500 = vmatpush1.bf16.msra.mxu0 %v351
  %501 = vmatprep.subr.bf16.mxu0 %v354
  %502 = vmatpush1.bf16.msra.mxu0 %v353
  %503 = vmatprep.subr.bf16.mxu0 %v356
  %504 = vmatpush1.bf16.msra.mxu0 %v355
  %505 = vmatprep.subr.bf16.mxu0 %v358
  %506 = vmatpush1.bf16.msra.mxu0 %v357
  %507 = vmatprep.subr.bf16.mxu0 %v360
  %508 = vmatpush1.bf16.msra.mxu0 %v359
  %509 = vmatprep.subr.bf16.mxu0 %v362
  %510 = vmatpush1.bf16.msra.mxu0 %v361
  %511 = vmatprep.subr.bf16.mxu0 %v364
  %512 = vmatpush1.bf16.msra.mxu0 %v363
  %513 = vmatprep.subr.bf16.mxu0 %v366
  %514 = vmatpush1.bf16.msra.mxu0 %v365
  %515 = vmatprep.subr.bf16.mxu0 %v368
  %516 = vmatpush1.bf16.msra.mxu0 %v367
  %517 = vmatprep.subr.bf16.mxu0 %v370
  %518 = vmatpush1.bf16.msra.mxu0 %v369
  %519 = vmatprep.subr.bf16.mxu0 %v372
  %520 = vmatpush1.bf16.msra.mxu0 %v371
  %521 = vmatprep.subr.bf16.mxu0 %v374
  %522 = vmatpush1.bf16.msra.mxu0 %v373
  %523 = vmatprep.subr.bf16.mxu0 %v376
  %524 = vmatpush1.bf16.msra.mxu0 %v375
  %525 = vmatprep.subr.bf16.mxu0 %v378
  %526 = vmatpush1.bf16.msra.mxu0 %v377
  %527 = vmatprep.subr.bf16.mxu0 %v380
  %528 = vmatpush1.bf16.msra.mxu0 %v379
  %529 = vmatprep.mubr.bf16.mxu0 %v125
  %530 = vmatmul.mubr.bf16.gmra.mrb[0].mxu0 %v124
  %v531 = vpop.f32.mrb[0].mxu0
  %v532 = vadd.f32 %v101, %v531
  %v533 = vpop.f32.mrb[0].mxu0
  %v534 = vadd.f32 %v105, %v533
  %v535 = vpop.f32.mrb[0].mxu0
  %v536 = vadd.f32 %v101, %v535
  %v537 = vpop.f32.mrb[0].mxu0
  %v538 = vadd.f32 %v105, %v537
  %539 = vdwg.mxu0
  %540 = vmatprep.subr.bf16.mxu0 %v382
  %541 = vmatpush1.bf16.msra.mxu0 %v381
  %542 = vmatprep.subr.bf16.mxu0 %v384
  %543 = vmatpush1.bf16.msra.mxu0 %v383
  %544 = vmatprep.subr.bf16.mxu0 %v386
  %545 = vmatpush1.bf16.msra.mxu0 %v385
  %546 = vmatprep.subr.bf16.mxu0 %v388
  %547 = vmatpush1.bf16.msra.mxu0 %v387
  %548 = vmatprep.subr.bf16.mxu0 %v390
  %549 = vmatpush1.bf16.msra.mxu0 %v389
  %550 = vmatprep.subr.bf16.mxu0 %v392
  %551 = vmatpush1.bf16.msra.mxu0 %v391
  %552 = vmatprep.subr.bf16.mxu0 %v394
  %553 = vmatpush1.bf16.msra.mxu0 %v393
  %554 = vmatprep.subr.bf16.mxu0 %v396
  %555 = vmatpush1.bf16.msra.mxu0 %v395
  %556 = vmatprep.subr.bf16.mxu0 %v398
  %557 = vmatpush1.bf16.msra.mxu0 %v397
  %558 = vmatprep.subr.bf16.mxu0 %v400
  %559 = vmatpush1.bf16.msra.mxu0 %v399
  %560 = vmatprep.subr.bf16.mxu0 %v402
  %561 = vmatpush1.bf16.msra.mxu0 %v401
  %562 = vmatprep.subr.bf16.mxu0 %v404
  %563 = vmatpush1.bf16.msra.mxu0 %v403
  %564 = vmatprep.subr.bf16.mxu0 %v406
  %565 = vmatpush1.bf16.msra.mxu0 %v405
  %566 = vmatprep.subr.bf16.mxu0 %v408
  %567 = vmatpush1.bf16.msra.mxu0 %v407
  %568 = vmatprep.subr.bf16.mxu0 %v410
  %569 = vmatpush1.bf16.msra.mxu0 %v409
  %570 = vmatprep.subr.bf16.mxu0 %v412
  %571 = vmatpush1.bf16.msra.mxu0 %v411
  %572 = vmatprep.mubr.bf16.mxu0 %v127
  %573 = vmatmul.mubr.bf16.gmra.mrb[0].mxu0 %v126
  %v574 = vpop.f32.mrb[0].mxu0
  %v575 = vadd.f32 %v532, %v574
  %v576 = vpop.f32.mrb[0].mxu0
  %v577 = vadd.f32 %v534, %v576
  %v578 = vpop.f32.mrb[0].mxu0
  %v579 = vadd.f32 %v536, %v578
  %v580 = vpop.f32.mrb[0].mxu0
  %v581 = vadd.f32 %v538, %v580
  %582 = vdwg.mxu0
  %583 = vmatprep.subr.bf16.mxu0 %v414
  %584 = vmatpush1.bf16.msra.mxu0 %v413
  %585 = vmatprep.subr.bf16.mxu0 %v416
  %586 = vmatpush1.bf16.msra.mxu0 %v415
  %587 = vmatprep.subr.bf16.mxu0 %v418
  %588 = vmatpush1.bf16.msra.mxu0 %v417
  %589 = vmatprep.subr.bf16.mxu0 %v420
  %590 = vmatpush1.bf16.msra.mxu0 %v419
  %591 = vmatprep.subr.bf16.mxu0 0
  %592 = vmatpush1.bf16.msra.mxu0 0
  %593 = vmatprep.subr.bf16.mxu0 0
  %594 = vmatpush1.bf16.msra.mxu0 0
  %595 = vmatprep.subr.bf16.mxu0 0
  %596 = vmatpush1.bf16.msra.mxu0 0
  %597 = vmatprep.subr.bf16.mxu0 0
  %598 = vmatpush1.bf16.msra.mxu0 0
  %599 = vmatprep.subr.bf16.mxu0 0
  %600 = vmatpush1.bf16.msra.mxu0 0
  %601 = vmatprep.subr.bf16.mxu0 0
  %602 = vmatpush1.bf16.msra.mxu0 0
  %603 = vmatprep.subr.bf16.mxu0 0
  %604 = vmatpush1.bf16.msra.mxu0 0
  %605 = vmatprep.subr.bf16.mxu0 0
  %606 = vmatpush1.bf16.msra.mxu0 0
  %607 = vmatprep.subr.bf16.mxu0 0
  %608 = vmatpush1.bf16.msra.mxu0 0
  %609 = vmatprep.subr.bf16.mxu0 0
  %610 = vmatpush1.bf16.msra.mxu0 0
  %611 = vmatprep.subr.bf16.mxu0 0
  %612 = vmatpush1.bf16.msra.mxu0 0
  %613 = vmatprep.subr.bf16.mxu0 0
  %614 = vmatpush1.bf16.msra.mxu0 0
  %615 = vmatprep.mubr.bf16.mxu0 0
  %616 = vmatmul.mubr.bf16.gmra.mrb[0].mxu0 %v495
  %v617 = vpop.f32.mrb[0].mxu0
  %v618 = vadd.f32 %v575, %v617
  %v619 = vpop.f32.mrb[0].mxu0
  %v620 = vadd.f32 %v577, %v619
  %v621 = vpop.f32.mrb[0].mxu0
  %v622 = vadd.f32 %v579, %v621
  %v623 = vpop.f32.mrb[0].mxu0
  %v624 = vadd.f32 %v581, %v623
  %625 = vdwg.mxu0
  %v626 = vld [vmem:[%s3] sm:$0x3]
  %vm627 = vcmp.ge.f32.partialorder %v618, 0.0
  %vm628 = vcmp.ge.f32.partialorder %v620, 0.0
  %vm629 = vcmp.ge.f32.partialorder %v622, 0.0
  %vm630 = vcmp.ge.f32.partialorder %v624, 0.0
  %v632 = vlaneseq
  %v633 = vshrl.u32 %v632, 7
  %v634 = vsub.s32 0, %v633
  %v635 = vrot.slane %v626, %v634
  %v636 = vlaneseq
  %v637 = vshrl.u32 %v636, 7
  %v638 = vsub.s32 1, %v637
  %v639 = vrot.slane %v626, %v638
  %v642 = vmul.f32 %v635, %v618
  %v643 = vmul.f32 %v639, %v620
  %v644 = vmul.f32 %v635, %v622
  %v645 = vmul.f32 %v639, %v624
  %v646 = vsel %vm627, %v618, %v642
  %v647 = vsel %vm628, %v620, %v643
  %v648 = vsel %vm629, %v622, %v644
  %v649 = vsel %vm630, %v624, %v645
  %650 = vst [vmem:[%s4] sm:$0xff] %v646
  %651 = vst [vmem:[%s4 + $0x8] sm:$0xff] %v647
  %652 = vst [vmem:[%s4 + $0x10] sm:$0xff] %v648
  %653 = vst [vmem:[%s4 + $0x18] sm:$0xff] %v649
  // Predicated region
  $region18: #{context_net.14} parent=0 // pred_check
    _
  $region19: #{context_net.14} parent=0 // pred_check_branch
    %655 = sbr.rel (0) target = $region21
  $region20: #{context_net.14} parent=0 // pred_region
    _
  $region21: #{context_net.14} parent=0 // pred_fallthru
    _
  // Predicated region
  $region22: #{context_net.14} parent=0 // pred_check
    _
  $region23: #{context_net.14} parent=0 // pred_check_branch
    %657 = sbr.rel (0) target = $region25
  $region24: #{context_net.14} parent=0 // pred_region
    _
  $region25: #{context_net.14} parent=0 // pred_fallthru
    _

// kernel: context_net.15
$region0: #{context_net.15}
  #allocation0 [shape = 'u32[]', space=smem, size = 0x4, offset = 0x4, fixed_abs, tag = 'smem constant byte address 0x4 - core index']
  #allocation1 [shape = 'u32[144,128]{1,0:T(1,128)}', space=vmem, size = 0x12000, scoped, tag = 'internal scratch']
  %s0 = inlined_call_operand.vmem [shape: bf16[2,4,1152], index: 0, kind: input, shape index: {}]
  %s1 = inlined_call_operand.vmem [shape: f32[2,4,128], index: 1, kind: input, shape index: {}]
  %s2 = inlined_call_operand.vmem [shape: bf16[1152,128], index: 2, kind: input, shape index: {}]
  %s3 = inlined_call_operand.vmem [shape: f32[1,128], index: 3, kind: input, shape index: {}]
  %s4 = inlined_call_operand.vmem [shape: f32[128,16], index: 4, kind: input, shape index: {}]
  %s5 = inlined_call_operand.vmem [shape: f32[16,128], index: 5, kind: input, shape index: {}]
  %s6 = inlined_call_operand.vmem [shape: f32[1,16], index: 6, kind: input, shape index: {}]
  %s7 = inlined_call_operand.vmem [shape: f32[1,128], index: 7, kind: input, shape index: {}]
  %s8 = inlined_call_operand.vmem [shape: f32[2,4,128], index: 8, kind: output, shape index: {}]
  %s9 = sld [smem:[#allocation0]]
  $region65: #{context_net.15} parent=0
    _
  %s11 = ssub.s32 1, %s9
  %s12 = scalar_select 0, %s11, %s9
  loop: start=0, step=1, limit=4
  $region2: #{context_net.15} parent=0 // loop_pre_header
    _
  $region3: #{context_net.15} parent=0 // loop_header
    %s14 = sphi 0, %s18
    %p15 = scmp.ge.s32.totalorder %s14, 4
    %s24 = sphi 0, %s26
    %s27 = sphi 0, %s24
    %s28 = sphi 0, %s27
    %s44 = sphi 0, %s28
    %s50 = sphi 0, %s52
    %s53 = sphi 0, %s50
    %s54 = sphi 0, %s53
    %s70 = sphi 0, %s54
    %s74 = sphi 0, %s74
    %s76 = sphi 0, %s74
    %s77 = sphi 0, %s76
    %s91 = sphi 0, %s77
    %s95 = sphi 0, %s95
    %s97 = sphi 0, %s95
    %s98 = sphi 0, %s97
    %s112 = sphi 0, %s98
    %s116 = sphi 0, %s116
    %s118 = sphi 0, %s116
    %s119 = sphi 0, %s118
    %s133 = sphi 0, %s119
    %s137 = sphi 0, %s137
    %s139 = sphi 0, %s137
    %s140 = sphi 0, %s139
    %s154 = sphi 0, %s140
    %s158 = sphi 0, %s158
    %s160 = sphi 0, %s158
    %s161 = sphi 0, %s160
    %s175 = sphi 0, %s161
    %s179 = sphi 0, %s179
    %s181 = sphi 0, %s179
    %s182 = sphi 0, %s181
    %s196 = sphi 0, %s182
    %s202 = sphi 0, %s204
    %s205 = sphi 0, %s202
    %s206 = sphi 0, %s205
    %s222 = sphi 0, %s206
  $region4: #{context_net.15} parent=0 // loop_header_branch
    %17 = sbr.rel (%p15) target = $region8
  $region5: #{context_net.15} parent=0 // loop_body
    %s19 = ssub.s32 %s14, 1
    %s20 = ssub.s32 %s14, 2
    %s21 = sadd.s32 %s14, 1
    %s22 = ssub.s32 %s14, %s21
    %p23 = scmp.eq.s32.totalorder %s22, 0
    %s25 = sadd.s32 %s24, 1
    %s26 = scalar_select %p23, %s24, %s25
    %p29 = pneg %p23
    %p30 = scmp.eq.s32.totalorder %s14, 1
    %p31 = por %p29, %p30
    %p32 = scmp.ne.s32.totalorder %s24, %s27
    %p33 = scmp.eq.s32.totalorder %s14, 0
    %p34 = por %p32, %p33
    %p35 = scmp.ne.s32.totalorder %s24, %s27
    %p36 = scmp.eq.s32.totalorder %s19, 1
    %p37 = por %p35, %p36
    %p38 = scmp.ne.s32.totalorder %s27, %s28
    %p39 = scmp.eq.s32.totalorder %s19, 0
    %p40 = por %p38, %p39
    %p41 = scmp.ne.s32.totalorder %s27, %s28
    %p42 = scmp.eq.s32.totalorder %s20, 1
    %p43 = por %p41, %p42
    %p45 = scmp.ne.s32.totalorder %s28, %s44
    %p46 = scmp.eq.s32.totalorder %s20, 0
    %p47 = por %p45, %p46
    %s48 = ssub.s32 %s14, %s21
    %p49 = scmp.eq.s32.totalorder %s48, 0
    %s51 = sadd.s32 %s50, 1
    %s52 = scalar_select %p49, %s50, %s51
    %p55 = pneg %p49
    %p56 = scmp.eq.s32.totalorder %s14, 1
    %p57 = por %p55, %p56
    %p58 = scmp.ne.s32.totalorder %s50, %s53
    %p59 = scmp.eq.s32.totalorder %s14, 0
    %p60 = por %p58, %p59
    %p61 = scmp.ne.s32.totalorder %s50, %s53
    %p62 = scmp.eq.s32.totalorder %s19, 1
    %p63 = por %p61, %p62
    %p64 = scmp.ne.s32.totalorder %s53, %s54
    %p65 = scmp.eq.s32.totalorder %s19, 0
    %p66 = por %p64, %p65
    %p67 = scmp.ne.s32.totalorder %s53, %s54
    %p68 = scmp.eq.s32.totalorder %s20, 1
    %p69 = por %p67, %p68
    %p71 = scmp.ne.s32.totalorder %s54, %s70
    %p72 = scmp.eq.s32.totalorder %s20, 0
    %p73 = por %p71, %p72
    %s75 = sadd.s32 %s74, 1
    %p78 = scmp.eq.s32.totalorder %s14, 1
    %p79 = scmp.ne.s32.totalorder %s74, %s76
    %p80 = scmp.eq.s32.totalorder %s14, 0
    %p81 = por %p79, %p80
    %p82 = scmp.ne.s32.totalorder %s74, %s76
    %p83 = scmp.eq.s32.totalorder %s19, 1
    %p84 = por %p82, %p83
    %p85 = scmp.ne.s32.totalorder %s76, %s77
    %p86 = scmp.eq.s32.totalorder %s19, 0
    %p87 = por %p85, %p86
    %p88 = scmp.ne.s32.totalorder %s76, %s77
    %p89 = scmp.eq.s32.totalorder %s20, 1
    %p90 = por %p88, %p89
    %p92 = scmp.ne.s32.totalorder %s77, %s91
    %p93 = scmp.eq.s32.totalorder %s20, 0
    %p94 = por %p92, %p93
    %s96 = sadd.s32 %s95, 1
    %p99 = scmp.eq.s32.totalorder %s14, 1
    %p100 = scmp.ne.s32.totalorder %s95, %s97
    %p101 = scmp.eq.s32.totalorder %s14, 0
    %p102 = por %p100, %p101
    %p103 = scmp.ne.s32.totalorder %s95, %s97
    %p104 = scmp.eq.s32.totalorder %s19, 1
    %p105 = por %p103, %p104
    %p106 = scmp.ne.s32.totalorder %s97, %s98
    %p107 = scmp.eq.s32.totalorder %s19, 0
    %p108 = por %p106, %p107
    %p109 = scmp.ne.s32.totalorder %s97, %s98
    %p110 = scmp.eq.s32.totalorder %s20, 1
    %p111 = por %p109, %p110
    %p113 = scmp.ne.s32.totalorder %s98, %s112
    %p114 = scmp.eq.s32.totalorder %s20, 0
    %p115 = por %p113, %p114
    %s117 = sadd.s32 %s116, 1
    %p120 = scmp.eq.s32.totalorder %s14, 1
    %p121 = scmp.ne.s32.totalorder %s116, %s118
    %p122 = scmp.eq.s32.totalorder %s14, 0
    %p123 = por %p121, %p122
    %p124 = scmp.ne.s32.totalorder %s116, %s118
    %p125 = scmp.eq.s32.totalorder %s19, 1
    %p126 = por %p124, %p125
    %p127 = scmp.ne.s32.totalorder %s118, %s119
    %p128 = scmp.eq.s32.totalorder %s19, 0
    %p129 = por %p127, %p128
    %p130 = scmp.ne.s32.totalorder %s118, %s119
    %p131 = scmp.eq.s32.totalorder %s20, 1
    %p132 = por %p130, %p131
    %p134 = scmp.ne.s32.totalorder %s119, %s133
    %p135 = scmp.eq.s32.totalorder %s20, 0
    %p136 = por %p134, %p135
    %s138 = sadd.s32 %s137, 1
    %p141 = scmp.eq.s32.totalorder %s14, 1
    %p142 = scmp.ne.s32.totalorder %s137, %s139
    %p143 = scmp.eq.s32.totalorder %s14, 0
    %p144 = por %p142, %p143
    %p145 = scmp.ne.s32.totalorder %s137, %s139
    %p146 = scmp.eq.s32.totalorder %s19, 1
    %p147 = por %p145, %p146
    %p148 = scmp.ne.s32.totalorder %s139, %s140
    %p149 = scmp.eq.s32.totalorder %s19, 0
    %p150 = por %p148, %p149
    %p151 = scmp.ne.s32.totalorder %s139, %s140
    %p152 = scmp.eq.s32.totalorder %s20, 1
    %p153 = por %p151, %p152
    %p155 = scmp.ne.s32.totalorder %s140, %s154
    %p156 = scmp.eq.s32.totalorder %s20, 0
    %p157 = por %p155, %p156
    %s159 = sadd.s32 %s158, 1
    %p162 = scmp.eq.s32.totalorder %s14, 1
    %p163 = scmp.ne.s32.totalorder %s158, %s160
    %p164 = scmp.eq.s32.totalorder %s14, 0
    %p165 = por %p163, %p164
    %p166 = scmp.ne.s32.totalorder %s158, %s160
    %p167 = scmp.eq.s32.totalorder %s19, 1
    %p168 = por %p166, %p167
    %p169 = scmp.ne.s32.totalorder %s160, %s161
    %p170 = scmp.eq.s32.totalorder %s19, 0
    %p171 = por %p169, %p170
    %p172 = scmp.ne.s32.totalorder %s160, %s161
    %p173 = scmp.eq.s32.totalorder %s20, 1
    %p174 = por %p172, %p173
    %p176 = scmp.ne.s32.totalorder %s161, %s175
    %p177 = scmp.eq.s32.totalorder %s20, 0
    %p178 = por %p176, %p177
    %s180 = sadd.s32 %s179, 1
    %p183 = scmp.eq.s32.totalorder %s14, 1
    %p184 = scmp.ne.s32.totalorder %s179, %s181
    %p185 = scmp.eq.s32.totalorder %s14, 0
    %p186 = por %p184, %p185
    %p187 = scmp.ne.s32.totalorder %s179, %s181
    %p188 = scmp.eq.s32.totalorder %s19, 1
    %p189 = por %p187, %p188
    %p190 = scmp.ne.s32.totalorder %s181, %s182
    %p191 = scmp.eq.s32.totalorder %s19, 0
    %p192 = por %p190, %p191
    %p193 = scmp.ne.s32.totalorder %s181, %s182
    %p194 = scmp.eq.s32.totalorder %s20, 1
    %p195 = por %p193, %p194
    %p197 = scmp.ne.s32.totalorder %s182, %s196
    %p198 = scmp.eq.s32.totalorder %s20, 0
    %p199 = por %p197, %p198
    %s200 = ssub.s32 %s14, %s21
    %p201 = scmp.eq.s32.totalorder %s200, 0
    %s203 = sadd.s32 %s202, 1
    %s204 = scalar_select %p201, %s202, %s203
    %p207 = pneg %p201
    %p208 = scmp.eq.s32.totalorder %s14, 1
    %p209 = por %p207, %p208
    %p210 = scmp.ne.s32.totalorder %s202, %s205
    %p211 = scmp.eq.s32.totalorder %s14, 0
    %p212 = por %p210, %p211
    %p213 = scmp.ne.s32.totalorder %s202, %s205
    %p214 = scmp.eq.s32.totalorder %s19, 1
    %p215 = por %p213, %p214
    %p216 = scmp.ne.s32.totalorder %s205, %s206
    %p217 = scmp.eq.s32.totalorder %s19, 0
    %p218 = por %p216, %p217
    %p219 = scmp.ne.s32.totalorder %s205, %s206
    %p220 = scmp.eq.s32.totalorder %s20, 1
    %p221 = por %p219, %p220
    %p223 = scmp.ne.s32.totalorder %s206, %s222
    %p224 = scmp.eq.s32.totalorder %s20, 0
    %p225 = por %p223, %p224
    %p226 = scmp.le.s32.totalorder 1, %s14
    %p227 = scmp.lt.s32.totalorder %s14, 3
    %p228 = pnand %p226, %p227
    %p229 = pneg %p228
    // Predicated region
    $region9: #{context_net.15} parent=5 // pred_check
      _
    $region10: #{context_net.15} parent=5 // pred_check_branch
      %231 = sbr.rel (%p228) target = $region12
    $region11: #{context_net.15} parent=5 // pred_region
      %s232 = ssub.s32 %s14, 1
      // Predicated region
      $region13: #{context_net.15} parent=11 // pred_check
        %p233 = pneg %p87
      $region14: #{context_net.15} parent=11 // pred_check_branch
        %235 = sbr.rel (%p233) target = $region16
      $region15: #{context_net.15} parent=11 // pred_region
        _
      $region16: #{context_net.15} parent=11 // pred_fallthru
        _
      // Predicated region
      $region17: #{context_net.15} parent=11 // pred_check
        %p236 = pneg %p108
      $region18: #{context_net.15} parent=11 // pred_check_branch
        %238 = sbr.rel (%p236) target = $region20
      $region19: #{context_net.15} parent=11 // pred_region
        _
      $region20: #{context_net.15} parent=11 // pred_fallthru
        _
      // Predicated region
      $region21: #{context_net.15} parent=11 // pred_check
        %p239 = pneg %p129
      $region22: #{context_net.15} parent=11 // pred_check_branch
        %241 = sbr.rel (%p239) target = $region24
      $region23: #{context_net.15} parent=11 // pred_region
        _
      $region24: #{context_net.15} parent=11 // pred_fallthru
        _
      // Predicated region
      $region25: #{context_net.15} parent=11 // pred_check
        %p242 = pneg %p150
      $region26: #{context_net.15} parent=11 // pred_check_branch
        %244 = sbr.rel (%p242) target = $region28
      $region27: #{context_net.15} parent=11 // pred_region
        _
      $region28: #{context_net.15} parent=11 // pred_fallthru
        _
      // Predicated region
      $region29: #{context_net.15} parent=11 // pred_check
        %p245 = pneg %p171
      $region30: #{context_net.15} parent=11 // pred_check_branch
        %247 = sbr.rel (%p245) target = $region32
      $region31: #{context_net.15} parent=11 // pred_region
        _
      $region32: #{context_net.15} parent=11 // pred_fallthru
        _
      // Predicated region
      $region33: #{context_net.15} parent=11 // pred_check
        %p248 = pneg %p192
      $region34: #{context_net.15} parent=11 // pred_check_branch
        %250 = sbr.rel (%p248) target = $region36
      $region35: #{context_net.15} parent=11 // pred_region
        _
      $region36: #{context_net.15} parent=11 // pred_fallthru
        _
    $region12: #{context_net.15} parent=5 // pred_fallthru
      _
    %p251 = scmp.lt.s32.totalorder %s14, 2
    // Predicated region
    $region37: #{context_net.15} parent=5 // pred_check
      %p252 = pneg %p251
    $region38: #{context_net.15} parent=5 // pred_check_branch
      %254 = sbr.rel (%p252) target = $region40
    $region39: #{context_net.15} parent=5 // pred_region
      // Predicated region
      $region41: #{context_net.15} parent=39 // pred_check
        %p255 = pneg %p34
      $region42: #{context_net.15} parent=39 // pred_check_branch
        %257 = sbr.rel (%p255) target = $region44
      $region43: #{context_net.15} parent=39 // pred_region
        %p258 = scmp.lt.s32.totalorder %s14, 1
        %s259 = scalar_select %p258, %s14, 1
        %s260 = smul.addr %s259, 9
        %s261 = smul.addr %s260, 2
        %s262 = scalar_lea.vmem %s0, %s261
      $region44: #{context_net.15} parent=39 // pred_fallthru
        _
      // Predicated region
      $region45: #{context_net.15} parent=39 // pred_check
        %p263 = pneg %p60
      $region46: #{context_net.15} parent=39 // pred_check_branch
        %265 = sbr.rel (%p263) target = $region48
      $region47: #{context_net.15} parent=39 // pred_region
        %p266 = scmp.lt.s32.totalorder %s14, 1
        %s267 = scalar_select %p266, %s14, 1
        %s268 = smul.addr %s267, 4
        %s269 = scalar_lea.vmem %s1, %s268
      $region48: #{context_net.15} parent=39 // pred_fallthru
        _
    $region40: #{context_net.15} parent=5 // pred_fallthru
      _
    %p270 = scmp.le.s32.totalorder 1, %s14
    %p271 = scmp.lt.s32.totalorder %s14, 3
    %p272 = pnand %p270, %p271
    %p273 = pneg %p272
    // Predicated region
    $region49: #{context_net.15} parent=5 // pred_check
      _
    $region50: #{context_net.15} parent=5 // pred_check_branch
      %275 = sbr.rel (%p272) target = $region52
    $region51: #{context_net.15} parent=5 // pred_region
      %s276 = ssub.s32 %s14, 1
      %p277 = scmp.lt.s32.totalorder %s19, 1
      %s278 = scalar_select %p277, %s19, 1
      %s279 = smul.addr %s278, 9
      %s280 = smul.addr %s279, 2
      %s281 = scalar_lea.vmem %s0, %s280
      %p282 = pneg %p40
      %p283 = pneg %p37
      %p284 = scmp.lt.s32.totalorder %s19, 1
      %s285 = scalar_select %p284, %s19, 1
      %s286 = smul.addr %s285, 4
      %s287 = scalar_lea.vmem %s1, %s286
      %p288 = pneg %p66
      %p289 = pneg %p63
      %p290 = pneg %p87
      %p291 = pneg %p84
      %p292 = pneg %p108
      %p293 = pneg %p105
      %p294 = pneg %p129
      %p295 = pneg %p126
      %p296 = pneg %p150
      %p297 = pneg %p147
      %p298 = pneg %p171
      %p299 = pneg %p168
      %p300 = pneg %p192
      %p301 = pneg %p189
      %p302 = pneg %p218
      %p303 = pneg %p215
      %p304 = scmp.lt.s32.totalorder %s19, 1
      %s305 = scalar_select %p304, %s19, 1
      %s306 = smul.addr %s305, 4
      %s307 = scalar_lea.vmem %s8, %s306
      %p308 = scmp.lt.s32.totalorder %s19, 1
      %s309 = scalar_select %p308, %s19, 1
      %s310 = smul.addr %s309, 9
      %s311 = smul.addr %s310, 2
      %s312 = scalar_lea.vmem %s0, %s311
      %p313 = scmp.lt.s32.totalorder %s19, 1
      %s314 = scalar_select %p313, %s19, 1
      %s315 = smul.addr %s314, 4
      %s316 = scalar_lea.vmem %s1, %s315
      %p317 = scmp.lt.s32.totalorder %s19, 1
      %s318 = scalar_select %p317, %s19, 1
      %s319 = smul.addr %s318, 4
      %s320 = scalar_lea.vmem %s8, %s319
      %v322 = vld [vmem:[%s312] sm:$0xff]
      %v323 = vld [vmem:[%s312 + $0x8] sm:$0xff]
      %v324 = vld [vmem:[%s312 + $0x10] sm:$0x3]
      %v325 = vld [vmem:[%s2] sm:$0xf]
      %v326 = vld [vmem:[%s2 + $0x4] sm:$0xf]
      %v327 = vld [vmem:[%s2 + $0x8] sm:$0xf]
      %v328 = vld [vmem:[%s2 + $0xc] sm:$0xf]
      %v329 = vld [vmem:[%s2 + $0x10] sm:$0xf]
      %v330 = vld [vmem:[%s2 + $0x14] sm:$0xf]
      %v331 = vld [vmem:[%s2 + $0x18] sm:$0xf]
      %v332 = vld [vmem:[%s2 + $0x1c] sm:$0xf]
      %v333 = vld [vmem:[%s2 + $0x20] sm:$0xf]
      %v334 = vld [vmem:[%s2 + $0x24] sm:$0xf]
      %v335 = vld [vmem:[%s2 + $0x28] sm:$0xf]
      %v336 = vld [vmem:[%s2 + $0x2c] sm:$0xf]
      %v337 = vld [vmem:[%s2 + $0x30] sm:$0xf]
      %v338 = vld [vmem:[%s2 + $0x34] sm:$0xf]
      %v339 = vld [vmem:[%s2 + $0x38] sm:$0xf]
      %v340 = vld [vmem:[%s2 + $0x3c] sm:$0xf]
      %v341 = vld [vmem:[%s2 + $0x40] sm:$0xf]
      %v342 = vld [vmem:[%s2 + $0x44] sm:$0xf]
      %v343 = vld [vmem:[%s2 + $0x48] sm:$0xf]
      %v344 = vld [vmem:[%s2 + $0x4c] sm:$0xf]
      %v345 = vld [vmem:[%s2 + $0x50] sm:$0xf]
      %v346 = vld [vmem:[%s2 + $0x54] sm:$0xf]
      %v347 = vld [vmem:[%s2 + $0x58] sm:$0xf]
      %v348 = vld [vmem:[%s2 + $0x5c] sm:$0xf]
      %v349 = vld [vmem:[%s2 + $0x60] sm:$0xf]
      %v350 = vld [vmem:[%s2 + $0x64] sm:$0xf]
      %v351 = vld [vmem:[%s2 + $0x68] sm:$0xf]
      %v352 = vld [vmem:[%s2 + $0x6c] sm:$0xf]
      %v353 = vld [vmem:[%s2 + $0x70] sm:$0xf]
      %v354 = vld [vmem:[%s2 + $0x74] sm:$0xf]
      %v355 = vld [vmem:[%s2 + $0x78] sm:$0xf]
      %v356 = vld [vmem:[%s2 + $0x7c] sm:$0xf]
      %v357 = vld [vmem:[%s2 + $0x80] sm:$0xf]
      %v358 = vld [vmem:[%s2 + $0x84] sm:$0xf]
      %v359 = vld [vmem:[%s2 + $0x88] sm:$0xf]
      %v360 = vld [vmem:[%s2 + $0x8c] sm:$0xf]
      %v361 = vld [vmem:[%s2 + $0x90] sm:$0xf]
      %v362 = vld [vmem:[%s2 + $0x94] sm:$0xf]
      %v363 = vld [vmem:[%s2 + $0x98] sm:$0xf]
      %v364 = vld [vmem:[%s2 + $0x9c] sm:$0xf]
      %v365 = vld [vmem:[%s2 + $0xa0] sm:$0xf]
      %v366 = vld [vmem:[%s2 + $0xa4] sm:$0xf]
      %v367 = vld [vmem:[%s2 + $0xa8] sm:$0xf]
      %v368 = vld [vmem:[%s2 + $0xac] sm:$0xf]
      %v369 = vld [vmem:[%s2 + $0xb0] sm:$0xf]
      %v370 = vld [vmem:[%s2 + $0xb4] sm:$0xf]
      %v371 = vld [vmem:[%s2 + $0xb8] sm:$0xf]
      %v372 = vld [vmem:[%s2 + $0xbc] sm:$0xf]
      %v373 = vld [vmem:[%s2 + $0xc0] sm:$0xf]
      %v374 = vld [vmem:[%s2 + $0xc4] sm:$0xf]
      %v375 = vld [vmem:[%s2 + $0xc8] sm:$0xf]
      %v376 = vld [vmem:[%s2 + $0xcc] sm:$0xf]
      %v377 = vld [vmem:[%s2 + $0xd0] sm:$0xf]
      %v378 = vld [vmem:[%s2 + $0xd4] sm:$0xf]
      %v379 = vld [vmem:[%s2 + $0xd8] sm:$0xf]
      %v380 = vld [vmem:[%s2 + $0xdc] sm:$0xf]
      %v381 = vld [vmem:[%s2 + $0xe0] sm:$0xf]
      %v382 = vld [vmem:[%s2 + $0xe4] sm:$0xf]
      %v383 = vld [vmem:[%s2 + $0xe8] sm:$0xf]
      %v384 = vld [vmem:[%s2 + $0xec] sm:$0xf]
      %v385 = vld [vmem:[%s2 + $0xf0] sm:$0xf]
      %v386 = vld [vmem:[%s2 + $0xf4] sm:$0xf]
      %v387 = vld [vmem:[%s2 + $0xf8] sm:$0xf]
      %v388 = vld [vmem:[%s2 + $0xfc] sm:$0xf]
      %v389 = vld [vmem:[%s2 + $0x100] sm:$0xf]
      %v390 = vld [vmem:[%s2 + $0x104] sm:$0xf]
      %v391 = vld [vmem:[%s2 + $0x108] sm:$0xf]
      %v392 = vld [vmem:[%s2 + $0x10c] sm:$0xf]
      %v393 = vld [vmem:[%s2 + $0x110] sm:$0xf]
      %v394 = vld [vmem:[%s2 + $0x114] sm:$0xf]
      %v395 = vld [vmem:[%s2 + $0x118] sm:$0xf]
      %v396 = vld [vmem:[%s2 + $0x11c] sm:$0xf]
      %v397 = vld [vmem:[%s2 + $0x120] sm:$0xf]
      %v398 = vld [vmem:[%s2 + $0x124] sm:$0xf]
      %v399 = vld [vmem:[%s2 + $0x128] sm:$0xf]
      %v400 = vld [vmem:[%s2 + $0x12c] sm:$0xf]
      %v401 = vld [vmem:[%s2 + $0x130] sm:$0xf]
      %v402 = vld [vmem:[%s2 + $0x134] sm:$0xf]
      %v403 = vld [vmem:[%s2 + $0x138] sm:$0xf]
      %v404 = vld [vmem:[%s2 + $0x13c] sm:$0xf]
      %v405 = vld [vmem:[%s2 + $0x140] sm:$0xf]
      %v406 = vld [vmem:[%s2 + $0x144] sm:$0xf]
      %v407 = vld [vmem:[%s2 + $0x148] sm:$0xf]
      %v408 = vld [vmem:[%s2 + $0x14c] sm:$0xf]
      %v409 = vld [vmem:[%s2 + $0x150] sm:$0xf]
      %v410 = vld [vmem:[%s2 + $0x154] sm:$0xf]
      %v411 = vld [vmem:[%s2 + $0x158] sm:$0xf]
      %v412 = vld [vmem:[%s2 + $0x15c] sm:$0xf]
      %v413 = vld [vmem:[%s2 + $0x160] sm:$0xf]
      %v414 = vld [vmem:[%s2 + $0x164] sm:$0xf]
      %v415 = vld [vmem:[%s2 + $0x168] sm:$0xf]
      %v416 = vld [vmem:[%s2 + $0x16c] sm:$0xf]
      %v417 = vld [vmem:[%s2 + $0x170] sm:$0xf]
      %v418 = vld [vmem:[%s2 + $0x174] sm:$0xf]
      %v419 = vld [vmem:[%s2 + $0x178] sm:$0xf]
      %v420 = vld [vmem:[%s2 + $0x17c] sm:$0xf]
      %v421 = vld [vmem:[%s2 + $0x180] sm:$0xf]
      %v422 = vld [vmem:[%s2 + $0x184] sm:$0xf]
      %v423 = vld [vmem:[%s2 + $0x188] sm:$0xf]
      %v424 = vld [vmem:[%s2 + $0x18c] sm:$0xf]
      %v425 = vld [vmem:[%s2 + $0x190] sm:$0xf]
      %v426 = vld [vmem:[%s2 + $0x194] sm:$0xf]
      %v427 = vld [vmem:[%s2 + $0x198] sm:$0xf]
      %v428 = vld [vmem:[%s2 + $0x19c] sm:$0xf]
      %v429 = vld [vmem:[%s2 + $0x1a0] sm:$0xf]
      %v430 = vld [vmem:[%s2 + $0x1a4] sm:$0xf]
      %v431 = vld [vmem:[%s2 + $0x1a8] sm:$0xf]
      %v432 = vld [vmem:[%s2 + $0x1ac] sm:$0xf]
      %v433 = vld [vmem:[%s2 + $0x1b0] sm:$0xf]
      %v434 = vld [vmem:[%s2 + $0x1b4] sm:$0xf]
      %v435 = vld [vmem:[%s2 + $0x1b8] sm:$0xf]
      %v436 = vld [vmem:[%s2 + $0x1bc] sm:$0xf]
      %v437 = vld [vmem:[%s2 + $0x1c0] sm:$0xf]
      %v438 = vld [vmem:[%s2 + $0x1c4] sm:$0xf]
      %v439 = vld [vmem:[%s2 + $0x1c8] sm:$0xf]
      %v440 = vld [vmem:[%s2 + $0x1cc] sm:$0xf]
      %v441 = vld [vmem:[%s2 + $0x1d0] sm:$0xf]
      %v442 = vld [vmem:[%s2 + $0x1d4] sm:$0xf]
      %v443 = vld [vmem:[%s2 + $0x1d8] sm:$0xf]
      %v444 = vld [vmem:[%s2 + $0x1dc] sm:$0xf]
      %v445 = vld [vmem:[%s2 + $0x1e0] sm:$0xf]
      %v446 = vld [vmem:[%s2 + $0x1e4] sm:$0xf]
      %v447 = vld [vmem:[%s2 + $0x1e8] sm:$0xf]
      %v448 = vld [vmem:[%s2 + $0x1ec] sm:$0xf]
      %v449 = vld [vmem:[%s2 + $0x1f0] sm:$0xf]
      %v450 = vld [vmem:[%s2 + $0x1f4] sm:$0xf]
      %v451 = vld [vmem:[%s2 + $0x1f8] sm:$0xf]
      %v452 = vld [vmem:[%s2 + $0x1fc] sm:$0xf]
      %v453 = vld [vmem:[%s2 + $0x200] sm:$0xf]
      %v454 = vld [vmem:[%s2 + $0x204] sm:$0xf]
      %v455 = vld [vmem:[%s2 + $0x208] sm:$0xf]
      %v456 = vld [vmem:[%s2 + $0x20c] sm:$0xf]
      %v457 = vld [vmem:[%s2 + $0x210] sm:$0xf]
      %v458 = vld [vmem:[%s2 + $0x214] sm:$0xf]
      %v459 = vld [vmem:[%s2 + $0x218] sm:$0xf]
      %v460 = vld [vmem:[%s2 + $0x21c] sm:$0xf]
      %v461 = vld [vmem:[%s2 + $0x220] sm:$0xf]
      %v462 = vld [vmem:[%s2 + $0x224] sm:$0xf]
      %v463 = vld [vmem:[%s2 + $0x228] sm:$0xf]
      %v464 = vld [vmem:[%s2 + $0x22c] sm:$0xf]
      %v465 = vld [vmem:[%s2 + $0x230] sm:$0xf]
      %v466 = vld [vmem:[%s2 + $0x234] sm:$0xf]
      %v467 = vld [vmem:[%s2 + $0x238] sm:$0xf]
      %v468 = vld [vmem:[%s2 + $0x23c] sm:$0xf]
      %v469 = vld [vmem:[%s3] sm:$0x1]
      %v471 = vlaneseq
      %v472 = vshrl.u32 %v471, 7
      %v473 = vsub.s32 0, %v472
      %v474 = vrot.slane %v469, %v473
      %v479 = vcombine.high %v322, %v322
      %v481 = vunpack.c.l.s4 1983009808
      %v482 = vunpack.c.0.s8 %v481
      %v483 = vlaneseq
      %v484 = vshrl.u32 %v483, 7
      %v485 = vsub.s32 %v482, %v484
      %v486 = vrot.slane %v322, %v485
      %v488 = vunpack.c.l.s4 1983009808
      %v489 = vunpack.c.0.s8 %v488
      %v490 = vlaneseq
      %v491 = vshrl.u32 %v490, 7
      %v492 = vsub.s32 %v489, %v491
      %v493 = vrot.slane %v479, %v492
      %v494 = vcombine.high %v486, %v486
      %v495 = vcombine.high %v493, %v493
      %v496 = vcombine.high %v323, %v323
      %v498 = vunpack.c.l.s4 1983009808
      %v499 = vunpack.c.0.s8 %v498
      %v500 = vlaneseq
      %v501 = vshrl.u32 %v500, 7
      %v502 = vsub.s32 %v499, %v501
      %v503 = vrot.slane %v323, %v502
      %v505 = vunpack.c.l.s4 1983009808
      %v506 = vunpack.c.0.s8 %v505
      %v507 = vlaneseq
      %v508 = vshrl.u32 %v507, 7
      %v509 = vsub.s32 %v506, %v508
      %v510 = vrot.slane %v496, %v509
      %v511 = vcombine.high %v503, %v503
      %v512 = vcombine.high %v510, %v510
      %v514 = vunpack.c.l.s4 1983009808
      %v515 = vunpack.c.0.s8 %v514
      %v516 = vlaneseq
      %v517 = vshrl.u32 %v516, 7
      %v518 = vsub.s32 %v515, %v517
      %v519 = vrot.slane %v324, %v518
      %v673 = vunpack.c.l.b16 %v325
      %v674 = vunpack.c.l.b16 %v326
      %v675 = vunpack.c.l.b16 %v327
      %v676 = vunpack.c.l.b16 %v328
      %v677 = vunpack.c.l.b16 %v329
      %v678 = vunpack.c.l.b16 %v330
      %v679 = vunpack.c.l.b16 %v331
      %v680 = vunpack.c.l.b16 %v332
      %v681 = vunpack.c.l.b16 %v333
      %v682 = vunpack.c.l.b16 %v334
      %v683 = vunpack.c.l.b16 %v335
      %v684 = vunpack.c.l.b16 %v336
      %v685 = vunpack.c.l.b16 %v337
      %v686 = vunpack.c.l.b16 %v338
      %v687 = vunpack.c.l.b16 %v339
      %v688 = vunpack.c.l.b16 %v340
      %v689 = vunpack.c.l.b16 %v341
      %v690 = vunpack.c.l.b16 %v342
      %v691 = vunpack.c.l.b16 %v343
      %v692 = vunpack.c.l.b16 %v344
      %v693 = vunpack.c.l.b16 %v345
      %v694 = vunpack.c.l.b16 %v346
      %v695 = vunpack.c.l.b16 %v347
      %v696 = vunpack.c.l.b16 %v348
      %v697 = vunpack.c.l.b16 %v349
      %v698 = vunpack.c.l.b16 %v350
      %v699 = vunpack.c.l.b16 %v351
      %v700 = vunpack.c.l.b16 %v352
      %v701 = vunpack.c.l.b16 %v353
      %v702 = vunpack.c.l.b16 %v354
      %v703 = vunpack.c.l.b16 %v355
      %v704 = vunpack.c.l.b16 %v356
      %v705 = vunpack.c.l.b16 %v357
      %v706 = vunpack.c.l.b16 %v358
      %v707 = vunpack.c.l.b16 %v359
      %v708 = vunpack.c.l.b16 %v360
      %v709 = vunpack.c.l.b16 %v361
      %v710 = vunpack.c.l.b16 %v362
      %v711 = vunpack.c.l.b16 %v363
      %v712 = vunpack.c.l.b16 %v364
      %v713 = vunpack.c.l.b16 %v365
      %v714 = vunpack.c.l.b16 %v366
      %v715 = vunpack.c.l.b16 %v367
      %v716 = vunpack.c.l.b16 %v368
      %v717 = vunpack.c.l.b16 %v369
      %v718 = vunpack.c.l.b16 %v370
      %v719 = vunpack.c.l.b16 %v371
      %v720 = vunpack.c.l.b16 %v372
      %v721 = vunpack.c.l.b16 %v373
      %v722 = vunpack.c.l.b16 %v374
      %v723 = vunpack.c.l.b16 %v375
      %v724 = vunpack.c.l.b16 %v376
      %v725 = vunpack.c.l.b16 %v377
      %v726 = vunpack.c.l.b16 %v378
      %v727 = vunpack.c.l.b16 %v379
      %v728 = vunpack.c.l.b16 %v380
      %v729 = vunpack.c.l.b16 %v381
      %v730 = vunpack.c.l.b16 %v382
      %v731 = vunpack.c.l.b16 %v383
      %v732 = vunpack.c.l.b16 %v384
      %v733 = vunpack.c.l.b16 %v385
      %v734 = vunpack.c.l.b16 %v386
      %v735 = vunpack.c.l.b16 %v387
      %v736 = vunpack.c.l.b16 %v388
      %v737 = vunpack.c.l.b16 %v389
      %v738 = vunpack.c.l.b16 %v390
      %v739 = vunpack.c.l.b16 %v391
      %v740 = vunpack.c.l.b16 %v392
      %v741 = vunpack.c.l.b16 %v393
      %v742 = vunpack.c.l.b16 %v394
      %v743 = vunpack.c.l.b16 %v395
      %v744 = vunpack.c.l.b16 %v396
      %v745 = vunpack.c.l.b16 %v397
      %v746 = vunpack.c.l.b16 %v398
      %v747 = vunpack.c.l.b16 %v399
      %v748 = vunpack.c.l.b16 %v400
      %v749 = vunpack.c.l.b16 %v401
      %v750 = vunpack.c.l.b16 %v402
      %v751 = vunpack.c.l.b16 %v403
      %v752 = vunpack.c.l.b16 %v404
      %v753 = vunpack.c.l.b16 %v405
      %v754 = vunpack.c.l.b16 %v406
      %v755 = vunpack.c.l.b16 %v407
      %v756 = vunpack.c.l.b16 %v408
      %v757 = vunpack.c.l.b16 %v409
      %v758 = vunpack.c.l.b16 %v410
      %v759 = vunpack.c.l.b16 %v411
      %v760 = vunpack.c.l.b16 %v412
      %v761 = vunpack.c.l.b16 %v413
      %v762 = vunpack.c.l.b16 %v414
      %v763 = vunpack.c.l.b16 %v415
      %v764 = vunpack.c.l.b16 %v416
      %v765 = vunpack.c.l.b16 %v417
      %v766 = vunpack.c.l.b16 %v418
      %v767 = vunpack.c.l.b16 %v419
      %v768 = vunpack.c.l.b16 %v420
      %v769 = vunpack.c.l.b16 %v421
      %v770 = vunpack.c.l.b16 %v422
      %v771 = vunpack.c.l.b16 %v423
      %v772 = vunpack.c.l.b16 %v424
      %v773 = vunpack.c.l.b16 %v425
      %v774 = vunpack.c.l.b16 %v426
      %v775 = vunpack.c.l.b16 %v427
      %v776 = vunpack.c.l.b16 %v428
      %v777 = vunpack.c.l.b16 %v429
      %v778 = vunpack.c.l.b16 %v430
      %v779 = vunpack.c.l.b16 %v431
      %v780 = vunpack.c.l.b16 %v432
      %v781 = vunpack.c.l.b16 %v433
      %v782 = vunpack.c.l.b16 %v434
      %v783 = vunpack.c.l.b16 %v435
      %v784 = vunpack.c.l.b16 %v436
      %v785 = vunpack.c.l.b16 %v437
      %v786 = vunpack.c.l.b16 %v438
      %v787 = vunpack.c.l.b16 %v439
      %v788 = vunpack.c.l.b16 %v440
      %v789 = vunpack.c.l.b16 %v441
      %v790 = vunpack.c.l.b16 %v442
      %v791 = vunpack.c.l.b16 %v443
      %v792 = vunpack.c.l.b16 %v444
      %v793 = vunpack.c.l.b16 %v445
      %v794 = vunpack.c.l.b16 %v446
      %v795 = vunpack.c.l.b16 %v447
      %v796 = vunpack.c.l.b16 %v448
      %v797 = vunpack.c.l.b16 %v449
      %v798 = vunpack.c.l.b16 %v450
      %v799 = vunpack.c.l.b16 %v451
      %v800 = vunpack.c.l.b16 %v452
      %v801 = vunpack.c.l.b16 %v453
      %v802 = vunpack.c.l.b16 %v454
      %v803 = vunpack.c.l.b16 %v455
      %v804 = vunpack.c.l.b16 %v456
      %v805 = vunpack.c.l.b16 %v457
      %v806 = vunpack.c.l.b16 %v458
      %v807 = vunpack.c.l.b16 %v459
      %v808 = vunpack.c.l.b16 %v460
      %v809 = vunpack.c.l.b16 %v461
      %v810 = vunpack.c.l.b16 %v462
      %v811 = vunpack.c.l.b16 %v463
      %v812 = vunpack.c.l.b16 %v464
      %v813 = vunpack.c.l.b16 %v465
      %v814 = vunpack.c.l.b16 %v466
      %v815 = vunpack.c.l.b16 %v467
      %v816 = vunpack.c.l.b16 %v468
      %v817 = vpack.c.b16 %v674, %v673
      %v818 = vpack.c.b16 %v676, %v675
      %v819 = vpack.c.b16 %v678, %v677
      %v820 = vpack.c.b16 %v680, %v679
      %v821 = vpack.c.b16 %v682, %v681
      %v822 = vpack.c.b16 %v684, %v683
      %v823 = vpack.c.b16 %v686, %v685
      %v824 = vpack.c.b16 %v688, %v687
      %v825 = vpack.c.b16 %v690, %v689
      %v826 = vpack.c.b16 %v692, %v691
      %v827 = vpack.c.b16 %v694, %v693
      %v828 = vpack.c.b16 %v696, %v695
      %v829 = vpack.c.b16 %v698, %v697
      %v830 = vpack.c.b16 %v700, %v699
      %v831 = vpack.c.b16 %v702, %v701
      %v832 = vpack.c.b16 %v704, %v703
      %v833 = vpack.c.b16 %v706, %v705
      %v834 = vpack.c.b16 %v708, %v707
      %v835 = vpack.c.b16 %v710, %v709
      %v836 = vpack.c.b16 %v712, %v711
      %v837 = vpack.c.b16 %v714, %v713
      %v838 = vpack.c.b16 %v716, %v715
      %v839 = vpack.c.b16 %v718, %v717
      %v840 = vpack.c.b16 %v720, %v719
      %v841 = vpack.c.b16 %v722, %v721
      %v842 = vpack.c.b16 %v724, %v723
      %v843 = vpack.c.b16 %v726, %v725
      %v844 = vpack.c.b16 %v728, %v727
      %v845 = vpack.c.b16 %v730, %v729
      %v846 = vpack.c.b16 %v732, %v731
      %v847 = vpack.c.b16 %v734, %v733
      %v848 = vpack.c.b16 %v736, %v735
      %v849 = vpack.c.b16 %v738, %v737
      %v850 = vpack.c.b16 %v740, %v739
      %v851 = vpack.c.b16 %v742, %v741
      %v852 = vpack.c.b16 %v744, %v743
      %v853 = vpack.c.b16 %v746, %v745
      %v854 = vpack.c.b16 %v748, %v747
      %v855 = vpack.c.b16 %v750, %v749
      %v856 = vpack.c.b16 %v752, %v751
      %v857 = vpack.c.b16 %v754, %v753
      %v858 = vpack.c.b16 %v756, %v755
      %v859 = vpack.c.b16 %v758, %v757
      %v860 = vpack.c.b16 %v760, %v759
      %v861 = vpack.c.b16 %v762, %v761
      %v862 = vpack.c.b16 %v764, %v763
      %v863 = vpack.c.b16 %v766, %v765
      %v864 = vpack.c.b16 %v768, %v767
      %v865 = vpack.c.b16 %v770, %v769
      %v866 = vpack.c.b16 %v772, %v771
      %v867 = vpack.c.b16 %v774, %v773
      %v868 = vpack.c.b16 %v776, %v775
      %v869 = vpack.c.b16 %v778, %v777
      %v870 = vpack.c.b16 %v780, %v779
      %v871 = vpack.c.b16 %v782, %v781
      %v872 = vpack.c.b16 %v784, %v783
      %v873 = vpack.c.b16 %v786, %v785
      %v874 = vpack.c.b16 %v788, %v787
      %v875 = vpack.c.b16 %v790, %v789
      %v876 = vpack.c.b16 %v792, %v791
      %v877 = vpack.c.b16 %v794, %v793
      %v878 = vpack.c.b16 %v796, %v795
      %v879 = vpack.c.b16 %v798, %v797
      %v880 = vpack.c.b16 %v800, %v799
      %v881 = vpack.c.b16 %v802, %v801
      %v882 = vpack.c.b16 %v804, %v803
      %v883 = vpack.c.b16 %v806, %v805
      %v884 = vpack.c.b16 %v808, %v807
      %v885 = vpack.c.b16 %v810, %v809
      %v886 = vpack.c.b16 %v812, %v811
      %v887 = vpack.c.b16 %v814, %v813
      %v888 = vpack.c.b16 %v816, %v815
      %961 = vmatprep.subr.bf16.mxu0 0
      %962 = vmatpush1.bf16.msra.mxu0 %v817
      %963 = vmatprep.subr.bf16.mxu0 0
      %964 = vmatpush1.bf16.msra.mxu0 %v818
      %965 = vmatprep.subr.bf16.mxu0 0
      %966 = vmatpush1.bf16.msra.mxu0 %v819
      %967 = vmatprep.subr.bf16.mxu0 0
      %968 = vmatpush1.bf16.msra.mxu0 %v820
      %969 = vmatprep.subr.bf16.mxu0 0
      %970 = vmatpush1.bf16.msra.mxu0 %v821
      %971 = vmatprep.subr.bf16.mxu0 0
      %972 = vmatpush1.bf16.msra.mxu0 %v822
      %973 = vmatprep.subr.bf16.mxu0 0
      %974 = vmatpush1.bf16.msra.mxu0 %v823
      %975 = vmatprep.subr.bf16.mxu0 0
      %976 = vmatpush1.bf16.msra.mxu0 %v824
      %977 = vmatprep.subr.bf16.mxu0 0
      %978 = vmatpush1.bf16.msra.mxu0 %v825
      %979 = vmatprep.subr.bf16.mxu0 0
      %980 = vmatpush1.bf16.msra.mxu0 %v826
      %981 = vmatprep.subr.bf16.mxu0 0
      %982 = vmatpush1.bf16.msra.mxu0 %v827
      %983 = vmatprep.subr.bf16.mxu0 0
      %984 = vmatpush1.bf16.msra.mxu0 %v828
      %985 = vmatprep.subr.bf16.mxu0 0
      %986 = vmatpush1.bf16.msra.mxu0 %v829
      %987 = vmatprep.subr.bf16.mxu0 0
      %988 = vmatpush1.bf16.msra.mxu0 %v830
      %989 = vmatprep.subr.bf16.mxu0 0
      %990 = vmatpush1.bf16.msra.mxu0 %v831
      %991 = vmatprep.subr.bf16.mxu0 0
      %992 = vmatpush1.bf16.msra.mxu0 %v832
      %993 = vmatprep.mubr.bf16.mxu0 %v494
      %994 = vmatmul.mubr.bf16.gmra.mrb[0].mxu0 %v486
      %v995 = vpop.f32.mrb[0].mxu0
      %v996 = vadd.f32 %v474, %v995
      %v997 = vpop.f32.mrb[0].mxu0
      %v998 = vpop.f32.mrb[0].mxu0
      %v999 = vpop.f32.mrb[0].mxu0
      %1000 = vdwg.mxu0
      %1001 = vmatprep.subr.bf16.mxu0 0
      %1002 = vmatpush1.bf16.msra.mxu0 %v833
      %1003 = vmatprep.subr.bf16.mxu0 0
      %1004 = vmatpush1.bf16.msra.mxu0 %v834
      %1005 = vmatprep.subr.bf16.mxu0 0
      %1006 = vmatpush1.bf16.msra.mxu0 %v835
      %1007 = vmatprep.subr.bf16.mxu0 0
      %1008 = vmatpush1.bf16.msra.mxu0 %v836
      %1009 = vmatprep.subr.bf16.mxu0 0
      %1010 = vmatpush1.bf16.msra.mxu0 %v837
      %1011 = vmatprep.subr.bf16.mxu0 0
      %1012 = vmatpush1.bf16.msra.mxu0 %v838
      %1013 = vmatprep.subr.bf16.mxu0 0
      %1014 = vmatpush1.bf16.msra.mxu0 %v839
      %1015 = vmatprep.subr.bf16.mxu0 0
      %1016 = vmatpush1.bf16.msra.mxu0 %v840
      %1017 = vmatprep.subr.bf16.mxu0 0
      %1018 = vmatpush1.bf16.msra.mxu0 %v841
      %1019 = vmatprep.subr.bf16.mxu0 0
      %1020 = vmatpush1.bf16.msra.mxu0 %v842
      %1021 = vmatprep.subr.bf16.mxu0 0
      %1022 = vmatpush1.bf16.msra.mxu0 %v843
      %1023 = vmatprep.subr.bf16.mxu0 0
      %1024 = vmatpush1.bf16.msra.mxu0 %v844
      %1025 = vmatprep.subr.bf16.mxu0 0
      %1026 = vmatpush1.bf16.msra.mxu0 %v845
      %1027 = vmatprep.subr.bf16.mxu0 0
      %1028 = vmatpush1.bf16.msra.mxu0 %v846
      %1029 = vmatprep.subr.bf16.mxu0 0
      %1030 = vmatpush1.bf16.msra.mxu0 %v847
      %1031 = vmatprep.subr.bf16.mxu0 0
      %1032 = vmatpush1.bf16.msra.mxu0 %v848
      %1033 = vmatprep.mubr.bf16.mxu0 %v495
      %1034 = vmatmul.mubr.bf16.gmra.mrb[0].mxu0 %v493
      %v1035 = vpop.f32.mrb[0].mxu0
      %v1036 = vadd.f32 %v996, %v1035
      %v1037 = vpop.f32.mrb[0].mxu0
      %v1038 = vpop.f32.mrb[0].mxu0
      %v1039 = vpop.f32.mrb[0].mxu0
      %1040 = vdwg.mxu0
      %1041 = vmatprep.subr.bf16.mxu0 0
      %1042 = vmatpush1.bf16.msra.mxu0 %v849
      %1043 = vmatprep.subr.bf16.mxu0 0
      %1044 = vmatpush1.bf16.msra.mxu0 %v850
      %1045 = vmatprep.subr.bf16.mxu0 0
      %1046 = vmatpush1.bf16.msra.mxu0 %v851
      %1047 = vmatprep.subr.bf16.mxu0 0
      %1048 = vmatpush1.bf16.msra.mxu0 %v852
      %1049 = vmatprep.subr.bf16.mxu0 0
      %1050 = vmatpush1.bf16.msra.mxu0 %v853
      %1051 = vmatprep.subr.bf16.mxu0 0
      %1052 = vmatpush1.bf16.msra.mxu0 %v854
      %1053 = vmatprep.subr.bf16.mxu0 0
      %1054 = vmatpush1.bf16.msra.mxu0 %v855
      %1055 = vmatprep.subr.bf16.mxu0 0
      %1056 = vmatpush1.bf16.msra.mxu0 %v856
      %1057 = vmatprep.subr.bf16.mxu0 0
      %1058 = vmatpush1.bf16.msra.mxu0 %v857
      %1059 = vmatprep.subr.bf16.mxu0 0
      %1060 = vmatpush1.bf16.msra.mxu0 %v858
      %1061 = vmatprep.subr.bf16.mxu0 0
      %1062 = vmatpush1.bf16.msra.mxu0 %v859
      %1063 = vmatprep.subr.bf16.mxu0 0
      %1064 = vmatpush1.bf16.msra.mxu0 %v860
      %1065 = vmatprep.subr.bf16.mxu0 0
      %1066 = vmatpush1.bf16.msra.mxu0 %v861
      %1067 = vmatprep.subr.bf16.mxu0 0
      %1068 = vmatpush1.bf16.msra.mxu0 %v862
      %1069 = vmatprep.subr.bf16.mxu0 0
      %1070 = vmatpush1.bf16.msra.mxu0 %v863
      %1071 = vmatprep.subr.bf16.mxu0 0
      %1072 = vmatpush1.bf16.msra.mxu0 %v864
      %1073 = vmatprep.mubr.bf16.mxu0 %v511
      %1074 = vmatmul.mubr.bf16.gmra.mrb[0].mxu0 %v503
      %v1075 = vpop.f32.mrb[0].mxu0
      %v1076 = vadd.f32 %v1036, %v1075
      %v1077 = vpop.f32.mrb[0].mxu0
      %v1078 = vpop.f32.mrb[0].mxu0
      %v1079 = vpop.f32.mrb[0].mxu0
      %1080 = vdwg.mxu0
      %1081 = vmatprep.subr.bf16.mxu0 0
      %1082 = vmatpush1.bf16.msra.mxu0 %v865
      %1083 = vmatprep.subr.bf16.mxu0 0
      %1084 = vmatpush1.bf16.msra.mxu0 %v866
      %1085 = vmatprep.subr.bf16.mxu0 0
      %1086 = vmatpush1.bf16.msra.mxu0 %v867
      %1087 = vmatprep.subr.bf16.mxu0 0
      %1088 = vmatpush1.bf16.msra.mxu0 %v868
      %1089 = vmatprep.subr.bf16.mxu0 0
      %1090 = vmatpush1.bf16.msra.mxu0 %v869
      %1091 = vmatprep.subr.bf16.mxu0 0
      %1092 = vmatpush1.bf16.msra.mxu0 %v870
      %1093 = vmatprep.subr.bf16.mxu0 0
      %1094 = vmatpush1.bf16.msra.mxu0 %v871
      %1095 = vmatprep.subr.bf16.mxu0 0
      %1096 = vmatpush1.bf16.msra.mxu0 %v872
      %1097 = vmatprep.subr.bf16.mxu0 0
      %1098 = vmatpush1.bf16.msra.mxu0 %v873
      %1099 = vmatprep.subr.bf16.mxu0 0
      %1100 = vmatpush1.bf16.msra.mxu0 %v874
      %1101 = vmatprep.subr.bf16.mxu0 0
      %1102 = vmatpush1.bf16.msra.mxu0 %v875
      %1103 = vmatprep.subr.bf16.mxu0 0
      %1104 = vmatpush1.bf16.msra.mxu0 %v876
      %1105 = vmatprep.subr.bf16.mxu0 0
      %1106 = vmatpush1.bf16.msra.mxu0 %v877
      %1107 = vmatprep.subr.bf16.mxu0 0
      %1108 = vmatpush1.bf16.msra.mxu0 %v878
      %1109 = vmatprep.subr.bf16.mxu0 0
      %1110 = vmatpush1.bf16.msra.mxu0 %v879
      %1111 = vmatprep.subr.bf16.mxu0 0
      %1112 = vmatpush1.bf16.msra.mxu0 %v880
      %1113 = vmatprep.mubr.bf16.mxu0 %v512
      %1114 = vmatmul.mubr.bf16.gmra.mrb[0].mxu0 %v510
      %v1115 = vpop.f32.mrb[0].mxu0
      %v1116 = vadd.f32 %v1076, %v1115
      %v1117 = vpop.f32.mrb[0].mxu0
      %v1118 = vpop.f32.mrb[0].mxu0
      %v1119 = vpop.f32.mrb[0].mxu0
      %1120 = vdwg.mxu0
      %1121 = vmatprep.subr.bf16.mxu0 0
      %1122 = vmatpush1.bf16.msra.mxu0 %v881
      %1123 = vmatprep.subr.bf16.mxu0 0
      %1124 = vmatpush1.bf16.msra.mxu0 %v882
      %1125 = vmatprep.subr.bf16.mxu0 0
      %1126 = vmatpush1.bf16.msra.mxu0 %v883
      %1127 = vmatprep.subr.bf16.mxu0 0
      %1128 = vmatpush1.bf16.msra.mxu0 %v884
      %1129 = vmatprep.subr.bf16.mxu0 0
      %1130 = vmatpush1.bf16.msra.mxu0 %v885
      %1131 = vmatprep.subr.bf16.mxu0 0
      %1132 = vmatpush1.bf16.msra.mxu0 %v886
      %1133 = vmatprep.subr.bf16.mxu0 0
      %1134 = vmatpush1.bf16.msra.mxu0 %v887
      %1135 = vmatprep.subr.bf16.mxu0 0
      %1136 = vmatpush1.bf16.msra.mxu0 %v888
      %1137 = vmatprep.subr.bf16.mxu0 0
      %1138 = vmatpush1.bf16.msra.mxu0 0
      %1139 = vmatprep.subr.bf16.mxu0 0
      %1140 = vmatpush1.bf16.msra.mxu0 0
      %1141 = vmatprep.subr.bf16.mxu0 0
      %1142 = vmatpush1.bf16.msra.mxu0 0
      %1143 = vmatprep.subr.bf16.mxu0 0
      %1144 = vmatpush1.bf16.msra.mxu0 0
      %1145 = vmatprep.subr.bf16.mxu0 0
      %1146 = vmatpush1.bf16.msra.mxu0 0
      %1147 = vmatprep.subr.bf16.mxu0 0
      %1148 = vmatpush1.bf16.msra.mxu0 0
      %1149 = vmatprep.subr.bf16.mxu0 0
      %1150 = vmatpush1.bf16.msra.mxu0 0
      %1151 = vmatprep.subr.bf16.mxu0 0
      %1152 = vmatpush1.bf16.msra.mxu0 0
      %1153 = vmatprep.mubr.bf16.mxu0 0
      %1154 = vmatmul.mubr.bf16.gmra.mrb[0].mxu0 %v519
      %v1155 = vpop.f32.mrb[0].mxu0
      %v1156 = vadd.f32 %v1116, %v1155
      %v1157 = vpop.f32.mrb[0].mxu0
      %v1158 = vpop.f32.mrb[0].mxu0
      %v1159 = vpop.f32.mrb[0].mxu0
      %1160 = vdwg.mxu0
      %vm1161 = vcmask 1043456
      %v1162 = vsel %vm1161, %v1156, 0.0
      %v1163 = vrot.slane %v1162, 4
      %v1164 = vadd.f32 %v1162, %v1163
      %v1165 = vrot.slane %v1164, 2
      %v1166 = vadd.f32 %v1164, %v1165
      %v1167 = vrot.slane %v1166, 1
      %v1168 = vadd.f32 %v1166, %v1167
      %v1169 = vrcp.pop 4.0
      %v1170 = vmul.f32 %v1168, %v1169
      %v1171 = vld [vmem:[%s4] sm:$0xff]
      %v1172 = vld [vmem:[%s4 + $0x8] sm:$0xff]
      %v1173 = vld [vmem:[%s4 + $0x10] sm:$0xff]
      %v1174 = vld [vmem:[%s4 + $0x18] sm:$0xff]
      %v1175 = vld [vmem:[%s4 + $0x20] sm:$0xff]
      %v1176 = vld [vmem:[%s4 + $0x28] sm:$0xff]
      %v1177 = vld [vmem:[%s4 + $0x30] sm:$0xff]
      %v1178 = vld [vmem:[%s4 + $0x38] sm:$0xff]
      %v1179 = vld [vmem:[%s4 + $0x40] sm:$0xff]
      %v1180 = vld [vmem:[%s4 + $0x48] sm:$0xff]
      %v1181 = vld [vmem:[%s4 + $0x50] sm:$0xff]
      %v1182 = vld [vmem:[%s4 + $0x58] sm:$0xff]
      %v1183 = vld [vmem:[%s4 + $0x60] sm:$0xff]
      %v1184 = vld [vmem:[%s4 + $0x68] sm:$0xff]
      %v1185 = vld [vmem:[%s4 + $0x70] sm:$0xff]
      %v1186 = vld [vmem:[%s4 + $0x78] sm:$0xff]
      %1187 = vmatprep.subr.mxu0 0.0
      %1188 = vmatpush1.msra.mxu0 %v1171
      %1189 = vmatprep.subr.mxu0 0.0
      %1190 = vmatpush1.msra.mxu0 %v1172
      %1191 = vmatprep.subr.mxu0 0.0
      %1192 = vmatpush1.msra.mxu0 %v1173
      %1193 = vmatprep.subr.mxu0 0.0
      %1194 = vmatpush1.msra.mxu0 %v1174
      %1195 = vmatprep.subr.mxu0 0.0
      %1196 = vmatpush1.msra.mxu0 %v1175
      %1197 = vmatprep.subr.mxu0 0.0
      %1198 = vmatpush1.msra.mxu0 %v1176
      %1199 = vmatprep.subr.mxu0 0.0
      %1200 = vmatpush1.msra.mxu0 %v1177
      %1201 = vmatprep.subr.mxu0 0.0
      %1202 = vmatpush1.msra.mxu0 %v1178
      %1203 = vmatprep.subr.mxu0 0.0
      %1204 = vmatpush1.msra.mxu0 %v1179
      %1205 = vmatprep.subr.mxu0 0.0
      %1206 = vmatpush1.msra.mxu0 %v1180
      %1207 = vmatprep.subr.mxu0 0.0
      %1208 = vmatpush1.msra.mxu0 %v1181
      %1209 = vmatprep.subr.mxu0 0.0
      %1210 = vmatpush1.msra.mxu0 %v1182
      %1211 = vmatprep.subr.mxu0 0.0
      %1212 = vmatpush1.msra.mxu0 %v1183
      %1213 = vmatprep.subr.mxu0 0.0
      %1214 = vmatpush1.msra.mxu0 %v1184
      %1215 = vmatprep.subr.mxu0 0.0
      %1216 = vmatpush1.msra.mxu0 %v1185
      %1217 = vmatprep.subr.mxu0 0.0
      %1218 = vmatpush1.msra.mxu0 %v1186
      %1219 = vmatprep.subr.mxu0 0.0
      %1220 = vmatpush1.msra.mxu0 0.0
      %1221 = vmatprep.subr.mxu0 0.0
      %1222 = vmatpush1.msra.mxu0 0.0
      %1223 = vmatprep.subr.mxu0 0.0
      %1224 = vmatpush1.msra.mxu0 0.0
      %1225 = vmatprep.subr.mxu0 0.0
      %1226 = vmatpush1.msra.mxu0 0.0
      %1227 = vmatprep.subr.mxu0 0.0
      %1228 = vmatpush1.msra.mxu0 0.0
      %1229 = vmatprep.subr.mxu0 0.0
      %1230 = vmatpush1.msra.mxu0 0.0
      %1231 = vmatprep.subr.mxu0 0.0
      %1232 = vmatpush1.msra.mxu0 0.0
      %1233 = vmatprep.subr.mxu0 0.0
      %1234 = vmatpush1.msra.mxu0 0.0
      %1235 = vmatprep.subr.mxu0 0.0
      %1236 = vmatpush1.msra.mxu0 0.0
      %1237 = vmatprep.subr.mxu0 0.0
      %1238 = vmatpush1.msra.mxu0 0.0
      %1239 = vmatprep.subr.mxu0 0.0
      %1240 = vmatpush1.msra.mxu0 0.0
      %1241 = vmatprep.subr.mxu0 0.0
      %1242 = vmatpush1.msra.mxu0 0.0
      %1243 = vmatprep.subr.mxu0 0.0
      %1244 = vmatpush1.msra.mxu0 0.0
      %1245 = vmatprep.subr.mxu0 0.0
      %1246 = vmatpush1.msra.mxu0 0.0
      %1247 = vmatprep.subr.mxu0 0.0
      %1248 = vmatpush1.msra.mxu0 0.0
      %1249 = vmatprep.subr.mxu0 0.0
      %1250 = vmatpush1.msra.mxu0 0.0
      %1251 = vmatprep.mubr.f32.mxu0 0.0
      %1252 = vmatmul.mubr.f32.gmra.mrb[0].mxu0 %v1170
      %v1253 = vpop.f32.mrb[0].mxu0
      %v1254 = vadd.f32 0.0, %v1253
      %v1255 = vpop.f32.mrb[0].mxu0
      %1256 = vdwg.mxu0
      %v1257 = vld [vmem:[%s6] sm:$0x1]
      %vm1258 = vcmp.ge.f32.partialorder %v1254, 0.0
      %v1259 = vmul.f32 %v1257, %v1254
      %v1260 = vsel %vm1258, %v1254, %v1259
      %v1261 = vld [vmem:[%s5] sm:$0xff]
      %v1262 = vld [vmem:[%s5 + $0x8] sm:$0xff]
      %vm1263 = vcmask 130048
      %v1265 = vsel %vm1263, %v1260, 0
      %1267 = vmatprep.subr.mxu0 0.0
      %1268 = vmatpush1.msra.mxu0 %v1261
      %1269 = vmatprep.subr.mxu0 0.0
      %1270 = vmatpush1.msra.mxu0 %v1262
      %1271 = vmatprep.subr.mxu0 0.0
      %1272 = vmatpush1.msra.mxu0 0.0
      %1273 = vmatprep.subr.mxu0 0.0
      %1274 = vmatpush1.msra.mxu0 0.0
      %1275 = vmatprep.subr.mxu0 0.0
      %1276 = vmatpush1.msra.mxu0 0.0
      %1277 = vmatprep.subr.mxu0 0.0
      %1278 = vmatpush1.msra.mxu0 0.0
      %1279 = vmatprep.subr.mxu0 0.0
      %1280 = vmatpush1.msra.mxu0 0.0
      %1281 = vmatprep.subr.mxu0 0.0
      %1282 = vmatpush1.msra.mxu0 0.0
      %1283 = vmatprep.subr.mxu0 0.0
      %1284 = vmatpush1.msra.mxu0 0.0
      %1285 = vmatprep.subr.mxu0 0.0
      %1286 = vmatpush1.msra.mxu0 0.0
      %1287 = vmatprep.subr.mxu0 0.0
      %1288 = vmatpush1.msra.mxu0 0.0
      %1289 = vmatprep.subr.mxu0 0.0
      %1290 = vmatpush1.msra.mxu0 0.0
      %1291 = vmatprep.subr.mxu0 0.0
      %1292 = vmatpush1.msra.mxu0 0.0
      %1293 = vmatprep.subr.mxu0 0.0
      %1294 = vmatpush1.msra.mxu0 0.0
      %1295 = vmatprep.subr.mxu0 0.0
      %1296 = vmatpush1.msra.mxu0 0.0
      %1297 = vmatprep.subr.mxu0 0.0
      %1298 = vmatpush1.msra.mxu0 0.0
      %1299 = vmatprep.subr.mxu0 0.0
      %1300 = vmatpush1.msra.mxu0 0.0
      %1301 = vmatprep.subr.mxu0 0.0
      %1302 = vmatpush1.msra.mxu0 0.0
      %1303 = vmatprep.subr.mxu0 0.0
      %1304 = vmatpush1.msra.mxu0 0.0
      %1305 = vmatprep.subr.mxu0 0.0
      %1306 = vmatpush1.msra.mxu0 0.0
      %1307 = vmatprep.subr.mxu0 0.0
      %1308 = vmatpush1.msra.mxu0 0.0
      %1309 = vmatprep.subr.mxu0 0.0
      %1310 = vmatpush1.msra.mxu0 0.0
      %1311 = vmatprep.subr.mxu0 0.0
      %1312 = vmatpush1.msra.mxu0 0.0
      %1313 = vmatprep.subr.mxu0 0.0
      %1314 = vmatpush1.msra.mxu0 0.0
      %1315 = vmatprep.subr.mxu0 0.0
      %1316 = vmatpush1.msra.mxu0 0.0
      %1317 = vmatprep.subr.mxu0 0.0
      %1318 = vmatpush1.msra.mxu0 0.0
      %1319 = vmatprep.subr.mxu0 0.0
      %1320 = vmatpush1.msra.mxu0 0.0
      %1321 = vmatprep.subr.mxu0 0.0
      %1322 = vmatpush1.msra.mxu0 0.0
      %1323 = vmatprep.subr.mxu0 0.0
      %1324 = vmatpush1.msra.mxu0 0.0
      %1325 = vmatprep.subr.mxu0 0.0
      %1326 = vmatpush1.msra.mxu0 0.0
      %1327 = vmatprep.subr.mxu0 0.0
      %1328 = vmatpush1.msra.mxu0 0.0
      %1329 = vmatprep.subr.mxu0 0.0
      %1330 = vmatpush1.msra.mxu0 0.0
      %1331 = vmatprep.mubr.f32.mxu0 0.0
      %1332 = vmatmul.mubr.f32.gmra.mrb[0].mxu0 %v1265
      %v1333 = vpop.f32.mrb[0].mxu0
      %v1334 = vadd.f32 0.0, %v1333
      %v1335 = vpop.f32.mrb[0].mxu0
      %1336 = vdwg.mxu0
      %v1337 = vxor.u32 %v1334, 2147483648
      %v1338 = vmul.f32 %v1337, 1.442695
      %v1339 = vpow.pop %v1338
      %v1340 = vadd.f32 %v1339, 1.0
      %v1341 = vrcp.pop %v1340
      %v1342 = vmul.f32 1.0, %v1341
      %v1343 = vlaneseq
      %v1344 = vshrl.u32 %v1343, 7
      %v1345 = vsub.s32 0, %v1344
      %v1346 = vrot.slane %v1342, %v1345
      %v1347 = vmul.f32 %v1156, %v1346
      %v1348 = vld [vmem:[%s316] sm:$0xf]
      %v1349 = vadd.f32 %v1347, %v1348
      %v1350 = vld [vmem:[%s7] sm:$0x1]
      %vm1351 = vcmp.ge.f32.partialorder %v1349, 0.0
      %v1353 = vlaneseq
      %v1354 = vshrl.u32 %v1353, 7
      %v1355 = vsub.s32 0, %v1354
      %v1356 = vrot.slane %v1350, %v1355
      %v1358 = vmul.f32 %v1356, %v1349
      %v1359 = vsel %vm1351, %v1349, %v1358
      %1360 = vst [vmem:[%s320] sm:$0xf] %v1359
      %p1361 = scmp.lt.s32.totalorder %s19, 1
      %s1362 = scalar_select %p1361, %s19, 1
      %s1363 = smul.addr %s1362, 4
      %s1364 = scalar_lea.vmem %s8, %s1363
      // Predicated region
      $region53: #{context_net.15} parent=51 // pred_check
        %p1365 = pneg %p215
      $region54: #{context_net.15} parent=51 // pred_check_branch
        %1367 = sbr.rel (%p1365) target = $region56
      $region55: #{context_net.15} parent=51 // pred_region
        _
      $region56: #{context_net.15} parent=51 // pred_fallthru
        _
    $region52: #{context_net.15} parent=5 // pred_fallthru
      _
    %p1368 = scmp.le.s32.totalorder 2, %s14
    // Predicated region
    $region57: #{context_net.15} parent=5 // pred_check
      %p1369 = pneg %p1368
    $region58: #{context_net.15} parent=5 // pred_check_branch
      %1371 = sbr.rel (%p1369) target = $region60
    $region59: #{context_net.15} parent=5 // pred_region
      %s1372 = ssub.s32 %s14, 2
      // Predicated region
      $region61: #{context_net.15} parent=59 // pred_check
        %p1373 = pneg %p221
      $region62: #{context_net.15} parent=59 // pred_check_branch
        %1375 = sbr.rel (%p1373) target = $region64
      $region63: #{context_net.15} parent=59 // pred_region
        %p1376 = scmp.lt.s32.totalorder %s20, 1
        %s1377 = scalar_select %p1376, %s20, 1
        %s1378 = smul.addr %s1377, 4
        %s1379 = scalar_lea.vmem %s8, %s1378
      $region64: #{context_net.15} parent=59 // pred_fallthru
        _
    $region60: #{context_net.15} parent=5 // pred_fallthru
      _
  $region6: #{context_net.15} parent=0 // loop_footer
    %s18 = sadd.s32 1, %s14
  $region7: #{context_net.15} parent=0 // loop_footer_branch
    %13 = sbr.rel target = $region3
  $region8: #{context_net.15} parent=0 // loop_exit
    _

</llo_original>
